<compile_context>
chip_gen: v6e
topology: v6e:2x2x1
jax: 0.10.0
libtpu: 0.0.40
codegen_flags: <defaults>
</compile_context>

<pallas_src>
import functools

import jax
import jax.numpy as jnp
from jax import lax
from jax.experimental import pallas as pl
from jax.experimental.pallas import tpu as pltpu

F32 = jnp.float32
GE_WIDTH = 0.5        # TODO(synk): GaussianExpansion source not given; standard MEGNet width assumed.
GE_CENTERS = 100      # logical number of Gaussian centers
GE_CENTERS_PAD = 128  # padded to a full 128-lane vreg (padded lanes are exactly 0)
VOCAB = 100           # nn.Embedding(num_embeddings=100, ...)
VOCAB_PAD = 128       # padded rows are all-zero and never indexed

_COMPILER_PARAMS = pltpu.CompilerParams(vmem_limit_bytes=32 * 1024 * 1024)

_BLOCK_PARAM_ORDER = (
    "e_w1_xi", "e_w1_xj", "e_w1_ea", "e_w1_u", "e_b1", "e_w2", "e_b2",
    "v_w1_x", "v_w1_agg", "v_w1_u", "v_b1", "v_w2", "v_b2",
    "u_w1_mv", "u_w1_me", "u_w1_u", "u_b1", "u_w2", "u_b2",
)
_S2S_PARAM_ORDER = ("w_ih_q", "w_ih_r", "w_hh", "b")
_HEAD_PARAM_ORDER = ("w1_qn", "w1_rn", "w1_qe", "w1_re", "w1_u",
                     "b1", "w2", "b2", "w3", "b3")


def _dot(a, b):
    return jnp.dot(a, b, preferred_element_type=F32)


def _relu(v):
    return jnp.maximum(v, 0.0)


# ---------------------------------------------------------------------------
# In-kernel building blocks (all operate on values already in vregs)
# ---------------------------------------------------------------------------
def _megnet_block(x, ea, u, oh_src, oh_dst, oh_dst_t, oh_nb, oh_nb_t,
                  oh_eb, oh_eb_t, inv_cnt_n, inv_cnt_v, inv_cnt_e, p):
    # TODO(synk): MEGNetBlock source not provided; standard edge->node->state
    # updates with mean aggregation and ReLU assumed.
    (we_xi, we_xj, we_ea, we_u, be1, we2, be2,
     wv_x, wv_agg, wv_u, bv1, wv2, bv2,
     wu_mv, wu_me, wu_u, bu1, wu2, bu2) = p

    # ---- edge update: phi_e(concat(x_i, x_j, ea, u_e)) via partial dots ----
    x_i = _dot(oh_src, x)                                        # x[src]  [E,Fn]
    x_j = _dot(oh_dst, x)                                        # x[dst]  [E,Fn]
    u_e = _dot(oh_eb, u)                                         # u[batch[src]]
    h = _relu(_dot(x_i, we_xi) + _dot(x_j, we_xj) + _dot(ea, we_ea) +
              _dot(u_e, we_u) + be1)
    e_new = _relu(_dot(h, we2) + be2)                            # [E,H]

    # ---- node update: scatter-mean of e_new onto dst, then phi_v ----------
    agg_e = _dot(oh_dst_t, e_new) * inv_cnt_n                    # [N,H]
    u_n = _dot(oh_nb, u)                                         # [N,Fs]
    h = _relu(_dot(x, wv_x) + _dot(agg_e, wv_agg) + _dot(u_n, wv_u) + bv1)
    v_new = _relu(_dot(h, wv2) + bv2)                            # [N,H]

    # ---- state update: per-graph means, then phi_u -------------------------
    mean_v = _dot(oh_nb_t, v_new) * inv_cnt_v                    # [B,H]
    mean_e = _dot(oh_eb_t, e_new) * inv_cnt_e                    # [B,H]
    h = _relu(_dot(mean_v, wu_mv) + _dot(mean_e, wu_me) + _dot(u, wu_u) + bu1)
    u_new = _relu(_dot(h, wu2) + bu2)                            # [B,H]

    return v_new, e_new, u_new


def _set2set(x, oh, oh_t, p, steps):
    # PyG Set2Set, num_layers=1; q_star kept split as (q, r) so the LSTM input
    # projection uses row-split W_ih (no concat needed).
    wih_q, wih_r, whh, b = p
    rws, hdim = x.shape
    bsz = oh.shape[1]
    h = jnp.zeros((bsz, hdim), F32)
    c = jnp.zeros((bsz, hdim), F32)
    q = jnp.zeros((bsz, hdim), F32)
    r = jnp.zeros((bsz, hdim), F32)
    for _ in range(steps):                                       # fixed 3 steps
        gates = _dot(q, wih_q) + _dot(r, wih_r) + _dot(h, whh) + b   # [B,4H]
        i_g = jax.nn.sigmoid(gates[:, 0 * hdim:1 * hdim])
        f_g = jax.nn.sigmoid(gates[:, 1 * hdim:2 * hdim])
        g_g = jnp.tanh(gates[:, 2 * hdim:3 * hdim])
        o_g = jax.nn.sigmoid(gates[:, 3 * hdim:4 * hdim])
        c = f_g * c + i_g * g_g
        h = o_g * jnp.tanh(c)
        q = h                                                    # [B,H]
        # attention scores + per-graph softmax (fully in-register)
        q_rows = _dot(oh, q)                                     # [R,H]
        score = jnp.sum(x * q_rows, axis=1, keepdims=True)       # [R,1]
        masked = jnp.where(oh > 0.5, score, -1e30)               # [R,B]
        seg_max = jnp.max(masked, axis=0, keepdims=True)         # [1,B]
        max_row = jnp.sum(oh * seg_max, axis=1, keepdims=True)   # [R,1]
        ex = jnp.exp(score - max_row)                            # [R,1]
        seg_sum = jnp.sum(oh * ex, axis=0, keepdims=True)        # [1,B]
        den_row = jnp.sum(oh * seg_sum, axis=1, keepdims=True)   # [R,1]
        a = ex / den_row                                         # [R,1]
        r = _dot(oh_t, a * x)                                    # [B,H]
    return q, r


# ---------------------------------------------------------------------------
# The single fused forward kernel
# ---------------------------------------------------------------------------
def _fused_forward_kernel(*refs, steps, inv_width_sq):
    out_ref = refs[-1]
    it = iter(refs[:-1])

    def take(k):
        return [next(it)[...] for _ in range(k)]

    ids, dist, u = take(3)
    src_c, dst_c, dst_r, nb_c, nb_r, eb_c, eb_r = take(7)
    emb, cent = take(2)
    blk1 = take(19)
    blk2 = take(19)
    s2n = take(4)
    s2e = take(4)
    w1_qn, w1_rn, w1_qe, w1_re, w1_u, b1, w2, b2, w3, b3 = take(10)

    n = ids.shape[0]
    e = dist.shape[0]
    b = u.shape[0]
    vocab = emb.shape[0]

    # --- prologue: embedding lookup (in-register one-hot on MXU) + Gaussian
    oh_id = (ids == lax.broadcasted_iota(jnp.int32, (n, vocab), 1)).astype(F32)
    x = _dot(oh_id, emb)                                         # [N,Fn]
    diff = dist - cent
    ea = jnp.exp(-(diff * diff) * inv_width_sq)                  # [E,128] (pad lanes -> 0)

    # --- gather / scatter one-hots: built ONCE, reused by blocks + Set2Set --
    node_iota = lax.broadcasted_iota(jnp.int32, (e, n), 1)
    oh_src = (src_c == node_iota).astype(F32)                            # [E,N]
    oh_dst = (dst_c == node_iota).astype(F32)                            # [E,N]
    oh_nb = (nb_c ==
             lax.broadcasted_iota(jnp.int32, (n, b), 1)).astype(F32)     # [N,B]
    oh_eb = (eb_c ==
             lax.broadcasted_iota(jnp.int32, (e, b), 1)).astype(F32)     # [E,B]
    oh_dst_t = (lax.broadcasted_iota(jnp.int32, (n, e), 0) ==
                dst_r).astype(F32)                                       # [N,E]
    oh_nb_t = (lax.broadcasted_iota(jnp.int32, (b, n), 0) ==
               nb_r).astype(F32)                                         # [B,N]
    oh_eb_t = (lax.broadcasted_iota(jnp.int32, (b, e), 0) ==
               eb_r).astype(F32)                                         # [B,E]

    inv_cnt_n = 1.0 / jnp.maximum(jnp.sum(oh_dst_t, axis=1, keepdims=True), 1.0)
    inv_cnt_v = 1.0 / jnp.maximum(jnp.sum(oh_nb_t, axis=1, keepdims=True), 1.0)
    inv_cnt_e = 1.0 / jnp.maximum(jnp.sum(oh_eb_t, axis=1, keepdims=True), 1.0)

    # --- two MEGNet blocks (all intermediates stay in vregs/VMEM) -----------
    x, ea, u = _megnet_block(x, ea, u, oh_src, oh_dst, oh_dst_t, oh_nb,
                             oh_nb_t, oh_eb, oh_eb_t,
                             inv_cnt_n, inv_cnt_v, inv_cnt_e, blk1)
    x, ea, u = _megnet_block(x, ea, u, oh_src, oh_dst, oh_dst_t, oh_nb,
                             oh_nb_t, oh_eb, oh_eb_t,
                             inv_cnt_n, inv_cnt_v, inv_cnt_e, blk2)

    # --- Set2Set over nodes and over edges -----------------------------------
    q_n, r_n = _set2set(x, oh_nb, oh_nb_t, s2n, steps)
    q_e, r_e = _set2set(ea, oh_eb, oh_eb_t, s2e, steps)

    # --- dense head: Linear-ReLU-Linear-ReLU-[Dropout]-Linear ---------------
    d = _relu(_dot(q_n, w1_qn) + _dot(r_n, w1_rn) + _dot(q_e, w1_qe) +
              _dot(r_e, w1_re) + _dot(u, w1_u) + b1)
    d = _relu(_dot(d, w2) + b2)
    # Dropout(0.2) is identity in eval mode (deterministic inference).
    out_ref[...] = _dot(d, w3) + b3


# ---------------------------------------------------------------------------
# Wrapper
# ---------------------------------------------------------------------------
def megnet_forward_fn(params, ids_col, dist_col, state, idx,
                      processing_steps=3):
    n_graphs = state.shape[0]
    flat = [
        ids_col, dist_col, state,
        idx["src_col"], idx["dst_col"], idx["dst_row"],
        idx["nb_col"], idx["nb_row"], idx["eb_col"], idx["eb_row"],
        params["embedding"], params["ge_centers"],
        *[params["block1"][k] for k in _BLOCK_PARAM_ORDER],
        *[params["block2"][k] for k in _BLOCK_PARAM_ORDER],
        *[params["s2s_nodes"][k] for k in _S2S_PARAM_ORDER],
        *[params["s2s_edges"][k] for k in _S2S_PARAM_ORDER],
        *[params["head"][k] for k in _HEAD_PARAM_ORDER],
    ]
    return pl.pallas_call(
        functools.partial(_fused_forward_kernel, steps=processing_steps,
                          inv_width_sq=1.0 / (GE_WIDTH * GE_WIDTH)),
        out_shape=jax.ShapeDtypeStruct((n_graphs, 1), F32),
        compiler_params=_COMPILER_PARAMS,
    )(*flat)


megnet_forward = jax.jit(megnet_forward_fn,
                         static_argnames=("processing_steps",))


# ---------------------------------------------------------------------------
# Parameter init (deterministic synthetic weights, row-split to match the
# "concat then Linear" semantics of the reference)
# ---------------------------------------------------------------------------
def _init_linear(key, fan_in, fan_out):
    kw, kb = jax.random.split(key)
    lim = (6.0 / (fan_in + fan_out)) ** 0.5
    w = jax.random.uniform(kw, (fan_in, fan_out), F32, -lim, lim)
    b = jax.random.uniform(kb, (fan_out,), F32, -lim, lim)
    return w, b.reshape(1, fan_out)


def _init_block(key, fn, fe, fs, hidden, fe_pad=None):
    ke, kv, ku = jax.random.split(key, 3)
    ke1, ke2 = jax.random.split(ke)
    kv1, kv2 = jax.random.split(kv)
    ku1, ku2 = jax.random.split(ku)

    w, e_b1 = _init_linear(ke1, 2 * fn + fe + fs, 2 * hidden)
    e_w1_xi, e_w1_xj = w[:fn], w[fn:2 * fn]
    e_w1_ea, e_w1_u = w[2 * fn:2 * fn + fe], w[2 * fn + fe:]
    if fe_pad is not None and fe_pad > fe:
        e_w1_ea = jnp.concatenate(
            [e_w1_ea, jnp.zeros((fe_pad - fe, 2 * hidden), F32)], axis=0)
    e_w2, e_b2 = _init_linear(ke2, 2 * hidden, hidden)

    w, v_b1 = _init_linear(kv1, fn + hidden + fs, 2 * hidden)
    v_w1_x, v_w1_agg, v_w1_u = w[:fn], w[fn:fn + hidden], w[fn + hidden:]
    v_w2, v_b2 = _init_linear(kv2, 2 * hidden, hidden)

    w, u_b1 = _init_linear(ku1, hidden + hidden + fs, 2 * hidden)
    u_w1_mv, u_w1_me, u_w1_u = w[:hidden], w[hidden:2 * hidden], w[2 * hidden:]
    u_w2, u_b2 = _init_linear(ku2, 2 * hidden, hidden)

    return {
        "e_w1_xi": e_w1_xi, "e_w1_xj": e_w1_xj, "e_w1_ea": e_w1_ea,
        "e_w1_u": e_w1_u, "e_b1": e_b1, "e_w2": e_w2, "e_b2": e_b2,
        "v_w1_x": v_w1_x, "v_w1_agg": v_w1_agg, "v_w1_u": v_w1_u,
        "v_b1": v_b1, "v_w2": v_w2, "v_b2": v_b2,
        "u_w1_mv": u_w1_mv, "u_w1_me": u_w1_me, "u_w1_u": u_w1_u,
        "u_b1": u_b1, "u_w2": u_w2, "u_b2": u_b2,
    }


def _init_set2set(key, hidden):
    k1, k2, k3 = jax.random.split(key, 3)
    scale = 1.0 / (hidden ** 0.5)
    w_ih = jax.random.uniform(k1, (2 * hidden, 4 * hidden), F32, -scale, scale)
    w_hh = jax.random.uniform(k2, (hidden, 4 * hidden), F32, -scale, scale)
    b = jax.random.uniform(k3, (4 * hidden,), F32, -scale, scale)
    return {"w_ih_q": w_ih[:hidden], "w_ih_r": w_ih[hidden:],
            "w_hh": w_hh, "b": b.reshape(1, 4 * hidden)}


def init_model(key, n_node_features, n_edge_features, n_state_features,
               hidden=32):
    keys = jax.random.split(key, 8)
    p = {}
    emb = jax.random.normal(keys[0], (VOCAB, n_node_features), F32) * 0.1
    # pad vocab 100 -> 128: padded rows are never indexed, math unchanged
    p["embedding"] = jnp.concatenate(
        [emb, jnp.zeros((VOCAB_PAD - VOCAB, n_node_features), F32)], axis=0)
    p["block1"] = _init_block(keys[1], n_node_features, n_edge_features,
                              n_state_features, hidden,
                              fe_pad=GE_CENTERS_PAD)
    p["block2"] = _init_block(keys[2], hidden, hidden, hidden, hidden)
    p["s2s_nodes"] = _init_set2set(keys[3], hidden)
    p["s2s_edges"] = _init_set2set(keys[4], hidden)
    w1, b1 = _init_linear(keys[5], 5 * hidden, 32)
    w2, b2 = _init_linear(keys[6], 32, 16)
    w3, b3 = _init_linear(keys[7], 16, 1)
    p["head"] = {
        "w1_qn": w1[:hidden], "w1_rn": w1[hidden:2 * hidden],
        "w1_qe": w1[2 * hidden:3 * hidden],
        "w1_re": w1[3 * hidden:4 * hidden],
        "w1_u": w1[4 * hidden:],
        "b1": b1, "w2": w2, "b2": b2, "w3": w3, "b3": b3,
    }
    centers = jnp.linspace(0.0, 5.0, GE_CENTERS)
    pad = jnp.full((GE_CENTERS_PAD - GE_CENTERS,), 1e6, F32)  # -> exp == 0.0
    p["ge_centers"] = jnp.concatenate([centers, pad]).astype(F32).reshape(
        1, GE_CENTERS_PAD)
    return p


def build_index_arrays(edge_index, batch):
    """Static per-graph index bookkeeping, built once outside the jit."""
    src = edge_index[0].astype(jnp.int32)
    dst = edge_index[1].astype(jnp.int32)
    ebatch = batch[src].astype(jnp.int32)
    e = src.shape[0]
    n = batch.shape[0]
    return {
        "src_col": src.reshape(e, 1),
        "dst_col": dst.reshape(e, 1),
        "dst_row": dst.reshape(1, e),
        "nb_col": batch.astype(jnp.int32).reshape(n, 1),
        "nb_row": batch.astype(jnp.int32).reshape(1, n),
        "eb_col": ebatch.reshape(e, 1),
        "eb_row": ebatch.reshape(1, e),
    }


# ---------------------------------------------------------------------------
# Main
# ---------------------------------------------------------------------------
if __name__ == "__main__":
    key = jax.random.PRNGKey(0)
    k_param, k_x, k_d, k_s = jax.random.split(key, 4)

    N_NODE_FEAT, N_EDGE_FEAT, N_STATE_FEAT, HIDDEN = 16, GE_CENTERS, 2, 32
    N_NODES, N_GRAPHS = 16, 2
    nodes_per_graph = N_NODES // N_GRAPHS

    params = init_model(k_param, N_NODE_FEAT, N_EDGE_FEAT, N_STATE_FEAT,
                        HIDDEN)

    # data.x : atomic-number indices [N, 1]
    x_ids = jax.random.randint(k_x, (N_NODES, 1), 0, 100, dtype=jnp.int32)

    # data.edge_index : bidirectional ring within each graph -> [2, 32]
    src_list, dst_list = [], []
    for g in range(N_GRAPHS):
        off = g * nodes_per_graph
        for i in range(nodes_per_graph):
            a, b = off + i, off + (i + 1) % nodes_per_graph
            src_list += [a, b]
            dst_list += [b, a]
    edge_index = jnp.array([src_list, dst_list], dtype=jnp.int32)
    n_edges = edge_index.shape[1]

    # data.edge_attr : distances in [0, 5)
    edge_dist = jax.random.uniform(k_d, (n_edges,), F32, 0.0, 5.0)

    # data.state / data.batch
    state = jax.random.normal(k_s, (N_GRAPHS, N_STATE_FEAT), F32)
    batch = jnp.repeat(jnp.arange(N_GRAPHS, dtype=jnp.int32), nodes_per_graph)

    idx = build_index_arrays(edge_index, batch)
    ids_col = x_ids.reshape(N_NODES, 1)
    dist_col = edge_dist.reshape(n_edges, 1)

    out = megnet_forward(params, ids_col, dist_col, state, idx)
    out = jax.block_until_ready(out)
    assert out.shape == (N_GRAPHS, 1), out.shape
    print("KERNEL_OK")
</pallas_src>

<mosaic_0001>
module attributes {stable_mosaic.version = 11 : i64} {
  func.func @_fused_forward_kernel(%arg0: memref<16x1xi32, #tpu.memory_space<vmem>>, %arg1: memref<32x1xf32, #tpu.memory_space<vmem>>, %arg2: memref<2x2xf32, #tpu.memory_space<vmem>>, %arg3: memref<32x1xi32, #tpu.memory_space<vmem>>, %arg4: memref<32x1xi32, #tpu.memory_space<vmem>>, %arg5: memref<1x32xi32, #tpu.memory_space<vmem>>, %arg6: memref<16x1xi32, #tpu.memory_space<vmem>>, %arg7: memref<1x16xi32, #tpu.memory_space<vmem>>, %arg8: memref<32x1xi32, #tpu.memory_space<vmem>>, %arg9: memref<1x32xi32, #tpu.memory_space<vmem>>, %arg10: memref<128x16xf32, #tpu.memory_space<vmem>>, %arg11: memref<1x128xf32, #tpu.memory_space<vmem>>, %arg12: memref<16x64xf32, #tpu.memory_space<vmem>>, %arg13: memref<16x64xf32, #tpu.memory_space<vmem>>, %arg14: memref<128x64xf32, #tpu.memory_space<vmem>>, %arg15: memref<2x64xf32, #tpu.memory_space<vmem>>, %arg16: memref<1x64xf32, #tpu.memory_space<vmem>>, %arg17: memref<64x32xf32, #tpu.memory_space<vmem>>, %arg18: memref<1x32xf32, #tpu.memory_space<vmem>>, %arg19: memref<16x64xf32, #tpu.memory_space<vmem>>, %arg20: memref<32x64xf32, #tpu.memory_space<vmem>>, %arg21: memref<2x64xf32, #tpu.memory_space<vmem>>, %arg22: memref<1x64xf32, #tpu.memory_space<vmem>>, %arg23: memref<64x32xf32, #tpu.memory_space<vmem>>, %arg24: memref<1x32xf32, #tpu.memory_space<vmem>>, %arg25: memref<32x64xf32, #tpu.memory_space<vmem>>, %arg26: memref<32x64xf32, #tpu.memory_space<vmem>>, %arg27: memref<2x64xf32, #tpu.memory_space<vmem>>, %arg28: memref<1x64xf32, #tpu.memory_space<vmem>>, %arg29: memref<64x32xf32, #tpu.memory_space<vmem>>, %arg30: memref<1x32xf32, #tpu.memory_space<vmem>>, %arg31: memref<32x64xf32, #tpu.memory_space<vmem>>, %arg32: memref<32x64xf32, #tpu.memory_space<vmem>>, %arg33: memref<32x64xf32, #tpu.memory_space<vmem>>, %arg34: memref<32x64xf32, #tpu.memory_space<vmem>>, %arg35: memref<1x64xf32, #tpu.memory_space<vmem>>, %arg36: memref<64x32xf32, #tpu.memory_space<vmem>>, %arg37: memref<1x32xf32, #tpu.memory_space<vmem>>, %arg38: memref<32x64xf32, #tpu.memory_space<vmem>>, %arg39: memref<32x64xf32, #tpu.memory_space<vmem>>, %arg40: memref<32x64xf32, #tpu.memory_space<vmem>>, %arg41: memref<1x64xf32, #tpu.memory_space<vmem>>, %arg42: memref<64x32xf32, #tpu.memory_space<vmem>>, %arg43: memref<1x32xf32, #tpu.memory_space<vmem>>, %arg44: memref<32x64xf32, #tpu.memory_space<vmem>>, %arg45: memref<32x64xf32, #tpu.memory_space<vmem>>, %arg46: memref<32x64xf32, #tpu.memory_space<vmem>>, %arg47: memref<1x64xf32, #tpu.memory_space<vmem>>, %arg48: memref<64x32xf32, #tpu.memory_space<vmem>>, %arg49: memref<1x32xf32, #tpu.memory_space<vmem>>, %arg50: memref<32x128xf32, #tpu.memory_space<vmem>>, %arg51: memref<32x128xf32, #tpu.memory_space<vmem>>, %arg52: memref<32x128xf32, #tpu.memory_space<vmem>>, %arg53: memref<1x128xf32, #tpu.memory_space<vmem>>, %arg54: memref<32x128xf32, #tpu.memory_space<vmem>>, %arg55: memref<32x128xf32, #tpu.memory_space<vmem>>, %arg56: memref<32x128xf32, #tpu.memory_space<vmem>>, %arg57: memref<1x128xf32, #tpu.memory_space<vmem>>, %arg58: memref<32x32xf32, #tpu.memory_space<vmem>>, %arg59: memref<32x32xf32, #tpu.memory_space<vmem>>, %arg60: memref<32x32xf32, #tpu.memory_space<vmem>>, %arg61: memref<32x32xf32, #tpu.memory_space<vmem>>, %arg62: memref<32x32xf32, #tpu.memory_space<vmem>>, %arg63: memref<1x32xf32, #tpu.memory_space<vmem>>, %arg64: memref<32x16xf32, #tpu.memory_space<vmem>>, %arg65: memref<1x16xf32, #tpu.memory_space<vmem>>, %arg66: memref<16x1xf32, #tpu.memory_space<vmem>>, %arg67: memref<1x1xf32, #tpu.memory_space<vmem>>, %arg68: memref<2x1xf32, #tpu.memory_space<vmem>>) attributes {dimension_semantics = [], scalar_prefetch = 0 : i64, scratch_operands = 0 : i64, tpu.core_type = #tpu.core_type<tc>} {
    %c0 = arith.constant 0 : index
    %c0_0 = arith.constant 0 : index
    %0 = vector.load %arg0[%c0, %c0_0] : memref<16x1xi32, #tpu.memory_space<vmem>>, vector<16x1xi32>
    %c0_1 = arith.constant 0 : index
    %c0_2 = arith.constant 0 : index
    %1 = vector.load %arg1[%c0_1, %c0_2] : memref<32x1xf32, #tpu.memory_space<vmem>>, vector<32x1xf32>
    %c0_3 = arith.constant 0 : index
    %c0_4 = arith.constant 0 : index
    %2 = vector.load %arg2[%c0_3, %c0_4] : memref<2x2xf32, #tpu.memory_space<vmem>>, vector<2x2xf32>
    %c0_5 = arith.constant 0 : index
    %c0_6 = arith.constant 0 : index
    %3 = vector.load %arg3[%c0_5, %c0_6] : memref<32x1xi32, #tpu.memory_space<vmem>>, vector<32x1xi32>
    %c0_7 = arith.constant 0 : index
    %c0_8 = arith.constant 0 : index
    %4 = vector.load %arg4[%c0_7, %c0_8] : memref<32x1xi32, #tpu.memory_space<vmem>>, vector<32x1xi32>
    %c0_9 = arith.constant 0 : index
    %c0_10 = arith.constant 0 : index
    %5 = vector.load %arg5[%c0_9, %c0_10] : memref<1x32xi32, #tpu.memory_space<vmem>>, vector<1x32xi32>
    %c0_11 = arith.constant 0 : index
    %c0_12 = arith.constant 0 : index
    %6 = vector.load %arg6[%c0_11, %c0_12] : memref<16x1xi32, #tpu.memory_space<vmem>>, vector<16x1xi32>
    %c0_13 = arith.constant 0 : index
    %c0_14 = arith.constant 0 : index
    %7 = vector.load %arg7[%c0_13, %c0_14] : memref<1x16xi32, #tpu.memory_space<vmem>>, vector<1x16xi32>
    %c0_15 = arith.constant 0 : index
    %c0_16 = arith.constant 0 : index
    %8 = vector.load %arg8[%c0_15, %c0_16] : memref<32x1xi32, #tpu.memory_space<vmem>>, vector<32x1xi32>
    %c0_17 = arith.constant 0 : index
    %c0_18 = arith.constant 0 : index
    %9 = vector.load %arg9[%c0_17, %c0_18] : memref<1x32xi32, #tpu.memory_space<vmem>>, vector<1x32xi32>
    %c0_19 = arith.constant 0 : index
    %c0_20 = arith.constant 0 : index
    %10 = vector.load %arg10[%c0_19, %c0_20] : memref<128x16xf32, #tpu.memory_space<vmem>>, vector<128x16xf32>
    %c0_21 = arith.constant 0 : index
    %c0_22 = arith.constant 0 : index
    %11 = vector.load %arg11[%c0_21, %c0_22] : memref<1x128xf32, #tpu.memory_space<vmem>>, vector<1x128xf32>
    %c0_23 = arith.constant 0 : index
    %c0_24 = arith.constant 0 : index
    %12 = vector.load %arg12[%c0_23, %c0_24] : memref<16x64xf32, #tpu.memory_space<vmem>>, vector<16x64xf32>
    %c0_25 = arith.constant 0 : index
    %c0_26 = arith.constant 0 : index
    %13 = vector.load %arg13[%c0_25, %c0_26] : memref<16x64xf32, #tpu.memory_space<vmem>>, vector<16x64xf32>
    %c0_27 = arith.constant 0 : index
    %c0_28 = arith.constant 0 : index
    %14 = vector.load %arg14[%c0_27, %c0_28] : memref<128x64xf32, #tpu.memory_space<vmem>>, vector<128x64xf32>
    %c0_29 = arith.constant 0 : index
    %c0_30 = arith.constant 0 : index
    %15 = vector.load %arg15[%c0_29, %c0_30] : memref<2x64xf32, #tpu.memory_space<vmem>>, vector<2x64xf32>
    %c0_31 = arith.constant 0 : index
    %c0_32 = arith.constant 0 : index
    %16 = vector.load %arg16[%c0_31, %c0_32] : memref<1x64xf32, #tpu.memory_space<vmem>>, vector<1x64xf32>
    %c0_33 = arith.constant 0 : index
    %c0_34 = arith.constant 0 : index
    %17 = vector.load %arg17[%c0_33, %c0_34] : memref<64x32xf32, #tpu.memory_space<vmem>>, vector<64x32xf32>
    %c0_35 = arith.constant 0 : index
    %c0_36 = arith.constant 0 : index
    %18 = vector.load %arg18[%c0_35, %c0_36] : memref<1x32xf32, #tpu.memory_space<vmem>>, vector<1x32xf32>
    %c0_37 = arith.constant 0 : index
    %c0_38 = arith.constant 0 : index
    %19 = vector.load %arg19[%c0_37, %c0_38] : memref<16x64xf32, #tpu.memory_space<vmem>>, vector<16x64xf32>
    %c0_39 = arith.constant 0 : index
    %c0_40 = arith.constant 0 : index
    %20 = vector.load %arg20[%c0_39, %c0_40] : memref<32x64xf32, #tpu.memory_space<vmem>>, vector<32x64xf32>
    %c0_41 = arith.constant 0 : index
    %c0_42 = arith.constant 0 : index
    %21 = vector.load %arg21[%c0_41, %c0_42] : memref<2x64xf32, #tpu.memory_space<vmem>>, vector<2x64xf32>
    %c0_43 = arith.constant 0 : index
    %c0_44 = arith.constant 0 : index
    %22 = vector.load %arg22[%c0_43, %c0_44] : memref<1x64xf32, #tpu.memory_space<vmem>>, vector<1x64xf32>
    %c0_45 = arith.constant 0 : index
    %c0_46 = arith.constant 0 : index
    %23 = vector.load %arg23[%c0_45, %c0_46] : memref<64x32xf32, #tpu.memory_space<vmem>>, vector<64x32xf32>
    %c0_47 = arith.constant 0 : index
    %c0_48 = arith.constant 0 : index
    %24 = vector.load %arg24[%c0_47, %c0_48] : memref<1x32xf32, #tpu.memory_space<vmem>>, vector<1x32xf32>
    %c0_49 = arith.constant 0 : index
    %c0_50 = arith.constant 0 : index
    %25 = vector.load %arg25[%c0_49, %c0_50] : memref<32x64xf32, #tpu.memory_space<vmem>>, vector<32x64xf32>
    %c0_51 = arith.constant 0 : index
    %c0_52 = arith.constant 0 : index
    %26 = vector.load %arg26[%c0_51, %c0_52] : memref<32x64xf32, #tpu.memory_space<vmem>>, vector<32x64xf32>
    %c0_53 = arith.constant 0 : index
    %c0_54 = arith.constant 0 : index
    %27 = vector.load %arg27[%c0_53, %c0_54] : memref<2x64xf32, #tpu.memory_space<vmem>>, vector<2x64xf32>
    %c0_55 = arith.constant 0 : index
    %c0_56 = arith.constant 0 : index
    %28 = vector.load %arg28[%c0_55, %c0_56] : memref<1x64xf32, #tpu.memory_space<vmem>>, vector<1x64xf32>
    %c0_57 = arith.constant 0 : index
    %c0_58 = arith.constant 0 : index
    %29 = vector.load %arg29[%c0_57, %c0_58] : memref<64x32xf32, #tpu.memory_space<vmem>>, vector<64x32xf32>
    %c0_59 = arith.constant 0 : index
    %c0_60 = arith.constant 0 : index
    %30 = vector.load %arg30[%c0_59, %c0_60] : memref<1x32xf32, #tpu.memory_space<vmem>>, vector<1x32xf32>
    %c0_61 = arith.constant 0 : index
    %c0_62 = arith.constant 0 : index
    %31 = vector.load %arg31[%c0_61, %c0_62] : memref<32x64xf32, #tpu.memory_space<vmem>>, vector<32x64xf32>
    %c0_63 = arith.constant 0 : index
    %c0_64 = arith.constant 0 : index
    %32 = vector.load %arg32[%c0_63, %c0_64] : memref<32x64xf32, #tpu.memory_space<vmem>>, vector<32x64xf32>
    %c0_65 = arith.constant 0 : index
    %c0_66 = arith.constant 0 : index
    %33 = vector.load %arg33[%c0_65, %c0_66] : memref<32x64xf32, #tpu.memory_space<vmem>>, vector<32x64xf32>
    %c0_67 = arith.constant 0 : index
    %c0_68 = arith.constant 0 : index
    %34 = vector.load %arg34[%c0_67, %c0_68] : memref<32x64xf32, #tpu.memory_space<vmem>>, vector<32x64xf32>
    %c0_69 = arith.constant 0 : index
    %c0_70 = arith.constant 0 : index
    %35 = vector.load %arg35[%c0_69, %c0_70] : memref<1x64xf32, #tpu.memory_space<vmem>>, vector<1x64xf32>
    %c0_71 = arith.constant 0 : index
    %c0_72 = arith.constant 0 : index
    %36 = vector.load %arg36[%c0_71, %c0_72] : memref<64x32xf32, #tpu.memory_space<vmem>>, vector<64x32xf32>
    %c0_73 = arith.constant 0 : index
    %c0_74 = arith.constant 0 : index
    %37 = vector.load %arg37[%c0_73, %c0_74] : memref<1x32xf32, #tpu.memory_space<vmem>>, vector<1x32xf32>
    %c0_75 = arith.constant 0 : index
    %c0_76 = arith.constant 0 : index
    %38 = vector.load %arg38[%c0_75, %c0_76] : memref<32x64xf32, #tpu.memory_space<vmem>>, vector<32x64xf32>
    %c0_77 = arith.constant 0 : index
    %c0_78 = arith.constant 0 : index
    %39 = vector.load %arg39[%c0_77, %c0_78] : memref<32x64xf32, #tpu.memory_space<vmem>>, vector<32x64xf32>
    %c0_79 = arith.constant 0 : index
    %c0_80 = arith.constant 0 : index
    %40 = vector.load %arg40[%c0_79, %c0_80] : memref<32x64xf32, #tpu.memory_space<vmem>>, vector<32x64xf32>
    %c0_81 = arith.constant 0 : index
    %c0_82 = arith.constant 0 : index
    %41 = vector.load %arg41[%c0_81, %c0_82] : memref<1x64xf32, #tpu.memory_space<vmem>>, vector<1x64xf32>
    %c0_83 = arith.constant 0 : index
    %c0_84 = arith.constant 0 : index
    %42 = vector.load %arg42[%c0_83, %c0_84] : memref<64x32xf32, #tpu.memory_space<vmem>>, vector<64x32xf32>
    %c0_85 = arith.constant 0 : index
    %c0_86 = arith.constant 0 : index
    %43 = vector.load %arg43[%c0_85, %c0_86] : memref<1x32xf32, #tpu.memory_space<vmem>>, vector<1x32xf32>
    %c0_87 = arith.constant 0 : index
    %c0_88 = arith.constant 0 : index
    %44 = vector.load %arg44[%c0_87, %c0_88] : memref<32x64xf32, #tpu.memory_space<vmem>>, vector<32x64xf32>
    %c0_89 = arith.constant 0 : index
    %c0_90 = arith.constant 0 : index
    %45 = vector.load %arg45[%c0_89, %c0_90] : memref<32x64xf32, #tpu.memory_space<vmem>>, vector<32x64xf32>
    %c0_91 = arith.constant 0 : index
    %c0_92 = arith.constant 0 : index
    %46 = vector.load %arg46[%c0_91, %c0_92] : memref<32x64xf32, #tpu.memory_space<vmem>>, vector<32x64xf32>
    %c0_93 = arith.constant 0 : index
    %c0_94 = arith.constant 0 : index
    %47 = vector.load %arg47[%c0_93, %c0_94] : memref<1x64xf32, #tpu.memory_space<vmem>>, vector<1x64xf32>
    %c0_95 = arith.constant 0 : index
    %c0_96 = arith.constant 0 : index
    %48 = vector.load %arg48[%c0_95, %c0_96] : memref<64x32xf32, #tpu.memory_space<vmem>>, vector<64x32xf32>
    %c0_97 = arith.constant 0 : index
    %c0_98 = arith.constant 0 : index
    %49 = vector.load %arg49[%c0_97, %c0_98] : memref<1x32xf32, #tpu.memory_space<vmem>>, vector<1x32xf32>
    %c0_99 = arith.constant 0 : index
    %c0_100 = arith.constant 0 : index
    %50 = vector.load %arg50[%c0_99, %c0_100] : memref<32x128xf32, #tpu.memory_space<vmem>>, vector<32x128xf32>
    %c0_101 = arith.constant 0 : index
    %c0_102 = arith.constant 0 : index
    %51 = vector.load %arg51[%c0_101, %c0_102] : memref<32x128xf32, #tpu.memory_space<vmem>>, vector<32x128xf32>
    %c0_103 = arith.constant 0 : index
    %c0_104 = arith.constant 0 : index
    %52 = vector.load %arg52[%c0_103, %c0_104] : memref<32x128xf32, #tpu.memory_space<vmem>>, vector<32x128xf32>
    %c0_105 = arith.constant 0 : index
    %c0_106 = arith.constant 0 : index
    %53 = vector.load %arg53[%c0_105, %c0_106] : memref<1x128xf32, #tpu.memory_space<vmem>>, vector<1x128xf32>
    %c0_107 = arith.constant 0 : index
    %c0_108 = arith.constant 0 : index
    %54 = vector.load %arg54[%c0_107, %c0_108] : memref<32x128xf32, #tpu.memory_space<vmem>>, vector<32x128xf32>
    %c0_109 = arith.constant 0 : index
    %c0_110 = arith.constant 0 : index
    %55 = vector.load %arg55[%c0_109, %c0_110] : memref<32x128xf32, #tpu.memory_space<vmem>>, vector<32x128xf32>
    %c0_111 = arith.constant 0 : index
    %c0_112 = arith.constant 0 : index
    %56 = vector.load %arg56[%c0_111, %c0_112] : memref<32x128xf32, #tpu.memory_space<vmem>>, vector<32x128xf32>
    %c0_113 = arith.constant 0 : index
    %c0_114 = arith.constant 0 : index
    %57 = vector.load %arg57[%c0_113, %c0_114] : memref<1x128xf32, #tpu.memory_space<vmem>>, vector<1x128xf32>
    %c0_115 = arith.constant 0 : index
    %c0_116 = arith.constant 0 : index
    %58 = vector.load %arg58[%c0_115, %c0_116] : memref<32x32xf32, #tpu.memory_space<vmem>>, vector<32x32xf32>
    %c0_117 = arith.constant 0 : index
    %c0_118 = arith.constant 0 : index
    %59 = vector.load %arg59[%c0_117, %c0_118] : memref<32x32xf32, #tpu.memory_space<vmem>>, vector<32x32xf32>
    %c0_119 = arith.constant 0 : index
    %c0_120 = arith.constant 0 : index
    %60 = vector.load %arg60[%c0_119, %c0_120] : memref<32x32xf32, #tpu.memory_space<vmem>>, vector<32x32xf32>
    %c0_121 = arith.constant 0 : index
    %c0_122 = arith.constant 0 : index
    %61 = vector.load %arg61[%c0_121, %c0_122] : memref<32x32xf32, #tpu.memory_space<vmem>>, vector<32x32xf32>
    %c0_123 = arith.constant 0 : index
    %c0_124 = arith.constant 0 : index
    %62 = vector.load %arg62[%c0_123, %c0_124] : memref<32x32xf32, #tpu.memory_space<vmem>>, vector<32x32xf32>
    %c0_125 = arith.constant 0 : index
    %c0_126 = arith.constant 0 : index
    %63 = vector.load %arg63[%c0_125, %c0_126] : memref<1x32xf32, #tpu.memory_space<vmem>>, vector<1x32xf32>
    %c0_127 = arith.constant 0 : index
    %c0_128 = arith.constant 0 : index
    %64 = vector.load %arg64[%c0_127, %c0_128] : memref<32x16xf32, #tpu.memory_space<vmem>>, vector<32x16xf32>
    %c0_129 = arith.constant 0 : index
    %c0_130 = arith.constant 0 : index
    %65 = vector.load %arg65[%c0_129, %c0_130] : memref<1x16xf32, #tpu.memory_space<vmem>>, vector<1x16xf32>
    %c0_131 = arith.constant 0 : index
    %c0_132 = arith.constant 0 : index
    %66 = vector.load %arg66[%c0_131, %c0_132] : memref<16x1xf32, #tpu.memory_space<vmem>>, vector<16x1xf32>
    %c0_133 = arith.constant 0 : index
    %c0_134 = arith.constant 0 : index
    %67 = vector.load %arg67[%c0_133, %c0_134] : memref<1x1xf32, #tpu.memory_space<vmem>>, vector<1x1xf32>
    %68 = tpu.iota {dimensions = array<i32: 1>} : vector<16x128xi32>
    %69 = vector.broadcast %0 : vector<16x1xi32> to vector<16x128xi32>
    %70 = arith.cmpi eq, %69, %68 : vector<16x128xi32>
    %71 = arith.extui %70 : vector<16x128xi1> to vector<16x128xi32>
    %72 = arith.sitofp %71 : vector<16x128xi32> to vector<16x128xf32>
    %cst = arith.constant dense<0.000000e+00> : vector<16x16xf32>
    %73 = tpu.matmul %72, %10, %cst {dimension_numbers = #tpu.dot_dimension_numbers<[1], [0], [0], [1], [0, 0, 1, 1], [], []>} : vector<16x128xf32>, vector<128x16xf32>, vector<16x16xf32> -> vector<16x16xf32>
    %74 = vector.broadcast %1 : vector<32x1xf32> to vector<32x128xf32>
    %75 = vector.broadcast %11 : vector<1x128xf32> to vector<32x128xf32>
    %76 = arith.subf %74, %75 : vector<32x128xf32>
    %77 = arith.mulf %76, %76 : vector<32x128xf32>
    %cst_135 = arith.constant 0.000000e+00 : f32
    %78 = vector.broadcast %cst_135 : f32 to vector<32x128xf32>
    %79 = arith.subf %78, %77 : vector<32x128xf32>
    %cst_136 = arith.constant 4.000000e+00 : f32
    %80 = vector.broadcast %cst_136 : f32 to vector<32x128xf32>
    %81 = arith.mulf %79, %80 : vector<32x128xf32>
    %82 = math.exp %81 : vector<32x128xf32>
    %83 = tpu.iota {dimensions = array<i32: 1>} : vector<32x16xi32>
    %84 = vector.broadcast %3 : vector<32x1xi32> to vector<32x16xi32>
    %85 = arith.cmpi eq, %84, %83 : vector<32x16xi32>
    %86 = arith.extui %85 : vector<32x16xi1> to vector<32x16xi32>
    %87 = arith.sitofp %86 : vector<32x16xi32> to vector<32x16xf32>
    %88 = vector.broadcast %4 : vector<32x1xi32> to vector<32x16xi32>
    %89 = arith.cmpi eq, %88, %83 : vector<32x16xi32>
    %90 = arith.extui %89 : vector<32x16xi1> to vector<32x16xi32>
    %91 = arith.sitofp %90 : vector<32x16xi32> to vector<32x16xf32>
    %92 = tpu.iota {dimensions = array<i32: 1>} : vector<16x2xi32>
    %93 = vector.broadcast %6 : vector<16x1xi32> to vector<16x2xi32>
    %94 = arith.cmpi eq, %93, %92 : vector<16x2xi32>
    %95 = arith.extui %94 : vector<16x2xi1> to vector<16x2xi32>
    %96 = arith.sitofp %95 : vector<16x2xi32> to vector<16x2xf32>
    %97 = tpu.iota {dimensions = array<i32: 1>} : vector<32x2xi32>
    %98 = vector.broadcast %8 : vector<32x1xi32> to vector<32x2xi32>
    %99 = arith.cmpi eq, %98, %97 : vector<32x2xi32>
    %100 = arith.extui %99 : vector<32x2xi1> to vector<32x2xi32>
    %101 = arith.sitofp %100 : vector<32x2xi32> to vector<32x2xf32>
    %102 = tpu.iota {dimensions = array<i32: 0>} : vector<16x32xi32>
    %103 = vector.broadcast %5 : vector<1x32xi32> to vector<16x32xi32>
    %104 = arith.cmpi eq, %102, %103 : vector<16x32xi32>
    %105 = arith.extui %104 : vector<16x32xi1> to vector<16x32xi32>
    %106 = arith.sitofp %105 : vector<16x32xi32> to vector<16x32xf32>
    %107 = tpu.iota {dimensions = array<i32: 0>} : vector<2x16xi32>
    %108 = vector.broadcast %7 : vector<1x16xi32> to vector<2x16xi32>
    %109 = arith.cmpi eq, %107, %108 : vector<2x16xi32>
    %110 = arith.extui %109 : vector<2x16xi1> to vector<2x16xi32>
    %111 = arith.sitofp %110 : vector<2x16xi32> to vector<2x16xf32>
    %112 = tpu.iota {dimensions = array<i32: 0>} : vector<2x32xi32>
    %113 = vector.broadcast %9 : vector<1x32xi32> to vector<2x32xi32>
    %114 = arith.cmpi eq, %112, %113 : vector<2x32xi32>
    %115 = arith.extui %114 : vector<2x32xi1> to vector<2x32xi32>
    %116 = arith.sitofp %115 : vector<2x32xi32> to vector<2x32xf32>
    %cst_137 = arith.constant dense<0.000000e+00> : vector<16xf32>
    %117 = vector.multi_reduction <add>, %106, %cst_137 [1] : vector<16x32xf32> to vector<16xf32>
    %118 = vector.shape_cast %117 : vector<16xf32> to vector<16x1xf32>
    %cst_138 = arith.constant 1.000000e+00 : f32
    %119 = vector.broadcast %cst_138 : f32 to vector<16x1xf32>
    %120 = arith.maximumf %118, %119 : vector<16x1xf32>
    %cst_139 = arith.constant 1.000000e+00 : f32
    %121 = vector.broadcast %cst_139 : f32 to vector<16x1xf32>
    %122 = arith.divf %121, %120 : vector<16x1xf32>
    %cst_140 = arith.constant dense<0.000000e+00> : vector<2xf32>
    %123 = vector.multi_reduction <add>, %111, %cst_140 [1] : vector<2x16xf32> to vector<2xf32>
    %124 = vector.shape_cast %123 : vector<2xf32> to vector<2x1xf32>
    %cst_141 = arith.constant 1.000000e+00 : f32
    %125 = vector.broadcast %cst_141 : f32 to vector<2x1xf32>
    %126 = arith.maximumf %124, %125 : vector<2x1xf32>
    %cst_142 = arith.constant 1.000000e+00 : f32
    %127 = vector.broadcast %cst_142 : f32 to vector<2x1xf32>
    %128 = arith.divf %127, %126 : vector<2x1xf32>
    %cst_143 = arith.constant dense<0.000000e+00> : vector<2xf32>
    %129 = vector.multi_reduction <add>, %116, %cst_143 [1] : vector<2x32xf32> to vector<2xf32>
    %130 = vector.shape_cast %129 : vector<2xf32> to vector<2x1xf32>
    %cst_144 = arith.constant 1.000000e+00 : f32
    %131 = vector.broadcast %cst_144 : f32 to vector<2x1xf32>
    %132 = arith.maximumf %130, %131 : vector<2x1xf32>
    %cst_145 = arith.constant 1.000000e+00 : f32
    %133 = vector.broadcast %cst_145 : f32 to vector<2x1xf32>
    %134 = arith.divf %133, %132 : vector<2x1xf32>
    %cst_146 = arith.constant dense<0.000000e+00> : vector<32x16xf32>
    %135 = tpu.matmul %87, %73, %cst_146 {dimension_numbers = #tpu.dot_dimension_numbers<[1], [0], [0], [1], [0, 0, 1, 1], [], []>} : vector<32x16xf32>, vector<16x16xf32>, vector<32x16xf32> -> vector<32x16xf32>
    %cst_147 = arith.constant dense<0.000000e+00> : vector<32x16xf32>
    %136 = tpu.matmul %91, %73, %cst_147 {dimension_numbers = #tpu.dot_dimension_numbers<[1], [0], [0], [1], [0, 0, 1, 1], [], []>} : vector<32x16xf32>, vector<16x16xf32>, vector<32x16xf32> -> vector<32x16xf32>
    %cst_148 = arith.constant dense<0.000000e+00> : vector<32x2xf32>
    %137 = tpu.matmul %101, %2, %cst_148 {dimension_numbers = #tpu.dot_dimension_numbers<[1], [0], [0], [1], [0, 0, 1, 1], [], []>} : vector<32x2xf32>, vector<2x2xf32>, vector<32x2xf32> -> vector<32x2xf32>
    %cst_149 = arith.constant dense<0.000000e+00> : vector<32x64xf32>
    %138 = tpu.matmul %135, %12, %cst_149 {dimension_numbers = #tpu.dot_dimension_numbers<[1], [0], [0], [1], [0, 0, 1, 1], [], []>} : vector<32x16xf32>, vector<16x64xf32>, vector<32x64xf32> -> vector<32x64xf32>
    %cst_150 = arith.constant dense<0.000000e+00> : vector<32x64xf32>
    %139 = tpu.matmul %136, %13, %cst_150 {dimension_numbers = #tpu.dot_dimension_numbers<[1], [0], [0], [1], [0, 0, 1, 1], [], []>} : vector<32x16xf32>, vector<16x64xf32>, vector<32x64xf32> -> vector<32x64xf32>
    %140 = arith.addf %138, %139 : vector<32x64xf32>
    %cst_151 = arith.constant dense<0.000000e+00> : vector<32x64xf32>
    %141 = tpu.matmul %82, %14, %cst_151 {dimension_numbers = #tpu.dot_dimension_numbers<[1], [0], [0], [1], [0, 0, 1, 1], [], []>} : vector<32x128xf32>, vector<128x64xf32>, vector<32x64xf32> -> vector<32x64xf32>
    %142 = arith.addf %140, %141 : vector<32x64xf32>
    %cst_152 = arith.constant dense<0.000000e+00> : vector<32x64xf32>
    %143 = tpu.matmul %137, %15, %cst_152 {dimension_numbers = #tpu.dot_dimension_numbers<[1], [0], [0], [1], [0, 0, 1, 1], [], []>} : vector<32x2xf32>, vector<2x64xf32>, vector<32x64xf32> -> vector<32x64xf32>
    %144 = arith.addf %142, %143 : vector<32x64xf32>
    %145 = vector.broadcast %16 : vector<1x64xf32> to vector<32x64xf32>
    %146 = arith.addf %144, %145 : vector<32x64xf32>
    %cst_153 = arith.constant 0.000000e+00 : f32
    %147 = vector.broadcast %cst_153 : f32 to vector<32x64xf32>
    %148 = arith.maximumf %146, %147 : vector<32x64xf32>
    %cst_154 = arith.constant dense<0.000000e+00> : vector<32x32xf32>
    %149 = tpu.matmul %148, %17, %cst_154 {dimension_numbers = #tpu.dot_dimension_numbers<[1], [0], [0], [1], [0, 0, 1, 1], [], []>} : vector<32x64xf32>, vector<64x32xf32>, vector<32x32xf32> -> vector<32x32xf32>
    %150 = vector.broadcast %18 : vector<1x32xf32> to vector<32x32xf32>
    %151 = arith.addf %149, %150 : vector<32x32xf32>
    %cst_155 = arith.constant 0.000000e+00 : f32
    %152 = vector.broadcast %cst_155 : f32 to vector<32x32xf32>
    %153 = arith.maximumf %151, %152 : vector<32x32xf32>
    %cst_156 = arith.constant dense<0.000000e+00> : vector<16x32xf32>
    %154 = tpu.matmul %106, %153, %cst_156 {dimension_numbers = #tpu.dot_dimension_numbers<[1], [0], [0], [1], [0, 0, 1, 1], [], []>} : vector<16x32xf32>, vector<32x32xf32>, vector<16x32xf32> -> vector<16x32xf32>
    %155 = vector.broadcast %122 : vector<16x1xf32> to vector<16x32xf32>
    %156 = arith.mulf %154, %155 : vector<16x32xf32>
    %cst_157 = arith.constant dense<0.000000e+00> : vector<16x2xf32>
    %157 = tpu.matmul %96, %2, %cst_157 {dimension_numbers = #tpu.dot_dimension_numbers<[1], [0], [0], [1], [0, 0, 1, 1], [], []>} : vector<16x2xf32>, vector<2x2xf32>, vector<16x2xf32> -> vector<16x2xf32>
    %cst_158 = arith.constant dense<0.000000e+00> : vector<16x64xf32>
    %158 = tpu.matmul %73, %19, %cst_158 {dimension_numbers = #tpu.dot_dimension_numbers<[1], [0], [0], [1], [0, 0, 1, 1], [], []>} : vector<16x16xf32>, vector<16x64xf32>, vector<16x64xf32> -> vector<16x64xf32>
    %cst_159 = arith.constant dense<0.000000e+00> : vector<16x64xf32>
    %159 = tpu.matmul %156, %20, %cst_159 {dimension_numbers = #tpu.dot_dimension_numbers<[1], [0], [0], [1], [0, 0, 1, 1], [], []>} : vector<16x32xf32>, vector<32x64xf32>, vector<16x64xf32> -> vector<16x64xf32>
    %160 = arith.addf %158, %159 : vector<16x64xf32>
    %cst_160 = arith.constant dense<0.000000e+00> : vector<16x64xf32>
    %161 = tpu.matmul %157, %21, %cst_160 {dimension_numbers = #tpu.dot_dimension_numbers<[1], [0], [0], [1], [0, 0, 1, 1], [], []>} : vector<16x2xf32>, vector<2x64xf32>, vector<16x64xf32> -> vector<16x64xf32>
    %162 = arith.addf %160, %161 : vector<16x64xf32>
    %163 = vector.broadcast %22 : vector<1x64xf32> to vector<16x64xf32>
    %164 = arith.addf %162, %163 : vector<16x64xf32>
    %cst_161 = arith.constant 0.000000e+00 : f32
    %165 = vector.broadcast %cst_161 : f32 to vector<16x64xf32>
    %166 = arith.maximumf %164, %165 : vector<16x64xf32>
    %cst_162 = arith.constant dense<0.000000e+00> : vector<16x32xf32>
    %167 = tpu.matmul %166, %23, %cst_162 {dimension_numbers = #tpu.dot_dimension_numbers<[1], [0], [0], [1], [0, 0, 1, 1], [], []>} : vector<16x64xf32>, vector<64x32xf32>, vector<16x32xf32> -> vector<16x32xf32>
    %168 = vector.broadcast %24 : vector<1x32xf32> to vector<16x32xf32>
    %169 = arith.addf %167, %168 : vector<16x32xf32>
    %cst_163 = arith.constant 0.000000e+00 : f32
    %170 = vector.broadcast %cst_163 : f32 to vector<16x32xf32>
    %171 = arith.maximumf %169, %170 : vector<16x32xf32>
    %cst_164 = arith.constant dense<0.000000e+00> : vector<2x32xf32>
    %172 = tpu.matmul %111, %171, %cst_164 {dimension_numbers = #tpu.dot_dimension_numbers<[1], [0], [0], [1], [0, 0, 1, 1], [], []>} : vector<2x16xf32>, vector<16x32xf32>, vector<2x32xf32> -> vector<2x32xf32>
    %173 = vector.broadcast %128 : vector<2x1xf32> to vector<2x32xf32>
    %174 = arith.mulf %172, %173 : vector<2x32xf32>
    %cst_165 = arith.constant dense<0.000000e+00> : vector<2x32xf32>
    %175 = tpu.matmul %116, %153, %cst_165 {dimension_numbers = #tpu.dot_dimension_numbers<[1], [0], [0], [1], [0, 0, 1, 1], [], []>} : vector<2x32xf32>, vector<32x32xf32>, vector<2x32xf32> -> vector<2x32xf32>
    %176 = vector.broadcast %134 : vector<2x1xf32> to vector<2x32xf32>
    %177 = arith.mulf %175, %176 : vector<2x32xf32>
    %cst_166 = arith.constant dense<0.000000e+00> : vector<2x64xf32>
    %178 = tpu.matmul %174, %25, %cst_166 {dimension_numbers = #tpu.dot_dimension_numbers<[1], [0], [0], [1], [0, 0, 1, 1], [], []>} : vector<2x32xf32>, vector<32x64xf32>, vector<2x64xf32> -> vector<2x64xf32>
    %cst_167 = arith.constant dense<0.000000e+00> : vector<2x64xf32>
    %179 = tpu.matmul %177, %26, %cst_167 {dimension_numbers = #tpu.dot_dimension_numbers<[1], [0], [0], [1], [0, 0, 1, 1], [], []>} : vector<2x32xf32>, vector<32x64xf32>, vector<2x64xf32> -> vector<2x64xf32>
    %180 = arith.addf %178, %179 : vector<2x64xf32>
    %cst_168 = arith.constant dense<0.000000e+00> : vector<2x64xf32>
    %181 = tpu.matmul %2, %27, %cst_168 {dimension_numbers = #tpu.dot_dimension_numbers<[1], [0], [0], [1], [0, 0, 1, 1], [], []>} : vector<2x2xf32>, vector<2x64xf32>, vector<2x64xf32> -> vector<2x64xf32>
    %182 = arith.addf %180, %181 : vector<2x64xf32>
    %183 = vector.broadcast %28 : vector<1x64xf32> to vector<2x64xf32>
    %184 = arith.addf %182, %183 : vector<2x64xf32>
    %cst_169 = arith.constant 0.000000e+00 : f32
    %185 = vector.broadcast %cst_169 : f32 to vector<2x64xf32>
    %186 = arith.maximumf %184, %185 : vector<2x64xf32>
    %cst_170 = arith.constant dense<0.000000e+00> : vector<2x32xf32>
    %187 = tpu.matmul %186, %29, %cst_170 {dimension_numbers = #tpu.dot_dimension_numbers<[1], [0], [0], [1], [0, 0, 1, 1], [], []>} : vector<2x64xf32>, vector<64x32xf32>, vector<2x32xf32> -> vector<2x32xf32>
    %188 = vector.broadcast %30 : vector<1x32xf32> to vector<2x32xf32>
    %189 = arith.addf %187, %188 : vector<2x32xf32>
    %cst_171 = arith.constant 0.000000e+00 : f32
    %190 = vector.broadcast %cst_171 : f32 to vector<2x32xf32>
    %191 = arith.maximumf %189, %190 : vector<2x32xf32>
    %cst_172 = arith.constant dense<0.000000e+00> : vector<32x32xf32>
    %192 = tpu.matmul %87, %171, %cst_172 {dimension_numbers = #tpu.dot_dimension_numbers<[1], [0], [0], [1], [0, 0, 1, 1], [], []>} : vector<32x16xf32>, vector<16x32xf32>, vector<32x32xf32> -> vector<32x32xf32>
    %cst_173 = arith.constant dense<0.000000e+00> : vector<32x32xf32>
    %193 = tpu.matmul %91, %171, %cst_173 {dimension_numbers = #tpu.dot_dimension_numbers<[1], [0], [0], [1], [0, 0, 1, 1], [], []>} : vector<32x16xf32>, vector<16x32xf32>, vector<32x32xf32> -> vector<32x32xf32>
    %cst_174 = arith.constant dense<0.000000e+00> : vector<32x32xf32>
    %194 = tpu.matmul %101, %191, %cst_174 {dimension_numbers = #tpu.dot_dimension_numbers<[1], [0], [0], [1], [0, 0, 1, 1], [], []>} : vector<32x2xf32>, vector<2x32xf32>, vector<32x32xf32> -> vector<32x32xf32>
    %cst_175 = arith.constant dense<0.000000e+00> : vector<32x64xf32>
    %195 = tpu.matmul %192, %31, %cst_175 {dimension_numbers = #tpu.dot_dimension_numbers<[1], [0], [0], [1], [0, 0, 1, 1], [], []>} : vector<32x32xf32>, vector<32x64xf32>, vector<32x64xf32> -> vector<32x64xf32>
    %cst_176 = arith.constant dense<0.000000e+00> : vector<32x64xf32>
    %196 = tpu.matmul %193, %32, %cst_176 {dimension_numbers = #tpu.dot_dimension_numbers<[1], [0], [0], [1], [0, 0, 1, 1], [], []>} : vector<32x32xf32>, vector<32x64xf32>, vector<32x64xf32> -> vector<32x64xf32>
    %197 = arith.addf %195, %196 : vector<32x64xf32>
    %cst_177 = arith.constant dense<0.000000e+00> : vector<32x64xf32>
    %198 = tpu.matmul %153, %33, %cst_177 {dimension_numbers = #tpu.dot_dimension_numbers<[1], [0], [0], [1], [0, 0, 1, 1], [], []>} : vector<32x32xf32>, vector<32x64xf32>, vector<32x64xf32> -> vector<32x64xf32>
    %199 = arith.addf %197, %198 : vector<32x64xf32>
    %cst_178 = arith.constant dense<0.000000e+00> : vector<32x64xf32>
    %200 = tpu.matmul %194, %34, %cst_178 {dimension_numbers = #tpu.dot_dimension_numbers<[1], [0], [0], [1], [0, 0, 1, 1], [], []>} : vector<32x32xf32>, vector<32x64xf32>, vector<32x64xf32> -> vector<32x64xf32>
    %201 = arith.addf %199, %200 : vector<32x64xf32>
    %202 = vector.broadcast %35 : vector<1x64xf32> to vector<32x64xf32>
    %203 = arith.addf %201, %202 : vector<32x64xf32>
    %cst_179 = arith.constant 0.000000e+00 : f32
    %204 = vector.broadcast %cst_179 : f32 to vector<32x64xf32>
    %205 = arith.maximumf %203, %204 : vector<32x64xf32>
    %cst_180 = arith.constant dense<0.000000e+00> : vector<32x32xf32>
    %206 = tpu.matmul %205, %36, %cst_180 {dimension_numbers = #tpu.dot_dimension_numbers<[1], [0], [0], [1], [0, 0, 1, 1], [], []>} : vector<32x64xf32>, vector<64x32xf32>, vector<32x32xf32> -> vector<32x32xf32>
    %207 = vector.broadcast %37 : vector<1x32xf32> to vector<32x32xf32>
    %208 = arith.addf %206, %207 : vector<32x32xf32>
    %cst_181 = arith.constant 0.000000e+00 : f32
    %209 = vector.broadcast %cst_181 : f32 to vector<32x32xf32>
    %210 = arith.maximumf %208, %209 : vector<32x32xf32>
    %cst_182 = arith.constant dense<0.000000e+00> : vector<16x32xf32>
    %211 = tpu.matmul %106, %210, %cst_182 {dimension_numbers = #tpu.dot_dimension_numbers<[1], [0], [0], [1], [0, 0, 1, 1], [], []>} : vector<16x32xf32>, vector<32x32xf32>, vector<16x32xf32> -> vector<16x32xf32>
    %212 = vector.broadcast %122 : vector<16x1xf32> to vector<16x32xf32>
    %213 = arith.mulf %211, %212 : vector<16x32xf32>
    %cst_183 = arith.constant dense<0.000000e+00> : vector<16x32xf32>
    %214 = tpu.matmul %96, %191, %cst_183 {dimension_numbers = #tpu.dot_dimension_numbers<[1], [0], [0], [1], [0, 0, 1, 1], [], []>} : vector<16x2xf32>, vector<2x32xf32>, vector<16x32xf32> -> vector<16x32xf32>
    %cst_184 = arith.constant dense<0.000000e+00> : vector<16x64xf32>
    %215 = tpu.matmul %171, %38, %cst_184 {dimension_numbers = #tpu.dot_dimension_numbers<[1], [0], [0], [1], [0, 0, 1, 1], [], []>} : vector<16x32xf32>, vector<32x64xf32>, vector<16x64xf32> -> vector<16x64xf32>
    %cst_185 = arith.constant dense<0.000000e+00> : vector<16x64xf32>
    %216 = tpu.matmul %213, %39, %cst_185 {dimension_numbers = #tpu.dot_dimension_numbers<[1], [0], [0], [1], [0, 0, 1, 1], [], []>} : vector<16x32xf32>, vector<32x64xf32>, vector<16x64xf32> -> vector<16x64xf32>
    %217 = arith.addf %215, %216 : vector<16x64xf32>
    %cst_186 = arith.constant dense<0.000000e+00> : vector<16x64xf32>
    %218 = tpu.matmul %214, %40, %cst_186 {dimension_numbers = #tpu.dot_dimension_numbers<[1], [0], [0], [1], [0, 0, 1, 1], [], []>} : vector<16x32xf32>, vector<32x64xf32>, vector<16x64xf32> -> vector<16x64xf32>
    %219 = arith.addf %217, %218 : vector<16x64xf32>
    %220 = vector.broadcast %41 : vector<1x64xf32> to vector<16x64xf32>
    %221 = arith.addf %219, %220 : vector<16x64xf32>
    %cst_187 = arith.constant 0.000000e+00 : f32
    %222 = vector.broadcast %cst_187 : f32 to vector<16x64xf32>
    %223 = arith.maximumf %221, %222 : vector<16x64xf32>
    %cst_188 = arith.constant dense<0.000000e+00> : vector<16x32xf32>
    %224 = tpu.matmul %223, %42, %cst_188 {dimension_numbers = #tpu.dot_dimension_numbers<[1], [0], [0], [1], [0, 0, 1, 1], [], []>} : vector<16x64xf32>, vector<64x32xf32>, vector<16x32xf32> -> vector<16x32xf32>
    %225 = vector.broadcast %43 : vector<1x32xf32> to vector<16x32xf32>
    %226 = arith.addf %224, %225 : vector<16x32xf32>
    %cst_189 = arith.constant 0.000000e+00 : f32
    %227 = vector.broadcast %cst_189 : f32 to vector<16x32xf32>
    %228 = arith.maximumf %226, %227 : vector<16x32xf32>
    %cst_190 = arith.constant dense<0.000000e+00> : vector<2x32xf32>
    %229 = tpu.matmul %111, %228, %cst_190 {dimension_numbers = #tpu.dot_dimension_numbers<[1], [0], [0], [1], [0, 0, 1, 1], [], []>} : vector<2x16xf32>, vector<16x32xf32>, vector<2x32xf32> -> vector<2x32xf32>
    %230 = vector.broadcast %128 : vector<2x1xf32> to vector<2x32xf32>
    %231 = arith.mulf %229, %230 : vector<2x32xf32>
    %cst_191 = arith.constant dense<0.000000e+00> : vector<2x32xf32>
    %232 = tpu.matmul %116, %210, %cst_191 {dimension_numbers = #tpu.dot_dimension_numbers<[1], [0], [0], [1], [0, 0, 1, 1], [], []>} : vector<2x32xf32>, vector<32x32xf32>, vector<2x32xf32> -> vector<2x32xf32>
    %233 = vector.broadcast %134 : vector<2x1xf32> to vector<2x32xf32>
    %234 = arith.mulf %232, %233 : vector<2x32xf32>
    %cst_192 = arith.constant dense<0.000000e+00> : vector<2x64xf32>
    %235 = tpu.matmul %231, %44, %cst_192 {dimension_numbers = #tpu.dot_dimension_numbers<[1], [0], [0], [1], [0, 0, 1, 1], [], []>} : vector<2x32xf32>, vector<32x64xf32>, vector<2x64xf32> -> vector<2x64xf32>
    %cst_193 = arith.constant dense<0.000000e+00> : vector<2x64xf32>
    %236 = tpu.matmul %234, %45, %cst_193 {dimension_numbers = #tpu.dot_dimension_numbers<[1], [0], [0], [1], [0, 0, 1, 1], [], []>} : vector<2x32xf32>, vector<32x64xf32>, vector<2x64xf32> -> vector<2x64xf32>
    %237 = arith.addf %235, %236 : vector<2x64xf32>
    %cst_194 = arith.constant dense<0.000000e+00> : vector<2x64xf32>
    %238 = tpu.matmul %191, %46, %cst_194 {dimension_numbers = #tpu.dot_dimension_numbers<[1], [0], [0], [1], [0, 0, 1, 1], [], []>} : vector<2x32xf32>, vector<32x64xf32>, vector<2x64xf32> -> vector<2x64xf32>
    %239 = arith.addf %237, %238 : vector<2x64xf32>
    %240 = vector.broadcast %47 : vector<1x64xf32> to vector<2x64xf32>
    %241 = arith.addf %239, %240 : vector<2x64xf32>
    %cst_195 = arith.constant 0.000000e+00 : f32
    %242 = vector.broadcast %cst_195 : f32 to vector<2x64xf32>
    %243 = arith.maximumf %241, %242 : vector<2x64xf32>
    %cst_196 = arith.constant dense<0.000000e+00> : vector<2x32xf32>
    %244 = tpu.matmul %243, %48, %cst_196 {dimension_numbers = #tpu.dot_dimension_numbers<[1], [0], [0], [1], [0, 0, 1, 1], [], []>} : vector<2x64xf32>, vector<64x32xf32>, vector<2x32xf32> -> vector<2x32xf32>
    %245 = vector.broadcast %49 : vector<1x32xf32> to vector<2x32xf32>
    %246 = arith.addf %244, %245 : vector<2x32xf32>
    %cst_197 = arith.constant 0.000000e+00 : f32
    %247 = vector.broadcast %cst_197 : f32 to vector<2x32xf32>
    %248 = arith.maximumf %246, %247 : vector<2x32xf32>
    %cst_198 = arith.constant 0.000000e+00 : f32
    %249 = vector.broadcast %cst_198 : f32 to vector<2x32xf32>
    %cst_199 = arith.constant 0.000000e+00 : f32
    %250 = vector.broadcast %cst_199 : f32 to vector<2x32xf32>
    %cst_200 = arith.constant 0.000000e+00 : f32
    %251 = vector.broadcast %cst_200 : f32 to vector<2x32xf32>
    %cst_201 = arith.constant 0.000000e+00 : f32
    %252 = vector.broadcast %cst_201 : f32 to vector<2x32xf32>
    %cst_202 = arith.constant dense<0.000000e+00> : vector<2x128xf32>
    %253 = tpu.matmul %251, %50, %cst_202 {dimension_numbers = #tpu.dot_dimension_numbers<[1], [0], [0], [1], [0, 0, 1, 1], [], []>} : vector<2x32xf32>, vector<32x128xf32>, vector<2x128xf32> -> vector<2x128xf32>
    %cst_203 = arith.constant dense<0.000000e+00> : vector<2x128xf32>
    %254 = tpu.matmul %252, %51, %cst_203 {dimension_numbers = #tpu.dot_dimension_numbers<[1], [0], [0], [1], [0, 0, 1, 1], [], []>} : vector<2x32xf32>, vector<32x128xf32>, vector<2x128xf32> -> vector<2x128xf32>
    %255 = arith.addf %253, %254 : vector<2x128xf32>
    %cst_204 = arith.constant dense<0.000000e+00> : vector<2x128xf32>
    %256 = tpu.matmul %249, %52, %cst_204 {dimension_numbers = #tpu.dot_dimension_numbers<[1], [0], [0], [1], [0, 0, 1, 1], [], []>} : vector<2x32xf32>, vector<32x128xf32>, vector<2x128xf32> -> vector<2x128xf32>
    %257 = arith.addf %255, %256 : vector<2x128xf32>
    %258 = vector.broadcast %53 : vector<1x128xf32> to vector<2x128xf32>
    %259 = arith.addf %257, %258 : vector<2x128xf32>
    %260 = vector.extract_strided_slice %259 {offsets = [0, 0], sizes = [2, 32], strides = [1, 1]} : vector<2x128xf32> to vector<2x32xf32>
    %261 = arith.negf %260 : vector<2x32xf32>
    %262 = math.exp %261 : vector<2x32xf32>
    %cst_205 = arith.constant 1.000000e+00 : f32
    %263 = vector.broadcast %cst_205 : f32 to vector<2x32xf32>
    %264 = arith.addf %263, %262 : vector<2x32xf32>
    %265 = arith.divf %263, %264 : vector<2x32xf32>
    %266 = vector.extract_strided_slice %259 {offsets = [0, 32], sizes = [2, 32], strides = [1, 1]} : vector<2x128xf32> to vector<2x32xf32>
    %267 = arith.negf %266 : vector<2x32xf32>
    %268 = math.exp %267 : vector<2x32xf32>
    %cst_206 = arith.constant 1.000000e+00 : f32
    %269 = vector.broadcast %cst_206 : f32 to vector<2x32xf32>
    %270 = arith.addf %269, %268 : vector<2x32xf32>
    %271 = arith.divf %269, %270 : vector<2x32xf32>
    %272 = vector.extract_strided_slice %259 {offsets = [0, 64], sizes = [2, 32], strides = [1, 1]} : vector<2x128xf32> to vector<2x32xf32>
    %273 = math.tanh %272 : vector<2x32xf32>
    %274 = vector.extract_strided_slice %259 {offsets = [0, 96], sizes = [2, 32], strides = [1, 1]} : vector<2x128xf32> to vector<2x32xf32>
    %275 = arith.negf %274 : vector<2x32xf32>
    %276 = math.exp %275 : vector<2x32xf32>
    %cst_207 = arith.constant 1.000000e+00 : f32
    %277 = vector.broadcast %cst_207 : f32 to vector<2x32xf32>
    %278 = arith.addf %277, %276 : vector<2x32xf32>
    %279 = arith.divf %277, %278 : vector<2x32xf32>
    %280 = arith.mulf %271, %250 : vector<2x32xf32>
    %281 = arith.mulf %265, %273 : vector<2x32xf32>
    %282 = arith.addf %280, %281 : vector<2x32xf32>
    %283 = math.tanh %282 : vector<2x32xf32>
    %284 = arith.mulf %279, %283 : vector<2x32xf32>
    %cst_208 = arith.constant dense<0.000000e+00> : vector<16x32xf32>
    %285 = tpu.matmul %96, %284, %cst_208 {dimension_numbers = #tpu.dot_dimension_numbers<[1], [0], [0], [1], [0, 0, 1, 1], [], []>} : vector<16x2xf32>, vector<2x32xf32>, vector<16x32xf32> -> vector<16x32xf32>
    %286 = arith.mulf %228, %285 : vector<16x32xf32>
    %cst_209 = arith.constant dense<0.000000e+00> : vector<16xf32>
    %287 = vector.multi_reduction <add>, %286, %cst_209 [1] : vector<16x32xf32> to vector<16xf32>
    %288 = vector.shape_cast %287 : vector<16xf32> to vector<16x1xf32>
    %cst_210 = arith.constant 5.000000e-01 : f32
    %289 = vector.broadcast %cst_210 : f32 to vector<16x2xf32>
    %290 = arith.cmpf ogt, %96, %289 : vector<16x2xf32>
    %cst_211 = arith.constant -1.000000e+30 : f32
    %291 = vector.shape_cast %288 : vector<16x1xf32> to vector<16x1xf32>
    %292 = vector.broadcast %291 : vector<16x1xf32> to vector<16x2xf32>
    %293 = vector.broadcast %cst_211 : f32 to vector<16x2xf32>
    %294 = arith.select %290, %292, %293 : vector<16x2xi1>, vector<16x2xf32>
    %cst_212 = arith.constant dense<0xFF800000> : vector<2xf32>
    %295 = vector.multi_reduction <maximumf>, %294, %cst_212 [0] : vector<16x2xf32> to vector<2xf32>
    %296 = vector.shape_cast %295 : vector<2xf32> to vector<1x2xf32>
    %297 = vector.broadcast %296 : vector<1x2xf32> to vector<16x2xf32>
    %298 = arith.mulf %96, %297 : vector<16x2xf32>
    %cst_213 = arith.constant dense<0.000000e+00> : vector<16xf32>
    %299 = vector.multi_reduction <add>, %298, %cst_213 [1] : vector<16x2xf32> to vector<16xf32>
    %300 = vector.shape_cast %299 : vector<16xf32> to vector<16x1xf32>
    %301 = arith.subf %288, %300 : vector<16x1xf32>
    %302 = math.exp %301 : vector<16x1xf32>
    %303 = vector.broadcast %302 : vector<16x1xf32> to vector<16x2xf32>
    %304 = arith.mulf %96, %303 : vector<16x2xf32>
    %cst_214 = arith.constant dense<0.000000e+00> : vector<2xf32>
    %305 = vector.multi_reduction <add>, %304, %cst_214 [0] : vector<16x2xf32> to vector<2xf32>
    %306 = vector.shape_cast %305 : vector<2xf32> to vector<1x2xf32>
    %307 = vector.broadcast %306 : vector<1x2xf32> to vector<16x2xf32>
    %308 = arith.mulf %96, %307 : vector<16x2xf32>
    %cst_215 = arith.constant dense<0.000000e+00> : vector<16xf32>
    %309 = vector.multi_reduction <add>, %308, %cst_215 [1] : vector<16x2xf32> to vector<16xf32>
    %310 = vector.shape_cast %309 : vector<16xf32> to vector<16x1xf32>
    %311 = arith.divf %302, %310 : vector<16x1xf32>
    %312 = vector.broadcast %311 : vector<16x1xf32> to vector<16x32xf32>
    %313 = arith.mulf %312, %228 : vector<16x32xf32>
    %cst_216 = arith.constant dense<0.000000e+00> : vector<2x32xf32>
    %314 = tpu.matmul %111, %313, %cst_216 {dimension_numbers = #tpu.dot_dimension_numbers<[1], [0], [0], [1], [0, 0, 1, 1], [], []>} : vector<2x16xf32>, vector<16x32xf32>, vector<2x32xf32> -> vector<2x32xf32>
    %cst_217 = arith.constant dense<0.000000e+00> : vector<2x128xf32>
    %315 = tpu.matmul %284, %50, %cst_217 {dimension_numbers = #tpu.dot_dimension_numbers<[1], [0], [0], [1], [0, 0, 1, 1], [], []>} : vector<2x32xf32>, vector<32x128xf32>, vector<2x128xf32> -> vector<2x128xf32>
    %cst_218 = arith.constant dense<0.000000e+00> : vector<2x128xf32>
    %316 = tpu.matmul %314, %51, %cst_218 {dimension_numbers = #tpu.dot_dimension_numbers<[1], [0], [0], [1], [0, 0, 1, 1], [], []>} : vector<2x32xf32>, vector<32x128xf32>, vector<2x128xf32> -> vector<2x128xf32>
    %317 = arith.addf %315, %316 : vector<2x128xf32>
    %cst_219 = arith.constant dense<0.000000e+00> : vector<2x128xf32>
    %318 = tpu.matmul %284, %52, %cst_219 {dimension_numbers = #tpu.dot_dimension_numbers<[1], [0], [0], [1], [0, 0, 1, 1], [], []>} : vector<2x32xf32>, vector<32x128xf32>, vector<2x128xf32> -> vector<2x128xf32>
    %319 = arith.addf %317, %318 : vector<2x128xf32>
    %320 = vector.broadcast %53 : vector<1x128xf32> to vector<2x128xf32>
    %321 = arith.addf %319, %320 : vector<2x128xf32>
    %322 = vector.extract_strided_slice %321 {offsets = [0, 0], sizes = [2, 32], strides = [1, 1]} : vector<2x128xf32> to vector<2x32xf32>
    %323 = arith.negf %322 : vector<2x32xf32>
    %324 = math.exp %323 : vector<2x32xf32>
    %cst_220 = arith.constant 1.000000e+00 : f32
    %325 = vector.broadcast %cst_220 : f32 to vector<2x32xf32>
    %326 = arith.addf %325, %324 : vector<2x32xf32>
    %327 = arith.divf %325, %326 : vector<2x32xf32>
    %328 = vector.extract_strided_slice %321 {offsets = [0, 32], sizes = [2, 32], strides = [1, 1]} : vector<2x128xf32> to vector<2x32xf32>
    %329 = arith.negf %328 : vector<2x32xf32>
    %330 = math.exp %329 : vector<2x32xf32>
    %cst_221 = arith.constant 1.000000e+00 : f32
    %331 = vector.broadcast %cst_221 : f32 to vector<2x32xf32>
    %332 = arith.addf %331, %330 : vector<2x32xf32>
    %333 = arith.divf %331, %332 : vector<2x32xf32>
    %334 = vector.extract_strided_slice %321 {offsets = [0, 64], sizes = [2, 32], strides = [1, 1]} : vector<2x128xf32> to vector<2x32xf32>
    %335 = math.tanh %334 : vector<2x32xf32>
    %336 = vector.extract_strided_slice %321 {offsets = [0, 96], sizes = [2, 32], strides = [1, 1]} : vector<2x128xf32> to vector<2x32xf32>
    %337 = arith.negf %336 : vector<2x32xf32>
    %338 = math.exp %337 : vector<2x32xf32>
    %cst_222 = arith.constant 1.000000e+00 : f32
    %339 = vector.broadcast %cst_222 : f32 to vector<2x32xf32>
    %340 = arith.addf %339, %338 : vector<2x32xf32>
    %341 = arith.divf %339, %340 : vector<2x32xf32>
    %342 = arith.mulf %333, %282 : vector<2x32xf32>
    %343 = arith.mulf %327, %335 : vector<2x32xf32>
    %344 = arith.addf %342, %343 : vector<2x32xf32>
    %345 = math.tanh %344 : vector<2x32xf32>
    %346 = arith.mulf %341, %345 : vector<2x32xf32>
    %cst_223 = arith.constant dense<0.000000e+00> : vector<16x32xf32>
    %347 = tpu.matmul %96, %346, %cst_223 {dimension_numbers = #tpu.dot_dimension_numbers<[1], [0], [0], [1], [0, 0, 1, 1], [], []>} : vector<16x2xf32>, vector<2x32xf32>, vector<16x32xf32> -> vector<16x32xf32>
    %348 = arith.mulf %228, %347 : vector<16x32xf32>
    %cst_224 = arith.constant dense<0.000000e+00> : vector<16xf32>
    %349 = vector.multi_reduction <add>, %348, %cst_224 [1] : vector<16x32xf32> to vector<16xf32>
    %350 = vector.shape_cast %349 : vector<16xf32> to vector<16x1xf32>
    %cst_225 = arith.constant 5.000000e-01 : f32
    %351 = vector.broadcast %cst_225 : f32 to vector<16x2xf32>
    %352 = arith.cmpf ogt, %96, %351 : vector<16x2xf32>
    %cst_226 = arith.constant -1.000000e+30 : f32
    %353 = vector.shape_cast %350 : vector<16x1xf32> to vector<16x1xf32>
    %354 = vector.broadcast %353 : vector<16x1xf32> to vector<16x2xf32>
    %355 = vector.broadcast %cst_226 : f32 to vector<16x2xf32>
    %356 = arith.select %352, %354, %355 : vector<16x2xi1>, vector<16x2xf32>
    %cst_227 = arith.constant dense<0xFF800000> : vector<2xf32>
    %357 = vector.multi_reduction <maximumf>, %356, %cst_227 [0] : vector<16x2xf32> to vector<2xf32>
    %358 = vector.shape_cast %357 : vector<2xf32> to vector<1x2xf32>
    %359 = vector.broadcast %358 : vector<1x2xf32> to vector<16x2xf32>
    %360 = arith.mulf %96, %359 : vector<16x2xf32>
    %cst_228 = arith.constant dense<0.000000e+00> : vector<16xf32>
    %361 = vector.multi_reduction <add>, %360, %cst_228 [1] : vector<16x2xf32> to vector<16xf32>
    %362 = vector.shape_cast %361 : vector<16xf32> to vector<16x1xf32>
    %363 = arith.subf %350, %362 : vector<16x1xf32>
    %364 = math.exp %363 : vector<16x1xf32>
    %365 = vector.broadcast %364 : vector<16x1xf32> to vector<16x2xf32>
    %366 = arith.mulf %96, %365 : vector<16x2xf32>
    %cst_229 = arith.constant dense<0.000000e+00> : vector<2xf32>
    %367 = vector.multi_reduction <add>, %366, %cst_229 [0] : vector<16x2xf32> to vector<2xf32>
    %368 = vector.shape_cast %367 : vector<2xf32> to vector<1x2xf32>
    %369 = vector.broadcast %368 : vector<1x2xf32> to vector<16x2xf32>
    %370 = arith.mulf %96, %369 : vector<16x2xf32>
    %cst_230 = arith.constant dense<0.000000e+00> : vector<16xf32>
    %371 = vector.multi_reduction <add>, %370, %cst_230 [1] : vector<16x2xf32> to vector<16xf32>
    %372 = vector.shape_cast %371 : vector<16xf32> to vector<16x1xf32>
    %373 = arith.divf %364, %372 : vector<16x1xf32>
    %374 = vector.broadcast %373 : vector<16x1xf32> to vector<16x32xf32>
    %375 = arith.mulf %374, %228 : vector<16x32xf32>
    %cst_231 = arith.constant dense<0.000000e+00> : vector<2x32xf32>
    %376 = tpu.matmul %111, %375, %cst_231 {dimension_numbers = #tpu.dot_dimension_numbers<[1], [0], [0], [1], [0, 0, 1, 1], [], []>} : vector<2x16xf32>, vector<16x32xf32>, vector<2x32xf32> -> vector<2x32xf32>
    %cst_232 = arith.constant dense<0.000000e+00> : vector<2x128xf32>
    %377 = tpu.matmul %346, %50, %cst_232 {dimension_numbers = #tpu.dot_dimension_numbers<[1], [0], [0], [1], [0, 0, 1, 1], [], []>} : vector<2x32xf32>, vector<32x128xf32>, vector<2x128xf32> -> vector<2x128xf32>
    %cst_233 = arith.constant dense<0.000000e+00> : vector<2x128xf32>
    %378 = tpu.matmul %376, %51, %cst_233 {dimension_numbers = #tpu.dot_dimension_numbers<[1], [0], [0], [1], [0, 0, 1, 1], [], []>} : vector<2x32xf32>, vector<32x128xf32>, vector<2x128xf32> -> vector<2x128xf32>
    %379 = arith.addf %377, %378 : vector<2x128xf32>
    %cst_234 = arith.constant dense<0.000000e+00> : vector<2x128xf32>
    %380 = tpu.matmul %346, %52, %cst_234 {dimension_numbers = #tpu.dot_dimension_numbers<[1], [0], [0], [1], [0, 0, 1, 1], [], []>} : vector<2x32xf32>, vector<32x128xf32>, vector<2x128xf32> -> vector<2x128xf32>
    %381 = arith.addf %379, %380 : vector<2x128xf32>
    %382 = vector.broadcast %53 : vector<1x128xf32> to vector<2x128xf32>
    %383 = arith.addf %381, %382 : vector<2x128xf32>
    %384 = vector.extract_strided_slice %383 {offsets = [0, 0], sizes = [2, 32], strides = [1, 1]} : vector<2x128xf32> to vector<2x32xf32>
    %385 = arith.negf %384 : vector<2x32xf32>
    %386 = math.exp %385 : vector<2x32xf32>
    %cst_235 = arith.constant 1.000000e+00 : f32
    %387 = vector.broadcast %cst_235 : f32 to vector<2x32xf32>
    %388 = arith.addf %387, %386 : vector<2x32xf32>
    %389 = arith.divf %387, %388 : vector<2x32xf32>
    %390 = vector.extract_strided_slice %383 {offsets = [0, 32], sizes = [2, 32], strides = [1, 1]} : vector<2x128xf32> to vector<2x32xf32>
    %391 = arith.negf %390 : vector<2x32xf32>
    %392 = math.exp %391 : vector<2x32xf32>
    %cst_236 = arith.constant 1.000000e+00 : f32
    %393 = vector.broadcast %cst_236 : f32 to vector<2x32xf32>
    %394 = arith.addf %393, %392 : vector<2x32xf32>
    %395 = arith.divf %393, %394 : vector<2x32xf32>
    %396 = vector.extract_strided_slice %383 {offsets = [0, 64], sizes = [2, 32], strides = [1, 1]} : vector<2x128xf32> to vector<2x32xf32>
    %397 = math.tanh %396 : vector<2x32xf32>
    %398 = vector.extract_strided_slice %383 {offsets = [0, 96], sizes = [2, 32], strides = [1, 1]} : vector<2x128xf32> to vector<2x32xf32>
    %399 = arith.negf %398 : vector<2x32xf32>
    %400 = math.exp %399 : vector<2x32xf32>
    %cst_237 = arith.constant 1.000000e+00 : f32
    %401 = vector.broadcast %cst_237 : f32 to vector<2x32xf32>
    %402 = arith.addf %401, %400 : vector<2x32xf32>
    %403 = arith.divf %401, %402 : vector<2x32xf32>
    %404 = arith.mulf %395, %344 : vector<2x32xf32>
    %405 = arith.mulf %389, %397 : vector<2x32xf32>
    %406 = arith.addf %404, %405 : vector<2x32xf32>
    %407 = math.tanh %406 : vector<2x32xf32>
    %408 = arith.mulf %403, %407 : vector<2x32xf32>
    %cst_238 = arith.constant dense<0.000000e+00> : vector<16x32xf32>
    %409 = tpu.matmul %96, %408, %cst_238 {dimension_numbers = #tpu.dot_dimension_numbers<[1], [0], [0], [1], [0, 0, 1, 1], [], []>} : vector<16x2xf32>, vector<2x32xf32>, vector<16x32xf32> -> vector<16x32xf32>
    %410 = arith.mulf %228, %409 : vector<16x32xf32>
    %cst_239 = arith.constant dense<0.000000e+00> : vector<16xf32>
    %411 = vector.multi_reduction <add>, %410, %cst_239 [1] : vector<16x32xf32> to vector<16xf32>
    %412 = vector.shape_cast %411 : vector<16xf32> to vector<16x1xf32>
    %cst_240 = arith.constant 5.000000e-01 : f32
    %413 = vector.broadcast %cst_240 : f32 to vector<16x2xf32>
    %414 = arith.cmpf ogt, %96, %413 : vector<16x2xf32>
    %cst_241 = arith.constant -1.000000e+30 : f32
    %415 = vector.shape_cast %412 : vector<16x1xf32> to vector<16x1xf32>
    %416 = vector.broadcast %415 : vector<16x1xf32> to vector<16x2xf32>
    %417 = vector.broadcast %cst_241 : f32 to vector<16x2xf32>
    %418 = arith.select %414, %416, %417 : vector<16x2xi1>, vector<16x2xf32>
    %cst_242 = arith.constant dense<0xFF800000> : vector<2xf32>
    %419 = vector.multi_reduction <maximumf>, %418, %cst_242 [0] : vector<16x2xf32> to vector<2xf32>
    %420 = vector.shape_cast %419 : vector<2xf32> to vector<1x2xf32>
    %421 = vector.broadcast %420 : vector<1x2xf32> to vector<16x2xf32>
    %422 = arith.mulf %96, %421 : vector<16x2xf32>
    %cst_243 = arith.constant dense<0.000000e+00> : vector<16xf32>
    %423 = vector.multi_reduction <add>, %422, %cst_243 [1] : vector<16x2xf32> to vector<16xf32>
    %424 = vector.shape_cast %423 : vector<16xf32> to vector<16x1xf32>
    %425 = arith.subf %412, %424 : vector<16x1xf32>
    %426 = math.exp %425 : vector<16x1xf32>
    %427 = vector.broadcast %426 : vector<16x1xf32> to vector<16x2xf32>
    %428 = arith.mulf %96, %427 : vector<16x2xf32>
    %cst_244 = arith.constant dense<0.000000e+00> : vector<2xf32>
    %429 = vector.multi_reduction <add>, %428, %cst_244 [0] : vector<16x2xf32> to vector<2xf32>
    %430 = vector.shape_cast %429 : vector<2xf32> to vector<1x2xf32>
    %431 = vector.broadcast %430 : vector<1x2xf32> to vector<16x2xf32>
    %432 = arith.mulf %96, %431 : vector<16x2xf32>
    %cst_245 = arith.constant dense<0.000000e+00> : vector<16xf32>
    %433 = vector.multi_reduction <add>, %432, %cst_245 [1] : vector<16x2xf32> to vector<16xf32>
    %434 = vector.shape_cast %433 : vector<16xf32> to vector<16x1xf32>
    %435 = arith.divf %426, %434 : vector<16x1xf32>
    %436 = vector.broadcast %435 : vector<16x1xf32> to vector<16x32xf32>
    %437 = arith.mulf %436, %228 : vector<16x32xf32>
    %cst_246 = arith.constant dense<0.000000e+00> : vector<2x32xf32>
    %438 = tpu.matmul %111, %437, %cst_246 {dimension_numbers = #tpu.dot_dimension_numbers<[1], [0], [0], [1], [0, 0, 1, 1], [], []>} : vector<2x16xf32>, vector<16x32xf32>, vector<2x32xf32> -> vector<2x32xf32>
    %cst_247 = arith.constant 0.000000e+00 : f32
    %439 = vector.broadcast %cst_247 : f32 to vector<2x32xf32>
    %cst_248 = arith.constant 0.000000e+00 : f32
    %440 = vector.broadcast %cst_248 : f32 to vector<2x32xf32>
    %cst_249 = arith.constant 0.000000e+00 : f32
    %441 = vector.broadcast %cst_249 : f32 to vector<2x32xf32>
    %cst_250 = arith.constant 0.000000e+00 : f32
    %442 = vector.broadcast %cst_250 : f32 to vector<2x32xf32>
    %cst_251 = arith.constant dense<0.000000e+00> : vector<2x128xf32>
    %443 = tpu.matmul %441, %54, %cst_251 {dimension_numbers = #tpu.dot_dimension_numbers<[1], [0], [0], [1], [0, 0, 1, 1], [], []>} : vector<2x32xf32>, vector<32x128xf32>, vector<2x128xf32> -> vector<2x128xf32>
    %cst_252 = arith.constant dense<0.000000e+00> : vector<2x128xf32>
    %444 = tpu.matmul %442, %55, %cst_252 {dimension_numbers = #tpu.dot_dimension_numbers<[1], [0], [0], [1], [0, 0, 1, 1], [], []>} : vector<2x32xf32>, vector<32x128xf32>, vector<2x128xf32> -> vector<2x128xf32>
    %445 = arith.addf %443, %444 : vector<2x128xf32>
    %cst_253 = arith.constant dense<0.000000e+00> : vector<2x128xf32>
    %446 = tpu.matmul %439, %56, %cst_253 {dimension_numbers = #tpu.dot_dimension_numbers<[1], [0], [0], [1], [0, 0, 1, 1], [], []>} : vector<2x32xf32>, vector<32x128xf32>, vector<2x128xf32> -> vector<2x128xf32>
    %447 = arith.addf %445, %446 : vector<2x128xf32>
    %448 = vector.broadcast %57 : vector<1x128xf32> to vector<2x128xf32>
    %449 = arith.addf %447, %448 : vector<2x128xf32>
    %450 = vector.extract_strided_slice %449 {offsets = [0, 0], sizes = [2, 32], strides = [1, 1]} : vector<2x128xf32> to vector<2x32xf32>
    %451 = arith.negf %450 : vector<2x32xf32>
    %452 = math.exp %451 : vector<2x32xf32>
    %cst_254 = arith.constant 1.000000e+00 : f32
    %453 = vector.broadcast %cst_254 : f32 to vector<2x32xf32>
    %454 = arith.addf %453, %452 : vector<2x32xf32>
    %455 = arith.divf %453, %454 : vector<2x32xf32>
    %456 = vector.extract_strided_slice %449 {offsets = [0, 32], sizes = [2, 32], strides = [1, 1]} : vector<2x128xf32> to vector<2x32xf32>
    %457 = arith.negf %456 : vector<2x32xf32>
    %458 = math.exp %457 : vector<2x32xf32>
    %cst_255 = arith.constant 1.000000e+00 : f32
    %459 = vector.broadcast %cst_255 : f32 to vector<2x32xf32>
    %460 = arith.addf %459, %458 : vector<2x32xf32>
    %461 = arith.divf %459, %460 : vector<2x32xf32>
    %462 = vector.extract_strided_slice %449 {offsets = [0, 64], sizes = [2, 32], strides = [1, 1]} : vector<2x128xf32> to vector<2x32xf32>
    %463 = math.tanh %462 : vector<2x32xf32>
    %464 = vector.extract_strided_slice %449 {offsets = [0, 96], sizes = [2, 32], strides = [1, 1]} : vector<2x128xf32> to vector<2x32xf32>
    %465 = arith.negf %464 : vector<2x32xf32>
    %466 = math.exp %465 : vector<2x32xf32>
    %cst_256 = arith.constant 1.000000e+00 : f32
    %467 = vector.broadcast %cst_256 : f32 to vector<2x32xf32>
    %468 = arith.addf %467, %466 : vector<2x32xf32>
    %469 = arith.divf %467, %468 : vector<2x32xf32>
    %470 = arith.mulf %461, %440 : vector<2x32xf32>
    %471 = arith.mulf %455, %463 : vector<2x32xf32>
    %472 = arith.addf %470, %471 : vector<2x32xf32>
    %473 = math.tanh %472 : vector<2x32xf32>
    %474 = arith.mulf %469, %473 : vector<2x32xf32>
    %cst_257 = arith.constant dense<0.000000e+00> : vector<32x32xf32>
    %475 = tpu.matmul %101, %474, %cst_257 {dimension_numbers = #tpu.dot_dimension_numbers<[1], [0], [0], [1], [0, 0, 1, 1], [], []>} : vector<32x2xf32>, vector<2x32xf32>, vector<32x32xf32> -> vector<32x32xf32>
    %476 = arith.mulf %210, %475 : vector<32x32xf32>
    %cst_258 = arith.constant dense<0.000000e+00> : vector<32xf32>
    %477 = vector.multi_reduction <add>, %476, %cst_258 [1] : vector<32x32xf32> to vector<32xf32>
    %478 = vector.shape_cast %477 : vector<32xf32> to vector<32x1xf32>
    %cst_259 = arith.constant 5.000000e-01 : f32
    %479 = vector.broadcast %cst_259 : f32 to vector<32x2xf32>
    %480 = arith.cmpf ogt, %101, %479 : vector<32x2xf32>
    %cst_260 = arith.constant -1.000000e+30 : f32
    %481 = vector.shape_cast %478 : vector<32x1xf32> to vector<32x1xf32>
    %482 = vector.broadcast %481 : vector<32x1xf32> to vector<32x2xf32>
    %483 = vector.broadcast %cst_260 : f32 to vector<32x2xf32>
    %484 = arith.select %480, %482, %483 : vector<32x2xi1>, vector<32x2xf32>
    %cst_261 = arith.constant dense<0xFF800000> : vector<2xf32>
    %485 = vector.multi_reduction <maximumf>, %484, %cst_261 [0] : vector<32x2xf32> to vector<2xf32>
    %486 = vector.shape_cast %485 : vector<2xf32> to vector<1x2xf32>
    %487 = vector.broadcast %486 : vector<1x2xf32> to vector<32x2xf32>
    %488 = arith.mulf %101, %487 : vector<32x2xf32>
    %cst_262 = arith.constant dense<0.000000e+00> : vector<32xf32>
    %489 = vector.multi_reduction <add>, %488, %cst_262 [1] : vector<32x2xf32> to vector<32xf32>
    %490 = vector.shape_cast %489 : vector<32xf32> to vector<32x1xf32>
    %491 = arith.subf %478, %490 : vector<32x1xf32>
    %492 = math.exp %491 : vector<32x1xf32>
    %493 = vector.broadcast %492 : vector<32x1xf32> to vector<32x2xf32>
    %494 = arith.mulf %101, %493 : vector<32x2xf32>
    %cst_263 = arith.constant dense<0.000000e+00> : vector<2xf32>
    %495 = vector.multi_reduction <add>, %494, %cst_263 [0] : vector<32x2xf32> to vector<2xf32>
    %496 = vector.shape_cast %495 : vector<2xf32> to vector<1x2xf32>
    %497 = vector.broadcast %496 : vector<1x2xf32> to vector<32x2xf32>
    %498 = arith.mulf %101, %497 : vector<32x2xf32>
    %cst_264 = arith.constant dense<0.000000e+00> : vector<32xf32>
    %499 = vector.multi_reduction <add>, %498, %cst_264 [1] : vector<32x2xf32> to vector<32xf32>
    %500 = vector.shape_cast %499 : vector<32xf32> to vector<32x1xf32>
    %501 = arith.divf %492, %500 : vector<32x1xf32>
    %502 = vector.broadcast %501 : vector<32x1xf32> to vector<32x32xf32>
    %503 = arith.mulf %502, %210 : vector<32x32xf32>
    %cst_265 = arith.constant dense<0.000000e+00> : vector<2x32xf32>
    %504 = tpu.matmul %116, %503, %cst_265 {dimension_numbers = #tpu.dot_dimension_numbers<[1], [0], [0], [1], [0, 0, 1, 1], [], []>} : vector<2x32xf32>, vector<32x32xf32>, vector<2x32xf32> -> vector<2x32xf32>
    %cst_266 = arith.constant dense<0.000000e+00> : vector<2x128xf32>
    %505 = tpu.matmul %474, %54, %cst_266 {dimension_numbers = #tpu.dot_dimension_numbers<[1], [0], [0], [1], [0, 0, 1, 1], [], []>} : vector<2x32xf32>, vector<32x128xf32>, vector<2x128xf32> -> vector<2x128xf32>
    %cst_267 = arith.constant dense<0.000000e+00> : vector<2x128xf32>
    %506 = tpu.matmul %504, %55, %cst_267 {dimension_numbers = #tpu.dot_dimension_numbers<[1], [0], [0], [1], [0, 0, 1, 1], [], []>} : vector<2x32xf32>, vector<32x128xf32>, vector<2x128xf32> -> vector<2x128xf32>
    %507 = arith.addf %505, %506 : vector<2x128xf32>
    %cst_268 = arith.constant dense<0.000000e+00> : vector<2x128xf32>
    %508 = tpu.matmul %474, %56, %cst_268 {dimension_numbers = #tpu.dot_dimension_numbers<[1], [0], [0], [1], [0, 0, 1, 1], [], []>} : vector<2x32xf32>, vector<32x128xf32>, vector<2x128xf32> -> vector<2x128xf32>
    %509 = arith.addf %507, %508 : vector<2x128xf32>
    %510 = vector.broadcast %57 : vector<1x128xf32> to vector<2x128xf32>
    %511 = arith.addf %509, %510 : vector<2x128xf32>
    %512 = vector.extract_strided_slice %511 {offsets = [0, 0], sizes = [2, 32], strides = [1, 1]} : vector<2x128xf32> to vector<2x32xf32>
    %513 = arith.negf %512 : vector<2x32xf32>
    %514 = math.exp %513 : vector<2x32xf32>
    %cst_269 = arith.constant 1.000000e+00 : f32
    %515 = vector.broadcast %cst_269 : f32 to vector<2x32xf32>
    %516 = arith.addf %515, %514 : vector<2x32xf32>
    %517 = arith.divf %515, %516 : vector<2x32xf32>
    %518 = vector.extract_strided_slice %511 {offsets = [0, 32], sizes = [2, 32], strides = [1, 1]} : vector<2x128xf32> to vector<2x32xf32>
    %519 = arith.negf %518 : vector<2x32xf32>
    %520 = math.exp %519 : vector<2x32xf32>
    %cst_270 = arith.constant 1.000000e+00 : f32
    %521 = vector.broadcast %cst_270 : f32 to vector<2x32xf32>
    %522 = arith.addf %521, %520 : vector<2x32xf32>
    %523 = arith.divf %521, %522 : vector<2x32xf32>
    %524 = vector.extract_strided_slice %511 {offsets = [0, 64], sizes = [2, 32], strides = [1, 1]} : vector<2x128xf32> to vector<2x32xf32>
    %525 = math.tanh %524 : vector<2x32xf32>
    %526 = vector.extract_strided_slice %511 {offsets = [0, 96], sizes = [2, 32], strides = [1, 1]} : vector<2x128xf32> to vector<2x32xf32>
    %527 = arith.negf %526 : vector<2x32xf32>
    %528 = math.exp %527 : vector<2x32xf32>
    %cst_271 = arith.constant 1.000000e+00 : f32
    %529 = vector.broadcast %cst_271 : f32 to vector<2x32xf32>
    %530 = arith.addf %529, %528 : vector<2x32xf32>
    %531 = arith.divf %529, %530 : vector<2x32xf32>
    %532 = arith.mulf %523, %472 : vector<2x32xf32>
    %533 = arith.mulf %517, %525 : vector<2x32xf32>
    %534 = arith.addf %532, %533 : vector<2x32xf32>
    %535 = math.tanh %534 : vector<2x32xf32>
    %536 = arith.mulf %531, %535 : vector<2x32xf32>
    %cst_272 = arith.constant dense<0.000000e+00> : vector<32x32xf32>
    %537 = tpu.matmul %101, %536, %cst_272 {dimension_numbers = #tpu.dot_dimension_numbers<[1], [0], [0], [1], [0, 0, 1, 1], [], []>} : vector<32x2xf32>, vector<2x32xf32>, vector<32x32xf32> -> vector<32x32xf32>
    %538 = arith.mulf %210, %537 : vector<32x32xf32>
    %cst_273 = arith.constant dense<0.000000e+00> : vector<32xf32>
    %539 = vector.multi_reduction <add>, %538, %cst_273 [1] : vector<32x32xf32> to vector<32xf32>
    %540 = vector.shape_cast %539 : vector<32xf32> to vector<32x1xf32>
    %cst_274 = arith.constant 5.000000e-01 : f32
    %541 = vector.broadcast %cst_274 : f32 to vector<32x2xf32>
    %542 = arith.cmpf ogt, %101, %541 : vector<32x2xf32>
    %cst_275 = arith.constant -1.000000e+30 : f32
    %543 = vector.shape_cast %540 : vector<32x1xf32> to vector<32x1xf32>
    %544 = vector.broadcast %543 : vector<32x1xf32> to vector<32x2xf32>
    %545 = vector.broadcast %cst_275 : f32 to vector<32x2xf32>
    %546 = arith.select %542, %544, %545 : vector<32x2xi1>, vector<32x2xf32>
    %cst_276 = arith.constant dense<0xFF800000> : vector<2xf32>
    %547 = vector.multi_reduction <maximumf>, %546, %cst_276 [0] : vector<32x2xf32> to vector<2xf32>
    %548 = vector.shape_cast %547 : vector<2xf32> to vector<1x2xf32>
    %549 = vector.broadcast %548 : vector<1x2xf32> to vector<32x2xf32>
    %550 = arith.mulf %101, %549 : vector<32x2xf32>
    %cst_277 = arith.constant dense<0.000000e+00> : vector<32xf32>
    %551 = vector.multi_reduction <add>, %550, %cst_277 [1] : vector<32x2xf32> to vector<32xf32>
    %552 = vector.shape_cast %551 : vector<32xf32> to vector<32x1xf32>
    %553 = arith.subf %540, %552 : vector<32x1xf32>
    %554 = math.exp %553 : vector<32x1xf32>
    %555 = vector.broadcast %554 : vector<32x1xf32> to vector<32x2xf32>
    %556 = arith.mulf %101, %555 : vector<32x2xf32>
    %cst_278 = arith.constant dense<0.000000e+00> : vector<2xf32>
    %557 = vector.multi_reduction <add>, %556, %cst_278 [0] : vector<32x2xf32> to vector<2xf32>
    %558 = vector.shape_cast %557 : vector<2xf32> to vector<1x2xf32>
    %559 = vector.broadcast %558 : vector<1x2xf32> to vector<32x2xf32>
    %560 = arith.mulf %101, %559 : vector<32x2xf32>
    %cst_279 = arith.constant dense<0.000000e+00> : vector<32xf32>
    %561 = vector.multi_reduction <add>, %560, %cst_279 [1] : vector<32x2xf32> to vector<32xf32>
    %562 = vector.shape_cast %561 : vector<32xf32> to vector<32x1xf32>
    %563 = arith.divf %554, %562 : vector<32x1xf32>
    %564 = vector.broadcast %563 : vector<32x1xf32> to vector<32x32xf32>
    %565 = arith.mulf %564, %210 : vector<32x32xf32>
    %cst_280 = arith.constant dense<0.000000e+00> : vector<2x32xf32>
    %566 = tpu.matmul %116, %565, %cst_280 {dimension_numbers = #tpu.dot_dimension_numbers<[1], [0], [0], [1], [0, 0, 1, 1], [], []>} : vector<2x32xf32>, vector<32x32xf32>, vector<2x32xf32> -> vector<2x32xf32>
    %cst_281 = arith.constant dense<0.000000e+00> : vector<2x128xf32>
    %567 = tpu.matmul %536, %54, %cst_281 {dimension_numbers = #tpu.dot_dimension_numbers<[1], [0], [0], [1], [0, 0, 1, 1], [], []>} : vector<2x32xf32>, vector<32x128xf32>, vector<2x128xf32> -> vector<2x128xf32>
    %cst_282 = arith.constant dense<0.000000e+00> : vector<2x128xf32>
    %568 = tpu.matmul %566, %55, %cst_282 {dimension_numbers = #tpu.dot_dimension_numbers<[1], [0], [0], [1], [0, 0, 1, 1], [], []>} : vector<2x32xf32>, vector<32x128xf32>, vector<2x128xf32> -> vector<2x128xf32>
    %569 = arith.addf %567, %568 : vector<2x128xf32>
    %cst_283 = arith.constant dense<0.000000e+00> : vector<2x128xf32>
    %570 = tpu.matmul %536, %56, %cst_283 {dimension_numbers = #tpu.dot_dimension_numbers<[1], [0], [0], [1], [0, 0, 1, 1], [], []>} : vector<2x32xf32>, vector<32x128xf32>, vector<2x128xf32> -> vector<2x128xf32>
    %571 = arith.addf %569, %570 : vector<2x128xf32>
    %572 = vector.broadcast %57 : vector<1x128xf32> to vector<2x128xf32>
    %573 = arith.addf %571, %572 : vector<2x128xf32>
    %574 = vector.extract_strided_slice %573 {offsets = [0, 0], sizes = [2, 32], strides = [1, 1]} : vector<2x128xf32> to vector<2x32xf32>
    %575 = arith.negf %574 : vector<2x32xf32>
    %576 = math.exp %575 : vector<2x32xf32>
    %cst_284 = arith.constant 1.000000e+00 : f32
    %577 = vector.broadcast %cst_284 : f32 to vector<2x32xf32>
    %578 = arith.addf %577, %576 : vector<2x32xf32>
    %579 = arith.divf %577, %578 : vector<2x32xf32>
    %580 = vector.extract_strided_slice %573 {offsets = [0, 32], sizes = [2, 32], strides = [1, 1]} : vector<2x128xf32> to vector<2x32xf32>
    %581 = arith.negf %580 : vector<2x32xf32>
    %582 = math.exp %581 : vector<2x32xf32>
    %cst_285 = arith.constant 1.000000e+00 : f32
    %583 = vector.broadcast %cst_285 : f32 to vector<2x32xf32>
    %584 = arith.addf %583, %582 : vector<2x32xf32>
    %585 = arith.divf %583, %584 : vector<2x32xf32>
    %586 = vector.extract_strided_slice %573 {offsets = [0, 64], sizes = [2, 32], strides = [1, 1]} : vector<2x128xf32> to vector<2x32xf32>
    %587 = math.tanh %586 : vector<2x32xf32>
    %588 = vector.extract_strided_slice %573 {offsets = [0, 96], sizes = [2, 32], strides = [1, 1]} : vector<2x128xf32> to vector<2x32xf32>
    %589 = arith.negf %588 : vector<2x32xf32>
    %590 = math.exp %589 : vector<2x32xf32>
    %cst_286 = arith.constant 1.000000e+00 : f32
    %591 = vector.broadcast %cst_286 : f32 to vector<2x32xf32>
    %592 = arith.addf %591, %590 : vector<2x32xf32>
    %593 = arith.divf %591, %592 : vector<2x32xf32>
    %594 = arith.mulf %585, %534 : vector<2x32xf32>
    %595 = arith.mulf %579, %587 : vector<2x32xf32>
    %596 = arith.addf %594, %595 : vector<2x32xf32>
    %597 = math.tanh %596 : vector<2x32xf32>
    %598 = arith.mulf %593, %597 : vector<2x32xf32>
    %cst_287 = arith.constant dense<0.000000e+00> : vector<32x32xf32>
    %599 = tpu.matmul %101, %598, %cst_287 {dimension_numbers = #tpu.dot_dimension_numbers<[1], [0], [0], [1], [0, 0, 1, 1], [], []>} : vector<32x2xf32>, vector<2x32xf32>, vector<32x32xf32> -> vector<32x32xf32>
    %600 = arith.mulf %210, %599 : vector<32x32xf32>
    %cst_288 = arith.constant dense<0.000000e+00> : vector<32xf32>
    %601 = vector.multi_reduction <add>, %600, %cst_288 [1] : vector<32x32xf32> to vector<32xf32>
    %602 = vector.shape_cast %601 : vector<32xf32> to vector<32x1xf32>
    %cst_289 = arith.constant 5.000000e-01 : f32
    %603 = vector.broadcast %cst_289 : f32 to vector<32x2xf32>
    %604 = arith.cmpf ogt, %101, %603 : vector<32x2xf32>
    %cst_290 = arith.constant -1.000000e+30 : f32
    %605 = vector.shape_cast %602 : vector<32x1xf32> to vector<32x1xf32>
    %606 = vector.broadcast %605 : vector<32x1xf32> to vector<32x2xf32>
    %607 = vector.broadcast %cst_290 : f32 to vector<32x2xf32>
    %608 = arith.select %604, %606, %607 : vector<32x2xi1>, vector<32x2xf32>
    %cst_291 = arith.constant dense<0xFF800000> : vector<2xf32>
    %609 = vector.multi_reduction <maximumf>, %608, %cst_291 [0] : vector<32x2xf32> to vector<2xf32>
    %610 = vector.shape_cast %609 : vector<2xf32> to vector<1x2xf32>
    %611 = vector.broadcast %610 : vector<1x2xf32> to vector<32x2xf32>
    %612 = arith.mulf %101, %611 : vector<32x2xf32>
    %cst_292 = arith.constant dense<0.000000e+00> : vector<32xf32>
    %613 = vector.multi_reduction <add>, %612, %cst_292 [1] : vector<32x2xf32> to vector<32xf32>
    %614 = vector.shape_cast %613 : vector<32xf32> to vector<32x1xf32>
    %615 = arith.subf %602, %614 : vector<32x1xf32>
    %616 = math.exp %615 : vector<32x1xf32>
    %617 = vector.broadcast %616 : vector<32x1xf32> to vector<32x2xf32>
    %618 = arith.mulf %101, %617 : vector<32x2xf32>
    %cst_293 = arith.constant dense<0.000000e+00> : vector<2xf32>
    %619 = vector.multi_reduction <add>, %618, %cst_293 [0] : vector<32x2xf32> to vector<2xf32>
    %620 = vector.shape_cast %619 : vector<2xf32> to vector<1x2xf32>
    %621 = vector.broadcast %620 : vector<1x2xf32> to vector<32x2xf32>
    %622 = arith.mulf %101, %621 : vector<32x2xf32>
    %cst_294 = arith.constant dense<0.000000e+00> : vector<32xf32>
    %623 = vector.multi_reduction <add>, %622, %cst_294 [1] : vector<32x2xf32> to vector<32xf32>
    %624 = vector.shape_cast %623 : vector<32xf32> to vector<32x1xf32>
    %625 = arith.divf %616, %624 : vector<32x1xf32>
    %626 = vector.broadcast %625 : vector<32x1xf32> to vector<32x32xf32>
    %627 = arith.mulf %626, %210 : vector<32x32xf32>
    %cst_295 = arith.constant dense<0.000000e+00> : vector<2x32xf32>
    %628 = tpu.matmul %116, %627, %cst_295 {dimension_numbers = #tpu.dot_dimension_numbers<[1], [0], [0], [1], [0, 0, 1, 1], [], []>} : vector<2x32xf32>, vector<32x32xf32>, vector<2x32xf32> -> vector<2x32xf32>
    %cst_296 = arith.constant dense<0.000000e+00> : vector<2x32xf32>
    %629 = tpu.matmul %408, %58, %cst_296 {dimension_numbers = #tpu.dot_dimension_numbers<[1], [0], [0], [1], [0, 0, 1, 1], [], []>} : vector<2x32xf32>, vector<32x32xf32>, vector<2x32xf32> -> vector<2x32xf32>
    %cst_297 = arith.constant dense<0.000000e+00> : vector<2x32xf32>
    %630 = tpu.matmul %438, %59, %cst_297 {dimension_numbers = #tpu.dot_dimension_numbers<[1], [0], [0], [1], [0, 0, 1, 1], [], []>} : vector<2x32xf32>, vector<32x32xf32>, vector<2x32xf32> -> vector<2x32xf32>
    %631 = arith.addf %629, %630 : vector<2x32xf32>
    %cst_298 = arith.constant dense<0.000000e+00> : vector<2x32xf32>
    %632 = tpu.matmul %598, %60, %cst_298 {dimension_numbers = #tpu.dot_dimension_numbers<[1], [0], [0], [1], [0, 0, 1, 1], [], []>} : vector<2x32xf32>, vector<32x32xf32>, vector<2x32xf32> -> vector<2x32xf32>
    %633 = arith.addf %631, %632 : vector<2x32xf32>
    %cst_299 = arith.constant dense<0.000000e+00> : vector<2x32xf32>
    %634 = tpu.matmul %628, %61, %cst_299 {dimension_numbers = #tpu.dot_dimension_numbers<[1], [0], [0], [1], [0, 0, 1, 1], [], []>} : vector<2x32xf32>, vector<32x32xf32>, vector<2x32xf32> -> vector<2x32xf32>
    %635 = arith.addf %633, %634 : vector<2x32xf32>
    %cst_300 = arith.constant dense<0.000000e+00> : vector<2x32xf32>
    %636 = tpu.matmul %248, %62, %cst_300 {dimension_numbers = #tpu.dot_dimension_numbers<[1], [0], [0], [1], [0, 0, 1, 1], [], []>} : vector<2x32xf32>, vector<32x32xf32>, vector<2x32xf32> -> vector<2x32xf32>
    %637 = arith.addf %635, %636 : vector<2x32xf32>
    %638 = vector.broadcast %63 : vector<1x32xf32> to vector<2x32xf32>
    %639 = arith.addf %637, %638 : vector<2x32xf32>
    %cst_301 = arith.constant 0.000000e+00 : f32
    %640 = vector.broadcast %cst_301 : f32 to vector<2x32xf32>
    %641 = arith.maximumf %639, %640 : vector<2x32xf32>
    %cst_302 = arith.constant dense<0.000000e+00> : vector<2x16xf32>
    %642 = tpu.matmul %641, %64, %cst_302 {dimension_numbers = #tpu.dot_dimension_numbers<[1], [0], [0], [1], [0, 0, 1, 1], [], []>} : vector<2x32xf32>, vector<32x16xf32>, vector<2x16xf32> -> vector<2x16xf32>
    %643 = vector.broadcast %65 : vector<1x16xf32> to vector<2x16xf32>
    %644 = arith.addf %642, %643 : vector<2x16xf32>
    %cst_303 = arith.constant 0.000000e+00 : f32
    %645 = vector.broadcast %cst_303 : f32 to vector<2x16xf32>
    %646 = arith.maximumf %644, %645 : vector<2x16xf32>
    %cst_304 = arith.constant dense<0.000000e+00> : vector<2x1xf32>
    %647 = tpu.matmul %646, %66, %cst_304 {dimension_numbers = #tpu.dot_dimension_numbers<[1], [0], [0], [1], [0, 0, 1, 1], [], []>} : vector<2x16xf32>, vector<16x1xf32>, vector<2x1xf32> -> vector<2x1xf32>
    %648 = vector.broadcast %67 : vector<1x1xf32> to vector<2x1xf32>
    %649 = arith.addf %647, %648 : vector<2x1xf32>
    %c0_305 = arith.constant 0 : index
    %c0_306 = arith.constant 0 : index
    %650 = vector.load %arg68[%c0_305, %c0_306] : memref<2x1xf32, #tpu.memory_space<vmem>>, vector<2x1xf32>
    tpu.vector_store %arg68[%c0_305, %c0_306], %649 {strides = array<i32>} : memref<2x1xf32, #tpu.memory_space<vmem>>, vector<2x1xf32>,
    return
  }
}

</mosaic_0001>

<llo_original>
// kernel: megnet_forward_fn.1
$region0: #{megnet_forward_fn.1}
  #allocation0 [shape = 'u32[]', space=smem, size = 0x4, offset = 0x4, fixed_abs, tag = 'smem constant byte address 0x4 - core index']
  #allocation1 [shape = 'u32[144,128]{1,0:T(1,128)}', space=vmem, size = 0x12000, scoped, tag = 'internal scratch']
  #allocation2 [shape = 'f32[1,1]{1,0:T(1,128)S(1)}', space=vmem, size = 0x200, scoped, tag = 'scoped memory for megnet_forward_fn.1']
  %s0 = inlined_call_operand.smem [shape: u32[69], index: -1, kind: input, shape index: {}]
  %s1 = sld [smem:[%s0]]
  %s2 = scalar_lea.smem %s0, 1
  %s3 = sld [smem:[%s2]]
  %s4 = scalar_lea.smem %s0, 2
  %s5 = sld [smem:[%s4]]
  %s6 = scalar_lea.smem %s0, 3
  %s7 = sld [smem:[%s6]]
  %s8 = scalar_lea.smem %s0, 4
  %s9 = sld [smem:[%s8]]
  %s10 = scalar_lea.smem %s0, 5
  %s11 = sld [smem:[%s10]]
  %s12 = scalar_lea.smem %s0, 6
  %s13 = sld [smem:[%s12]]
  %s14 = scalar_lea.smem %s0, 7
  %s15 = sld [smem:[%s14]]
  %s16 = scalar_lea.smem %s0, 8
  %s17 = sld [smem:[%s16]]
  %s18 = scalar_lea.smem %s0, 9
  %s19 = sld [smem:[%s18]]
  %s20 = scalar_lea.smem %s0, 10
  %s21 = sld [smem:[%s20]]
  %s22 = scalar_lea.smem %s0, 11
  %s23 = sld [smem:[%s22]]
  %s24 = scalar_lea.smem %s0, 12
  %s25 = sld [smem:[%s24]]
  %s26 = scalar_lea.smem %s0, 13
  %s27 = sld [smem:[%s26]]
  %s28 = scalar_lea.smem %s0, 14
  %s29 = sld [smem:[%s28]]
  %s30 = scalar_lea.smem %s0, 15
  %s31 = sld [smem:[%s30]]
  %s32 = scalar_lea.smem %s0, 16
  %s33 = sld [smem:[%s32]]
  %s34 = scalar_lea.smem %s0, 17
  %s35 = sld [smem:[%s34]]
  %s36 = scalar_lea.smem %s0, 18
  %s37 = sld [smem:[%s36]]
  %s38 = scalar_lea.smem %s0, 19
  %s39 = sld [smem:[%s38]]
  %s40 = scalar_lea.smem %s0, 20
  %s41 = sld [smem:[%s40]]
  %s42 = scalar_lea.smem %s0, 21
  %s43 = sld [smem:[%s42]]
  %s44 = scalar_lea.smem %s0, 22
  %s45 = sld [smem:[%s44]]
  %s46 = scalar_lea.smem %s0, 23
  %s47 = sld [smem:[%s46]]
  %s48 = scalar_lea.smem %s0, 24
  %s49 = sld [smem:[%s48]]
  %s50 = scalar_lea.smem %s0, 25
  %s51 = sld [smem:[%s50]]
  %s52 = scalar_lea.smem %s0, 26
  %s53 = sld [smem:[%s52]]
  %s54 = scalar_lea.smem %s0, 27
  %s55 = sld [smem:[%s54]]
  %s56 = scalar_lea.smem %s0, 28
  %s57 = sld [smem:[%s56]]
  %s58 = scalar_lea.smem %s0, 29
  %s59 = sld [smem:[%s58]]
  %s60 = scalar_lea.smem %s0, 30
  %s61 = sld [smem:[%s60]]
  %s62 = scalar_lea.smem %s0, 31
  %s63 = sld [smem:[%s62]]
  %s64 = scalar_lea.smem %s0, 32
  %s65 = sld [smem:[%s64]]
  %s66 = scalar_lea.smem %s0, 33
  %s67 = sld [smem:[%s66]]
  %s68 = scalar_lea.smem %s0, 34
  %s69 = sld [smem:[%s68]]
  %s70 = scalar_lea.smem %s0, 35
  %s71 = sld [smem:[%s70]]
  %s72 = scalar_lea.smem %s0, 36
  %s73 = sld [smem:[%s72]]
  %s74 = scalar_lea.smem %s0, 37
  %s75 = sld [smem:[%s74]]
  %s76 = scalar_lea.smem %s0, 38
  %s77 = sld [smem:[%s76]]
  %s78 = scalar_lea.smem %s0, 39
  %s79 = sld [smem:[%s78]]
  %s80 = scalar_lea.smem %s0, 40
  %s81 = sld [smem:[%s80]]
  %s82 = scalar_lea.smem %s0, 41
  %s83 = sld [smem:[%s82]]
  %s84 = scalar_lea.smem %s0, 42
  %s85 = sld [smem:[%s84]]
  %s86 = scalar_lea.smem %s0, 43
  %s87 = sld [smem:[%s86]]
  %s88 = scalar_lea.smem %s0, 44
  %s89 = sld [smem:[%s88]]
  %s90 = scalar_lea.smem %s0, 45
  %s91 = sld [smem:[%s90]]
  %s92 = scalar_lea.smem %s0, 46
  %s93 = sld [smem:[%s92]]
  %s94 = scalar_lea.smem %s0, 47
  %s95 = sld [smem:[%s94]]
  %s96 = scalar_lea.smem %s0, 48
  %s97 = sld [smem:[%s96]]
  %s98 = scalar_lea.smem %s0, 49
  %s99 = sld [smem:[%s98]]
  %s100 = scalar_lea.smem %s0, 50
  %s101 = sld [smem:[%s100]]
  %s102 = scalar_lea.smem %s0, 51
  %s103 = sld [smem:[%s102]]
  %s104 = scalar_lea.smem %s0, 52
  %s105 = sld [smem:[%s104]]
  %s106 = scalar_lea.smem %s0, 53
  %s107 = sld [smem:[%s106]]
  %s108 = scalar_lea.smem %s0, 54
  %s109 = sld [smem:[%s108]]
  %s110 = scalar_lea.smem %s0, 55
  %s111 = sld [smem:[%s110]]
  %s112 = scalar_lea.smem %s0, 56
  %s113 = sld [smem:[%s112]]
  %s114 = scalar_lea.smem %s0, 57
  %s115 = sld [smem:[%s114]]
  %s116 = scalar_lea.smem %s0, 58
  %s117 = sld [smem:[%s116]]
  %s118 = scalar_lea.smem %s0, 59
  %s119 = sld [smem:[%s118]]
  %s120 = scalar_lea.smem %s0, 60
  %s121 = sld [smem:[%s120]]
  %s122 = scalar_lea.smem %s0, 61
  %s123 = sld [smem:[%s122]]
  %s124 = scalar_lea.smem %s0, 62
  %s125 = sld [smem:[%s124]]
  %s126 = scalar_lea.smem %s0, 63
  %s127 = sld [smem:[%s126]]
  %s128 = scalar_lea.smem %s0, 64
  %s129 = sld [smem:[%s128]]
  %s130 = scalar_lea.smem %s0, 65
  %s131 = sld [smem:[%s130]]
  %s132 = scalar_lea.smem %s0, 66
  %s133 = sld [smem:[%s132]]
  %s134 = scalar_lea.smem %s0, 67
  %s135 = sld [smem:[%s134]]
  %s136 = scalar_lea.smem %s0, 68
  %s137 = sld [smem:[%s136]]
  %s138 = sld [smem:[#allocation0]]
  $region362: #{megnet_forward_fn.1} parent=0
    _
  %s140 = ssub.s32 1, %s138
  %s141 = scalar_select 0, %s140, %s138
  %v142 = vstv %s135
  %143 = vst [vmem:[#allocation2] sm:$0x1] %v142
  $region1: #{megnet_forward_fn.1} parent=0
    #allocation3 [shape = 'u8[512]{0}', space=vmem, size = 0x400, scoped, tag = 'input window, operand 5, single buffered']
    #allocation4 [shape = 's32[1]{0}', space=sflag, size = 0x4, scoped, tag = 'scoped memory for megnet_forward_fn.1']
    #allocation5 [shape = 'u8[512]{0}', space=vmem, size = 0x400, scoped, tag = 'input window, operand 7, single buffered']
    #allocation6 [shape = 's32[1]{0}', space=sflag, size = 0x4, scoped, tag = 'scoped memory for megnet_forward_fn.1']
    #allocation7 [shape = 'u8[512]{0}', space=vmem, size = 0x400, scoped, tag = 'input window, operand 9, single buffered']
    #allocation8 [shape = 'u8[512]{0}', space=vmem, size = 0x400, scoped, tag = 'input window, operand 11, single buffered']
    #allocation9 [shape = 's32[1]{0}', space=sflag, size = 0x4, scoped, tag = 'scoped memory for megnet_forward_fn.1']
    #allocation10 [shape = 'u8[512]{0}', space=vmem, size = 0x400, scoped, tag = 'input window, operand 16, single buffered']
    #allocation11 [shape = 'u8[512]{0}', space=vmem, size = 0x400, scoped, tag = 'input window, operand 18, single buffered']
    #allocation12 [shape = 's32[1]{0}', space=sflag, size = 0x4, scoped, tag = 'scoped memory for megnet_forward_fn.1']
    #allocation13 [shape = 'u8[512]{0}', space=vmem, size = 0x400, scoped, tag = 'input window, operand 22, single buffered']
    #allocation14 [shape = 'u8[512]{0}', space=vmem, size = 0x400, scoped, tag = 'input window, operand 24, single buffered']
    #allocation15 [shape = 's32[1]{0}', space=sflag, size = 0x4, scoped, tag = 'scoped memory for megnet_forward_fn.1']
    #allocation16 [shape = 'u8[512]{0}', space=vmem, size = 0x400, scoped, tag = 'input window, operand 28, single buffered']
    #allocation17 [shape = 'u8[512]{0}', space=vmem, size = 0x400, scoped, tag = 'input window, operand 30, single buffered']
    #allocation18 [shape = 's32[1]{0}', space=sflag, size = 0x4, scoped, tag = 'scoped memory for megnet_forward_fn.1']
    #allocation19 [shape = 'u8[512]{0}', space=vmem, size = 0x400, scoped, tag = 'input window, operand 35, single buffered']
    #allocation20 [shape = 'u8[512]{0}', space=vmem, size = 0x400, scoped, tag = 'input window, operand 37, single buffered']
    #allocation21 [shape = 's32[1]{0}', space=sflag, size = 0x4, scoped, tag = 'scoped memory for megnet_forward_fn.1']
    #allocation22 [shape = 'u8[512]{0}', space=vmem, size = 0x400, scoped, tag = 'input window, operand 41, single buffered']
    #allocation23 [shape = 'u8[512]{0}', space=vmem, size = 0x400, scoped, tag = 'input window, operand 43, single buffered']
    #allocation24 [shape = 's32[1]{0}', space=sflag, size = 0x4, scoped, tag = 'scoped memory for megnet_forward_fn.1']
    #allocation25 [shape = 'u8[512]{0}', space=vmem, size = 0x400, scoped, tag = 'input window, operand 47, single buffered']
    #allocation26 [shape = 'u8[512]{0}', space=vmem, size = 0x400, scoped, tag = 'input window, operand 49, single buffered']
    #allocation27 [shape = 's32[1]{0}', space=sflag, size = 0x4, scoped, tag = 'scoped memory for megnet_forward_fn.1']
    #allocation28 [shape = 'u8[512]{0}', space=vmem, size = 0x400, scoped, tag = 'input window, operand 53, single buffered']
    #allocation29 [shape = 'u8[512]{0}', space=vmem, size = 0x400, scoped, tag = 'input window, operand 57, single buffered']
    #allocation30 [shape = 's32[1]{0}', space=sflag, size = 0x4, scoped, tag = 'scoped memory for megnet_forward_fn.1']
    #allocation31 [shape = 'u8[512]{0}', space=vmem, size = 0x400, scoped, tag = 'input window, operand 63, single buffered']
    #allocation32 [shape = 'u8[512]{0}', space=vmem, size = 0x400, scoped, tag = 'input window, operand 65, single buffered']
    #allocation33 [shape = 's32[1]{0}', space=sflag, size = 0x4, scoped, tag = 'scoped memory for megnet_forward_fn.1']
    %144 = vsyncpa [#allocation4], 0
    %145 = vsyncpa [#allocation6], 0
    %146 = vsyncpa [#allocation9], 0
    %147 = vsyncpa [#allocation12], 0
    %148 = vsyncpa [#allocation15], 0
    %149 = vsyncpa [#allocation18], 0
    %150 = vsyncpa [#allocation21], 0
    %151 = vsyncpa [#allocation24], 0
    %152 = vsyncpa [#allocation27], 0
    %153 = vsyncpa [#allocation30], 0
    %154 = vsyncpa [#allocation33], 0
    // Predicated region
    $region2: #{megnet_forward_fn.1} parent=1 // pred_check
      _
    $region3: #{megnet_forward_fn.1} parent=1 // pred_check_branch
      %156 = sbr.rel (0) target = $region5
    $region4: #{megnet_forward_fn.1} parent=1 // pred_region
      _
    $region5: #{megnet_forward_fn.1} parent=1 // pred_fallthru
      _
    // Predicated region
    $region6: #{megnet_forward_fn.1} parent=1 // pred_check
      _
    $region7: #{megnet_forward_fn.1} parent=1 // pred_check_branch
      %158 = sbr.rel (0) target = $region9
    $region8: #{megnet_forward_fn.1} parent=1 // pred_region
      _
    $region9: #{megnet_forward_fn.1} parent=1 // pred_fallthru
      _
    // Predicated region
    $region10: #{megnet_forward_fn.1} parent=1 // pred_check
      _
    $region11: #{megnet_forward_fn.1} parent=1 // pred_check_branch
      %160 = sbr.rel (0) target = $region13
    $region12: #{megnet_forward_fn.1} parent=1 // pred_region
      _
    $region13: #{megnet_forward_fn.1} parent=1 // pred_fallthru
      _
    // Predicated region
    $region14: #{megnet_forward_fn.1} parent=1 // pred_check
      _
    $region15: #{megnet_forward_fn.1} parent=1 // pred_check_branch
      %162 = sbr.rel (0) target = $region17
    $region16: #{megnet_forward_fn.1} parent=1 // pred_region
      _
    $region17: #{megnet_forward_fn.1} parent=1 // pred_fallthru
      _
    // Predicated region
    $region18: #{megnet_forward_fn.1} parent=1 // pred_check
      _
    $region19: #{megnet_forward_fn.1} parent=1 // pred_check_branch
      %164 = sbr.rel (0) target = $region21
    $region20: #{megnet_forward_fn.1} parent=1 // pred_region
      _
    $region21: #{megnet_forward_fn.1} parent=1 // pred_fallthru
      _
    // Predicated region
    $region22: #{megnet_forward_fn.1} parent=1 // pred_check
      _
    $region23: #{megnet_forward_fn.1} parent=1 // pred_check_branch
      %166 = sbr.rel (0) target = $region25
    $region24: #{megnet_forward_fn.1} parent=1 // pred_region
      %s168 = ssub.s32 16, 16
      %169 = vsyncadd [#allocation4], %s168
      %s171 = sshll.u32 [#allocation3], 4
      %s172 = int_to_ptr.vmem [resolvable:$true] %s171
      %174 = dma.hbm_to_vmem [thread:$0]  %s11, 16, %s172, [#allocation4]
    $region25: #{megnet_forward_fn.1} parent=1 // pred_fallthru
      _
    // Predicated region
    $region26: #{megnet_forward_fn.1} parent=1 // pred_check
      _
    $region27: #{megnet_forward_fn.1} parent=1 // pred_check_branch
      %176 = sbr.rel (0) target = $region29
    $region28: #{megnet_forward_fn.1} parent=1 // pred_region
      _
    $region29: #{megnet_forward_fn.1} parent=1 // pred_fallthru
      _
    // Predicated region
    $region30: #{megnet_forward_fn.1} parent=1 // pred_check
      _
    $region31: #{megnet_forward_fn.1} parent=1 // pred_check_branch
      %178 = sbr.rel (0) target = $region33
    $region32: #{megnet_forward_fn.1} parent=1 // pred_region
      %s180 = ssub.s32 16, 16
      %181 = vsyncadd [#allocation6], %s180
      %s183 = sshll.u32 [#allocation5], 4
      %s184 = int_to_ptr.vmem [resolvable:$true] %s183
      %186 = dma.hbm_to_vmem [thread:$0]  %s15, 16, %s184, [#allocation6]
    $region33: #{megnet_forward_fn.1} parent=1 // pred_fallthru
      _
    // Predicated region
    $region34: #{megnet_forward_fn.1} parent=1 // pred_check
      _
    $region35: #{megnet_forward_fn.1} parent=1 // pred_check_branch
      %188 = sbr.rel (0) target = $region37
    $region36: #{megnet_forward_fn.1} parent=1 // pred_region
      _
    $region37: #{megnet_forward_fn.1} parent=1 // pred_fallthru
      _
    // Predicated region
    $region38: #{megnet_forward_fn.1} parent=1 // pred_check
      _
    $region39: #{megnet_forward_fn.1} parent=1 // pred_check_branch
      %190 = sbr.rel (0) target = $region41
    $region40: #{megnet_forward_fn.1} parent=1 // pred_region
      %s192 = ssub.s32 16, 16
      %193 = vsyncadd [#allocation6], %s192
      %s195 = sshll.u32 [#allocation7], 4
      %s196 = int_to_ptr.vmem [resolvable:$true] %s195
      %198 = dma.hbm_to_vmem [thread:$0]  %s19, 16, %s196, [#allocation6]
    $region41: #{megnet_forward_fn.1} parent=1 // pred_fallthru
      _
    // Predicated region
    $region42: #{megnet_forward_fn.1} parent=1 // pred_check
      _
    $region43: #{megnet_forward_fn.1} parent=1 // pred_check_branch
      %200 = sbr.rel (0) target = $region45
    $region44: #{megnet_forward_fn.1} parent=1 // pred_region
      _
    $region45: #{megnet_forward_fn.1} parent=1 // pred_fallthru
      _
    // Predicated region
    $region46: #{megnet_forward_fn.1} parent=1 // pred_check
      _
    $region47: #{megnet_forward_fn.1} parent=1 // pred_check_branch
      %202 = sbr.rel (0) target = $region49
    $region48: #{megnet_forward_fn.1} parent=1 // pred_region
      %s204 = ssub.s32 16, 16
      %205 = vsyncadd [#allocation9], %s204
      %s207 = sshll.u32 [#allocation8], 4
      %s208 = int_to_ptr.vmem [resolvable:$true] %s207
      %210 = dma.hbm_to_vmem [thread:$0]  %s23, 16, %s208, [#allocation9]
    $region49: #{megnet_forward_fn.1} parent=1 // pred_fallthru
      _
    // Predicated region
    $region50: #{megnet_forward_fn.1} parent=1 // pred_check
      _
    $region51: #{megnet_forward_fn.1} parent=1 // pred_check_branch
      %212 = sbr.rel (0) target = $region53
    $region52: #{megnet_forward_fn.1} parent=1 // pred_region
      _
    $region53: #{megnet_forward_fn.1} parent=1 // pred_fallthru
      _
    // Predicated region
    $region54: #{megnet_forward_fn.1} parent=1 // pred_check
      _
    $region55: #{megnet_forward_fn.1} parent=1 // pred_check_branch
      %214 = sbr.rel (0) target = $region57
    $region56: #{megnet_forward_fn.1} parent=1 // pred_region
      _
    $region57: #{megnet_forward_fn.1} parent=1 // pred_fallthru
      _
    // Predicated region
    $region58: #{megnet_forward_fn.1} parent=1 // pred_check
      _
    $region59: #{megnet_forward_fn.1} parent=1 // pred_check_branch
      %216 = sbr.rel (0) target = $region61
    $region60: #{megnet_forward_fn.1} parent=1 // pred_region
      _
    $region61: #{megnet_forward_fn.1} parent=1 // pred_fallthru
      _
    // Predicated region
    $region62: #{megnet_forward_fn.1} parent=1 // pred_check
      _
    $region63: #{megnet_forward_fn.1} parent=1 // pred_check_branch
      %218 = sbr.rel (0) target = $region65
    $region64: #{megnet_forward_fn.1} parent=1 // pred_region
      _
    $region65: #{megnet_forward_fn.1} parent=1 // pred_fallthru
      _
    // Predicated region
    $region66: #{megnet_forward_fn.1} parent=1 // pred_check
      _
    $region67: #{megnet_forward_fn.1} parent=1 // pred_check_branch
      %220 = sbr.rel (0) target = $region69
    $region68: #{megnet_forward_fn.1} parent=1 // pred_region
      %s222 = ssub.s32 16, 16
      %223 = vsyncadd [#allocation9], %s222
      %s225 = sshll.u32 [#allocation10], 4
      %s226 = int_to_ptr.vmem [resolvable:$true] %s225
      %228 = dma.hbm_to_vmem [thread:$0]  %s33, 16, %s226, [#allocation9]
    $region69: #{megnet_forward_fn.1} parent=1 // pred_fallthru
      _
    // Predicated region
    $region70: #{megnet_forward_fn.1} parent=1 // pred_check
      _
    $region71: #{megnet_forward_fn.1} parent=1 // pred_check_branch
      %230 = sbr.rel (0) target = $region73
    $region72: #{megnet_forward_fn.1} parent=1 // pred_region
      _
    $region73: #{megnet_forward_fn.1} parent=1 // pred_fallthru
      _
    // Predicated region
    $region74: #{megnet_forward_fn.1} parent=1 // pred_check
      _
    $region75: #{megnet_forward_fn.1} parent=1 // pred_check_branch
      %232 = sbr.rel (0) target = $region77
    $region76: #{megnet_forward_fn.1} parent=1 // pred_region
      %s234 = ssub.s32 16, 16
      %235 = vsyncadd [#allocation12], %s234
      %s237 = sshll.u32 [#allocation11], 4
      %s238 = int_to_ptr.vmem [resolvable:$true] %s237
      %240 = dma.hbm_to_vmem [thread:$0]  %s37, 16, %s238, [#allocation12]
    $region77: #{megnet_forward_fn.1} parent=1 // pred_fallthru
      _
    // Predicated region
    $region78: #{megnet_forward_fn.1} parent=1 // pred_check
      _
    $region79: #{megnet_forward_fn.1} parent=1 // pred_check_branch
      %242 = sbr.rel (0) target = $region81
    $region80: #{megnet_forward_fn.1} parent=1 // pred_region
      _
    $region81: #{megnet_forward_fn.1} parent=1 // pred_fallthru
      _
    // Predicated region
    $region82: #{megnet_forward_fn.1} parent=1 // pred_check
      _
    $region83: #{megnet_forward_fn.1} parent=1 // pred_check_branch
      %244 = sbr.rel (0) target = $region85
    $region84: #{megnet_forward_fn.1} parent=1 // pred_region
      _
    $region85: #{megnet_forward_fn.1} parent=1 // pred_fallthru
      _
    // Predicated region
    $region86: #{megnet_forward_fn.1} parent=1 // pred_check
      _
    $region87: #{megnet_forward_fn.1} parent=1 // pred_check_branch
      %246 = sbr.rel (0) target = $region89
    $region88: #{megnet_forward_fn.1} parent=1 // pred_region
      _
    $region89: #{megnet_forward_fn.1} parent=1 // pred_fallthru
      _
    // Predicated region
    $region90: #{megnet_forward_fn.1} parent=1 // pred_check
      _
    $region91: #{megnet_forward_fn.1} parent=1 // pred_check_branch
      %248 = sbr.rel (0) target = $region93
    $region92: #{megnet_forward_fn.1} parent=1 // pred_region
      %s250 = ssub.s32 16, 16
      %251 = vsyncadd [#allocation12], %s250
      %s253 = sshll.u32 [#allocation13], 4
      %s254 = int_to_ptr.vmem [resolvable:$true] %s253
      %256 = dma.hbm_to_vmem [thread:$0]  %s45, 16, %s254, [#allocation12]
    $region93: #{megnet_forward_fn.1} parent=1 // pred_fallthru
      _
    // Predicated region
    $region94: #{megnet_forward_fn.1} parent=1 // pred_check
      _
    $region95: #{megnet_forward_fn.1} parent=1 // pred_check_branch
      %258 = sbr.rel (0) target = $region97
    $region96: #{megnet_forward_fn.1} parent=1 // pred_region
      _
    $region97: #{megnet_forward_fn.1} parent=1 // pred_fallthru
      _
    // Predicated region
    $region98: #{megnet_forward_fn.1} parent=1 // pred_check
      _
    $region99: #{megnet_forward_fn.1} parent=1 // pred_check_branch
      %260 = sbr.rel (0) target = $region101
    $region100: #{megnet_forward_fn.1} parent=1 // pred_region
      %s262 = ssub.s32 16, 16
      %263 = vsyncadd [#allocation15], %s262
      %s265 = sshll.u32 [#allocation14], 4
      %s266 = int_to_ptr.vmem [resolvable:$true] %s265
      %268 = dma.hbm_to_vmem [thread:$0]  %s49, 16, %s266, [#allocation15]
    $region101: #{megnet_forward_fn.1} parent=1 // pred_fallthru
      _
    // Predicated region
    $region102: #{megnet_forward_fn.1} parent=1 // pred_check
      _
    $region103: #{megnet_forward_fn.1} parent=1 // pred_check_branch
      %270 = sbr.rel (0) target = $region105
    $region104: #{megnet_forward_fn.1} parent=1 // pred_region
      _
    $region105: #{megnet_forward_fn.1} parent=1 // pred_fallthru
      _
    // Predicated region
    $region106: #{megnet_forward_fn.1} parent=1 // pred_check
      _
    $region107: #{megnet_forward_fn.1} parent=1 // pred_check_branch
      %272 = sbr.rel (0) target = $region109
    $region108: #{megnet_forward_fn.1} parent=1 // pred_region
      _
    $region109: #{megnet_forward_fn.1} parent=1 // pred_fallthru
      _
    // Predicated region
    $region110: #{megnet_forward_fn.1} parent=1 // pred_check
      _
    $region111: #{megnet_forward_fn.1} parent=1 // pred_check_branch
      %274 = sbr.rel (0) target = $region113
    $region112: #{megnet_forward_fn.1} parent=1 // pred_region
      _
    $region113: #{megnet_forward_fn.1} parent=1 // pred_fallthru
      _
    // Predicated region
    $region114: #{megnet_forward_fn.1} parent=1 // pred_check
      _
    $region115: #{megnet_forward_fn.1} parent=1 // pred_check_branch
      %276 = sbr.rel (0) target = $region117
    $region116: #{megnet_forward_fn.1} parent=1 // pred_region
      %s278 = ssub.s32 16, 16
      %279 = vsyncadd [#allocation15], %s278
      %s281 = sshll.u32 [#allocation16], 4
      %s282 = int_to_ptr.vmem [resolvable:$true] %s281
      %284 = dma.hbm_to_vmem [thread:$0]  %s57, 16, %s282, [#allocation15]
    $region117: #{megnet_forward_fn.1} parent=1 // pred_fallthru
      _
    // Predicated region
    $region118: #{megnet_forward_fn.1} parent=1 // pred_check
      _
    $region119: #{megnet_forward_fn.1} parent=1 // pred_check_branch
      %286 = sbr.rel (0) target = $region121
    $region120: #{megnet_forward_fn.1} parent=1 // pred_region
      _
    $region121: #{megnet_forward_fn.1} parent=1 // pred_fallthru
      _
    // Predicated region
    $region122: #{megnet_forward_fn.1} parent=1 // pred_check
      _
    $region123: #{megnet_forward_fn.1} parent=1 // pred_check_branch
      %288 = sbr.rel (0) target = $region125
    $region124: #{megnet_forward_fn.1} parent=1 // pred_region
      %s290 = ssub.s32 16, 16
      %291 = vsyncadd [#allocation18], %s290
      %s293 = sshll.u32 [#allocation17], 4
      %s294 = int_to_ptr.vmem [resolvable:$true] %s293
      %296 = dma.hbm_to_vmem [thread:$0]  %s61, 16, %s294, [#allocation18]
    $region125: #{megnet_forward_fn.1} parent=1 // pred_fallthru
      _
    // Predicated region
    $region126: #{megnet_forward_fn.1} parent=1 // pred_check
      _
    $region127: #{megnet_forward_fn.1} parent=1 // pred_check_branch
      %298 = sbr.rel (0) target = $region129
    $region128: #{megnet_forward_fn.1} parent=1 // pred_region
      _
    $region129: #{megnet_forward_fn.1} parent=1 // pred_fallthru
      _
    // Predicated region
    $region130: #{megnet_forward_fn.1} parent=1 // pred_check
      _
    $region131: #{megnet_forward_fn.1} parent=1 // pred_check_branch
      %300 = sbr.rel (0) target = $region133
    $region132: #{megnet_forward_fn.1} parent=1 // pred_region
      _
    $region133: #{megnet_forward_fn.1} parent=1 // pred_fallthru
      _
    // Predicated region
    $region134: #{megnet_forward_fn.1} parent=1 // pred_check
      _
    $region135: #{megnet_forward_fn.1} parent=1 // pred_check_branch
      %302 = sbr.rel (0) target = $region137
    $region136: #{megnet_forward_fn.1} parent=1 // pred_region
      _
    $region137: #{megnet_forward_fn.1} parent=1 // pred_fallthru
      _
    // Predicated region
    $region138: #{megnet_forward_fn.1} parent=1 // pred_check
      _
    $region139: #{megnet_forward_fn.1} parent=1 // pred_check_branch
      %304 = sbr.rel (0) target = $region141
    $region140: #{megnet_forward_fn.1} parent=1 // pred_region
      _
    $region141: #{megnet_forward_fn.1} parent=1 // pred_fallthru
      _
    // Predicated region
    $region142: #{megnet_forward_fn.1} parent=1 // pred_check
      _
    $region143: #{megnet_forward_fn.1} parent=1 // pred_check_branch
      %306 = sbr.rel (0) target = $region145
    $region144: #{megnet_forward_fn.1} parent=1 // pred_region
      %s308 = ssub.s32 16, 16
      %309 = vsyncadd [#allocation18], %s308
      %s311 = sshll.u32 [#allocation19], 4
      %s312 = int_to_ptr.vmem [resolvable:$true] %s311
      %314 = dma.hbm_to_vmem [thread:$0]  %s71, 16, %s312, [#allocation18]
    $region145: #{megnet_forward_fn.1} parent=1 // pred_fallthru
      _
    // Predicated region
    $region146: #{megnet_forward_fn.1} parent=1 // pred_check
      _
    $region147: #{megnet_forward_fn.1} parent=1 // pred_check_branch
      %316 = sbr.rel (0) target = $region149
    $region148: #{megnet_forward_fn.1} parent=1 // pred_region
      _
    $region149: #{megnet_forward_fn.1} parent=1 // pred_fallthru
      _
    // Predicated region
    $region150: #{megnet_forward_fn.1} parent=1 // pred_check
      _
    $region151: #{megnet_forward_fn.1} parent=1 // pred_check_branch
      %318 = sbr.rel (0) target = $region153
    $region152: #{megnet_forward_fn.1} parent=1 // pred_region
      %s320 = ssub.s32 16, 16
      %321 = vsyncadd [#allocation21], %s320
      %s323 = sshll.u32 [#allocation20], 4
      %s324 = int_to_ptr.vmem [resolvable:$true] %s323
      %326 = dma.hbm_to_vmem [thread:$0]  %s75, 16, %s324, [#allocation21]
    $region153: #{megnet_forward_fn.1} parent=1 // pred_fallthru
      _
    // Predicated region
    $region154: #{megnet_forward_fn.1} parent=1 // pred_check
      _
    $region155: #{megnet_forward_fn.1} parent=1 // pred_check_branch
      %328 = sbr.rel (0) target = $region157
    $region156: #{megnet_forward_fn.1} parent=1 // pred_region
      _
    $region157: #{megnet_forward_fn.1} parent=1 // pred_fallthru
      _
    // Predicated region
    $region158: #{megnet_forward_fn.1} parent=1 // pred_check
      _
    $region159: #{megnet_forward_fn.1} parent=1 // pred_check_branch
      %330 = sbr.rel (0) target = $region161
    $region160: #{megnet_forward_fn.1} parent=1 // pred_region
      _
    $region161: #{megnet_forward_fn.1} parent=1 // pred_fallthru
      _
    // Predicated region
    $region162: #{megnet_forward_fn.1} parent=1 // pred_check
      _
    $region163: #{megnet_forward_fn.1} parent=1 // pred_check_branch
      %332 = sbr.rel (0) target = $region165
    $region164: #{megnet_forward_fn.1} parent=1 // pred_region
      _
    $region165: #{megnet_forward_fn.1} parent=1 // pred_fallthru
      _
    // Predicated region
    $region166: #{megnet_forward_fn.1} parent=1 // pred_check
      _
    $region167: #{megnet_forward_fn.1} parent=1 // pred_check_branch
      %334 = sbr.rel (0) target = $region169
    $region168: #{megnet_forward_fn.1} parent=1 // pred_region
      %s336 = ssub.s32 16, 16
      %337 = vsyncadd [#allocation21], %s336
      %s339 = sshll.u32 [#allocation22], 4
      %s340 = int_to_ptr.vmem [resolvable:$true] %s339
      %342 = dma.hbm_to_vmem [thread:$0]  %s83, 16, %s340, [#allocation21]
    $region169: #{megnet_forward_fn.1} parent=1 // pred_fallthru
      _
    // Predicated region
    $region170: #{megnet_forward_fn.1} parent=1 // pred_check
      _
    $region171: #{megnet_forward_fn.1} parent=1 // pred_check_branch
      %344 = sbr.rel (0) target = $region173
    $region172: #{megnet_forward_fn.1} parent=1 // pred_region
      _
    $region173: #{megnet_forward_fn.1} parent=1 // pred_fallthru
      _
    // Predicated region
    $region174: #{megnet_forward_fn.1} parent=1 // pred_check
      _
    $region175: #{megnet_forward_fn.1} parent=1 // pred_check_branch
      %346 = sbr.rel (0) target = $region177
    $region176: #{megnet_forward_fn.1} parent=1 // pred_region
      %s348 = ssub.s32 16, 16
      %349 = vsyncadd [#allocation24], %s348
      %s351 = sshll.u32 [#allocation23], 4
      %s352 = int_to_ptr.vmem [resolvable:$true] %s351
      %354 = dma.hbm_to_vmem [thread:$0]  %s87, 16, %s352, [#allocation24]
    $region177: #{megnet_forward_fn.1} parent=1 // pred_fallthru
      _
    // Predicated region
    $region178: #{megnet_forward_fn.1} parent=1 // pred_check
      _
    $region179: #{megnet_forward_fn.1} parent=1 // pred_check_branch
      %356 = sbr.rel (0) target = $region181
    $region180: #{megnet_forward_fn.1} parent=1 // pred_region
      _
    $region181: #{megnet_forward_fn.1} parent=1 // pred_fallthru
      _
    // Predicated region
    $region182: #{megnet_forward_fn.1} parent=1 // pred_check
      _
    $region183: #{megnet_forward_fn.1} parent=1 // pred_check_branch
      %358 = sbr.rel (0) target = $region185
    $region184: #{megnet_forward_fn.1} parent=1 // pred_region
      _
    $region185: #{megnet_forward_fn.1} parent=1 // pred_fallthru
      _
    // Predicated region
    $region186: #{megnet_forward_fn.1} parent=1 // pred_check
      _
    $region187: #{megnet_forward_fn.1} parent=1 // pred_check_branch
      %360 = sbr.rel (0) target = $region189
    $region188: #{megnet_forward_fn.1} parent=1 // pred_region
      _
    $region189: #{megnet_forward_fn.1} parent=1 // pred_fallthru
      _
    // Predicated region
    $region190: #{megnet_forward_fn.1} parent=1 // pred_check
      _
    $region191: #{megnet_forward_fn.1} parent=1 // pred_check_branch
      %362 = sbr.rel (0) target = $region193
    $region192: #{megnet_forward_fn.1} parent=1 // pred_region
      %s364 = ssub.s32 16, 16
      %365 = vsyncadd [#allocation24], %s364
      %s367 = sshll.u32 [#allocation25], 4
      %s368 = int_to_ptr.vmem [resolvable:$true] %s367
      %370 = dma.hbm_to_vmem [thread:$0]  %s95, 16, %s368, [#allocation24]
    $region193: #{megnet_forward_fn.1} parent=1 // pred_fallthru
      _
    // Predicated region
    $region194: #{megnet_forward_fn.1} parent=1 // pred_check
      _
    $region195: #{megnet_forward_fn.1} parent=1 // pred_check_branch
      %372 = sbr.rel (0) target = $region197
    $region196: #{megnet_forward_fn.1} parent=1 // pred_region
      _
    $region197: #{megnet_forward_fn.1} parent=1 // pred_fallthru
      _
    // Predicated region
    $region198: #{megnet_forward_fn.1} parent=1 // pred_check
      _
    $region199: #{megnet_forward_fn.1} parent=1 // pred_check_branch
      %374 = sbr.rel (0) target = $region201
    $region200: #{megnet_forward_fn.1} parent=1 // pred_region
      %s376 = ssub.s32 16, 16
      %377 = vsyncadd [#allocation27], %s376
      %s379 = sshll.u32 [#allocation26], 4
      %s380 = int_to_ptr.vmem [resolvable:$true] %s379
      %382 = dma.hbm_to_vmem [thread:$0]  %s99, 16, %s380, [#allocation27]
    $region201: #{megnet_forward_fn.1} parent=1 // pred_fallthru
      _
    // Predicated region
    $region202: #{megnet_forward_fn.1} parent=1 // pred_check
      _
    $region203: #{megnet_forward_fn.1} parent=1 // pred_check_branch
      %384 = sbr.rel (0) target = $region205
    $region204: #{megnet_forward_fn.1} parent=1 // pred_region
      _
    $region205: #{megnet_forward_fn.1} parent=1 // pred_fallthru
      _
    // Predicated region
    $region206: #{megnet_forward_fn.1} parent=1 // pred_check
      _
    $region207: #{megnet_forward_fn.1} parent=1 // pred_check_branch
      %386 = sbr.rel (0) target = $region209
    $region208: #{megnet_forward_fn.1} parent=1 // pred_region
      _
    $region209: #{megnet_forward_fn.1} parent=1 // pred_fallthru
      _
    // Predicated region
    $region210: #{megnet_forward_fn.1} parent=1 // pred_check
      _
    $region211: #{megnet_forward_fn.1} parent=1 // pred_check_branch
      %388 = sbr.rel (0) target = $region213
    $region212: #{megnet_forward_fn.1} parent=1 // pred_region
      _
    $region213: #{megnet_forward_fn.1} parent=1 // pred_fallthru
      _
    // Predicated region
    $region214: #{megnet_forward_fn.1} parent=1 // pred_check
      _
    $region215: #{megnet_forward_fn.1} parent=1 // pred_check_branch
      %390 = sbr.rel (0) target = $region217
    $region216: #{megnet_forward_fn.1} parent=1 // pred_region
      %s392 = ssub.s32 16, 16
      %393 = vsyncadd [#allocation27], %s392
      %s395 = sshll.u32 [#allocation28], 4
      %s396 = int_to_ptr.vmem [resolvable:$true] %s395
      %398 = dma.hbm_to_vmem [thread:$0]  %s107, 16, %s396, [#allocation27]
    $region217: #{megnet_forward_fn.1} parent=1 // pred_fallthru
      _
    // Predicated region
    $region218: #{megnet_forward_fn.1} parent=1 // pred_check
      _
    $region219: #{megnet_forward_fn.1} parent=1 // pred_check_branch
      %400 = sbr.rel (0) target = $region221
    $region220: #{megnet_forward_fn.1} parent=1 // pred_region
      _
    $region221: #{megnet_forward_fn.1} parent=1 // pred_fallthru
      _
    // Predicated region
    $region222: #{megnet_forward_fn.1} parent=1 // pred_check
      _
    $region223: #{megnet_forward_fn.1} parent=1 // pred_check_branch
      %402 = sbr.rel (0) target = $region225
    $region224: #{megnet_forward_fn.1} parent=1 // pred_region
      _
    $region225: #{megnet_forward_fn.1} parent=1 // pred_fallthru
      _
    // Predicated region
    $region226: #{megnet_forward_fn.1} parent=1 // pred_check
      _
    $region227: #{megnet_forward_fn.1} parent=1 // pred_check_branch
      %404 = sbr.rel (0) target = $region229
    $region228: #{megnet_forward_fn.1} parent=1 // pred_region
      _
    $region229: #{megnet_forward_fn.1} parent=1 // pred_fallthru
      _
    // Predicated region
    $region230: #{megnet_forward_fn.1} parent=1 // pred_check
      _
    $region231: #{megnet_forward_fn.1} parent=1 // pred_check_branch
      %406 = sbr.rel (0) target = $region233
    $region232: #{megnet_forward_fn.1} parent=1 // pred_region
      %s408 = ssub.s32 16, 16
      %409 = vsyncadd [#allocation30], %s408
      %s411 = sshll.u32 [#allocation29], 4
      %s412 = int_to_ptr.vmem [resolvable:$true] %s411
      %414 = dma.hbm_to_vmem [thread:$0]  %s115, 16, %s412, [#allocation30]
    $region233: #{megnet_forward_fn.1} parent=1 // pred_fallthru
      _
    // Predicated region
    $region234: #{megnet_forward_fn.1} parent=1 // pred_check
      _
    $region235: #{megnet_forward_fn.1} parent=1 // pred_check_branch
      %416 = sbr.rel (0) target = $region237
    $region236: #{megnet_forward_fn.1} parent=1 // pred_region
      _
    $region237: #{megnet_forward_fn.1} parent=1 // pred_fallthru
      _
    // Predicated region
    $region238: #{megnet_forward_fn.1} parent=1 // pred_check
      _
    $region239: #{megnet_forward_fn.1} parent=1 // pred_check_branch
      %418 = sbr.rel (0) target = $region241
    $region240: #{megnet_forward_fn.1} parent=1 // pred_region
      _
    $region241: #{megnet_forward_fn.1} parent=1 // pred_fallthru
      _
    // Predicated region
    $region242: #{megnet_forward_fn.1} parent=1 // pred_check
      _
    $region243: #{megnet_forward_fn.1} parent=1 // pred_check_branch
      %420 = sbr.rel (0) target = $region245
    $region244: #{megnet_forward_fn.1} parent=1 // pred_region
      _
    $region245: #{megnet_forward_fn.1} parent=1 // pred_fallthru
      _
    // Predicated region
    $region246: #{megnet_forward_fn.1} parent=1 // pred_check
      _
    $region247: #{megnet_forward_fn.1} parent=1 // pred_check_branch
      %422 = sbr.rel (0) target = $region249
    $region248: #{megnet_forward_fn.1} parent=1 // pred_region
      _
    $region249: #{megnet_forward_fn.1} parent=1 // pred_fallthru
      _
    // Predicated region
    $region250: #{megnet_forward_fn.1} parent=1 // pred_check
      _
    $region251: #{megnet_forward_fn.1} parent=1 // pred_check_branch
      %424 = sbr.rel (0) target = $region253
    $region252: #{megnet_forward_fn.1} parent=1 // pred_region
      _
    $region253: #{megnet_forward_fn.1} parent=1 // pred_fallthru
      _
    // Predicated region
    $region254: #{megnet_forward_fn.1} parent=1 // pred_check
      _
    $region255: #{megnet_forward_fn.1} parent=1 // pred_check_branch
      %426 = sbr.rel (0) target = $region257
    $region256: #{megnet_forward_fn.1} parent=1 // pred_region
      %s428 = ssub.s32 16, 16
      %429 = vsyncadd [#allocation30], %s428
      %s431 = sshll.u32 [#allocation31], 4
      %s432 = int_to_ptr.vmem [resolvable:$true] %s431
      %434 = dma.hbm_to_vmem [thread:$0]  %s127, 16, %s432, [#allocation30]
    $region257: #{megnet_forward_fn.1} parent=1 // pred_fallthru
      _
    // Predicated region
    $region258: #{megnet_forward_fn.1} parent=1 // pred_check
      _
    $region259: #{megnet_forward_fn.1} parent=1 // pred_check_branch
      %436 = sbr.rel (0) target = $region261
    $region260: #{megnet_forward_fn.1} parent=1 // pred_region
      _
    $region261: #{megnet_forward_fn.1} parent=1 // pred_fallthru
      _
    // Predicated region
    $region262: #{megnet_forward_fn.1} parent=1 // pred_check
      _
    $region263: #{megnet_forward_fn.1} parent=1 // pred_check_branch
      %438 = sbr.rel (0) target = $region265
    $region264: #{megnet_forward_fn.1} parent=1 // pred_region
      %s440 = ssub.s32 16, 16
      %441 = vsyncadd [#allocation33], %s440
      %s443 = sshll.u32 [#allocation32], 4
      %s444 = int_to_ptr.vmem [resolvable:$true] %s443
      %446 = dma.hbm_to_vmem [thread:$0]  %s131, 16, %s444, [#allocation33]
    $region265: #{megnet_forward_fn.1} parent=1 // pred_fallthru
      _
    // Predicated region
    $region266: #{megnet_forward_fn.1} parent=1 // pred_check
      _
    $region267: #{megnet_forward_fn.1} parent=1 // pred_check_branch
      %448 = sbr.rel (0) target = $region269
    $region268: #{megnet_forward_fn.1} parent=1 // pred_region
      _
    $region269: #{megnet_forward_fn.1} parent=1 // pred_fallthru
      _
    // Predicated region
    $region270: #{megnet_forward_fn.1} parent=1 // pred_check
      _
    $region271: #{megnet_forward_fn.1} parent=1 // pred_check_branch
      %450 = sbr.rel (0) target = $region273
    $region272: #{megnet_forward_fn.1} parent=1 // pred_region
      _
    $region273: #{megnet_forward_fn.1} parent=1 // pred_fallthru
      _
    // Predicated region
    $region274: #{megnet_forward_fn.1} parent=1 // pred_check
      _
    $region275: #{megnet_forward_fn.1} parent=1 // pred_check_branch
      %452 = sbr.rel (0) target = $region277
    $region276: #{megnet_forward_fn.1} parent=1 // pred_region
      %453 = dma.done [#allocation4], 16
    $region277: #{megnet_forward_fn.1} parent=1 // pred_fallthru
      _
    // Predicated region
    $region278: #{megnet_forward_fn.1} parent=1 // pred_check
      _
    $region279: #{megnet_forward_fn.1} parent=1 // pred_check_branch
      %455 = sbr.rel (0) target = $region281
    $region280: #{megnet_forward_fn.1} parent=1 // pred_region
      %456 = dma.done [#allocation6], 16
    $region281: #{megnet_forward_fn.1} parent=1 // pred_fallthru
      _
    // Predicated region
    $region282: #{megnet_forward_fn.1} parent=1 // pred_check
      _
    $region283: #{megnet_forward_fn.1} parent=1 // pred_check_branch
      %458 = sbr.rel (0) target = $region285
    $region284: #{megnet_forward_fn.1} parent=1 // pred_region
      %459 = dma.done [#allocation6], 16
    $region285: #{megnet_forward_fn.1} parent=1 // pred_fallthru
      _
    // Predicated region
    $region286: #{megnet_forward_fn.1} parent=1 // pred_check
      _
    $region287: #{megnet_forward_fn.1} parent=1 // pred_check_branch
      %461 = sbr.rel (0) target = $region289
    $region288: #{megnet_forward_fn.1} parent=1 // pred_region
      %462 = dma.done [#allocation9], 16
    $region289: #{megnet_forward_fn.1} parent=1 // pred_fallthru
      _
    // Predicated region
    $region290: #{megnet_forward_fn.1} parent=1 // pred_check
      _
    $region291: #{megnet_forward_fn.1} parent=1 // pred_check_branch
      %464 = sbr.rel (0) target = $region293
    $region292: #{megnet_forward_fn.1} parent=1 // pred_region
      %465 = dma.done [#allocation9], 16
    $region293: #{megnet_forward_fn.1} parent=1 // pred_fallthru
      _
    // Predicated region
    $region294: #{megnet_forward_fn.1} parent=1 // pred_check
      _
    $region295: #{megnet_forward_fn.1} parent=1 // pred_check_branch
      %467 = sbr.rel (0) target = $region297
    $region296: #{megnet_forward_fn.1} parent=1 // pred_region
      %468 = dma.done [#allocation12], 16
    $region297: #{megnet_forward_fn.1} parent=1 // pred_fallthru
      _
    // Predicated region
    $region298: #{megnet_forward_fn.1} parent=1 // pred_check
      _
    $region299: #{megnet_forward_fn.1} parent=1 // pred_check_branch
      %470 = sbr.rel (0) target = $region301
    $region300: #{megnet_forward_fn.1} parent=1 // pred_region
      %471 = dma.done [#allocation12], 16
    $region301: #{megnet_forward_fn.1} parent=1 // pred_fallthru
      _
    // Predicated region
    $region302: #{megnet_forward_fn.1} parent=1 // pred_check
      _
    $region303: #{megnet_forward_fn.1} parent=1 // pred_check_branch
      %473 = sbr.rel (0) target = $region305
    $region304: #{megnet_forward_fn.1} parent=1 // pred_region
      %474 = dma.done [#allocation15], 16
    $region305: #{megnet_forward_fn.1} parent=1 // pred_fallthru
      _
    // Predicated region
    $region306: #{megnet_forward_fn.1} parent=1 // pred_check
      _
    $region307: #{megnet_forward_fn.1} parent=1 // pred_check_branch
      %476 = sbr.rel (0) target = $region309
    $region308: #{megnet_forward_fn.1} parent=1 // pred_region
      %477 = dma.done [#allocation15], 16
    $region309: #{megnet_forward_fn.1} parent=1 // pred_fallthru
      _
    // Predicated region
    $region310: #{megnet_forward_fn.1} parent=1 // pred_check
      _
    $region311: #{megnet_forward_fn.1} parent=1 // pred_check_branch
      %479 = sbr.rel (0) target = $region313
    $region312: #{megnet_forward_fn.1} parent=1 // pred_region
      %480 = dma.done [#allocation18], 16
    $region313: #{megnet_forward_fn.1} parent=1 // pred_fallthru
      _
    // Predicated region
    $region314: #{megnet_forward_fn.1} parent=1 // pred_check
      _
    $region315: #{megnet_forward_fn.1} parent=1 // pred_check_branch
      %482 = sbr.rel (0) target = $region317
    $region316: #{megnet_forward_fn.1} parent=1 // pred_region
      %483 = dma.done [#allocation18], 16
    $region317: #{megnet_forward_fn.1} parent=1 // pred_fallthru
      _
    // Predicated region
    $region318: #{megnet_forward_fn.1} parent=1 // pred_check
      _
    $region319: #{megnet_forward_fn.1} parent=1 // pred_check_branch
      %485 = sbr.rel (0) target = $region321
    $region320: #{megnet_forward_fn.1} parent=1 // pred_region
      %486 = dma.done [#allocation21], 16
    $region321: #{megnet_forward_fn.1} parent=1 // pred_fallthru
      _
    // Predicated region
    $region322: #{megnet_forward_fn.1} parent=1 // pred_check
      _
    $region323: #{megnet_forward_fn.1} parent=1 // pred_check_branch
      %488 = sbr.rel (0) target = $region325
    $region324: #{megnet_forward_fn.1} parent=1 // pred_region
      %489 = dma.done [#allocation21], 16
    $region325: #{megnet_forward_fn.1} parent=1 // pred_fallthru
      _
    // Predicated region
    $region326: #{megnet_forward_fn.1} parent=1 // pred_check
      _
    $region327: #{megnet_forward_fn.1} parent=1 // pred_check_branch
      %491 = sbr.rel (0) target = $region329
    $region328: #{megnet_forward_fn.1} parent=1 // pred_region
      %492 = dma.done [#allocation24], 16
    $region329: #{megnet_forward_fn.1} parent=1 // pred_fallthru
      _
    // Predicated region
    $region330: #{megnet_forward_fn.1} parent=1 // pred_check
      _
    $region331: #{megnet_forward_fn.1} parent=1 // pred_check_branch
      %494 = sbr.rel (0) target = $region333
    $region332: #{megnet_forward_fn.1} parent=1 // pred_region
      %495 = dma.done [#allocation24], 16
    $region333: #{megnet_forward_fn.1} parent=1 // pred_fallthru
      _
    // Predicated region
    $region334: #{megnet_forward_fn.1} parent=1 // pred_check
      _
    $region335: #{megnet_forward_fn.1} parent=1 // pred_check_branch
      %497 = sbr.rel (0) target = $region337
    $region336: #{megnet_forward_fn.1} parent=1 // pred_region
      %498 = dma.done [#allocation27], 16
    $region337: #{megnet_forward_fn.1} parent=1 // pred_fallthru
      _
    // Predicated region
    $region338: #{megnet_forward_fn.1} parent=1 // pred_check
      _
    $region339: #{megnet_forward_fn.1} parent=1 // pred_check_branch
      %500 = sbr.rel (0) target = $region341
    $region340: #{megnet_forward_fn.1} parent=1 // pred_region
      %501 = dma.done [#allocation27], 16
    $region341: #{megnet_forward_fn.1} parent=1 // pred_fallthru
      _
    // Predicated region
    $region342: #{megnet_forward_fn.1} parent=1 // pred_check
      _
    $region343: #{megnet_forward_fn.1} parent=1 // pred_check_branch
      %503 = sbr.rel (0) target = $region345
    $region344: #{megnet_forward_fn.1} parent=1 // pred_region
      %504 = dma.done [#allocation30], 16
    $region345: #{megnet_forward_fn.1} parent=1 // pred_fallthru
      _
    // Predicated region
    $region346: #{megnet_forward_fn.1} parent=1 // pred_check
      _
    $region347: #{megnet_forward_fn.1} parent=1 // pred_check_branch
      %506 = sbr.rel (0) target = $region349
    $region348: #{megnet_forward_fn.1} parent=1 // pred_region
      %507 = dma.done [#allocation30], 16
    $region349: #{megnet_forward_fn.1} parent=1 // pred_fallthru
      _
    // Predicated region
    $region350: #{megnet_forward_fn.1} parent=1 // pred_check
      _
    $region351: #{megnet_forward_fn.1} parent=1 // pred_check_branch
      %509 = sbr.rel (0) target = $region353
    $region352: #{megnet_forward_fn.1} parent=1 // pred_region
      %510 = dma.done [#allocation33], 16
    $region353: #{megnet_forward_fn.1} parent=1 // pred_fallthru
      _
    %v511 = vld [vmem:[%s1] sm:$0xff]
    %v512 = vld [vmem:[%s1 + $0x8] sm:$0xff]
    %v513 = vld [vmem:[%s3] sm:$0xff]
    %v514 = vld [vmem:[%s3 + $0x8] sm:$0xff]
    %v515 = vld [vmem:[%s3 + $0x10] sm:$0xff]
    %v516 = vld [vmem:[%s3 + $0x18] sm:$0xff]
    %v517 = vld [vmem:[%s5] sm:$0x3]
    %v518 = vld [vmem:[%s7] sm:$0xff]
    %v519 = vld [vmem:[%s7 + $0x8] sm:$0xff]
    %v520 = vld [vmem:[%s7 + $0x10] sm:$0xff]
    %v521 = vld [vmem:[%s7 + $0x18] sm:$0xff]
    %v522 = vld [vmem:[%s9] sm:$0xff]
    %v523 = vld [vmem:[%s9 + $0x8] sm:$0xff]
    %v524 = vld [vmem:[%s9 + $0x10] sm:$0xff]
    %v525 = vld [vmem:[%s9 + $0x18] sm:$0xff]
    %v526 = vld [vmem:[#allocation3] sm:$0x1]
    %v527 = vld [vmem:[%s13] sm:$0xff]
    %v528 = vld [vmem:[%s13 + $0x8] sm:$0xff]
    %v529 = vld [vmem:[#allocation5] sm:$0x1]
    %v530 = vld [vmem:[%s17] sm:$0xff]
    %v531 = vld [vmem:[%s17 + $0x8] sm:$0xff]
    %v532 = vld [vmem:[%s17 + $0x10] sm:$0xff]
    %v533 = vld [vmem:[%s17 + $0x18] sm:$0xff]
    %v534 = vld [vmem:[#allocation7] sm:$0x1]
    %v535 = vld [vmem:[%s21] sm:$0xff]
    %v536 = vld [vmem:[%s21 + $0x8] sm:$0xff]
    %v537 = vld [vmem:[%s21 + $0x10] sm:$0xff]
    %v538 = vld [vmem:[%s21 + $0x18] sm:$0xff]
    %v539 = vld [vmem:[%s21 + $0x20] sm:$0xff]
    %v540 = vld [vmem:[%s21 + $0x28] sm:$0xff]
    %v541 = vld [vmem:[%s21 + $0x30] sm:$0xff]
    %v542 = vld [vmem:[%s21 + $0x38] sm:$0xff]
    %v543 = vld [vmem:[%s21 + $0x40] sm:$0xff]
    %v544 = vld [vmem:[%s21 + $0x48] sm:$0xff]
    %v545 = vld [vmem:[%s21 + $0x50] sm:$0xff]
    %v546 = vld [vmem:[%s21 + $0x58] sm:$0xff]
    %v547 = vld [vmem:[%s21 + $0x60] sm:$0xff]
    %v548 = vld [vmem:[%s21 + $0x68] sm:$0xff]
    %v549 = vld [vmem:[%s21 + $0x70] sm:$0xff]
    %v550 = vld [vmem:[%s21 + $0x78] sm:$0xff]
    %v551 = vld [vmem:[#allocation8] sm:$0x1]
    %v552 = vld [vmem:[%s25] sm:$0xff]
    %v553 = vld [vmem:[%s25 + $0x8] sm:$0xff]
    %v554 = vld [vmem:[%s27] sm:$0xff]
    %v555 = vld [vmem:[%s27 + $0x8] sm:$0xff]
    %v556 = vld [vmem:[%s29] sm:$0xff]
    %v557 = vld [vmem:[%s29 + $0x8] sm:$0xff]
    %v558 = vld [vmem:[%s29 + $0x10] sm:$0xff]
    %v559 = vld [vmem:[%s29 + $0x18] sm:$0xff]
    %v560 = vld [vmem:[%s29 + $0x20] sm:$0xff]
    %v561 = vld [vmem:[%s29 + $0x28] sm:$0xff]
    %v562 = vld [vmem:[%s29 + $0x30] sm:$0xff]
    %v563 = vld [vmem:[%s29 + $0x38] sm:$0xff]
    %v564 = vld [vmem:[%s29 + $0x40] sm:$0xff]
    %v565 = vld [vmem:[%s29 + $0x48] sm:$0xff]
    %v566 = vld [vmem:[%s29 + $0x50] sm:$0xff]
    %v567 = vld [vmem:[%s29 + $0x58] sm:$0xff]
    %v568 = vld [vmem:[%s29 + $0x60] sm:$0xff]
    %v569 = vld [vmem:[%s29 + $0x68] sm:$0xff]
    %v570 = vld [vmem:[%s29 + $0x70] sm:$0xff]
    %v571 = vld [vmem:[%s29 + $0x78] sm:$0xff]
    %v572 = vld [vmem:[%s31] sm:$0x3]
    %v573 = vld [vmem:[#allocation10] sm:$0x1]
    %v574 = vld [vmem:[%s35] sm:$0xff]
    %v575 = vld [vmem:[%s35 + $0x8] sm:$0xff]
    %v576 = vld [vmem:[%s35 + $0x10] sm:$0xff]
    %v577 = vld [vmem:[%s35 + $0x18] sm:$0xff]
    %v578 = vld [vmem:[%s35 + $0x20] sm:$0xff]
    %v579 = vld [vmem:[%s35 + $0x28] sm:$0xff]
    %v580 = vld [vmem:[%s35 + $0x30] sm:$0xff]
    %v581 = vld [vmem:[%s35 + $0x38] sm:$0xff]
    %v582 = vld [vmem:[#allocation11] sm:$0x1]
    %v583 = vld [vmem:[%s39] sm:$0xff]
    %v584 = vld [vmem:[%s39 + $0x8] sm:$0xff]
    %v585 = vld [vmem:[%s41] sm:$0xff]
    %v586 = vld [vmem:[%s41 + $0x8] sm:$0xff]
    %v587 = vld [vmem:[%s41 + $0x10] sm:$0xff]
    %v588 = vld [vmem:[%s41 + $0x18] sm:$0xff]
    %v589 = vld [vmem:[%s43] sm:$0x3]
    %v590 = vld [vmem:[#allocation13] sm:$0x1]
    %v591 = vld [vmem:[%s47] sm:$0xff]
    %v592 = vld [vmem:[%s47 + $0x8] sm:$0xff]
    %v593 = vld [vmem:[%s47 + $0x10] sm:$0xff]
    %v594 = vld [vmem:[%s47 + $0x18] sm:$0xff]
    %v595 = vld [vmem:[%s47 + $0x20] sm:$0xff]
    %v596 = vld [vmem:[%s47 + $0x28] sm:$0xff]
    %v597 = vld [vmem:[%s47 + $0x30] sm:$0xff]
    %v598 = vld [vmem:[%s47 + $0x38] sm:$0xff]
    %v599 = vld [vmem:[#allocation14] sm:$0x1]
    %v600 = vld [vmem:[%s51] sm:$0xff]
    %v601 = vld [vmem:[%s51 + $0x8] sm:$0xff]
    %v602 = vld [vmem:[%s51 + $0x10] sm:$0xff]
    %v603 = vld [vmem:[%s51 + $0x18] sm:$0xff]
    %v604 = vld [vmem:[%s53] sm:$0xff]
    %v605 = vld [vmem:[%s53 + $0x8] sm:$0xff]
    %v606 = vld [vmem:[%s53 + $0x10] sm:$0xff]
    %v607 = vld [vmem:[%s53 + $0x18] sm:$0xff]
    %v608 = vld [vmem:[%s55] sm:$0x3]
    %v609 = vld [vmem:[#allocation16] sm:$0x1]
    %v610 = vld [vmem:[%s59] sm:$0xff]
    %v611 = vld [vmem:[%s59 + $0x8] sm:$0xff]
    %v612 = vld [vmem:[%s59 + $0x10] sm:$0xff]
    %v613 = vld [vmem:[%s59 + $0x18] sm:$0xff]
    %v614 = vld [vmem:[%s59 + $0x20] sm:$0xff]
    %v615 = vld [vmem:[%s59 + $0x28] sm:$0xff]
    %v616 = vld [vmem:[%s59 + $0x30] sm:$0xff]
    %v617 = vld [vmem:[%s59 + $0x38] sm:$0xff]
    %v618 = vld [vmem:[#allocation17] sm:$0x1]
    %v619 = vld [vmem:[%s63] sm:$0xff]
    %v620 = vld [vmem:[%s63 + $0x8] sm:$0xff]
    %v621 = vld [vmem:[%s63 + $0x10] sm:$0xff]
    %v622 = vld [vmem:[%s63 + $0x18] sm:$0xff]
    %v623 = vld [vmem:[%s65] sm:$0xff]
    %v624 = vld [vmem:[%s65 + $0x8] sm:$0xff]
    %v625 = vld [vmem:[%s65 + $0x10] sm:$0xff]
    %v626 = vld [vmem:[%s65 + $0x18] sm:$0xff]
    %v627 = vld [vmem:[%s67] sm:$0xff]
    %v628 = vld [vmem:[%s67 + $0x8] sm:$0xff]
    %v629 = vld [vmem:[%s67 + $0x10] sm:$0xff]
    %v630 = vld [vmem:[%s67 + $0x18] sm:$0xff]
    %v631 = vld [vmem:[%s69] sm:$0xff]
    %v632 = vld [vmem:[%s69 + $0x8] sm:$0xff]
    %v633 = vld [vmem:[%s69 + $0x10] sm:$0xff]
    %v634 = vld [vmem:[%s69 + $0x18] sm:$0xff]
    %v635 = vld [vmem:[#allocation19] sm:$0x1]
    %v636 = vld [vmem:[%s73] sm:$0xff]
    %v637 = vld [vmem:[%s73 + $0x8] sm:$0xff]
    %v638 = vld [vmem:[%s73 + $0x10] sm:$0xff]
    %v639 = vld [vmem:[%s73 + $0x18] sm:$0xff]
    %v640 = vld [vmem:[%s73 + $0x20] sm:$0xff]
    %v641 = vld [vmem:[%s73 + $0x28] sm:$0xff]
    %v642 = vld [vmem:[%s73 + $0x30] sm:$0xff]
    %v643 = vld [vmem:[%s73 + $0x38] sm:$0xff]
    %v644 = vld [vmem:[#allocation20] sm:$0x1]
    %v645 = vld [vmem:[%s77] sm:$0xff]
    %v646 = vld [vmem:[%s77 + $0x8] sm:$0xff]
    %v647 = vld [vmem:[%s77 + $0x10] sm:$0xff]
    %v648 = vld [vmem:[%s77 + $0x18] sm:$0xff]
    %v649 = vld [vmem:[%s79] sm:$0xff]
    %v650 = vld [vmem:[%s79 + $0x8] sm:$0xff]
    %v651 = vld [vmem:[%s79 + $0x10] sm:$0xff]
    %v652 = vld [vmem:[%s79 + $0x18] sm:$0xff]
    %v653 = vld [vmem:[%s81] sm:$0xff]
    %v654 = vld [vmem:[%s81 + $0x8] sm:$0xff]
    %v655 = vld [vmem:[%s81 + $0x10] sm:$0xff]
    %v656 = vld [vmem:[%s81 + $0x18] sm:$0xff]
    %v657 = vld [vmem:[#allocation22] sm:$0x1]
    %v658 = vld [vmem:[%s85] sm:$0xff]
    %v659 = vld [vmem:[%s85 + $0x8] sm:$0xff]
    %v660 = vld [vmem:[%s85 + $0x10] sm:$0xff]
    %v661 = vld [vmem:[%s85 + $0x18] sm:$0xff]
    %v662 = vld [vmem:[%s85 + $0x20] sm:$0xff]
    %v663 = vld [vmem:[%s85 + $0x28] sm:$0xff]
    %v664 = vld [vmem:[%s85 + $0x30] sm:$0xff]
    %v665 = vld [vmem:[%s85 + $0x38] sm:$0xff]
    %v666 = vld [vmem:[#allocation23] sm:$0x1]
    %v667 = vld [vmem:[%s89] sm:$0xff]
    %v668 = vld [vmem:[%s89 + $0x8] sm:$0xff]
    %v669 = vld [vmem:[%s89 + $0x10] sm:$0xff]
    %v670 = vld [vmem:[%s89 + $0x18] sm:$0xff]
    %v671 = vld [vmem:[%s91] sm:$0xff]
    %v672 = vld [vmem:[%s91 + $0x8] sm:$0xff]
    %v673 = vld [vmem:[%s91 + $0x10] sm:$0xff]
    %v674 = vld [vmem:[%s91 + $0x18] sm:$0xff]
    %v675 = vld [vmem:[%s93] sm:$0xff]
    %v676 = vld [vmem:[%s93 + $0x8] sm:$0xff]
    %v677 = vld [vmem:[%s93 + $0x10] sm:$0xff]
    %v678 = vld [vmem:[%s93 + $0x18] sm:$0xff]
    %v679 = vld [vmem:[#allocation25] sm:$0x1]
    %v680 = vld [vmem:[%s97] sm:$0xff]
    %v681 = vld [vmem:[%s97 + $0x8] sm:$0xff]
    %v682 = vld [vmem:[%s97 + $0x10] sm:$0xff]
    %v683 = vld [vmem:[%s97 + $0x18] sm:$0xff]
    %v684 = vld [vmem:[%s97 + $0x20] sm:$0xff]
    %v685 = vld [vmem:[%s97 + $0x28] sm:$0xff]
    %v686 = vld [vmem:[%s97 + $0x30] sm:$0xff]
    %v687 = vld [vmem:[%s97 + $0x38] sm:$0xff]
    %v688 = vld [vmem:[#allocation26] sm:$0x1]
    %v689 = vld [vmem:[%s101] sm:$0xff]
    %v690 = vld [vmem:[%s101 + $0x8] sm:$0xff]
    %v691 = vld [vmem:[%s101 + $0x10] sm:$0xff]
    %v692 = vld [vmem:[%s101 + $0x18] sm:$0xff]
    %v693 = vld [vmem:[%s103] sm:$0xff]
    %v694 = vld [vmem:[%s103 + $0x8] sm:$0xff]
    %v695 = vld [vmem:[%s103 + $0x10] sm:$0xff]
    %v696 = vld [vmem:[%s103 + $0x18] sm:$0xff]
    %v697 = vld [vmem:[%s105] sm:$0xff]
    %v698 = vld [vmem:[%s105 + $0x8] sm:$0xff]
    %v699 = vld [vmem:[%s105 + $0x10] sm:$0xff]
    %v700 = vld [vmem:[%s105 + $0x18] sm:$0xff]
    %v701 = vld [vmem:[#allocation28] sm:$0x1]
    %v702 = vld [vmem:[%s109] sm:$0xff]
    %v703 = vld [vmem:[%s109 + $0x8] sm:$0xff]
    %v704 = vld [vmem:[%s109 + $0x10] sm:$0xff]
    %v705 = vld [vmem:[%s109 + $0x18] sm:$0xff]
    %v706 = vld [vmem:[%s111] sm:$0xff]
    %v707 = vld [vmem:[%s111 + $0x8] sm:$0xff]
    %v708 = vld [vmem:[%s111 + $0x10] sm:$0xff]
    %v709 = vld [vmem:[%s111 + $0x18] sm:$0xff]
    %v710 = vld [vmem:[%s113] sm:$0xff]
    %v711 = vld [vmem:[%s113 + $0x8] sm:$0xff]
    %v712 = vld [vmem:[%s113 + $0x10] sm:$0xff]
    %v713 = vld [vmem:[%s113 + $0x18] sm:$0xff]
    %v714 = vld [vmem:[#allocation29] sm:$0x1]
    %v715 = vld [vmem:[%s117] sm:$0xff]
    %v716 = vld [vmem:[%s117 + $0x8] sm:$0xff]
    %v717 = vld [vmem:[%s117 + $0x10] sm:$0xff]
    %v718 = vld [vmem:[%s117 + $0x18] sm:$0xff]
    %v719 = vld [vmem:[%s119] sm:$0xff]
    %v720 = vld [vmem:[%s119 + $0x8] sm:$0xff]
    %v721 = vld [vmem:[%s119 + $0x10] sm:$0xff]
    %v722 = vld [vmem:[%s119 + $0x18] sm:$0xff]
    %v723 = vld [vmem:[%s121] sm:$0xff]
    %v724 = vld [vmem:[%s121 + $0x8] sm:$0xff]
    %v725 = vld [vmem:[%s121 + $0x10] sm:$0xff]
    %v726 = vld [vmem:[%s121 + $0x18] sm:$0xff]
    %v727 = vld [vmem:[%s123] sm:$0xff]
    %v728 = vld [vmem:[%s123 + $0x8] sm:$0xff]
    %v729 = vld [vmem:[%s123 + $0x10] sm:$0xff]
    %v730 = vld [vmem:[%s123 + $0x18] sm:$0xff]
    %v731 = vld [vmem:[%s125] sm:$0xff]
    %v732 = vld [vmem:[%s125 + $0x8] sm:$0xff]
    %v733 = vld [vmem:[%s125 + $0x10] sm:$0xff]
    %v734 = vld [vmem:[%s125 + $0x18] sm:$0xff]
    %v735 = vld [vmem:[#allocation31] sm:$0x1]
    %v736 = vld [vmem:[%s129] sm:$0xff]
    %v737 = vld [vmem:[%s129 + $0x8] sm:$0xff]
    %v738 = vld [vmem:[%s129 + $0x10] sm:$0xff]
    %v739 = vld [vmem:[%s129 + $0x18] sm:$0xff]
    %v740 = vld [vmem:[#allocation32] sm:$0x1]
    %v741 = vld [vmem:[%s133] sm:$0xff]
    %v742 = vld [vmem:[%s133 + $0x8] sm:$0xff]
    %v743 = vld [vmem:[#allocation2] sm:$0x1]
    %v744 = vlaneseq
    %v745 = vand.u32 %v744, 127
    %746 = vset.pattern.permute.xlu0 0
    %747 = vperm.xlu0 %746, %v511
    %v748 = vpop.permute.xlu0 %747
    %749 = vset.pattern.permute.xlu0 0
    %750 = vperm.xlu0 %749, %v512
    %v751 = vpop.permute.xlu0 %750
    %vm752 = vcmp.eq.s32.totalorder %v748, %v745
    %vm753 = vcmp.eq.s32.totalorder %v751, %v745
    %v754 = vsel %vm752, 1, 0
    %v755 = vsel %vm753, 1, 0
    %v756 = vcvt.s32.f32 %v754
    %v757 = vcvt.s32.f32 %v755
    %758 = vmatprep.subr.mxu0 0.0
    %759 = vmatpush1.msra.mxu0 %v550
    %760 = vmatprep.subr.mxu0 0.0
    %761 = vmatpush1.msra.mxu0 %v549
    %762 = vmatprep.subr.mxu0 0.0
    %763 = vmatpush1.msra.mxu0 %v548
    %764 = vmatprep.subr.mxu0 0.0
    %765 = vmatpush1.msra.mxu0 %v547
    %766 = vmatprep.subr.mxu0 0.0
    %767 = vmatpush1.msra.mxu0 %v546
    %768 = vmatprep.subr.mxu0 0.0
    %769 = vmatpush1.msra.mxu0 %v545
    %770 = vmatprep.subr.mxu0 0.0
    %771 = vmatpush1.msra.mxu0 %v544
    %772 = vmatprep.subr.mxu0 0.0
    %773 = vmatpush1.msra.mxu0 %v543
    %774 = vmatprep.subr.mxu0 0.0
    %775 = vmatpush1.msra.mxu0 %v542
    %776 = vmatprep.subr.mxu0 0.0
    %777 = vmatpush1.msra.mxu0 %v541
    %778 = vmatprep.subr.mxu0 0.0
    %779 = vmatpush1.msra.mxu0 %v540
    %780 = vmatprep.subr.mxu0 0.0
    %781 = vmatpush1.msra.mxu0 %v539
    %782 = vmatprep.subr.mxu0 0.0
    %783 = vmatpush1.msra.mxu0 %v538
    %784 = vmatprep.subr.mxu0 0.0
    %785 = vmatpush1.msra.mxu0 %v537
    %786 = vmatprep.subr.mxu0 0.0
    %787 = vmatpush1.msra.mxu0 %v536
    %788 = vmatprep.subr.mxu0 0.0
    %789 = vmatpush1.msra.mxu0 %v535
    %790 = vmatprep.subr.mxu0 0.0
    %791 = vmatpush2.msra.mxu0 0.0
    %792 = vmatprep.subr.mxu0 0.0
    %793 = vmatpush2.msra.mxu0 0.0
    %794 = vmatprep.subr.mxu0 0.0
    %795 = vmatpush2.msra.mxu0 0.0
    %796 = vmatprep.subr.mxu0 0.0
    %797 = vmatpush2.msra.mxu0 0.0
    %798 = vmatprep.subr.mxu0 0.0
    %799 = vmatpush2.msra.mxu0 0.0
    %800 = vmatprep.subr.mxu0 0.0
    %801 = vmatpush2.msra.mxu0 0.0
    %802 = vmatprep.subr.mxu0 0.0
    %803 = vmatpush2.msra.mxu0 0.0
    %804 = vmatprep.subr.mxu0 0.0
    %805 = vmatpush2.msra.mxu0 0.0
    %806 = vmatprep.subr.mxu0 0.0
    %807 = vmatpush2.msra.mxu0 0.0
    %808 = vmatprep.subr.mxu0 0.0
    %809 = vmatpush2.msra.mxu0 0.0
    %810 = vmatprep.subr.mxu0 0.0
    %811 = vmatpush2.msra.mxu0 0.0
    %812 = vmatprep.subr.mxu0 0.0
    %813 = vmatpush2.msra.mxu0 0.0
    %814 = vmatprep.subr.mxu0 0.0
    %815 = vmatpush2.msra.mxu0 0.0
    %816 = vmatprep.subr.mxu0 0.0
    %817 = vmatpush2.msra.mxu0 0.0
    %818 = vmatprep.subr.mxu0 0.0
    %819 = vmatpush2.msra.mxu0 0.0
    %820 = vmatprep.subr.mxu0 0.0
    %821 = vmatpush2.msra.mxu0 0.0
    %822 = vmatprep.mubr.f32.mxu0 0.0
    %823 = vmatmul.mubr.f32.gmra.mxu0 %v756
    %v824 = vpop.f32.mrf.mxu0
    %v825 = vadd.f32 0.0, %v824
    %v826 = vpop.f32.mrf.mxu0
    %827 = vmatprep.mubr.f32.mxu0 0.0
    %828 = vmatmul.mubr.f32.gmra.mxu0 %v757
    %v829 = vpop.f32.mrf.mxu0
    %v830 = vadd.f32 0.0, %v829
    %v831 = vpop.f32.mrf.mxu0
    %832 = vdwg.mxu0
    %834 = vset.pattern.permute.xlu0 0
    %835 = vperm.xlu0 %834, %v513
    %v836 = vpop.permute.xlu0 %835
    %839 = vset.pattern.permute.xlu0 0
    %840 = vperm.xlu0 %839, %v514
    %v841 = vpop.permute.xlu0 %840
    %844 = vset.pattern.permute.xlu0 0
    %845 = vperm.xlu0 %844, %v515
    %v846 = vpop.permute.xlu0 %845
    %849 = vset.pattern.permute.xlu0 0
    %850 = vperm.xlu0 %849, %v516
    %v851 = vpop.permute.xlu0 %850
    %v854 = vlaneseq
    %v855 = vshrl.u32 %v854, 7
    %v856 = vsub.s32 0, %v855
    %v857 = vrot.slane %v551, %v856
    %v859 = vsub.f32 %v836, %v857
    %v860 = vsub.f32 %v841, %v857
    %v861 = vsub.f32 %v846, %v857
    %v862 = vsub.f32 %v851, %v857
    %v863 = vmul.f32 %v859, %v859
    %v864 = vmul.f32 %v860, %v860
    %v865 = vmul.f32 %v861, %v861
    %v866 = vmul.f32 %v862, %v862
    %v867 = vsub.f32 0.0, %v863
    %v868 = vsub.f32 0.0, %v864
    %v869 = vsub.f32 0.0, %v865
    %v870 = vsub.f32 0.0, %v866
    %v871 = vmul.f32 %v867, 4.0
    %v872 = vmul.f32 %v868, 4.0
    %v873 = vmul.f32 %v869, 4.0
    %v874 = vmul.f32 %v870, 4.0
    %v875 = vmul.f32 %v871, 1.442695
    %v876 = vpow.pop %v875
    %v877 = vmul.f32 %v872, 1.442695
    %v878 = vpow.pop %v877
    %v879 = vmul.f32 %v873, 1.442695
    %v880 = vpow.pop %v879
    %v881 = vmul.f32 %v874, 1.442695
    %v882 = vpow.pop %v881
    %883 = vset.pattern.permute.xlu0 0
    %884 = vperm.xlu0 %883, %v518
    %v885 = vpop.permute.xlu0 %884
    %886 = vset.pattern.permute.xlu0 0
    %887 = vperm.xlu0 %886, %v519
    %v888 = vpop.permute.xlu0 %887
    %889 = vset.pattern.permute.xlu0 0
    %890 = vperm.xlu0 %889, %v520
    %v891 = vpop.permute.xlu0 %890
    %892 = vset.pattern.permute.xlu0 0
    %893 = vperm.xlu0 %892, %v521
    %v894 = vpop.permute.xlu0 %893
    %vm895 = vcmp.eq.s32.totalorder %v885, %v745
    %vm896 = vcmp.eq.s32.totalorder %v888, %v745
    %vm897 = vcmp.eq.s32.totalorder %v891, %v745
    %vm898 = vcmp.eq.s32.totalorder %v894, %v745
    %v899 = vsel %vm895, 1, 0
    %v900 = vsel %vm896, 1, 0
    %v901 = vsel %vm897, 1, 0
    %v902 = vsel %vm898, 1, 0
    %v903 = vcvt.s32.f32 %v899
    %v904 = vcvt.s32.f32 %v900
    %v905 = vcvt.s32.f32 %v901
    %v906 = vcvt.s32.f32 %v902
    %907 = vset.pattern.permute.xlu0 0
    %908 = vperm.xlu0 %907, %v522
    %v909 = vpop.permute.xlu0 %908
    %910 = vset.pattern.permute.xlu0 0
    %911 = vperm.xlu0 %910, %v523
    %v912 = vpop.permute.xlu0 %911
    %913 = vset.pattern.permute.xlu0 0
    %914 = vperm.xlu0 %913, %v524
    %v915 = vpop.permute.xlu0 %914
    %916 = vset.pattern.permute.xlu0 0
    %917 = vperm.xlu0 %916, %v525
    %v918 = vpop.permute.xlu0 %917
    %vm919 = vcmp.eq.s32.totalorder %v909, %v745
    %vm920 = vcmp.eq.s32.totalorder %v912, %v745
    %vm921 = vcmp.eq.s32.totalorder %v915, %v745
    %vm922 = vcmp.eq.s32.totalorder %v918, %v745
    %v923 = vsel %vm919, 1, 0
    %v924 = vsel %vm920, 1, 0
    %v925 = vsel %vm921, 1, 0
    %v926 = vsel %vm922, 1, 0
    %v927 = vcvt.s32.f32 %v923
    %v928 = vcvt.s32.f32 %v924
    %v929 = vcvt.s32.f32 %v925
    %v930 = vcvt.s32.f32 %v926
    %931 = vset.pattern.permute.xlu0 0
    %932 = vperm.xlu0 %931, %v527
    %v933 = vpop.permute.xlu0 %932
    %934 = vset.pattern.permute.xlu0 0
    %935 = vperm.xlu0 %934, %v528
    %v936 = vpop.permute.xlu0 %935
    %vm937 = vcmp.eq.s32.totalorder %v933, %v745
    %vm938 = vcmp.eq.s32.totalorder %v936, %v745
    %v939 = vsel %vm937, 1, 0
    %v940 = vsel %vm938, 1, 0
    %v941 = vcvt.s32.f32 %v939
    %v942 = vcvt.s32.f32 %v940
    %943 = vset.pattern.permute.xlu0 0
    %944 = vperm.xlu0 %943, %v530
    %v945 = vpop.permute.xlu0 %944
    %946 = vset.pattern.permute.xlu0 0
    %947 = vperm.xlu0 %946, %v531
    %v948 = vpop.permute.xlu0 %947
    %949 = vset.pattern.permute.xlu0 0
    %950 = vperm.xlu0 %949, %v532
    %v951 = vpop.permute.xlu0 %950
    %952 = vset.pattern.permute.xlu0 0
    %953 = vperm.xlu0 %952, %v533
    %v954 = vpop.permute.xlu0 %953
    %vm955 = vcmp.eq.s32.totalorder %v945, %v745
    %vm956 = vcmp.eq.s32.totalorder %v948, %v745
    %vm957 = vcmp.eq.s32.totalorder %v951, %v745
    %vm958 = vcmp.eq.s32.totalorder %v954, %v745
    %v959 = vsel %vm955, 1, 0
    %v960 = vsel %vm956, 1, 0
    %v961 = vsel %vm957, 1, 0
    %v962 = vsel %vm958, 1, 0
    %v963 = vcvt.s32.f32 %v959
    %v964 = vcvt.s32.f32 %v960
    %v965 = vcvt.s32.f32 %v961
    %v966 = vcvt.s32.f32 %v962
    %v967 = vlaneseq
    %v968 = vshrl.u32 %v967, 7
    %v969 = vadd.s32 %v968, 8
    %v970 = vlaneseq
    %v971 = vshrl.u32 %v970, 7
    %v972 = vsub.s32 0, %v971
    %v973 = vrot.slane %v526, %v972
    %vm974 = vcmp.eq.s32.totalorder %v968, %v973
    %vm975 = vcmp.eq.s32.totalorder %v969, %v973
    %v976 = vsel %vm974, 1, 0
    %v977 = vsel %vm975, 1, 0
    %v978 = vcvt.s32.f32 %v976
    %v979 = vcvt.s32.f32 %v977
    %v980 = vlaneseq
    %v981 = vshrl.u32 %v980, 7
    %v982 = vsub.s32 0, %v981
    %v983 = vrot.slane %v529, %v982
    %vm984 = vcmp.eq.s32.totalorder %v968, %v983
    %v985 = vsel %vm984, 1, 0
    %v986 = vcvt.s32.f32 %v985
    %v987 = vlaneseq
    %v988 = vshrl.u32 %v987, 7
    %v989 = vsub.s32 0, %v988
    %v990 = vrot.slane %v534, %v989
    %vm991 = vcmp.eq.s32.totalorder %v968, %v990
    %v992 = vsel %vm991, 1, 0
    %v993 = vcvt.s32.f32 %v992
    %vm994 = vcmask 261120
    %v995 = vsel %vm994, %v978, 0.0
    %996 = vadd.xlane.f32.xlu0 %v995
    %v997 = vpop.xlane.xlu0 %996
    %v998 = vsel %vm994, %v979, 0.0
    %999 = vadd.xlane.f32.xlu0 %v998
    %v1000 = vpop.xlane.xlu0 %999
    %v1001 = vmax.f32 %v997, 1.0
    %v1002 = vmax.f32 %v1000, 1.0
    %v1003 = vrcp.pop %v1001
    %v1004 = vmul.f32 1.0, %v1003
    %v1005 = vrcp.pop %v1002
    %v1006 = vmul.f32 1.0, %v1005
    %vm1007 = vcmask 123904
    %v1008 = vsel %vm1007, %v986, 0.0
    %1009 = vadd.xlane.f32.xlu0 %v1008
    %v1010 = vpop.xlane.xlu0 %1009
    %v1011 = vmax.f32 %v1010, 1.0
    %v1012 = vrcp.pop %v1011
    %v1013 = vmul.f32 1.0, %v1012
    %vm1014 = vcmask 254976
    %v1015 = vsel %vm1014, %v993, 0.0
    %1016 = vadd.xlane.f32.xlu0 %v1015
    %v1017 = vpop.xlane.xlu0 %1016
    %v1018 = vmax.f32 %v1017, 1.0
    %v1019 = vrcp.pop %v1018
    %v1020 = vmul.f32 1.0, %v1019
    %vm1021 = vcmask 130048
    %v1023 = vsel %vm1021, %v903, 0
    %v1026 = vsel %vm1021, %v904, 0
    %v1029 = vsel %vm1021, %v905, 0
    %v1032 = vsel %vm1021, %v906, 0
    %1034 = vmatprep.subr.mxu0 0.0
    %1035 = vmatpush1.msra.mxu0 0.0
    %1036 = vmatprep.subr.mxu0 0.0
    %1037 = vmatpush1.msra.mxu0 0.0
    %1038 = vmatprep.subr.mxu0 0.0
    %1039 = vmatpush1.msra.mxu0 0.0
    %1040 = vmatprep.subr.mxu0 0.0
    %1041 = vmatpush1.msra.mxu0 0.0
    %1042 = vmatprep.subr.mxu0 0.0
    %1043 = vmatpush1.msra.mxu0 0.0
    %1044 = vmatprep.subr.mxu0 0.0
    %1045 = vmatpush1.msra.mxu0 0.0
    %1046 = vmatprep.subr.mxu0 0.0
    %1047 = vmatpush1.msra.mxu0 0.0
    %1048 = vmatprep.subr.mxu0 0.0
    %1049 = vmatpush1.msra.mxu0 0.0
    %1050 = vmatprep.subr.mxu0 0.0
    %1051 = vmatpush1.msra.mxu0 0.0
    %1052 = vmatprep.subr.mxu0 0.0
    %1053 = vmatpush1.msra.mxu0 0.0
    %1054 = vmatprep.subr.mxu0 0.0
    %1055 = vmatpush1.msra.mxu0 0.0
    %1056 = vmatprep.subr.mxu0 0.0
    %1057 = vmatpush1.msra.mxu0 0.0
    %1058 = vmatprep.subr.mxu0 0.0
    %1059 = vmatpush1.msra.mxu0 0.0
    %1060 = vmatprep.subr.mxu0 0.0
    %1061 = vmatpush1.msra.mxu0 0.0
    %1062 = vmatprep.subr.mxu0 0.0
    %1063 = vmatpush1.msra.mxu0 %v830
    %1064 = vmatprep.subr.mxu0 0.0
    %1065 = vmatpush1.msra.mxu0 %v825
    %1066 = vmatprep.subr.mxu0 0.0
    %1067 = vmatpush2.msra.mxu0 0.0
    %1068 = vmatprep.subr.mxu0 0.0
    %1069 = vmatpush2.msra.mxu0 0.0
    %1070 = vmatprep.subr.mxu0 0.0
    %1071 = vmatpush2.msra.mxu0 0.0
    %1072 = vmatprep.subr.mxu0 0.0
    %1073 = vmatpush2.msra.mxu0 0.0
    %1074 = vmatprep.subr.mxu0 0.0
    %1075 = vmatpush2.msra.mxu0 0.0
    %1076 = vmatprep.subr.mxu0 0.0
    %1077 = vmatpush2.msra.mxu0 0.0
    %1078 = vmatprep.subr.mxu0 0.0
    %1079 = vmatpush2.msra.mxu0 0.0
    %1080 = vmatprep.subr.mxu0 0.0
    %1081 = vmatpush2.msra.mxu0 0.0
    %1082 = vmatprep.subr.mxu0 0.0
    %1083 = vmatpush2.msra.mxu0 0.0
    %1084 = vmatprep.subr.mxu0 0.0
    %1085 = vmatpush2.msra.mxu0 0.0
    %1086 = vmatprep.subr.mxu0 0.0
    %1087 = vmatpush2.msra.mxu0 0.0
    %1088 = vmatprep.subr.mxu0 0.0
    %1089 = vmatpush2.msra.mxu0 0.0
    %1090 = vmatprep.subr.mxu0 0.0
    %1091 = vmatpush2.msra.mxu0 0.0
    %1092 = vmatprep.subr.mxu0 0.0
    %1093 = vmatpush2.msra.mxu0 0.0
    %1094 = vmatprep.subr.mxu0 0.0
    %1095 = vmatpush2.msra.mxu0 0.0
    %1096 = vmatprep.subr.mxu0 0.0
    %1097 = vmatpush2.msra.mxu0 0.0
    %1098 = vmatprep.mubr.f32.mxu0 0.0
    %1099 = vmatmul.mubr.f32.gmra.mxu0 %v1023
    %v1100 = vpop.f32.mrf.mxu0
    %v1101 = vadd.f32 0.0, %v1100
    %v1102 = vpop.f32.mrf.mxu0
    %1103 = vmatprep.mubr.f32.mxu0 0.0
    %1104 = vmatmul.mubr.f32.gmra.mxu0 %v1026
    %v1105 = vpop.f32.mrf.mxu0
    %v1106 = vadd.f32 0.0, %v1105
    %v1107 = vpop.f32.mrf.mxu0
    %1108 = vmatprep.mubr.f32.mxu0 0.0
    %1109 = vmatmul.mubr.f32.gmra.mxu0 %v1029
    %v1110 = vpop.f32.mrf.mxu0
    %v1111 = vadd.f32 0.0, %v1110
    %v1112 = vpop.f32.mrf.mxu0
    %1113 = vmatprep.mubr.f32.mxu0 0.0
    %1114 = vmatmul.mubr.f32.gmra.mxu0 %v1032
    %v1115 = vpop.f32.mrf.mxu0
    %v1116 = vadd.f32 0.0, %v1115
    %v1117 = vpop.f32.mrf.mxu0
    %1118 = vdwg.mxu0
    %v1120 = vsel %vm1021, %v927, 0
    %v1123 = vsel %vm1021, %v928, 0
    %v1126 = vsel %vm1021, %v929, 0
    %v1129 = vsel %vm1021, %v930, 0
    %1131 = vmatprep.subr.mxu0 0.0
    %1132 = vmatpush1.msra.mxu0 0.0
    %1133 = vmatprep.subr.mxu0 0.0
    %1134 = vmatpush1.msra.mxu0 0.0
    %1135 = vmatprep.subr.mxu0 0.0
    %1136 = vmatpush1.msra.mxu0 0.0
    %1137 = vmatprep.subr.mxu0 0.0
    %1138 = vmatpush1.msra.mxu0 0.0
    %1139 = vmatprep.subr.mxu0 0.0
    %1140 = vmatpush1.msra.mxu0 0.0
    %1141 = vmatprep.subr.mxu0 0.0
    %1142 = vmatpush1.msra.mxu0 0.0
    %1143 = vmatprep.subr.mxu0 0.0
    %1144 = vmatpush1.msra.mxu0 0.0
    %1145 = vmatprep.subr.mxu0 0.0
    %1146 = vmatpush1.msra.mxu0 0.0
    %1147 = vmatprep.subr.mxu0 0.0
    %1148 = vmatpush1.msra.mxu0 0.0
    %1149 = vmatprep.subr.mxu0 0.0
    %1150 = vmatpush1.msra.mxu0 0.0
    %1151 = vmatprep.subr.mxu0 0.0
    %1152 = vmatpush1.msra.mxu0 0.0
    %1153 = vmatprep.subr.mxu0 0.0
    %1154 = vmatpush1.msra.mxu0 0.0
    %1155 = vmatprep.subr.mxu0 0.0
    %1156 = vmatpush1.msra.mxu0 0.0
    %1157 = vmatprep.subr.mxu0 0.0
    %1158 = vmatpush1.msra.mxu0 0.0
    %1159 = vmatprep.subr.mxu0 0.0
    %1160 = vmatpush1.msra.mxu0 %v830
    %1161 = vmatprep.subr.mxu0 0.0
    %1162 = vmatpush1.msra.mxu0 %v825
    %1163 = vmatprep.subr.mxu0 0.0
    %1164 = vmatpush2.msra.mxu0 0.0
    %1165 = vmatprep.subr.mxu0 0.0
    %1166 = vmatpush2.msra.mxu0 0.0
    %1167 = vmatprep.subr.mxu0 0.0
    %1168 = vmatpush2.msra.mxu0 0.0
    %1169 = vmatprep.subr.mxu0 0.0
    %1170 = vmatpush2.msra.mxu0 0.0
    %1171 = vmatprep.subr.mxu0 0.0
    %1172 = vmatpush2.msra.mxu0 0.0
    %1173 = vmatprep.subr.mxu0 0.0
    %1174 = vmatpush2.msra.mxu0 0.0
    %1175 = vmatprep.subr.mxu0 0.0
    %1176 = vmatpush2.msra.mxu0 0.0
    %1177 = vmatprep.subr.mxu0 0.0
    %1178 = vmatpush2.msra.mxu0 0.0
    %1179 = vmatprep.subr.mxu0 0.0
    %1180 = vmatpush2.msra.mxu0 0.0
    %1181 = vmatprep.subr.mxu0 0.0
    %1182 = vmatpush2.msra.mxu0 0.0
    %1183 = vmatprep.subr.mxu0 0.0
    %1184 = vmatpush2.msra.mxu0 0.0
    %1185 = vmatprep.subr.mxu0 0.0
    %1186 = vmatpush2.msra.mxu0 0.0
    %1187 = vmatprep.subr.mxu0 0.0
    %1188 = vmatpush2.msra.mxu0 0.0
    %1189 = vmatprep.subr.mxu0 0.0
    %1190 = vmatpush2.msra.mxu0 0.0
    %1191 = vmatprep.subr.mxu0 0.0
    %1192 = vmatpush2.msra.mxu0 0.0
    %1193 = vmatprep.subr.mxu0 0.0
    %1194 = vmatpush2.msra.mxu0 0.0
    %1195 = vmatprep.mubr.f32.mxu0 0.0
    %1196 = vmatmul.mubr.f32.gmra.mxu0 %v1120
    %v1197 = vpop.f32.mrf.mxu0
    %v1198 = vadd.f32 0.0, %v1197
    %v1199 = vpop.f32.mrf.mxu0
    %1200 = vmatprep.mubr.f32.mxu0 0.0
    %1201 = vmatmul.mubr.f32.gmra.mxu0 %v1123
    %v1202 = vpop.f32.mrf.mxu0
    %v1203 = vadd.f32 0.0, %v1202
    %v1204 = vpop.f32.mrf.mxu0
    %1205 = vmatprep.mubr.f32.mxu0 0.0
    %1206 = vmatmul.mubr.f32.gmra.mxu0 %v1126
    %v1207 = vpop.f32.mrf.mxu0
    %v1208 = vadd.f32 0.0, %v1207
    %v1209 = vpop.f32.mrf.mxu0
    %1210 = vmatprep.mubr.f32.mxu0 0.0
    %1211 = vmatmul.mubr.f32.gmra.mxu0 %v1129
    %v1212 = vpop.f32.mrf.mxu0
    %v1213 = vadd.f32 0.0, %v1212
    %v1214 = vpop.f32.mrf.mxu0
    %1215 = vdwg.mxu0
    %vm1216 = vcmask 15360
    %v1218 = vsel %vm1216, %v963, 0
    %v1221 = vsel %vm1216, %v964, 0
    %v1224 = vsel %vm1216, %v965, 0
    %v1227 = vsel %vm1216, %v966, 0
    %vm1229 = vcmask 1041408
    %v1231 = vsel %vm1229, %v517, 0
    %1233 = vmatprep.subr.mxu0 0.0
    %1234 = vmatpush1.msra.mxu0 0.0
    %1235 = vmatprep.subr.mxu0 0.0
    %1236 = vmatpush1.msra.mxu0 0.0
    %1237 = vmatprep.subr.mxu0 0.0
    %1238 = vmatpush1.msra.mxu0 0.0
    %1239 = vmatprep.subr.mxu0 0.0
    %1240 = vmatpush1.msra.mxu0 0.0
    %1241 = vmatprep.subr.mxu0 0.0
    %1242 = vmatpush1.msra.mxu0 0.0
    %1243 = vmatprep.subr.mxu0 0.0
    %1244 = vmatpush1.msra.mxu0 0.0
    %1245 = vmatprep.subr.mxu0 0.0
    %1246 = vmatpush1.msra.mxu0 0.0
    %1247 = vmatprep.subr.mxu0 0.0
    %1248 = vmatpush1.msra.mxu0 0.0
    %1249 = vmatprep.subr.mxu0 0.0
    %1250 = vmatpush1.msra.mxu0 0.0
    %1251 = vmatprep.subr.mxu0 0.0
    %1252 = vmatpush1.msra.mxu0 0.0
    %1253 = vmatprep.subr.mxu0 0.0
    %1254 = vmatpush1.msra.mxu0 0.0
    %1255 = vmatprep.subr.mxu0 0.0
    %1256 = vmatpush1.msra.mxu0 0.0
    %1257 = vmatprep.subr.mxu0 0.0
    %1258 = vmatpush1.msra.mxu0 0.0
    %1259 = vmatprep.subr.mxu0 0.0
    %1260 = vmatpush1.msra.mxu0 0.0
    %1261 = vmatprep.subr.mxu0 0.0
    %1262 = vmatpush1.msra.mxu0 0.0
    %1263 = vmatprep.subr.mxu0 0.0
    %1264 = vmatpush1.msra.mxu0 %v1231
    %1265 = vmatprep.subr.mxu0 0.0
    %1266 = vmatpush2.msra.mxu0 0.0
    %1267 = vmatprep.subr.mxu0 0.0
    %1268 = vmatpush2.msra.mxu0 0.0
    %1269 = vmatprep.subr.mxu0 0.0
    %1270 = vmatpush2.msra.mxu0 0.0
    %1271 = vmatprep.subr.mxu0 0.0
    %1272 = vmatpush2.msra.mxu0 0.0
    %1273 = vmatprep.subr.mxu0 0.0
    %1274 = vmatpush2.msra.mxu0 0.0
    %1275 = vmatprep.subr.mxu0 0.0
    %1276 = vmatpush2.msra.mxu0 0.0
    %1277 = vmatprep.subr.mxu0 0.0
    %1278 = vmatpush2.msra.mxu0 0.0
    %1279 = vmatprep.subr.mxu0 0.0
    %1280 = vmatpush2.msra.mxu0 0.0
    %1281 = vmatprep.subr.mxu0 0.0
    %1282 = vmatpush2.msra.mxu0 0.0
    %1283 = vmatprep.subr.mxu0 0.0
    %1284 = vmatpush2.msra.mxu0 0.0
    %1285 = vmatprep.subr.mxu0 0.0
    %1286 = vmatpush2.msra.mxu0 0.0
    %1287 = vmatprep.subr.mxu0 0.0
    %1288 = vmatpush2.msra.mxu0 0.0
    %1289 = vmatprep.subr.mxu0 0.0
    %1290 = vmatpush2.msra.mxu0 0.0
    %1291 = vmatprep.subr.mxu0 0.0
    %1292 = vmatpush2.msra.mxu0 0.0
    %1293 = vmatprep.subr.mxu0 0.0
    %1294 = vmatpush2.msra.mxu0 0.0
    %1295 = vmatprep.subr.mxu0 0.0
    %1296 = vmatpush2.msra.mxu0 0.0
    %1297 = vmatprep.mubr.f32.mxu0 0.0
    %1298 = vmatmul.mubr.f32.gmra.mxu0 %v1218
    %v1299 = vpop.f32.mrf.mxu0
    %v1300 = vadd.f32 0.0, %v1299
    %v1301 = vpop.f32.mrf.mxu0
    %1302 = vmatprep.mubr.f32.mxu0 0.0
    %1303 = vmatmul.mubr.f32.gmra.mxu0 %v1221
    %v1304 = vpop.f32.mrf.mxu0
    %v1305 = vadd.f32 0.0, %v1304
    %v1306 = vpop.f32.mrf.mxu0
    %1307 = vmatprep.mubr.f32.mxu0 0.0
    %1308 = vmatmul.mubr.f32.gmra.mxu0 %v1224
    %v1309 = vpop.f32.mrf.mxu0
    %v1310 = vadd.f32 0.0, %v1309
    %v1311 = vpop.f32.mrf.mxu0
    %1312 = vmatprep.mubr.f32.mxu0 0.0
    %1313 = vmatmul.mubr.f32.gmra.mxu0 %v1227
    %v1314 = vpop.f32.mrf.mxu0
    %v1315 = vadd.f32 0.0, %v1314
    %v1316 = vpop.f32.mrf.mxu0
    %1317 = vdwg.mxu0
    %v1319 = vsel %vm1021, %v1198, 0
    %v1322 = vsel %vm1021, %v1203, 0
    %v1325 = vsel %vm1021, %v1208, 0
    %v1328 = vsel %vm1021, %v1213, 0
    %1330 = vmatprep.subr.mxu0 0.0
    %1331 = vmatpush1.msra.mxu0 0.0
    %1332 = vmatprep.subr.mxu0 0.0
    %1333 = vmatpush1.msra.mxu0 0.0
    %1334 = vmatprep.subr.mxu0 0.0
    %1335 = vmatpush1.msra.mxu0 0.0
    %1336 = vmatprep.subr.mxu0 0.0
    %1337 = vmatpush1.msra.mxu0 0.0
    %1338 = vmatprep.subr.mxu0 0.0
    %1339 = vmatpush1.msra.mxu0 0.0
    %1340 = vmatprep.subr.mxu0 0.0
    %1341 = vmatpush1.msra.mxu0 0.0
    %1342 = vmatprep.subr.mxu0 0.0
    %1343 = vmatpush1.msra.mxu0 0.0
    %1344 = vmatprep.subr.mxu0 0.0
    %1345 = vmatpush1.msra.mxu0 0.0
    %1346 = vmatprep.subr.mxu0 0.0
    %1347 = vmatpush1.msra.mxu0 0.0
    %1348 = vmatprep.subr.mxu0 0.0
    %1349 = vmatpush1.msra.mxu0 0.0
    %1350 = vmatprep.subr.mxu0 0.0
    %1351 = vmatpush1.msra.mxu0 0.0
    %1352 = vmatprep.subr.mxu0 0.0
    %1353 = vmatpush1.msra.mxu0 0.0
    %1354 = vmatprep.subr.mxu0 0.0
    %1355 = vmatpush1.msra.mxu0 0.0
    %1356 = vmatprep.subr.mxu0 0.0
    %1357 = vmatpush1.msra.mxu0 0.0
    %1358 = vmatprep.subr.mxu0 0.0
    %1359 = vmatpush1.msra.mxu0 %v555
    %1360 = vmatprep.subr.mxu0 0.0
    %1361 = vmatpush1.msra.mxu0 %v554
    %1362 = vmatprep.subr.mxu0 0.0
    %1363 = vmatpush2.msra.mxu0 0.0
    %1364 = vmatprep.subr.mxu0 0.0
    %1365 = vmatpush2.msra.mxu0 0.0
    %1366 = vmatprep.subr.mxu0 0.0
    %1367 = vmatpush2.msra.mxu0 0.0
    %1368 = vmatprep.subr.mxu0 0.0
    %1369 = vmatpush2.msra.mxu0 0.0
    %1370 = vmatprep.subr.mxu0 0.0
    %1371 = vmatpush2.msra.mxu0 0.0
    %1372 = vmatprep.subr.mxu0 0.0
    %1373 = vmatpush2.msra.mxu0 0.0
    %1374 = vmatprep.subr.mxu0 0.0
    %1375 = vmatpush2.msra.mxu0 0.0
    %1376 = vmatprep.subr.mxu0 0.0
    %1377 = vmatpush2.msra.mxu0 0.0
    %1378 = vmatprep.subr.mxu0 0.0
    %1379 = vmatpush2.msra.mxu0 0.0
    %1380 = vmatprep.subr.mxu0 0.0
    %1381 = vmatpush2.msra.mxu0 0.0
    %1382 = vmatprep.subr.mxu0 0.0
    %1383 = vmatpush2.msra.mxu0 0.0
    %1384 = vmatprep.subr.mxu0 0.0
    %1385 = vmatpush2.msra.mxu0 0.0
    %1386 = vmatprep.subr.mxu0 0.0
    %1387 = vmatpush2.msra.mxu0 0.0
    %1388 = vmatprep.subr.mxu0 0.0
    %1389 = vmatpush2.msra.mxu0 0.0
    %1390 = vmatprep.subr.mxu0 0.0
    %1391 = vmatpush2.msra.mxu0 0.0
    %1392 = vmatprep.subr.mxu0 0.0
    %1393 = vmatpush2.msra.mxu0 0.0
    %1394 = vmatprep.mubr.f32.mxu0 0.0
    %1395 = vmatmul.mubr.f32.gmra.mxu0 %v1319
    %v1396 = vpop.f32.mrf.mxu0
    %v1397 = vadd.f32 0.0, %v1396
    %v1398 = vpop.f32.mrf.mxu0
    %1399 = vmatprep.mubr.f32.mxu0 0.0
    %1400 = vmatmul.mubr.f32.gmra.mxu0 %v1322
    %v1401 = vpop.f32.mrf.mxu0
    %v1402 = vadd.f32 0.0, %v1401
    %v1403 = vpop.f32.mrf.mxu0
    %1404 = vmatprep.mubr.f32.mxu0 0.0
    %1405 = vmatmul.mubr.f32.gmra.mxu0 %v1325
    %v1406 = vpop.f32.mrf.mxu0
    %v1407 = vadd.f32 0.0, %v1406
    %v1408 = vpop.f32.mrf.mxu0
    %1409 = vmatprep.mubr.f32.mxu0 0.0
    %1410 = vmatmul.mubr.f32.gmra.mxu0 %v1328
    %v1411 = vpop.f32.mrf.mxu0
    %v1412 = vadd.f32 0.0, %v1411
    %v1413 = vpop.f32.mrf.mxu0
    %1414 = vdwg.mxu0
    %v1416 = vsel %vm1021, %v1101, 0
    %v1419 = vsel %vm1021, %v1106, 0
    %v1422 = vsel %vm1021, %v1111, 0
    %v1425 = vsel %vm1021, %v1116, 0
    %1427 = vmatprep.subr.mxu0 0.0
    %1428 = vmatpush1.msra.mxu0 0.0
    %1429 = vmatprep.subr.mxu0 0.0
    %1430 = vmatpush1.msra.mxu0 0.0
    %1431 = vmatprep.subr.mxu0 0.0
    %1432 = vmatpush1.msra.mxu0 0.0
    %1433 = vmatprep.subr.mxu0 0.0
    %1434 = vmatpush1.msra.mxu0 0.0
    %1435 = vmatprep.subr.mxu0 0.0
    %1436 = vmatpush1.msra.mxu0 0.0
    %1437 = vmatprep.subr.mxu0 0.0
    %1438 = vmatpush1.msra.mxu0 0.0
    %1439 = vmatprep.subr.mxu0 0.0
    %1440 = vmatpush1.msra.mxu0 0.0
    %1441 = vmatprep.subr.mxu0 0.0
    %1442 = vmatpush1.msra.mxu0 0.0
    %1443 = vmatprep.subr.mxu0 0.0
    %1444 = vmatpush1.msra.mxu0 0.0
    %1445 = vmatprep.subr.mxu0 0.0
    %1446 = vmatpush1.msra.mxu0 0.0
    %1447 = vmatprep.subr.mxu0 0.0
    %1448 = vmatpush1.msra.mxu0 0.0
    %1449 = vmatprep.subr.mxu0 0.0
    %1450 = vmatpush1.msra.mxu0 0.0
    %1451 = vmatprep.subr.mxu0 0.0
    %1452 = vmatpush1.msra.mxu0 0.0
    %1453 = vmatprep.subr.mxu0 0.0
    %1454 = vmatpush1.msra.mxu0 0.0
    %1455 = vmatprep.subr.mxu0 0.0
    %1456 = vmatpush1.msra.mxu0 %v553
    %1457 = vmatprep.subr.mxu0 0.0
    %1458 = vmatpush1.msra.mxu0 %v552
    %1459 = vmatprep.subr.mxu0 0.0
    %1460 = vmatpush2.msra.mxu0 0.0
    %1461 = vmatprep.subr.mxu0 0.0
    %1462 = vmatpush2.msra.mxu0 0.0
    %1463 = vmatprep.subr.mxu0 0.0
    %1464 = vmatpush2.msra.mxu0 0.0
    %1465 = vmatprep.subr.mxu0 0.0
    %1466 = vmatpush2.msra.mxu0 0.0
    %1467 = vmatprep.subr.mxu0 0.0
    %1468 = vmatpush2.msra.mxu0 0.0
    %1469 = vmatprep.subr.mxu0 0.0
    %1470 = vmatpush2.msra.mxu0 0.0
    %1471 = vmatprep.subr.mxu0 0.0
    %1472 = vmatpush2.msra.mxu0 0.0
    %1473 = vmatprep.subr.mxu0 0.0
    %1474 = vmatpush2.msra.mxu0 0.0
    %1475 = vmatprep.subr.mxu0 0.0
    %1476 = vmatpush2.msra.mxu0 0.0
    %1477 = vmatprep.subr.mxu0 0.0
    %1478 = vmatpush2.msra.mxu0 0.0
    %1479 = vmatprep.subr.mxu0 0.0
    %1480 = vmatpush2.msra.mxu0 0.0
    %1481 = vmatprep.subr.mxu0 0.0
    %1482 = vmatpush2.msra.mxu0 0.0
    %1483 = vmatprep.subr.mxu0 0.0
    %1484 = vmatpush2.msra.mxu0 0.0
    %1485 = vmatprep.subr.mxu0 0.0
    %1486 = vmatpush2.msra.mxu0 0.0
    %1487 = vmatprep.subr.mxu0 0.0
    %1488 = vmatpush2.msra.mxu0 0.0
    %1489 = vmatprep.subr.mxu0 0.0
    %1490 = vmatpush2.msra.mxu0 0.0
    %1491 = vmatprep.mubr.f32.mxu0 0.0
    %1492 = vmatmul.mubr.f32.gmra.mxu0 %v1416
    %v1493 = vpop.f32.mrf.mxu0
    %v1494 = vadd.f32 %v1397, %v1493
    %v1495 = vpop.f32.mrf.mxu0
    %1496 = vmatprep.mubr.f32.mxu0 0.0
    %1497 = vmatmul.mubr.f32.gmra.mxu0 %v1419
    %v1498 = vpop.f32.mrf.mxu0
    %v1499 = vadd.f32 %v1402, %v1498
    %v1500 = vpop.f32.mrf.mxu0
    %1501 = vmatprep.mubr.f32.mxu0 0.0
    %1502 = vmatmul.mubr.f32.gmra.mxu0 %v1422
    %v1503 = vpop.f32.mrf.mxu0
    %v1504 = vadd.f32 %v1407, %v1503
    %v1505 = vpop.f32.mrf.mxu0
    %1506 = vmatprep.mubr.f32.mxu0 0.0
    %1507 = vmatmul.mubr.f32.gmra.mxu0 %v1425
    %v1508 = vpop.f32.mrf.mxu0
    %v1509 = vadd.f32 %v1412, %v1508
    %v1510 = vpop.f32.mrf.mxu0
    %1511 = vdwg.mxu0
    %1512 = vmatprep.subr.mxu0 0.0
    %1513 = vmatpush1.msra.mxu0 %v571
    %1514 = vmatprep.subr.mxu0 0.0
    %1515 = vmatpush1.msra.mxu0 %v570
    %1516 = vmatprep.subr.mxu0 0.0
    %1517 = vmatpush1.msra.mxu0 %v569
    %1518 = vmatprep.subr.mxu0 0.0
    %1519 = vmatpush1.msra.mxu0 %v568
    %1520 = vmatprep.subr.mxu0 0.0
    %1521 = vmatpush1.msra.mxu0 %v567
    %1522 = vmatprep.subr.mxu0 0.0
    %1523 = vmatpush1.msra.mxu0 %v566
    %1524 = vmatprep.subr.mxu0 0.0
    %1525 = vmatpush1.msra.mxu0 %v565
    %1526 = vmatprep.subr.mxu0 0.0
    %1527 = vmatpush1.msra.mxu0 %v564
    %1528 = vmatprep.subr.mxu0 0.0
    %1529 = vmatpush1.msra.mxu0 %v563
    %1530 = vmatprep.subr.mxu0 0.0
    %1531 = vmatpush1.msra.mxu0 %v562
    %1532 = vmatprep.subr.mxu0 0.0
    %1533 = vmatpush1.msra.mxu0 %v561
    %1534 = vmatprep.subr.mxu0 0.0
    %1535 = vmatpush1.msra.mxu0 %v560
    %1536 = vmatprep.subr.mxu0 0.0
    %1537 = vmatpush1.msra.mxu0 %v559
    %1538 = vmatprep.subr.mxu0 0.0
    %1539 = vmatpush1.msra.mxu0 %v558
    %1540 = vmatprep.subr.mxu0 0.0
    %1541 = vmatpush1.msra.mxu0 %v557
    %1542 = vmatprep.subr.mxu0 0.0
    %1543 = vmatpush1.msra.mxu0 %v556
    %1544 = vmatprep.subr.mxu0 0.0
    %1545 = vmatpush2.msra.mxu0 0.0
    %1546 = vmatprep.subr.mxu0 0.0
    %1547 = vmatpush2.msra.mxu0 0.0
    %1548 = vmatprep.subr.mxu0 0.0
    %1549 = vmatpush2.msra.mxu0 0.0
    %1550 = vmatprep.subr.mxu0 0.0
    %1551 = vmatpush2.msra.mxu0 0.0
    %1552 = vmatprep.subr.mxu0 0.0
    %1553 = vmatpush2.msra.mxu0 0.0
    %1554 = vmatprep.subr.mxu0 0.0
    %1555 = vmatpush2.msra.mxu0 0.0
    %1556 = vmatprep.subr.mxu0 0.0
    %1557 = vmatpush2.msra.mxu0 0.0
    %1558 = vmatprep.subr.mxu0 0.0
    %1559 = vmatpush2.msra.mxu0 0.0
    %1560 = vmatprep.subr.mxu0 0.0
    %1561 = vmatpush2.msra.mxu0 0.0
    %1562 = vmatprep.subr.mxu0 0.0
    %1563 = vmatpush2.msra.mxu0 0.0
    %1564 = vmatprep.subr.mxu0 0.0
    %1565 = vmatpush2.msra.mxu0 0.0
    %1566 = vmatprep.subr.mxu0 0.0
    %1567 = vmatpush2.msra.mxu0 0.0
    %1568 = vmatprep.subr.mxu0 0.0
    %1569 = vmatpush2.msra.mxu0 0.0
    %1570 = vmatprep.subr.mxu0 0.0
    %1571 = vmatpush2.msra.mxu0 0.0
    %1572 = vmatprep.subr.mxu0 0.0
    %1573 = vmatpush2.msra.mxu0 0.0
    %1574 = vmatprep.subr.mxu0 0.0
    %1575 = vmatpush2.msra.mxu0 0.0
    %1576 = vmatprep.mubr.f32.mxu0 0.0
    %1577 = vmatmul.mubr.f32.gmra.mxu0 %v876
    %v1578 = vpop.f32.mrf.mxu0
    %v1579 = vadd.f32 0.0, %v1578
    %v1580 = vpop.f32.mrf.mxu0
    %1581 = vmatprep.mubr.f32.mxu0 0.0
    %1582 = vmatmul.mubr.f32.gmra.mxu0 %v878
    %v1583 = vpop.f32.mrf.mxu0
    %v1584 = vadd.f32 0.0, %v1583
    %v1585 = vpop.f32.mrf.mxu0
    %1586 = vmatprep.mubr.f32.mxu0 0.0
    %1587 = vmatmul.mubr.f32.gmra.mxu0 %v880
    %v1588 = vpop.f32.mrf.mxu0
    %v1589 = vadd.f32 0.0, %v1588
    %v1590 = vpop.f32.mrf.mxu0
    %1591 = vmatprep.mubr.f32.mxu0 0.0
    %1592 = vmatmul.mubr.f32.gmra.mxu0 %v882
    %v1593 = vpop.f32.mrf.mxu0
    %v1594 = vadd.f32 0.0, %v1593
    %v1595 = vpop.f32.mrf.mxu0
    %1596 = vdwg.mxu0
    %v1597 = vadd.f32 %v1494, %v1579
    %v1598 = vadd.f32 %v1499, %v1584
    %v1599 = vadd.f32 %v1504, %v1589
    %v1600 = vadd.f32 %v1509, %v1594
    %v1602 = vsel %vm1216, %v1300, 0
    %v1605 = vsel %vm1216, %v1305, 0
    %v1608 = vsel %vm1216, %v1310, 0
    %v1611 = vsel %vm1216, %v1315, 0
    %v1614 = vsel %vm1229, %v572, 0
    %1616 = vmatprep.subr.mxu0 0.0
    %1617 = vmatpush1.msra.mxu0 0.0
    %1618 = vmatprep.subr.mxu0 0.0
    %1619 = vmatpush1.msra.mxu0 0.0
    %1620 = vmatprep.subr.mxu0 0.0
    %1621 = vmatpush1.msra.mxu0 0.0
    %1622 = vmatprep.subr.mxu0 0.0
    %1623 = vmatpush1.msra.mxu0 0.0
    %1624 = vmatprep.subr.mxu0 0.0
    %1625 = vmatpush1.msra.mxu0 0.0
    %1626 = vmatprep.subr.mxu0 0.0
    %1627 = vmatpush1.msra.mxu0 0.0
    %1628 = vmatprep.subr.mxu0 0.0
    %1629 = vmatpush1.msra.mxu0 0.0
    %1630 = vmatprep.subr.mxu0 0.0
    %1631 = vmatpush1.msra.mxu0 0.0
    %1632 = vmatprep.subr.mxu0 0.0
    %1633 = vmatpush1.msra.mxu0 0.0
    %1634 = vmatprep.subr.mxu0 0.0
    %1635 = vmatpush1.msra.mxu0 0.0
    %1636 = vmatprep.subr.mxu0 0.0
    %1637 = vmatpush1.msra.mxu0 0.0
    %1638 = vmatprep.subr.mxu0 0.0
    %1639 = vmatpush1.msra.mxu0 0.0
    %1640 = vmatprep.subr.mxu0 0.0
    %1641 = vmatpush1.msra.mxu0 0.0
    %1642 = vmatprep.subr.mxu0 0.0
    %1643 = vmatpush1.msra.mxu0 0.0
    %1644 = vmatprep.subr.mxu0 0.0
    %1645 = vmatpush1.msra.mxu0 0.0
    %1646 = vmatprep.subr.mxu0 0.0
    %1647 = vmatpush1.msra.mxu0 %v1614
    %1648 = vmatprep.subr.mxu0 0.0
    %1649 = vmatpush2.msra.mxu0 0.0
    %1650 = vmatprep.subr.mxu0 0.0
    %1651 = vmatpush2.msra.mxu0 0.0
    %1652 = vmatprep.subr.mxu0 0.0
    %1653 = vmatpush2.msra.mxu0 0.0
    %1654 = vmatprep.subr.mxu0 0.0
    %1655 = vmatpush2.msra.mxu0 0.0
    %1656 = vmatprep.subr.mxu0 0.0
    %1657 = vmatpush2.msra.mxu0 0.0
    %1658 = vmatprep.subr.mxu0 0.0
    %1659 = vmatpush2.msra.mxu0 0.0
    %1660 = vmatprep.subr.mxu0 0.0
    %1661 = vmatpush2.msra.mxu0 0.0
    %1662 = vmatprep.subr.mxu0 0.0
    %1663 = vmatpush2.msra.mxu0 0.0
    %1664 = vmatprep.subr.mxu0 0.0
    %1665 = vmatpush2.msra.mxu0 0.0
    %1666 = vmatprep.subr.mxu0 0.0
    %1667 = vmatpush2.msra.mxu0 0.0
    %1668 = vmatprep.subr.mxu0 0.0
    %1669 = vmatpush2.msra.mxu0 0.0
    %1670 = vmatprep.subr.mxu0 0.0
    %1671 = vmatpush2.msra.mxu0 0.0
    %1672 = vmatprep.subr.mxu0 0.0
    %1673 = vmatpush2.msra.mxu0 0.0
    %1674 = vmatprep.subr.mxu0 0.0
    %1675 = vmatpush2.msra.mxu0 0.0
    %1676 = vmatprep.subr.mxu0 0.0
    %1677 = vmatpush2.msra.mxu0 0.0
    %1678 = vmatprep.subr.mxu0 0.0
    %1679 = vmatpush2.msra.mxu0 0.0
    %1680 = vmatprep.mubr.f32.mxu0 0.0
    %1681 = vmatmul.mubr.f32.gmra.mxu0 %v1602
    %v1682 = vpop.f32.mrf.mxu0
    %v1683 = vadd.f32 0.0, %v1682
    %v1684 = vpop.f32.mrf.mxu0
    %1685 = vmatprep.mubr.f32.mxu0 0.0
    %1686 = vmatmul.mubr.f32.gmra.mxu0 %v1605
    %v1687 = vpop.f32.mrf.mxu0
    %v1688 = vadd.f32 0.0, %v1687
    %v1689 = vpop.f32.mrf.mxu0
    %1690 = vmatprep.mubr.f32.mxu0 0.0
    %1691 = vmatmul.mubr.f32.gmra.mxu0 %v1608
    %v1692 = vpop.f32.mrf.mxu0
    %v1693 = vadd.f32 0.0, %v1692
    %v1694 = vpop.f32.mrf.mxu0
    %1695 = vmatprep.mubr.f32.mxu0 0.0
    %1696 = vmatmul.mubr.f32.gmra.mxu0 %v1611
    %v1697 = vpop.f32.mrf.mxu0
    %v1698 = vadd.f32 0.0, %v1697
    %v1699 = vpop.f32.mrf.mxu0
    %1700 = vdwg.mxu0
    %v1701 = vadd.f32 %v1597, %v1683
    %v1702 = vadd.f32 %v1598, %v1688
    %v1703 = vadd.f32 %v1599, %v1693
    %v1704 = vadd.f32 %v1600, %v1698
    %v1706 = vlaneseq
    %v1707 = vshrl.u32 %v1706, 7
    %v1708 = vsub.s32 0, %v1707
    %v1709 = vrot.slane %v573, %v1708
    %v1711 = vadd.f32 %v1701, %v1709
    %v1712 = vadd.f32 %v1702, %v1709
    %v1713 = vadd.f32 %v1703, %v1709
    %v1714 = vadd.f32 %v1704, %v1709
    %v1715 = vmax.f32 %v1711, 0.0
    %v1716 = vmax.f32 %v1712, 0.0
    %v1717 = vmax.f32 %v1713, 0.0
    %v1718 = vmax.f32 %v1714, 0.0
    %v1720 = vlaneseq
    %v1721 = vshrl.u32 %v1720, 7
    %v1722 = vsub.s32 0, %v1721
    %v1723 = vrot.slane %v582, %v1722
    %vm1725 = vcmask 523264
    %v1727 = vsel %vm1725, %v1715, 0
    %v1730 = vsel %vm1725, %v1716, 0
    %v1733 = vsel %vm1725, %v1717, 0
    %v1736 = vsel %vm1725, %v1718, 0
    %1738 = vmatprep.subr.mxu0 0.0
    %1739 = vmatpush1.msra.mxu0 0.0
    %1740 = vmatprep.subr.mxu0 0.0
    %1741 = vmatpush1.msra.mxu0 0.0
    %1742 = vmatprep.subr.mxu0 0.0
    %1743 = vmatpush1.msra.mxu0 0.0
    %1744 = vmatprep.subr.mxu0 0.0
    %1745 = vmatpush1.msra.mxu0 0.0
    %1746 = vmatprep.subr.mxu0 0.0
    %1747 = vmatpush1.msra.mxu0 0.0
    %1748 = vmatprep.subr.mxu0 0.0
    %1749 = vmatpush1.msra.mxu0 0.0
    %1750 = vmatprep.subr.mxu0 0.0
    %1751 = vmatpush1.msra.mxu0 0.0
    %1752 = vmatprep.subr.mxu0 0.0
    %1753 = vmatpush1.msra.mxu0 0.0
    %1754 = vmatprep.subr.mxu0 0.0
    %1755 = vmatpush1.msra.mxu0 %v581
    %1756 = vmatprep.subr.mxu0 0.0
    %1757 = vmatpush1.msra.mxu0 %v580
    %1758 = vmatprep.subr.mxu0 0.0
    %1759 = vmatpush1.msra.mxu0 %v579
    %1760 = vmatprep.subr.mxu0 0.0
    %1761 = vmatpush1.msra.mxu0 %v578
    %1762 = vmatprep.subr.mxu0 0.0
    %1763 = vmatpush1.msra.mxu0 %v577
    %1764 = vmatprep.subr.mxu0 0.0
    %1765 = vmatpush1.msra.mxu0 %v576
    %1766 = vmatprep.subr.mxu0 0.0
    %1767 = vmatpush1.msra.mxu0 %v575
    %1768 = vmatprep.subr.mxu0 0.0
    %1769 = vmatpush1.msra.mxu0 %v574
    %1770 = vmatprep.subr.mxu0 0.0
    %1771 = vmatpush2.msra.mxu0 0.0
    %1772 = vmatprep.subr.mxu0 0.0
    %1773 = vmatpush2.msra.mxu0 0.0
    %1774 = vmatprep.subr.mxu0 0.0
    %1775 = vmatpush2.msra.mxu0 0.0
    %1776 = vmatprep.subr.mxu0 0.0
    %1777 = vmatpush2.msra.mxu0 0.0
    %1778 = vmatprep.subr.mxu0 0.0
    %1779 = vmatpush2.msra.mxu0 0.0
    %1780 = vmatprep.subr.mxu0 0.0
    %1781 = vmatpush2.msra.mxu0 0.0
    %1782 = vmatprep.subr.mxu0 0.0
    %1783 = vmatpush2.msra.mxu0 0.0
    %1784 = vmatprep.subr.mxu0 0.0
    %1785 = vmatpush2.msra.mxu0 0.0
    %1786 = vmatprep.subr.mxu0 0.0
    %1787 = vmatpush2.msra.mxu0 0.0
    %1788 = vmatprep.subr.mxu0 0.0
    %1789 = vmatpush2.msra.mxu0 0.0
    %1790 = vmatprep.subr.mxu0 0.0
    %1791 = vmatpush2.msra.mxu0 0.0
    %1792 = vmatprep.subr.mxu0 0.0
    %1793 = vmatpush2.msra.mxu0 0.0
    %1794 = vmatprep.subr.mxu0 0.0
    %1795 = vmatpush2.msra.mxu0 0.0
    %1796 = vmatprep.subr.mxu0 0.0
    %1797 = vmatpush2.msra.mxu0 0.0
    %1798 = vmatprep.subr.mxu0 0.0
    %1799 = vmatpush2.msra.mxu0 0.0
    %1800 = vmatprep.subr.mxu0 0.0
    %1801 = vmatpush2.msra.mxu0 0.0
    %1802 = vmatprep.mubr.f32.mxu0 0.0
    %1803 = vmatmul.mubr.f32.gmra.mxu0 %v1727
    %v1804 = vpop.f32.mrf.mxu0
    %v1805 = vadd.f32 %v1723, %v1804
    %v1806 = vpop.f32.mrf.mxu0
    %1807 = vmatprep.mubr.f32.mxu0 0.0
    %1808 = vmatmul.mubr.f32.gmra.mxu0 %v1730
    %v1809 = vpop.f32.mrf.mxu0
    %v1810 = vadd.f32 %v1723, %v1809
    %v1811 = vpop.f32.mrf.mxu0
    %1812 = vmatprep.mubr.f32.mxu0 0.0
    %1813 = vmatmul.mubr.f32.gmra.mxu0 %v1733
    %v1814 = vpop.f32.mrf.mxu0
    %v1815 = vadd.f32 %v1723, %v1814
    %v1816 = vpop.f32.mrf.mxu0
    %1817 = vmatprep.mubr.f32.mxu0 0.0
    %1818 = vmatmul.mubr.f32.gmra.mxu0 %v1736
    %v1819 = vpop.f32.mrf.mxu0
    %v1820 = vadd.f32 %v1723, %v1819
    %v1821 = vpop.f32.mrf.mxu0
    %1822 = vdwg.mxu0
    %v1823 = vmax.f32 %v1805, 0.0
    %v1824 = vmax.f32 %v1810, 0.0
    %v1825 = vmax.f32 %v1815, 0.0
    %v1826 = vmax.f32 %v1820, 0.0
    %v1828 = vsel %vm994, %v978, 0
    %v1831 = vsel %vm994, %v979, 0
    %1833 = vmatprep.subr.mxu0 0.0
    %1834 = vmatpush1.msra.mxu0 0.0
    %1835 = vmatprep.subr.mxu0 0.0
    %1836 = vmatpush1.msra.mxu0 0.0
    %1837 = vmatprep.subr.mxu0 0.0
    %1838 = vmatpush1.msra.mxu0 0.0
    %1839 = vmatprep.subr.mxu0 0.0
    %1840 = vmatpush1.msra.mxu0 0.0
    %1841 = vmatprep.subr.mxu0 0.0
    %1842 = vmatpush1.msra.mxu0 0.0
    %1843 = vmatprep.subr.mxu0 0.0
    %1844 = vmatpush1.msra.mxu0 0.0
    %1845 = vmatprep.subr.mxu0 0.0
    %1846 = vmatpush1.msra.mxu0 0.0
    %1847 = vmatprep.subr.mxu0 0.0
    %1848 = vmatpush1.msra.mxu0 0.0
    %1849 = vmatprep.subr.mxu0 0.0
    %1850 = vmatpush1.msra.mxu0 0.0
    %1851 = vmatprep.subr.mxu0 0.0
    %1852 = vmatpush1.msra.mxu0 0.0
    %1853 = vmatprep.subr.mxu0 0.0
    %1854 = vmatpush1.msra.mxu0 0.0
    %1855 = vmatprep.subr.mxu0 0.0
    %1856 = vmatpush1.msra.mxu0 0.0
    %1857 = vmatprep.subr.mxu0 0.0
    %1858 = vmatpush1.msra.mxu0 %v1826
    %1859 = vmatprep.subr.mxu0 0.0
    %1860 = vmatpush1.msra.mxu0 %v1825
    %1861 = vmatprep.subr.mxu0 0.0
    %1862 = vmatpush1.msra.mxu0 %v1824
    %1863 = vmatprep.subr.mxu0 0.0
    %1864 = vmatpush1.msra.mxu0 %v1823
    %1865 = vmatprep.subr.mxu0 0.0
    %1866 = vmatpush2.msra.mxu0 0.0
    %1867 = vmatprep.subr.mxu0 0.0
    %1868 = vmatpush2.msra.mxu0 0.0
    %1869 = vmatprep.subr.mxu0 0.0
    %1870 = vmatpush2.msra.mxu0 0.0
    %1871 = vmatprep.subr.mxu0 0.0
    %1872 = vmatpush2.msra.mxu0 0.0
    %1873 = vmatprep.subr.mxu0 0.0
    %1874 = vmatpush2.msra.mxu0 0.0
    %1875 = vmatprep.subr.mxu0 0.0
    %1876 = vmatpush2.msra.mxu0 0.0
    %1877 = vmatprep.subr.mxu0 0.0
    %1878 = vmatpush2.msra.mxu0 0.0
    %1879 = vmatprep.subr.mxu0 0.0
    %1880 = vmatpush2.msra.mxu0 0.0
    %1881 = vmatprep.subr.mxu0 0.0
    %1882 = vmatpush2.msra.mxu0 0.0
    %1883 = vmatprep.subr.mxu0 0.0
    %1884 = vmatpush2.msra.mxu0 0.0
    %1885 = vmatprep.subr.mxu0 0.0
    %1886 = vmatpush2.msra.mxu0 0.0
    %1887 = vmatprep.subr.mxu0 0.0
    %1888 = vmatpush2.msra.mxu0 0.0
    %1889 = vmatprep.subr.mxu0 0.0
    %1890 = vmatpush2.msra.mxu0 0.0
    %1891 = vmatprep.subr.mxu0 0.0
    %1892 = vmatpush2.msra.mxu0 0.0
    %1893 = vmatprep.subr.mxu0 0.0
    %1894 = vmatpush2.msra.mxu0 0.0
    %1895 = vmatprep.subr.mxu0 0.0
    %1896 = vmatpush2.msra.mxu0 0.0
    %1897 = vmatprep.mubr.f32.mxu0 0.0
    %1898 = vmatmul.mubr.f32.gmra.mxu0 %v1828
    %v1899 = vpop.f32.mrf.mxu0
    %v1900 = vadd.f32 0.0, %v1899
    %v1901 = vpop.f32.mrf.mxu0
    %1902 = vmatprep.mubr.f32.mxu0 0.0
    %1903 = vmatmul.mubr.f32.gmra.mxu0 %v1831
    %v1904 = vpop.f32.mrf.mxu0
    %v1905 = vadd.f32 0.0, %v1904
    %v1906 = vpop.f32.mrf.mxu0
    %1907 = vdwg.mxu0
    %v1908 = vmul.f32 %v1900, %v1004
    %v1909 = vmul.f32 %v1905, %v1006
    %v1911 = vsel %vm1216, %v941, 0
    %v1914 = vsel %vm1216, %v942, 0
    %1916 = vmatprep.subr.mxu0 0.0
    %1917 = vmatpush1.msra.mxu0 0.0
    %1918 = vmatprep.subr.mxu0 0.0
    %1919 = vmatpush1.msra.mxu0 0.0
    %1920 = vmatprep.subr.mxu0 0.0
    %1921 = vmatpush1.msra.mxu0 0.0
    %1922 = vmatprep.subr.mxu0 0.0
    %1923 = vmatpush1.msra.mxu0 0.0
    %1924 = vmatprep.subr.mxu0 0.0
    %1925 = vmatpush1.msra.mxu0 0.0
    %1926 = vmatprep.subr.mxu0 0.0
    %1927 = vmatpush1.msra.mxu0 0.0
    %1928 = vmatprep.subr.mxu0 0.0
    %1929 = vmatpush1.msra.mxu0 0.0
    %1930 = vmatprep.subr.mxu0 0.0
    %1931 = vmatpush1.msra.mxu0 0.0
    %1932 = vmatprep.subr.mxu0 0.0
    %1933 = vmatpush1.msra.mxu0 0.0
    %1934 = vmatprep.subr.mxu0 0.0
    %1935 = vmatpush1.msra.mxu0 0.0
    %1936 = vmatprep.subr.mxu0 0.0
    %1937 = vmatpush1.msra.mxu0 0.0
    %1938 = vmatprep.subr.mxu0 0.0
    %1939 = vmatpush1.msra.mxu0 0.0
    %1940 = vmatprep.subr.mxu0 0.0
    %1941 = vmatpush1.msra.mxu0 0.0
    %1942 = vmatprep.subr.mxu0 0.0
    %1943 = vmatpush1.msra.mxu0 0.0
    %1944 = vmatprep.subr.mxu0 0.0
    %1945 = vmatpush1.msra.mxu0 0.0
    %1946 = vmatprep.subr.mxu0 0.0
    %1947 = vmatpush1.msra.mxu0 %v1231
    %1948 = vmatprep.subr.mxu0 0.0
    %1949 = vmatpush2.msra.mxu0 0.0
    %1950 = vmatprep.subr.mxu0 0.0
    %1951 = vmatpush2.msra.mxu0 0.0
    %1952 = vmatprep.subr.mxu0 0.0
    %1953 = vmatpush2.msra.mxu0 0.0
    %1954 = vmatprep.subr.mxu0 0.0
    %1955 = vmatpush2.msra.mxu0 0.0
    %1956 = vmatprep.subr.mxu0 0.0
    %1957 = vmatpush2.msra.mxu0 0.0
    %1958 = vmatprep.subr.mxu0 0.0
    %1959 = vmatpush2.msra.mxu0 0.0
    %1960 = vmatprep.subr.mxu0 0.0
    %1961 = vmatpush2.msra.mxu0 0.0
    %1962 = vmatprep.subr.mxu0 0.0
    %1963 = vmatpush2.msra.mxu0 0.0
    %1964 = vmatprep.subr.mxu0 0.0
    %1965 = vmatpush2.msra.mxu0 0.0
    %1966 = vmatprep.subr.mxu0 0.0
    %1967 = vmatpush2.msra.mxu0 0.0
    %1968 = vmatprep.subr.mxu0 0.0
    %1969 = vmatpush2.msra.mxu0 0.0
    %1970 = vmatprep.subr.mxu0 0.0
    %1971 = vmatpush2.msra.mxu0 0.0
    %1972 = vmatprep.subr.mxu0 0.0
    %1973 = vmatpush2.msra.mxu0 0.0
    %1974 = vmatprep.subr.mxu0 0.0
    %1975 = vmatpush2.msra.mxu0 0.0
    %1976 = vmatprep.subr.mxu0 0.0
    %1977 = vmatpush2.msra.mxu0 0.0
    %1978 = vmatprep.subr.mxu0 0.0
    %1979 = vmatpush2.msra.mxu0 0.0
    %1980 = vmatprep.mubr.f32.mxu0 0.0
    %1981 = vmatmul.mubr.f32.gmra.mxu0 %v1911
    %v1982 = vpop.f32.mrf.mxu0
    %v1983 = vadd.f32 0.0, %v1982
    %v1984 = vpop.f32.mrf.mxu0
    %1985 = vmatprep.mubr.f32.mxu0 0.0
    %1986 = vmatmul.mubr.f32.gmra.mxu0 %v1914
    %v1987 = vpop.f32.mrf.mxu0
    %v1988 = vadd.f32 0.0, %v1987
    %v1989 = vpop.f32.mrf.mxu0
    %1990 = vdwg.mxu0
    %v1992 = vsel %vm994, %v1908, 0
    %v1995 = vsel %vm994, %v1909, 0
    %1997 = vmatprep.subr.mxu0 0.0
    %1998 = vmatpush1.msra.mxu0 0.0
    %1999 = vmatprep.subr.mxu0 0.0
    %2000 = vmatpush1.msra.mxu0 0.0
    %2001 = vmatprep.subr.mxu0 0.0
    %2002 = vmatpush1.msra.mxu0 0.0
    %2003 = vmatprep.subr.mxu0 0.0
    %2004 = vmatpush1.msra.mxu0 0.0
    %2005 = vmatprep.subr.mxu0 0.0
    %2006 = vmatpush1.msra.mxu0 0.0
    %2007 = vmatprep.subr.mxu0 0.0
    %2008 = vmatpush1.msra.mxu0 0.0
    %2009 = vmatprep.subr.mxu0 0.0
    %2010 = vmatpush1.msra.mxu0 0.0
    %2011 = vmatprep.subr.mxu0 0.0
    %2012 = vmatpush1.msra.mxu0 0.0
    %2013 = vmatprep.subr.mxu0 0.0
    %2014 = vmatpush1.msra.mxu0 0.0
    %2015 = vmatprep.subr.mxu0 0.0
    %2016 = vmatpush1.msra.mxu0 0.0
    %2017 = vmatprep.subr.mxu0 0.0
    %2018 = vmatpush1.msra.mxu0 0.0
    %2019 = vmatprep.subr.mxu0 0.0
    %2020 = vmatpush1.msra.mxu0 0.0
    %2021 = vmatprep.subr.mxu0 0.0
    %2022 = vmatpush1.msra.mxu0 %v588
    %2023 = vmatprep.subr.mxu0 0.0
    %2024 = vmatpush1.msra.mxu0 %v587
    %2025 = vmatprep.subr.mxu0 0.0
    %2026 = vmatpush1.msra.mxu0 %v586
    %2027 = vmatprep.subr.mxu0 0.0
    %2028 = vmatpush1.msra.mxu0 %v585
    %2029 = vmatprep.subr.mxu0 0.0
    %2030 = vmatpush2.msra.mxu0 0.0
    %2031 = vmatprep.subr.mxu0 0.0
    %2032 = vmatpush2.msra.mxu0 0.0
    %2033 = vmatprep.subr.mxu0 0.0
    %2034 = vmatpush2.msra.mxu0 0.0
    %2035 = vmatprep.subr.mxu0 0.0
    %2036 = vmatpush2.msra.mxu0 0.0
    %2037 = vmatprep.subr.mxu0 0.0
    %2038 = vmatpush2.msra.mxu0 0.0
    %2039 = vmatprep.subr.mxu0 0.0
    %2040 = vmatpush2.msra.mxu0 0.0
    %2041 = vmatprep.subr.mxu0 0.0
    %2042 = vmatpush2.msra.mxu0 0.0
    %2043 = vmatprep.subr.mxu0 0.0
    %2044 = vmatpush2.msra.mxu0 0.0
    %2045 = vmatprep.subr.mxu0 0.0
    %2046 = vmatpush2.msra.mxu0 0.0
    %2047 = vmatprep.subr.mxu0 0.0
    %2048 = vmatpush2.msra.mxu0 0.0
    %2049 = vmatprep.subr.mxu0 0.0
    %2050 = vmatpush2.msra.mxu0 0.0
    %2051 = vmatprep.subr.mxu0 0.0
    %2052 = vmatpush2.msra.mxu0 0.0
    %2053 = vmatprep.subr.mxu0 0.0
    %2054 = vmatpush2.msra.mxu0 0.0
    %2055 = vmatprep.subr.mxu0 0.0
    %2056 = vmatpush2.msra.mxu0 0.0
    %2057 = vmatprep.subr.mxu0 0.0
    %2058 = vmatpush2.msra.mxu0 0.0
    %2059 = vmatprep.subr.mxu0 0.0
    %2060 = vmatpush2.msra.mxu0 0.0
    %2061 = vmatprep.mubr.f32.mxu0 0.0
    %2062 = vmatmul.mubr.f32.gmra.mxu0 %v1992
    %v2063 = vpop.f32.mrf.mxu0
    %v2064 = vadd.f32 0.0, %v2063
    %v2065 = vpop.f32.mrf.mxu0
    %2066 = vmatprep.mubr.f32.mxu0 0.0
    %2067 = vmatmul.mubr.f32.gmra.mxu0 %v1995
    %v2068 = vpop.f32.mrf.mxu0
    %v2069 = vadd.f32 0.0, %v2068
    %v2070 = vpop.f32.mrf.mxu0
    %2071 = vdwg.mxu0
    %v2073 = vsel %vm1021, %v825, 0
    %v2076 = vsel %vm1021, %v830, 0
    %2078 = vmatprep.subr.mxu0 0.0
    %2079 = vmatpush1.msra.mxu0 0.0
    %2080 = vmatprep.subr.mxu0 0.0
    %2081 = vmatpush1.msra.mxu0 0.0
    %2082 = vmatprep.subr.mxu0 0.0
    %2083 = vmatpush1.msra.mxu0 0.0
    %2084 = vmatprep.subr.mxu0 0.0
    %2085 = vmatpush1.msra.mxu0 0.0
    %2086 = vmatprep.subr.mxu0 0.0
    %2087 = vmatpush1.msra.mxu0 0.0
    %2088 = vmatprep.subr.mxu0 0.0
    %2089 = vmatpush1.msra.mxu0 0.0
    %2090 = vmatprep.subr.mxu0 0.0
    %2091 = vmatpush1.msra.mxu0 0.0
    %2092 = vmatprep.subr.mxu0 0.0
    %2093 = vmatpush1.msra.mxu0 0.0
    %2094 = vmatprep.subr.mxu0 0.0
    %2095 = vmatpush1.msra.mxu0 0.0
    %2096 = vmatprep.subr.mxu0 0.0
    %2097 = vmatpush1.msra.mxu0 0.0
    %2098 = vmatprep.subr.mxu0 0.0
    %2099 = vmatpush1.msra.mxu0 0.0
    %2100 = vmatprep.subr.mxu0 0.0
    %2101 = vmatpush1.msra.mxu0 0.0
    %2102 = vmatprep.subr.mxu0 0.0
    %2103 = vmatpush1.msra.mxu0 0.0
    %2104 = vmatprep.subr.mxu0 0.0
    %2105 = vmatpush1.msra.mxu0 0.0
    %2106 = vmatprep.subr.mxu0 0.0
    %2107 = vmatpush1.msra.mxu0 %v584
    %2108 = vmatprep.subr.mxu0 0.0
    %2109 = vmatpush1.msra.mxu0 %v583
    %2110 = vmatprep.subr.mxu0 0.0
    %2111 = vmatpush2.msra.mxu0 0.0
    %2112 = vmatprep.subr.mxu0 0.0
    %2113 = vmatpush2.msra.mxu0 0.0
    %2114 = vmatprep.subr.mxu0 0.0
    %2115 = vmatpush2.msra.mxu0 0.0
    %2116 = vmatprep.subr.mxu0 0.0
    %2117 = vmatpush2.msra.mxu0 0.0
    %2118 = vmatprep.subr.mxu0 0.0
    %2119 = vmatpush2.msra.mxu0 0.0
    %2120 = vmatprep.subr.mxu0 0.0
    %2121 = vmatpush2.msra.mxu0 0.0
    %2122 = vmatprep.subr.mxu0 0.0
    %2123 = vmatpush2.msra.mxu0 0.0
    %2124 = vmatprep.subr.mxu0 0.0
    %2125 = vmatpush2.msra.mxu0 0.0
    %2126 = vmatprep.subr.mxu0 0.0
    %2127 = vmatpush2.msra.mxu0 0.0
    %2128 = vmatprep.subr.mxu0 0.0
    %2129 = vmatpush2.msra.mxu0 0.0
    %2130 = vmatprep.subr.mxu0 0.0
    %2131 = vmatpush2.msra.mxu0 0.0
    %2132 = vmatprep.subr.mxu0 0.0
    %2133 = vmatpush2.msra.mxu0 0.0
    %2134 = vmatprep.subr.mxu0 0.0
    %2135 = vmatpush2.msra.mxu0 0.0
    %2136 = vmatprep.subr.mxu0 0.0
    %2137 = vmatpush2.msra.mxu0 0.0
    %2138 = vmatprep.subr.mxu0 0.0
    %2139 = vmatpush2.msra.mxu0 0.0
    %2140 = vmatprep.subr.mxu0 0.0
    %2141 = vmatpush2.msra.mxu0 0.0
    %2142 = vmatprep.mubr.f32.mxu0 0.0
    %2143 = vmatmul.mubr.f32.gmra.mxu0 %v2073
    %v2144 = vpop.f32.mrf.mxu0
    %v2145 = vadd.f32 %v2064, %v2144
    %v2146 = vpop.f32.mrf.mxu0
    %2147 = vmatprep.mubr.f32.mxu0 0.0
    %2148 = vmatmul.mubr.f32.gmra.mxu0 %v2076
    %v2149 = vpop.f32.mrf.mxu0
    %v2150 = vadd.f32 %v2069, %v2149
    %v2151 = vpop.f32.mrf.mxu0
    %2152 = vdwg.mxu0
    %v2154 = vsel %vm1216, %v1983, 0
    %v2157 = vsel %vm1216, %v1988, 0
    %v2160 = vsel %vm1229, %v589, 0
    %2162 = vmatprep.subr.mxu0 0.0
    %2163 = vmatpush1.msra.mxu0 0.0
    %2164 = vmatprep.subr.mxu0 0.0
    %2165 = vmatpush1.msra.mxu0 0.0
    %2166 = vmatprep.subr.mxu0 0.0
    %2167 = vmatpush1.msra.mxu0 0.0
    %2168 = vmatprep.subr.mxu0 0.0
    %2169 = vmatpush1.msra.mxu0 0.0
    %2170 = vmatprep.subr.mxu0 0.0
    %2171 = vmatpush1.msra.mxu0 0.0
    %2172 = vmatprep.subr.mxu0 0.0
    %2173 = vmatpush1.msra.mxu0 0.0
    %2174 = vmatprep.subr.mxu0 0.0
    %2175 = vmatpush1.msra.mxu0 0.0
    %2176 = vmatprep.subr.mxu0 0.0
    %2177 = vmatpush1.msra.mxu0 0.0
    %2178 = vmatprep.subr.mxu0 0.0
    %2179 = vmatpush1.msra.mxu0 0.0
    %2180 = vmatprep.subr.mxu0 0.0
    %2181 = vmatpush1.msra.mxu0 0.0
    %2182 = vmatprep.subr.mxu0 0.0
    %2183 = vmatpush1.msra.mxu0 0.0
    %2184 = vmatprep.subr.mxu0 0.0
    %2185 = vmatpush1.msra.mxu0 0.0
    %2186 = vmatprep.subr.mxu0 0.0
    %2187 = vmatpush1.msra.mxu0 0.0
    %2188 = vmatprep.subr.mxu0 0.0
    %2189 = vmatpush1.msra.mxu0 0.0
    %2190 = vmatprep.subr.mxu0 0.0
    %2191 = vmatpush1.msra.mxu0 0.0
    %2192 = vmatprep.subr.mxu0 0.0
    %2193 = vmatpush1.msra.mxu0 %v2160
    %2194 = vmatprep.subr.mxu0 0.0
    %2195 = vmatpush2.msra.mxu0 0.0
    %2196 = vmatprep.subr.mxu0 0.0
    %2197 = vmatpush2.msra.mxu0 0.0
    %2198 = vmatprep.subr.mxu0 0.0
    %2199 = vmatpush2.msra.mxu0 0.0
    %2200 = vmatprep.subr.mxu0 0.0
    %2201 = vmatpush2.msra.mxu0 0.0
    %2202 = vmatprep.subr.mxu0 0.0
    %2203 = vmatpush2.msra.mxu0 0.0
    %2204 = vmatprep.subr.mxu0 0.0
    %2205 = vmatpush2.msra.mxu0 0.0
    %2206 = vmatprep.subr.mxu0 0.0
    %2207 = vmatpush2.msra.mxu0 0.0
    %2208 = vmatprep.subr.mxu0 0.0
    %2209 = vmatpush2.msra.mxu0 0.0
    %2210 = vmatprep.subr.mxu0 0.0
    %2211 = vmatpush2.msra.mxu0 0.0
    %2212 = vmatprep.subr.mxu0 0.0
    %2213 = vmatpush2.msra.mxu0 0.0
    %2214 = vmatprep.subr.mxu0 0.0
    %2215 = vmatpush2.msra.mxu0 0.0
    %2216 = vmatprep.subr.mxu0 0.0
    %2217 = vmatpush2.msra.mxu0 0.0
    %2218 = vmatprep.subr.mxu0 0.0
    %2219 = vmatpush2.msra.mxu0 0.0
    %2220 = vmatprep.subr.mxu0 0.0
    %2221 = vmatpush2.msra.mxu0 0.0
    %2222 = vmatprep.subr.mxu0 0.0
    %2223 = vmatpush2.msra.mxu0 0.0
    %2224 = vmatprep.subr.mxu0 0.0
    %2225 = vmatpush2.msra.mxu0 0.0
    %2226 = vmatprep.mubr.f32.mxu0 0.0
    %2227 = vmatmul.mubr.f32.gmra.mxu0 %v2154
    %v2228 = vpop.f32.mrf.mxu0
    %v2229 = vadd.f32 0.0, %v2228
    %v2230 = vpop.f32.mrf.mxu0
    %2231 = vmatprep.mubr.f32.mxu0 0.0
    %2232 = vmatmul.mubr.f32.gmra.mxu0 %v2157
    %v2233 = vpop.f32.mrf.mxu0
    %v2234 = vadd.f32 0.0, %v2233
    %v2235 = vpop.f32.mrf.mxu0
    %2236 = vdwg.mxu0
    %v2237 = vadd.f32 %v2145, %v2229
    %v2238 = vadd.f32 %v2150, %v2234
    %v2240 = vlaneseq
    %v2241 = vshrl.u32 %v2240, 7
    %v2242 = vsub.s32 0, %v2241
    %v2243 = vrot.slane %v590, %v2242
    %v2245 = vadd.f32 %v2237, %v2243
    %v2246 = vadd.f32 %v2238, %v2243
    %v2247 = vmax.f32 %v2245, 0.0
    %v2248 = vmax.f32 %v2246, 0.0
    %v2250 = vlaneseq
    %v2251 = vshrl.u32 %v2250, 7
    %v2252 = vsub.s32 0, %v2251
    %v2253 = vrot.slane %v599, %v2252
    %v2256 = vsel %vm1725, %v2247, 0
    %v2259 = vsel %vm1725, %v2248, 0
    %2261 = vmatprep.subr.mxu0 0.0
    %2262 = vmatpush1.msra.mxu0 0.0
    %2263 = vmatprep.subr.mxu0 0.0
    %2264 = vmatpush1.msra.mxu0 0.0
    %2265 = vmatprep.subr.mxu0 0.0
    %2266 = vmatpush1.msra.mxu0 0.0
    %2267 = vmatprep.subr.mxu0 0.0
    %2268 = vmatpush1.msra.mxu0 0.0
    %2269 = vmatprep.subr.mxu0 0.0
    %2270 = vmatpush1.msra.mxu0 0.0
    %2271 = vmatprep.subr.mxu0 0.0
    %2272 = vmatpush1.msra.mxu0 0.0
    %2273 = vmatprep.subr.mxu0 0.0
    %2274 = vmatpush1.msra.mxu0 0.0
    %2275 = vmatprep.subr.mxu0 0.0
    %2276 = vmatpush1.msra.mxu0 0.0
    %2277 = vmatprep.subr.mxu0 0.0
    %2278 = vmatpush1.msra.mxu0 %v598
    %2279 = vmatprep.subr.mxu0 0.0
    %2280 = vmatpush1.msra.mxu0 %v597
    %2281 = vmatprep.subr.mxu0 0.0
    %2282 = vmatpush1.msra.mxu0 %v596
    %2283 = vmatprep.subr.mxu0 0.0
    %2284 = vmatpush1.msra.mxu0 %v595
    %2285 = vmatprep.subr.mxu0 0.0
    %2286 = vmatpush1.msra.mxu0 %v594
    %2287 = vmatprep.subr.mxu0 0.0
    %2288 = vmatpush1.msra.mxu0 %v593
    %2289 = vmatprep.subr.mxu0 0.0
    %2290 = vmatpush1.msra.mxu0 %v592
    %2291 = vmatprep.subr.mxu0 0.0
    %2292 = vmatpush1.msra.mxu0 %v591
    %2293 = vmatprep.subr.mxu0 0.0
    %2294 = vmatpush2.msra.mxu0 0.0
    %2295 = vmatprep.subr.mxu0 0.0
    %2296 = vmatpush2.msra.mxu0 0.0
    %2297 = vmatprep.subr.mxu0 0.0
    %2298 = vmatpush2.msra.mxu0 0.0
    %2299 = vmatprep.subr.mxu0 0.0
    %2300 = vmatpush2.msra.mxu0 0.0
    %2301 = vmatprep.subr.mxu0 0.0
    %2302 = vmatpush2.msra.mxu0 0.0
    %2303 = vmatprep.subr.mxu0 0.0
    %2304 = vmatpush2.msra.mxu0 0.0
    %2305 = vmatprep.subr.mxu0 0.0
    %2306 = vmatpush2.msra.mxu0 0.0
    %2307 = vmatprep.subr.mxu0 0.0
    %2308 = vmatpush2.msra.mxu0 0.0
    %2309 = vmatprep.subr.mxu0 0.0
    %2310 = vmatpush2.msra.mxu0 0.0
    %2311 = vmatprep.subr.mxu0 0.0
    %2312 = vmatpush2.msra.mxu0 0.0
    %2313 = vmatprep.subr.mxu0 0.0
    %2314 = vmatpush2.msra.mxu0 0.0
    %2315 = vmatprep.subr.mxu0 0.0
    %2316 = vmatpush2.msra.mxu0 0.0
    %2317 = vmatprep.subr.mxu0 0.0
    %2318 = vmatpush2.msra.mxu0 0.0
    %2319 = vmatprep.subr.mxu0 0.0
    %2320 = vmatpush2.msra.mxu0 0.0
    %2321 = vmatprep.subr.mxu0 0.0
    %2322 = vmatpush2.msra.mxu0 0.0
    %2323 = vmatprep.subr.mxu0 0.0
    %2324 = vmatpush2.msra.mxu0 0.0
    %2325 = vmatprep.mubr.f32.mxu0 0.0
    %2326 = vmatmul.mubr.f32.gmra.mxu0 %v2256
    %v2327 = vpop.f32.mrf.mxu0
    %v2328 = vadd.f32 %v2253, %v2327
    %v2329 = vpop.f32.mrf.mxu0
    %2330 = vmatprep.mubr.f32.mxu0 0.0
    %2331 = vmatmul.mubr.f32.gmra.mxu0 %v2259
    %v2332 = vpop.f32.mrf.mxu0
    %v2333 = vadd.f32 %v2253, %v2332
    %v2334 = vpop.f32.mrf.mxu0
    %2335 = vdwg.mxu0
    %v2336 = vmax.f32 %v2328, 0.0
    %v2337 = vmax.f32 %v2333, 0.0
    %v2339 = vsel %vm1021, %v986, 0
    %2341 = vmatprep.subr.mxu0 0.0
    %2342 = vmatpush1.msra.mxu0 0.0
    %2343 = vmatprep.subr.mxu0 0.0
    %2344 = vmatpush1.msra.mxu0 0.0
    %2345 = vmatprep.subr.mxu0 0.0
    %2346 = vmatpush1.msra.mxu0 0.0
    %2347 = vmatprep.subr.mxu0 0.0
    %2348 = vmatpush1.msra.mxu0 0.0
    %2349 = vmatprep.subr.mxu0 0.0
    %2350 = vmatpush1.msra.mxu0 0.0
    %2351 = vmatprep.subr.mxu0 0.0
    %2352 = vmatpush1.msra.mxu0 0.0
    %2353 = vmatprep.subr.mxu0 0.0
    %2354 = vmatpush1.msra.mxu0 0.0
    %2355 = vmatprep.subr.mxu0 0.0
    %2356 = vmatpush1.msra.mxu0 0.0
    %2357 = vmatprep.subr.mxu0 0.0
    %2358 = vmatpush1.msra.mxu0 0.0
    %2359 = vmatprep.subr.mxu0 0.0
    %2360 = vmatpush1.msra.mxu0 0.0
    %2361 = vmatprep.subr.mxu0 0.0
    %2362 = vmatpush1.msra.mxu0 0.0
    %2363 = vmatprep.subr.mxu0 0.0
    %2364 = vmatpush1.msra.mxu0 0.0
    %2365 = vmatprep.subr.mxu0 0.0
    %2366 = vmatpush1.msra.mxu0 0.0
    %2367 = vmatprep.subr.mxu0 0.0
    %2368 = vmatpush1.msra.mxu0 0.0
    %2369 = vmatprep.subr.mxu0 0.0
    %2370 = vmatpush1.msra.mxu0 %v2337
    %2371 = vmatprep.subr.mxu0 0.0
    %2372 = vmatpush1.msra.mxu0 %v2336
    %2373 = vmatprep.subr.mxu0 0.0
    %2374 = vmatpush2.msra.mxu0 0.0
    %2375 = vmatprep.subr.mxu0 0.0
    %2376 = vmatpush2.msra.mxu0 0.0
    %2377 = vmatprep.subr.mxu0 0.0
    %2378 = vmatpush2.msra.mxu0 0.0
    %2379 = vmatprep.subr.mxu0 0.0
    %2380 = vmatpush2.msra.mxu0 0.0
    %2381 = vmatprep.subr.mxu0 0.0
    %2382 = vmatpush2.msra.mxu0 0.0
    %2383 = vmatprep.subr.mxu0 0.0
    %2384 = vmatpush2.msra.mxu0 0.0
    %2385 = vmatprep.subr.mxu0 0.0
    %2386 = vmatpush2.msra.mxu0 0.0
    %2387 = vmatprep.subr.mxu0 0.0
    %2388 = vmatpush2.msra.mxu0 0.0
    %2389 = vmatprep.subr.mxu0 0.0
    %2390 = vmatpush2.msra.mxu0 0.0
    %2391 = vmatprep.subr.mxu0 0.0
    %2392 = vmatpush2.msra.mxu0 0.0
    %2393 = vmatprep.subr.mxu0 0.0
    %2394 = vmatpush2.msra.mxu0 0.0
    %2395 = vmatprep.subr.mxu0 0.0
    %2396 = vmatpush2.msra.mxu0 0.0
    %2397 = vmatprep.subr.mxu0 0.0
    %2398 = vmatpush2.msra.mxu0 0.0
    %2399 = vmatprep.subr.mxu0 0.0
    %2400 = vmatpush2.msra.mxu0 0.0
    %2401 = vmatprep.subr.mxu0 0.0
    %2402 = vmatpush2.msra.mxu0 0.0
    %2403 = vmatprep.subr.mxu0 0.0
    %2404 = vmatpush2.msra.mxu0 0.0
    %2405 = vmatprep.mubr.f32.mxu0 0.0
    %2406 = vmatmul.mubr.f32.gmra.mxu0 %v2339
    %v2407 = vpop.f32.mrf.mxu0
    %v2408 = vadd.f32 0.0, %v2407
    %v2409 = vpop.f32.mrf.mxu0
    %2410 = vdwg.mxu0
    %v2411 = vmul.f32 %v2408, %v1013
    %v2413 = vsel %vm994, %v993, 0
    %2415 = vmatprep.subr.mxu0 0.0
    %2416 = vmatpush1.msra.mxu0 0.0
    %2417 = vmatprep.subr.mxu0 0.0
    %2418 = vmatpush1.msra.mxu0 0.0
    %2419 = vmatprep.subr.mxu0 0.0
    %2420 = vmatpush1.msra.mxu0 0.0
    %2421 = vmatprep.subr.mxu0 0.0
    %2422 = vmatpush1.msra.mxu0 0.0
    %2423 = vmatprep.subr.mxu0 0.0
    %2424 = vmatpush1.msra.mxu0 0.0
    %2425 = vmatprep.subr.mxu0 0.0
    %2426 = vmatpush1.msra.mxu0 0.0
    %2427 = vmatprep.subr.mxu0 0.0
    %2428 = vmatpush1.msra.mxu0 0.0
    %2429 = vmatprep.subr.mxu0 0.0
    %2430 = vmatpush1.msra.mxu0 0.0
    %2431 = vmatprep.subr.mxu0 0.0
    %2432 = vmatpush1.msra.mxu0 0.0
    %2433 = vmatprep.subr.mxu0 0.0
    %2434 = vmatpush1.msra.mxu0 0.0
    %2435 = vmatprep.subr.mxu0 0.0
    %2436 = vmatpush1.msra.mxu0 0.0
    %2437 = vmatprep.subr.mxu0 0.0
    %2438 = vmatpush1.msra.mxu0 0.0
    %2439 = vmatprep.subr.mxu0 0.0
    %2440 = vmatpush1.msra.mxu0 %v1826
    %2441 = vmatprep.subr.mxu0 0.0
    %2442 = vmatpush1.msra.mxu0 %v1825
    %2443 = vmatprep.subr.mxu0 0.0
    %2444 = vmatpush1.msra.mxu0 %v1824
    %2445 = vmatprep.subr.mxu0 0.0
    %2446 = vmatpush1.msra.mxu0 %v1823
    %2447 = vmatprep.subr.mxu0 0.0
    %2448 = vmatpush2.msra.mxu0 0.0
    %2449 = vmatprep.subr.mxu0 0.0
    %2450 = vmatpush2.msra.mxu0 0.0
    %2451 = vmatprep.subr.mxu0 0.0
    %2452 = vmatpush2.msra.mxu0 0.0
    %2453 = vmatprep.subr.mxu0 0.0
    %2454 = vmatpush2.msra.mxu0 0.0
    %2455 = vmatprep.subr.mxu0 0.0
    %2456 = vmatpush2.msra.mxu0 0.0
    %2457 = vmatprep.subr.mxu0 0.0
    %2458 = vmatpush2.msra.mxu0 0.0
    %2459 = vmatprep.subr.mxu0 0.0
    %2460 = vmatpush2.msra.mxu0 0.0
    %2461 = vmatprep.subr.mxu0 0.0
    %2462 = vmatpush2.msra.mxu0 0.0
    %2463 = vmatprep.subr.mxu0 0.0
    %2464 = vmatpush2.msra.mxu0 0.0
    %2465 = vmatprep.subr.mxu0 0.0
    %2466 = vmatpush2.msra.mxu0 0.0
    %2467 = vmatprep.subr.mxu0 0.0
    %2468 = vmatpush2.msra.mxu0 0.0
    %2469 = vmatprep.subr.mxu0 0.0
    %2470 = vmatpush2.msra.mxu0 0.0
    %2471 = vmatprep.subr.mxu0 0.0
    %2472 = vmatpush2.msra.mxu0 0.0
    %2473 = vmatprep.subr.mxu0 0.0
    %2474 = vmatpush2.msra.mxu0 0.0
    %2475 = vmatprep.subr.mxu0 0.0
    %2476 = vmatpush2.msra.mxu0 0.0
    %2477 = vmatprep.subr.mxu0 0.0
    %2478 = vmatpush2.msra.mxu0 0.0
    %2479 = vmatprep.mubr.f32.mxu0 0.0
    %2480 = vmatmul.mubr.f32.gmra.mxu0 %v2413
    %v2481 = vpop.f32.mrf.mxu0
    %v2482 = vadd.f32 0.0, %v2481
    %v2483 = vpop.f32.mrf.mxu0
    %2484 = vdwg.mxu0
    %v2485 = vmul.f32 %v2482, %v1020
    %v2487 = vsel %vm994, %v2485, 0
    %2489 = vmatprep.subr.mxu0 0.0
    %2490 = vmatpush1.msra.mxu0 0.0
    %2491 = vmatprep.subr.mxu0 0.0
    %2492 = vmatpush1.msra.mxu0 0.0
    %2493 = vmatprep.subr.mxu0 0.0
    %2494 = vmatpush1.msra.mxu0 0.0
    %2495 = vmatprep.subr.mxu0 0.0
    %2496 = vmatpush1.msra.mxu0 0.0
    %2497 = vmatprep.subr.mxu0 0.0
    %2498 = vmatpush1.msra.mxu0 0.0
    %2499 = vmatprep.subr.mxu0 0.0
    %2500 = vmatpush1.msra.mxu0 0.0
    %2501 = vmatprep.subr.mxu0 0.0
    %2502 = vmatpush1.msra.mxu0 0.0
    %2503 = vmatprep.subr.mxu0 0.0
    %2504 = vmatpush1.msra.mxu0 0.0
    %2505 = vmatprep.subr.mxu0 0.0
    %2506 = vmatpush1.msra.mxu0 0.0
    %2507 = vmatprep.subr.mxu0 0.0
    %2508 = vmatpush1.msra.mxu0 0.0
    %2509 = vmatprep.subr.mxu0 0.0
    %2510 = vmatpush1.msra.mxu0 0.0
    %2511 = vmatprep.subr.mxu0 0.0
    %2512 = vmatpush1.msra.mxu0 0.0
    %2513 = vmatprep.subr.mxu0 0.0
    %2514 = vmatpush1.msra.mxu0 %v607
    %2515 = vmatprep.subr.mxu0 0.0
    %2516 = vmatpush1.msra.mxu0 %v606
    %2517 = vmatprep.subr.mxu0 0.0
    %2518 = vmatpush1.msra.mxu0 %v605
    %2519 = vmatprep.subr.mxu0 0.0
    %2520 = vmatpush1.msra.mxu0 %v604
    %2521 = vmatprep.subr.mxu0 0.0
    %2522 = vmatpush2.msra.mxu0 0.0
    %2523 = vmatprep.subr.mxu0 0.0
    %2524 = vmatpush2.msra.mxu0 0.0
    %2525 = vmatprep.subr.mxu0 0.0
    %2526 = vmatpush2.msra.mxu0 0.0
    %2527 = vmatprep.subr.mxu0 0.0
    %2528 = vmatpush2.msra.mxu0 0.0
    %2529 = vmatprep.subr.mxu0 0.0
    %2530 = vmatpush2.msra.mxu0 0.0
    %2531 = vmatprep.subr.mxu0 0.0
    %2532 = vmatpush2.msra.mxu0 0.0
    %2533 = vmatprep.subr.mxu0 0.0
    %2534 = vmatpush2.msra.mxu0 0.0
    %2535 = vmatprep.subr.mxu0 0.0
    %2536 = vmatpush2.msra.mxu0 0.0
    %2537 = vmatprep.subr.mxu0 0.0
    %2538 = vmatpush2.msra.mxu0 0.0
    %2539 = vmatprep.subr.mxu0 0.0
    %2540 = vmatpush2.msra.mxu0 0.0
    %2541 = vmatprep.subr.mxu0 0.0
    %2542 = vmatpush2.msra.mxu0 0.0
    %2543 = vmatprep.subr.mxu0 0.0
    %2544 = vmatpush2.msra.mxu0 0.0
    %2545 = vmatprep.subr.mxu0 0.0
    %2546 = vmatpush2.msra.mxu0 0.0
    %2547 = vmatprep.subr.mxu0 0.0
    %2548 = vmatpush2.msra.mxu0 0.0
    %2549 = vmatprep.subr.mxu0 0.0
    %2550 = vmatpush2.msra.mxu0 0.0
    %2551 = vmatprep.subr.mxu0 0.0
    %2552 = vmatpush2.msra.mxu0 0.0
    %2553 = vmatprep.mubr.f32.mxu0 0.0
    %2554 = vmatmul.mubr.f32.gmra.mxu0 %v2487
    %v2555 = vpop.f32.mrf.mxu0
    %v2556 = vadd.f32 0.0, %v2555
    %v2557 = vpop.f32.mrf.mxu0
    %2558 = vdwg.mxu0
    %v2560 = vsel %vm994, %v2411, 0
    %2562 = vmatprep.subr.mxu0 0.0
    %2563 = vmatpush1.msra.mxu0 0.0
    %2564 = vmatprep.subr.mxu0 0.0
    %2565 = vmatpush1.msra.mxu0 0.0
    %2566 = vmatprep.subr.mxu0 0.0
    %2567 = vmatpush1.msra.mxu0 0.0
    %2568 = vmatprep.subr.mxu0 0.0
    %2569 = vmatpush1.msra.mxu0 0.0
    %2570 = vmatprep.subr.mxu0 0.0
    %2571 = vmatpush1.msra.mxu0 0.0
    %2572 = vmatprep.subr.mxu0 0.0
    %2573 = vmatpush1.msra.mxu0 0.0
    %2574 = vmatprep.subr.mxu0 0.0
    %2575 = vmatpush1.msra.mxu0 0.0
    %2576 = vmatprep.subr.mxu0 0.0
    %2577 = vmatpush1.msra.mxu0 0.0
    %2578 = vmatprep.subr.mxu0 0.0
    %2579 = vmatpush1.msra.mxu0 0.0
    %2580 = vmatprep.subr.mxu0 0.0
    %2581 = vmatpush1.msra.mxu0 0.0
    %2582 = vmatprep.subr.mxu0 0.0
    %2583 = vmatpush1.msra.mxu0 0.0
    %2584 = vmatprep.subr.mxu0 0.0
    %2585 = vmatpush1.msra.mxu0 0.0
    %2586 = vmatprep.subr.mxu0 0.0
    %2587 = vmatpush1.msra.mxu0 %v603
    %2588 = vmatprep.subr.mxu0 0.0
    %2589 = vmatpush1.msra.mxu0 %v602
    %2590 = vmatprep.subr.mxu0 0.0
    %2591 = vmatpush1.msra.mxu0 %v601
    %2592 = vmatprep.subr.mxu0 0.0
    %2593 = vmatpush1.msra.mxu0 %v600
    %2594 = vmatprep.subr.mxu0 0.0
    %2595 = vmatpush2.msra.mxu0 0.0
    %2596 = vmatprep.subr.mxu0 0.0
    %2597 = vmatpush2.msra.mxu0 0.0
    %2598 = vmatprep.subr.mxu0 0.0
    %2599 = vmatpush2.msra.mxu0 0.0
    %2600 = vmatprep.subr.mxu0 0.0
    %2601 = vmatpush2.msra.mxu0 0.0
    %2602 = vmatprep.subr.mxu0 0.0
    %2603 = vmatpush2.msra.mxu0 0.0
    %2604 = vmatprep.subr.mxu0 0.0
    %2605 = vmatpush2.msra.mxu0 0.0
    %2606 = vmatprep.subr.mxu0 0.0
    %2607 = vmatpush2.msra.mxu0 0.0
    %2608 = vmatprep.subr.mxu0 0.0
    %2609 = vmatpush2.msra.mxu0 0.0
    %2610 = vmatprep.subr.mxu0 0.0
    %2611 = vmatpush2.msra.mxu0 0.0
    %2612 = vmatprep.subr.mxu0 0.0
    %2613 = vmatpush2.msra.mxu0 0.0
    %2614 = vmatprep.subr.mxu0 0.0
    %2615 = vmatpush2.msra.mxu0 0.0
    %2616 = vmatprep.subr.mxu0 0.0
    %2617 = vmatpush2.msra.mxu0 0.0
    %2618 = vmatprep.subr.mxu0 0.0
    %2619 = vmatpush2.msra.mxu0 0.0
    %2620 = vmatprep.subr.mxu0 0.0
    %2621 = vmatpush2.msra.mxu0 0.0
    %2622 = vmatprep.subr.mxu0 0.0
    %2623 = vmatpush2.msra.mxu0 0.0
    %2624 = vmatprep.subr.mxu0 0.0
    %2625 = vmatpush2.msra.mxu0 0.0
    %2626 = vmatprep.mubr.f32.mxu0 0.0
    %2627 = vmatmul.mubr.f32.gmra.mxu0 %v2560
    %v2628 = vpop.f32.mrf.mxu0
    %v2629 = vadd.f32 %v2556, %v2628
    %v2630 = vpop.f32.mrf.mxu0
    %2631 = vdwg.mxu0
    %v2632 = vsel %vm1216, %v517, 0
    %v2635 = vsel %vm1229, %v608, 0
    %2637 = vmatprep.subr.mxu0 0.0
    %2638 = vmatpush1.msra.mxu0 0.0
    %2639 = vmatprep.subr.mxu0 0.0
    %2640 = vmatpush1.msra.mxu0 0.0
    %2641 = vmatprep.subr.mxu0 0.0
    %2642 = vmatpush1.msra.mxu0 0.0
    %2643 = vmatprep.subr.mxu0 0.0
    %2644 = vmatpush1.msra.mxu0 0.0
    %2645 = vmatprep.subr.mxu0 0.0
    %2646 = vmatpush1.msra.mxu0 0.0
    %2647 = vmatprep.subr.mxu0 0.0
    %2648 = vmatpush1.msra.mxu0 0.0
    %2649 = vmatprep.subr.mxu0 0.0
    %2650 = vmatpush1.msra.mxu0 0.0
    %2651 = vmatprep.subr.mxu0 0.0
    %2652 = vmatpush1.msra.mxu0 0.0
    %2653 = vmatprep.subr.mxu0 0.0
    %2654 = vmatpush1.msra.mxu0 0.0
    %2655 = vmatprep.subr.mxu0 0.0
    %2656 = vmatpush1.msra.mxu0 0.0
    %2657 = vmatprep.subr.mxu0 0.0
    %2658 = vmatpush1.msra.mxu0 0.0
    %2659 = vmatprep.subr.mxu0 0.0
    %2660 = vmatpush1.msra.mxu0 0.0
    %2661 = vmatprep.subr.mxu0 0.0
    %2662 = vmatpush1.msra.mxu0 0.0
    %2663 = vmatprep.subr.mxu0 0.0
    %2664 = vmatpush1.msra.mxu0 0.0
    %2665 = vmatprep.subr.mxu0 0.0
    %2666 = vmatpush1.msra.mxu0 0.0
    %2667 = vmatprep.subr.mxu0 0.0
    %2668 = vmatpush1.msra.mxu0 %v2635
    %2669 = vmatprep.subr.mxu0 0.0
    %2670 = vmatpush2.msra.mxu0 0.0
    %2671 = vmatprep.subr.mxu0 0.0
    %2672 = vmatpush2.msra.mxu0 0.0
    %2673 = vmatprep.subr.mxu0 0.0
    %2674 = vmatpush2.msra.mxu0 0.0
    %2675 = vmatprep.subr.mxu0 0.0
    %2676 = vmatpush2.msra.mxu0 0.0
    %2677 = vmatprep.subr.mxu0 0.0
    %2678 = vmatpush2.msra.mxu0 0.0
    %2679 = vmatprep.subr.mxu0 0.0
    %2680 = vmatpush2.msra.mxu0 0.0
    %2681 = vmatprep.subr.mxu0 0.0
    %2682 = vmatpush2.msra.mxu0 0.0
    %2683 = vmatprep.subr.mxu0 0.0
    %2684 = vmatpush2.msra.mxu0 0.0
    %2685 = vmatprep.subr.mxu0 0.0
    %2686 = vmatpush2.msra.mxu0 0.0
    %2687 = vmatprep.subr.mxu0 0.0
    %2688 = vmatpush2.msra.mxu0 0.0
    %2689 = vmatprep.subr.mxu0 0.0
    %2690 = vmatpush2.msra.mxu0 0.0
    %2691 = vmatprep.subr.mxu0 0.0
    %2692 = vmatpush2.msra.mxu0 0.0
    %2693 = vmatprep.subr.mxu0 0.0
    %2694 = vmatpush2.msra.mxu0 0.0
    %2695 = vmatprep.subr.mxu0 0.0
    %2696 = vmatpush2.msra.mxu0 0.0
    %2697 = vmatprep.subr.mxu0 0.0
    %2698 = vmatpush2.msra.mxu0 0.0
    %2699 = vmatprep.subr.mxu0 0.0
    %2700 = vmatpush2.msra.mxu0 0.0
    %2701 = vmatprep.mubr.f32.mxu0 0.0
    %2702 = vmatmul.mubr.f32.gmra.mxu0 %v2632
    %v2703 = vpop.f32.mrf.mxu0
    %v2704 = vadd.f32 0.0, %v2703
    %v2705 = vpop.f32.mrf.mxu0
    %2706 = vdwg.mxu0
    %v2707 = vadd.f32 %v2629, %v2704
    %v2709 = vlaneseq
    %v2710 = vshrl.u32 %v2709, 7
    %v2711 = vsub.s32 0, %v2710
    %v2712 = vrot.slane %v609, %v2711
    %v2714 = vadd.f32 %v2707, %v2712
    %v2715 = vmax.f32 %v2714, 0.0
    %v2717 = vlaneseq
    %v2718 = vshrl.u32 %v2717, 7
    %v2719 = vsub.s32 0, %v2718
    %v2720 = vrot.slane %v618, %v2719
    %v2723 = vsel %vm1725, %v2715, 0
    %2725 = vmatprep.subr.mxu0 0.0
    %2726 = vmatpush1.msra.mxu0 0.0
    %2727 = vmatprep.subr.mxu0 0.0
    %2728 = vmatpush1.msra.mxu0 0.0
    %2729 = vmatprep.subr.mxu0 0.0
    %2730 = vmatpush1.msra.mxu0 0.0
    %2731 = vmatprep.subr.mxu0 0.0
    %2732 = vmatpush1.msra.mxu0 0.0
    %2733 = vmatprep.subr.mxu0 0.0
    %2734 = vmatpush1.msra.mxu0 0.0
    %2735 = vmatprep.subr.mxu0 0.0
    %2736 = vmatpush1.msra.mxu0 0.0
    %2737 = vmatprep.subr.mxu0 0.0
    %2738 = vmatpush1.msra.mxu0 0.0
    %2739 = vmatprep.subr.mxu0 0.0
    %2740 = vmatpush1.msra.mxu0 0.0
    %2741 = vmatprep.subr.mxu0 0.0
    %2742 = vmatpush1.msra.mxu0 %v617
    %2743 = vmatprep.subr.mxu0 0.0
    %2744 = vmatpush1.msra.mxu0 %v616
    %2745 = vmatprep.subr.mxu0 0.0
    %2746 = vmatpush1.msra.mxu0 %v615
    %2747 = vmatprep.subr.mxu0 0.0
    %2748 = vmatpush1.msra.mxu0 %v614
    %2749 = vmatprep.subr.mxu0 0.0
    %2750 = vmatpush1.msra.mxu0 %v613
    %2751 = vmatprep.subr.mxu0 0.0
    %2752 = vmatpush1.msra.mxu0 %v612
    %2753 = vmatprep.subr.mxu0 0.0
    %2754 = vmatpush1.msra.mxu0 %v611
    %2755 = vmatprep.subr.mxu0 0.0
    %2756 = vmatpush1.msra.mxu0 %v610
    %2757 = vmatprep.subr.mxu0 0.0
    %2758 = vmatpush2.msra.mxu0 0.0
    %2759 = vmatprep.subr.mxu0 0.0
    %2760 = vmatpush2.msra.mxu0 0.0
    %2761 = vmatprep.subr.mxu0 0.0
    %2762 = vmatpush2.msra.mxu0 0.0
    %2763 = vmatprep.subr.mxu0 0.0
    %2764 = vmatpush2.msra.mxu0 0.0
    %2765 = vmatprep.subr.mxu0 0.0
    %2766 = vmatpush2.msra.mxu0 0.0
    %2767 = vmatprep.subr.mxu0 0.0
    %2768 = vmatpush2.msra.mxu0 0.0
    %2769 = vmatprep.subr.mxu0 0.0
    %2770 = vmatpush2.msra.mxu0 0.0
    %2771 = vmatprep.subr.mxu0 0.0
    %2772 = vmatpush2.msra.mxu0 0.0
    %2773 = vmatprep.subr.mxu0 0.0
    %2774 = vmatpush2.msra.mxu0 0.0
    %2775 = vmatprep.subr.mxu0 0.0
    %2776 = vmatpush2.msra.mxu0 0.0
    %2777 = vmatprep.subr.mxu0 0.0
    %2778 = vmatpush2.msra.mxu0 0.0
    %2779 = vmatprep.subr.mxu0 0.0
    %2780 = vmatpush2.msra.mxu0 0.0
    %2781 = vmatprep.subr.mxu0 0.0
    %2782 = vmatpush2.msra.mxu0 0.0
    %2783 = vmatprep.subr.mxu0 0.0
    %2784 = vmatpush2.msra.mxu0 0.0
    %2785 = vmatprep.subr.mxu0 0.0
    %2786 = vmatpush2.msra.mxu0 0.0
    %2787 = vmatprep.subr.mxu0 0.0
    %2788 = vmatpush2.msra.mxu0 0.0
    %2789 = vmatprep.mubr.f32.mxu0 0.0
    %2790 = vmatmul.mubr.f32.gmra.mxu0 %v2723
    %v2791 = vpop.f32.mrf.mxu0
    %v2792 = vadd.f32 %v2720, %v2791
    %v2793 = vpop.f32.mrf.mxu0
    %2794 = vdwg.mxu0
    %v2795 = vmax.f32 %v2792, 0.0
    %2796 = vmatprep.subr.mxu0 0.0
    %2797 = vmatpush1.msra.mxu0 0.0
    %2798 = vmatprep.subr.mxu0 0.0
    %2799 = vmatpush1.msra.mxu0 0.0
    %2800 = vmatprep.subr.mxu0 0.0
    %2801 = vmatpush1.msra.mxu0 0.0
    %2802 = vmatprep.subr.mxu0 0.0
    %2803 = vmatpush1.msra.mxu0 0.0
    %2804 = vmatprep.subr.mxu0 0.0
    %2805 = vmatpush1.msra.mxu0 0.0
    %2806 = vmatprep.subr.mxu0 0.0
    %2807 = vmatpush1.msra.mxu0 0.0
    %2808 = vmatprep.subr.mxu0 0.0
    %2809 = vmatpush1.msra.mxu0 0.0
    %2810 = vmatprep.subr.mxu0 0.0
    %2811 = vmatpush1.msra.mxu0 0.0
    %2812 = vmatprep.subr.mxu0 0.0
    %2813 = vmatpush1.msra.mxu0 0.0
    %2814 = vmatprep.subr.mxu0 0.0
    %2815 = vmatpush1.msra.mxu0 0.0
    %2816 = vmatprep.subr.mxu0 0.0
    %2817 = vmatpush1.msra.mxu0 0.0
    %2818 = vmatprep.subr.mxu0 0.0
    %2819 = vmatpush1.msra.mxu0 0.0
    %2820 = vmatprep.subr.mxu0 0.0
    %2821 = vmatpush1.msra.mxu0 0.0
    %2822 = vmatprep.subr.mxu0 0.0
    %2823 = vmatpush1.msra.mxu0 0.0
    %2824 = vmatprep.subr.mxu0 0.0
    %2825 = vmatpush1.msra.mxu0 %v2337
    %2826 = vmatprep.subr.mxu0 0.0
    %2827 = vmatpush1.msra.mxu0 %v2336
    %2828 = vmatprep.subr.mxu0 0.0
    %2829 = vmatpush2.msra.mxu0 0.0
    %2830 = vmatprep.subr.mxu0 0.0
    %2831 = vmatpush2.msra.mxu0 0.0
    %2832 = vmatprep.subr.mxu0 0.0
    %2833 = vmatpush2.msra.mxu0 0.0
    %2834 = vmatprep.subr.mxu0 0.0
    %2835 = vmatpush2.msra.mxu0 0.0
    %2836 = vmatprep.subr.mxu0 0.0
    %2837 = vmatpush2.msra.mxu0 0.0
    %2838 = vmatprep.subr.mxu0 0.0
    %2839 = vmatpush2.msra.mxu0 0.0
    %2840 = vmatprep.subr.mxu0 0.0
    %2841 = vmatpush2.msra.mxu0 0.0
    %2842 = vmatprep.subr.mxu0 0.0
    %2843 = vmatpush2.msra.mxu0 0.0
    %2844 = vmatprep.subr.mxu0 0.0
    %2845 = vmatpush2.msra.mxu0 0.0
    %2846 = vmatprep.subr.mxu0 0.0
    %2847 = vmatpush2.msra.mxu0 0.0
    %2848 = vmatprep.subr.mxu0 0.0
    %2849 = vmatpush2.msra.mxu0 0.0
    %2850 = vmatprep.subr.mxu0 0.0
    %2851 = vmatpush2.msra.mxu0 0.0
    %2852 = vmatprep.subr.mxu0 0.0
    %2853 = vmatpush2.msra.mxu0 0.0
    %2854 = vmatprep.subr.mxu0 0.0
    %2855 = vmatpush2.msra.mxu0 0.0
    %2856 = vmatprep.subr.mxu0 0.0
    %2857 = vmatpush2.msra.mxu0 0.0
    %2858 = vmatprep.subr.mxu0 0.0
    %2859 = vmatpush2.msra.mxu0 0.0
    %2860 = vmatprep.mubr.f32.mxu0 0.0
    %2861 = vmatmul.mubr.f32.gmra.mxu0 %v1023
    %v2862 = vpop.f32.mrf.mxu0
    %v2863 = vadd.f32 0.0, %v2862
    %v2864 = vpop.f32.mrf.mxu0
    %2865 = vmatprep.mubr.f32.mxu0 0.0
    %2866 = vmatmul.mubr.f32.gmra.mxu0 %v1026
    %v2867 = vpop.f32.mrf.mxu0
    %v2868 = vadd.f32 0.0, %v2867
    %v2869 = vpop.f32.mrf.mxu0
    %2870 = vmatprep.mubr.f32.mxu0 0.0
    %2871 = vmatmul.mubr.f32.gmra.mxu0 %v1029
    %v2872 = vpop.f32.mrf.mxu0
    %v2873 = vadd.f32 0.0, %v2872
    %v2874 = vpop.f32.mrf.mxu0
    %2875 = vmatprep.mubr.f32.mxu0 0.0
    %2876 = vmatmul.mubr.f32.gmra.mxu0 %v1032
    %v2877 = vpop.f32.mrf.mxu0
    %v2878 = vadd.f32 0.0, %v2877
    %v2879 = vpop.f32.mrf.mxu0
    %2880 = vdwg.mxu0
    %2881 = vmatprep.subr.mxu0 0.0
    %2882 = vmatpush1.msra.mxu0 0.0
    %2883 = vmatprep.subr.mxu0 0.0
    %2884 = vmatpush1.msra.mxu0 0.0
    %2885 = vmatprep.subr.mxu0 0.0
    %2886 = vmatpush1.msra.mxu0 0.0
    %2887 = vmatprep.subr.mxu0 0.0
    %2888 = vmatpush1.msra.mxu0 0.0
    %2889 = vmatprep.subr.mxu0 0.0
    %2890 = vmatpush1.msra.mxu0 0.0
    %2891 = vmatprep.subr.mxu0 0.0
    %2892 = vmatpush1.msra.mxu0 0.0
    %2893 = vmatprep.subr.mxu0 0.0
    %2894 = vmatpush1.msra.mxu0 0.0
    %2895 = vmatprep.subr.mxu0 0.0
    %2896 = vmatpush1.msra.mxu0 0.0
    %2897 = vmatprep.subr.mxu0 0.0
    %2898 = vmatpush1.msra.mxu0 0.0
    %2899 = vmatprep.subr.mxu0 0.0
    %2900 = vmatpush1.msra.mxu0 0.0
    %2901 = vmatprep.subr.mxu0 0.0
    %2902 = vmatpush1.msra.mxu0 0.0
    %2903 = vmatprep.subr.mxu0 0.0
    %2904 = vmatpush1.msra.mxu0 0.0
    %2905 = vmatprep.subr.mxu0 0.0
    %2906 = vmatpush1.msra.mxu0 0.0
    %2907 = vmatprep.subr.mxu0 0.0
    %2908 = vmatpush1.msra.mxu0 0.0
    %2909 = vmatprep.subr.mxu0 0.0
    %2910 = vmatpush1.msra.mxu0 %v2337
    %2911 = vmatprep.subr.mxu0 0.0
    %2912 = vmatpush1.msra.mxu0 %v2336
    %2913 = vmatprep.subr.mxu0 0.0
    %2914 = vmatpush2.msra.mxu0 0.0
    %2915 = vmatprep.subr.mxu0 0.0
    %2916 = vmatpush2.msra.mxu0 0.0
    %2917 = vmatprep.subr.mxu0 0.0
    %2918 = vmatpush2.msra.mxu0 0.0
    %2919 = vmatprep.subr.mxu0 0.0
    %2920 = vmatpush2.msra.mxu0 0.0
    %2921 = vmatprep.subr.mxu0 0.0
    %2922 = vmatpush2.msra.mxu0 0.0
    %2923 = vmatprep.subr.mxu0 0.0
    %2924 = vmatpush2.msra.mxu0 0.0
    %2925 = vmatprep.subr.mxu0 0.0
    %2926 = vmatpush2.msra.mxu0 0.0
    %2927 = vmatprep.subr.mxu0 0.0
    %2928 = vmatpush2.msra.mxu0 0.0
    %2929 = vmatprep.subr.mxu0 0.0
    %2930 = vmatpush2.msra.mxu0 0.0
    %2931 = vmatprep.subr.mxu0 0.0
    %2932 = vmatpush2.msra.mxu0 0.0
    %2933 = vmatprep.subr.mxu0 0.0
    %2934 = vmatpush2.msra.mxu0 0.0
    %2935 = vmatprep.subr.mxu0 0.0
    %2936 = vmatpush2.msra.mxu0 0.0
    %2937 = vmatprep.subr.mxu0 0.0
    %2938 = vmatpush2.msra.mxu0 0.0
    %2939 = vmatprep.subr.mxu0 0.0
    %2940 = vmatpush2.msra.mxu0 0.0
    %2941 = vmatprep.subr.mxu0 0.0
    %2942 = vmatpush2.msra.mxu0 0.0
    %2943 = vmatprep.subr.mxu0 0.0
    %2944 = vmatpush2.msra.mxu0 0.0
    %2945 = vmatprep.mubr.f32.mxu0 0.0
    %2946 = vmatmul.mubr.f32.gmra.mxu0 %v1120
    %v2947 = vpop.f32.mrf.mxu0
    %v2948 = vadd.f32 0.0, %v2947
    %v2949 = vpop.f32.mrf.mxu0
    %2950 = vmatprep.mubr.f32.mxu0 0.0
    %2951 = vmatmul.mubr.f32.gmra.mxu0 %v1123
    %v2952 = vpop.f32.mrf.mxu0
    %v2953 = vadd.f32 0.0, %v2952
    %v2954 = vpop.f32.mrf.mxu0
    %2955 = vmatprep.mubr.f32.mxu0 0.0
    %2956 = vmatmul.mubr.f32.gmra.mxu0 %v1126
    %v2957 = vpop.f32.mrf.mxu0
    %v2958 = vadd.f32 0.0, %v2957
    %v2959 = vpop.f32.mrf.mxu0
    %2960 = vmatprep.mubr.f32.mxu0 0.0
    %2961 = vmatmul.mubr.f32.gmra.mxu0 %v1129
    %v2962 = vpop.f32.mrf.mxu0
    %v2963 = vadd.f32 0.0, %v2962
    %v2964 = vpop.f32.mrf.mxu0
    %2965 = vdwg.mxu0
    %v2967 = vsel %vm1229, %v2795, 0
    %2969 = vmatprep.subr.mxu0 0.0
    %2970 = vmatpush1.msra.mxu0 0.0
    %2971 = vmatprep.subr.mxu0 0.0
    %2972 = vmatpush1.msra.mxu0 0.0
    %2973 = vmatprep.subr.mxu0 0.0
    %2974 = vmatpush1.msra.mxu0 0.0
    %2975 = vmatprep.subr.mxu0 0.0
    %2976 = vmatpush1.msra.mxu0 0.0
    %2977 = vmatprep.subr.mxu0 0.0
    %2978 = vmatpush1.msra.mxu0 0.0
    %2979 = vmatprep.subr.mxu0 0.0
    %2980 = vmatpush1.msra.mxu0 0.0
    %2981 = vmatprep.subr.mxu0 0.0
    %2982 = vmatpush1.msra.mxu0 0.0
    %2983 = vmatprep.subr.mxu0 0.0
    %2984 = vmatpush1.msra.mxu0 0.0
    %2985 = vmatprep.subr.mxu0 0.0
    %2986 = vmatpush1.msra.mxu0 0.0
    %2987 = vmatprep.subr.mxu0 0.0
    %2988 = vmatpush1.msra.mxu0 0.0
    %2989 = vmatprep.subr.mxu0 0.0
    %2990 = vmatpush1.msra.mxu0 0.0
    %2991 = vmatprep.subr.mxu0 0.0
    %2992 = vmatpush1.msra.mxu0 0.0
    %2993 = vmatprep.subr.mxu0 0.0
    %2994 = vmatpush1.msra.mxu0 0.0
    %2995 = vmatprep.subr.mxu0 0.0
    %2996 = vmatpush1.msra.mxu0 0.0
    %2997 = vmatprep.subr.mxu0 0.0
    %2998 = vmatpush1.msra.mxu0 0.0
    %2999 = vmatprep.subr.mxu0 0.0
    %3000 = vmatpush1.msra.mxu0 %v2967
    %3001 = vmatprep.subr.mxu0 0.0
    %3002 = vmatpush2.msra.mxu0 0.0
    %3003 = vmatprep.subr.mxu0 0.0
    %3004 = vmatpush2.msra.mxu0 0.0
    %3005 = vmatprep.subr.mxu0 0.0
    %3006 = vmatpush2.msra.mxu0 0.0
    %3007 = vmatprep.subr.mxu0 0.0
    %3008 = vmatpush2.msra.mxu0 0.0
    %3009 = vmatprep.subr.mxu0 0.0
    %3010 = vmatpush2.msra.mxu0 0.0
    %3011 = vmatprep.subr.mxu0 0.0
    %3012 = vmatpush2.msra.mxu0 0.0
    %3013 = vmatprep.subr.mxu0 0.0
    %3014 = vmatpush2.msra.mxu0 0.0
    %3015 = vmatprep.subr.mxu0 0.0
    %3016 = vmatpush2.msra.mxu0 0.0
    %3017 = vmatprep.subr.mxu0 0.0
    %3018 = vmatpush2.msra.mxu0 0.0
    %3019 = vmatprep.subr.mxu0 0.0
    %3020 = vmatpush2.msra.mxu0 0.0
    %3021 = vmatprep.subr.mxu0 0.0
    %3022 = vmatpush2.msra.mxu0 0.0
    %3023 = vmatprep.subr.mxu0 0.0
    %3024 = vmatpush2.msra.mxu0 0.0
    %3025 = vmatprep.subr.mxu0 0.0
    %3026 = vmatpush2.msra.mxu0 0.0
    %3027 = vmatprep.subr.mxu0 0.0
    %3028 = vmatpush2.msra.mxu0 0.0
    %3029 = vmatprep.subr.mxu0 0.0
    %3030 = vmatpush2.msra.mxu0 0.0
    %3031 = vmatprep.subr.mxu0 0.0
    %3032 = vmatpush2.msra.mxu0 0.0
    %3033 = vmatprep.mubr.f32.mxu0 0.0
    %3034 = vmatmul.mubr.f32.gmra.mxu0 %v1218
    %v3035 = vpop.f32.mrf.mxu0
    %v3036 = vadd.f32 0.0, %v3035
    %v3037 = vpop.f32.mrf.mxu0
    %3038 = vmatprep.mubr.f32.mxu0 0.0
    %3039 = vmatmul.mubr.f32.gmra.mxu0 %v1221
    %v3040 = vpop.f32.mrf.mxu0
    %v3041 = vadd.f32 0.0, %v3040
    %v3042 = vpop.f32.mrf.mxu0
    %3043 = vmatprep.mubr.f32.mxu0 0.0
    %3044 = vmatmul.mubr.f32.gmra.mxu0 %v1224
    %v3045 = vpop.f32.mrf.mxu0
    %v3046 = vadd.f32 0.0, %v3045
    %v3047 = vpop.f32.mrf.mxu0
    %3048 = vmatprep.mubr.f32.mxu0 0.0
    %3049 = vmatmul.mubr.f32.gmra.mxu0 %v1227
    %v3050 = vpop.f32.mrf.mxu0
    %v3051 = vadd.f32 0.0, %v3050
    %v3052 = vpop.f32.mrf.mxu0
    %3053 = vdwg.mxu0
    %v3055 = vsel %vm994, %v2948, 0
    %v3058 = vsel %vm994, %v2953, 0
    %v3061 = vsel %vm994, %v2958, 0
    %v3064 = vsel %vm994, %v2963, 0
    %3066 = vmatprep.subr.mxu0 0.0
    %3067 = vmatpush1.msra.mxu0 0.0
    %3068 = vmatprep.subr.mxu0 0.0
    %3069 = vmatpush1.msra.mxu0 0.0
    %3070 = vmatprep.subr.mxu0 0.0
    %3071 = vmatpush1.msra.mxu0 0.0
    %3072 = vmatprep.subr.mxu0 0.0
    %3073 = vmatpush1.msra.mxu0 0.0
    %3074 = vmatprep.subr.mxu0 0.0
    %3075 = vmatpush1.msra.mxu0 0.0
    %3076 = vmatprep.subr.mxu0 0.0
    %3077 = vmatpush1.msra.mxu0 0.0
    %3078 = vmatprep.subr.mxu0 0.0
    %3079 = vmatpush1.msra.mxu0 0.0
    %3080 = vmatprep.subr.mxu0 0.0
    %3081 = vmatpush1.msra.mxu0 0.0
    %3082 = vmatprep.subr.mxu0 0.0
    %3083 = vmatpush1.msra.mxu0 0.0
    %3084 = vmatprep.subr.mxu0 0.0
    %3085 = vmatpush1.msra.mxu0 0.0
    %3086 = vmatprep.subr.mxu0 0.0
    %3087 = vmatpush1.msra.mxu0 0.0
    %3088 = vmatprep.subr.mxu0 0.0
    %3089 = vmatpush1.msra.mxu0 0.0
    %3090 = vmatprep.subr.mxu0 0.0
    %3091 = vmatpush1.msra.mxu0 %v626
    %3092 = vmatprep.subr.mxu0 0.0
    %3093 = vmatpush1.msra.mxu0 %v625
    %3094 = vmatprep.subr.mxu0 0.0
    %3095 = vmatpush1.msra.mxu0 %v624
    %3096 = vmatprep.subr.mxu0 0.0
    %3097 = vmatpush1.msra.mxu0 %v623
    %3098 = vmatprep.subr.mxu0 0.0
    %3099 = vmatpush2.msra.mxu0 0.0
    %3100 = vmatprep.subr.mxu0 0.0
    %3101 = vmatpush2.msra.mxu0 0.0
    %3102 = vmatprep.subr.mxu0 0.0
    %3103 = vmatpush2.msra.mxu0 0.0
    %3104 = vmatprep.subr.mxu0 0.0
    %3105 = vmatpush2.msra.mxu0 0.0
    %3106 = vmatprep.subr.mxu0 0.0
    %3107 = vmatpush2.msra.mxu0 0.0
    %3108 = vmatprep.subr.mxu0 0.0
    %3109 = vmatpush2.msra.mxu0 0.0
    %3110 = vmatprep.subr.mxu0 0.0
    %3111 = vmatpush2.msra.mxu0 0.0
    %3112 = vmatprep.subr.mxu0 0.0
    %3113 = vmatpush2.msra.mxu0 0.0
    %3114 = vmatprep.subr.mxu0 0.0
    %3115 = vmatpush2.msra.mxu0 0.0
    %3116 = vmatprep.subr.mxu0 0.0
    %3117 = vmatpush2.msra.mxu0 0.0
    %3118 = vmatprep.subr.mxu0 0.0
    %3119 = vmatpush2.msra.mxu0 0.0
    %3120 = vmatprep.subr.mxu0 0.0
    %3121 = vmatpush2.msra.mxu0 0.0
    %3122 = vmatprep.subr.mxu0 0.0
    %3123 = vmatpush2.msra.mxu0 0.0
    %3124 = vmatprep.subr.mxu0 0.0
    %3125 = vmatpush2.msra.mxu0 0.0
    %3126 = vmatprep.subr.mxu0 0.0
    %3127 = vmatpush2.msra.mxu0 0.0
    %3128 = vmatprep.subr.mxu0 0.0
    %3129 = vmatpush2.msra.mxu0 0.0
    %3130 = vmatprep.mubr.f32.mxu0 0.0
    %3131 = vmatmul.mubr.f32.gmra.mxu0 %v3055
    %v3132 = vpop.f32.mrf.mxu0
    %v3133 = vadd.f32 0.0, %v3132
    %v3134 = vpop.f32.mrf.mxu0
    %3135 = vmatprep.mubr.f32.mxu0 0.0
    %3136 = vmatmul.mubr.f32.gmra.mxu0 %v3058
    %v3137 = vpop.f32.mrf.mxu0
    %v3138 = vadd.f32 0.0, %v3137
    %v3139 = vpop.f32.mrf.mxu0
    %3140 = vmatprep.mubr.f32.mxu0 0.0
    %3141 = vmatmul.mubr.f32.gmra.mxu0 %v3061
    %v3142 = vpop.f32.mrf.mxu0
    %v3143 = vadd.f32 0.0, %v3142
    %v3144 = vpop.f32.mrf.mxu0
    %3145 = vmatprep.mubr.f32.mxu0 0.0
    %3146 = vmatmul.mubr.f32.gmra.mxu0 %v3064
    %v3147 = vpop.f32.mrf.mxu0
    %v3148 = vadd.f32 0.0, %v3147
    %v3149 = vpop.f32.mrf.mxu0
    %3150 = vdwg.mxu0
    %v3152 = vsel %vm994, %v2863, 0
    %v3155 = vsel %vm994, %v2868, 0
    %v3158 = vsel %vm994, %v2873, 0
    %v3161 = vsel %vm994, %v2878, 0
    %3163 = vmatprep.subr.mxu0 0.0
    %3164 = vmatpush1.msra.mxu0 0.0
    %3165 = vmatprep.subr.mxu0 0.0
    %3166 = vmatpush1.msra.mxu0 0.0
    %3167 = vmatprep.subr.mxu0 0.0
    %3168 = vmatpush1.msra.mxu0 0.0
    %3169 = vmatprep.subr.mxu0 0.0
    %3170 = vmatpush1.msra.mxu0 0.0
    %3171 = vmatprep.subr.mxu0 0.0
    %3172 = vmatpush1.msra.mxu0 0.0
    %3173 = vmatprep.subr.mxu0 0.0
    %3174 = vmatpush1.msra.mxu0 0.0
    %3175 = vmatprep.subr.mxu0 0.0
    %3176 = vmatpush1.msra.mxu0 0.0
    %3177 = vmatprep.subr.mxu0 0.0
    %3178 = vmatpush1.msra.mxu0 0.0
    %3179 = vmatprep.subr.mxu0 0.0
    %3180 = vmatpush1.msra.mxu0 0.0
    %3181 = vmatprep.subr.mxu0 0.0
    %3182 = vmatpush1.msra.mxu0 0.0
    %3183 = vmatprep.subr.mxu0 0.0
    %3184 = vmatpush1.msra.mxu0 0.0
    %3185 = vmatprep.subr.mxu0 0.0
    %3186 = vmatpush1.msra.mxu0 0.0
    %3187 = vmatprep.subr.mxu0 0.0
    %3188 = vmatpush1.msra.mxu0 %v622
    %3189 = vmatprep.subr.mxu0 0.0
    %3190 = vmatpush1.msra.mxu0 %v621
    %3191 = vmatprep.subr.mxu0 0.0
    %3192 = vmatpush1.msra.mxu0 %v620
    %3193 = vmatprep.subr.mxu0 0.0
    %3194 = vmatpush1.msra.mxu0 %v619
    %3195 = vmatprep.subr.mxu0 0.0
    %3196 = vmatpush2.msra.mxu0 0.0
    %3197 = vmatprep.subr.mxu0 0.0
    %3198 = vmatpush2.msra.mxu0 0.0
    %3199 = vmatprep.subr.mxu0 0.0
    %3200 = vmatpush2.msra.mxu0 0.0
    %3201 = vmatprep.subr.mxu0 0.0
    %3202 = vmatpush2.msra.mxu0 0.0
    %3203 = vmatprep.subr.mxu0 0.0
    %3204 = vmatpush2.msra.mxu0 0.0
    %3205 = vmatprep.subr.mxu0 0.0
    %3206 = vmatpush2.msra.mxu0 0.0
    %3207 = vmatprep.subr.mxu0 0.0
    %3208 = vmatpush2.msra.mxu0 0.0
    %3209 = vmatprep.subr.mxu0 0.0
    %3210 = vmatpush2.msra.mxu0 0.0
    %3211 = vmatprep.subr.mxu0 0.0
    %3212 = vmatpush2.msra.mxu0 0.0
    %3213 = vmatprep.subr.mxu0 0.0
    %3214 = vmatpush2.msra.mxu0 0.0
    %3215 = vmatprep.subr.mxu0 0.0
    %3216 = vmatpush2.msra.mxu0 0.0
    %3217 = vmatprep.subr.mxu0 0.0
    %3218 = vmatpush2.msra.mxu0 0.0
    %3219 = vmatprep.subr.mxu0 0.0
    %3220 = vmatpush2.msra.mxu0 0.0
    %3221 = vmatprep.subr.mxu0 0.0
    %3222 = vmatpush2.msra.mxu0 0.0
    %3223 = vmatprep.subr.mxu0 0.0
    %3224 = vmatpush2.msra.mxu0 0.0
    %3225 = vmatprep.subr.mxu0 0.0
    %3226 = vmatpush2.msra.mxu0 0.0
    %3227 = vmatprep.mubr.f32.mxu0 0.0
    %3228 = vmatmul.mubr.f32.gmra.mxu0 %v3152
    %v3229 = vpop.f32.mrf.mxu0
    %v3230 = vadd.f32 %v3133, %v3229
    %v3231 = vpop.f32.mrf.mxu0
    %3232 = vmatprep.mubr.f32.mxu0 0.0
    %3233 = vmatmul.mubr.f32.gmra.mxu0 %v3155
    %v3234 = vpop.f32.mrf.mxu0
    %v3235 = vadd.f32 %v3138, %v3234
    %v3236 = vpop.f32.mrf.mxu0
    %3237 = vmatprep.mubr.f32.mxu0 0.0
    %3238 = vmatmul.mubr.f32.gmra.mxu0 %v3158
    %v3239 = vpop.f32.mrf.mxu0
    %v3240 = vadd.f32 %v3143, %v3239
    %v3241 = vpop.f32.mrf.mxu0
    %3242 = vmatprep.mubr.f32.mxu0 0.0
    %3243 = vmatmul.mubr.f32.gmra.mxu0 %v3161
    %v3244 = vpop.f32.mrf.mxu0
    %v3245 = vadd.f32 %v3148, %v3244
    %v3246 = vpop.f32.mrf.mxu0
    %3247 = vdwg.mxu0
    %v3249 = vsel %vm994, %v1823, 0
    %v3252 = vsel %vm994, %v1824, 0
    %v3255 = vsel %vm994, %v1825, 0
    %v3258 = vsel %vm994, %v1826, 0
    %3260 = vmatprep.subr.mxu0 0.0
    %3261 = vmatpush1.msra.mxu0 0.0
    %3262 = vmatprep.subr.mxu0 0.0
    %3263 = vmatpush1.msra.mxu0 0.0
    %3264 = vmatprep.subr.mxu0 0.0
    %3265 = vmatpush1.msra.mxu0 0.0
    %3266 = vmatprep.subr.mxu0 0.0
    %3267 = vmatpush1.msra.mxu0 0.0
    %3268 = vmatprep.subr.mxu0 0.0
    %3269 = vmatpush1.msra.mxu0 0.0
    %3270 = vmatprep.subr.mxu0 0.0
    %3271 = vmatpush1.msra.mxu0 0.0
    %3272 = vmatprep.subr.mxu0 0.0
    %3273 = vmatpush1.msra.mxu0 0.0
    %3274 = vmatprep.subr.mxu0 0.0
    %3275 = vmatpush1.msra.mxu0 0.0
    %3276 = vmatprep.subr.mxu0 0.0
    %3277 = vmatpush1.msra.mxu0 0.0
    %3278 = vmatprep.subr.mxu0 0.0
    %3279 = vmatpush1.msra.mxu0 0.0
    %3280 = vmatprep.subr.mxu0 0.0
    %3281 = vmatpush1.msra.mxu0 0.0
    %3282 = vmatprep.subr.mxu0 0.0
    %3283 = vmatpush1.msra.mxu0 0.0
    %3284 = vmatprep.subr.mxu0 0.0
    %3285 = vmatpush1.msra.mxu0 %v630
    %3286 = vmatprep.subr.mxu0 0.0
    %3287 = vmatpush1.msra.mxu0 %v629
    %3288 = vmatprep.subr.mxu0 0.0
    %3289 = vmatpush1.msra.mxu0 %v628
    %3290 = vmatprep.subr.mxu0 0.0
    %3291 = vmatpush1.msra.mxu0 %v627
    %3292 = vmatprep.subr.mxu0 0.0
    %3293 = vmatpush2.msra.mxu0 0.0
    %3294 = vmatprep.subr.mxu0 0.0
    %3295 = vmatpush2.msra.mxu0 0.0
    %3296 = vmatprep.subr.mxu0 0.0
    %3297 = vmatpush2.msra.mxu0 0.0
    %3298 = vmatprep.subr.mxu0 0.0
    %3299 = vmatpush2.msra.mxu0 0.0
    %3300 = vmatprep.subr.mxu0 0.0
    %3301 = vmatpush2.msra.mxu0 0.0
    %3302 = vmatprep.subr.mxu0 0.0
    %3303 = vmatpush2.msra.mxu0 0.0
    %3304 = vmatprep.subr.mxu0 0.0
    %3305 = vmatpush2.msra.mxu0 0.0
    %3306 = vmatprep.subr.mxu0 0.0
    %3307 = vmatpush2.msra.mxu0 0.0
    %3308 = vmatprep.subr.mxu0 0.0
    %3309 = vmatpush2.msra.mxu0 0.0
    %3310 = vmatprep.subr.mxu0 0.0
    %3311 = vmatpush2.msra.mxu0 0.0
    %3312 = vmatprep.subr.mxu0 0.0
    %3313 = vmatpush2.msra.mxu0 0.0
    %3314 = vmatprep.subr.mxu0 0.0
    %3315 = vmatpush2.msra.mxu0 0.0
    %3316 = vmatprep.subr.mxu0 0.0
    %3317 = vmatpush2.msra.mxu0 0.0
    %3318 = vmatprep.subr.mxu0 0.0
    %3319 = vmatpush2.msra.mxu0 0.0
    %3320 = vmatprep.subr.mxu0 0.0
    %3321 = vmatpush2.msra.mxu0 0.0
    %3322 = vmatprep.subr.mxu0 0.0
    %3323 = vmatpush2.msra.mxu0 0.0
    %3324 = vmatprep.mubr.f32.mxu0 0.0
    %3325 = vmatmul.mubr.f32.gmra.mxu0 %v3249
    %v3326 = vpop.f32.mrf.mxu0
    %v3327 = vadd.f32 0.0, %v3326
    %v3328 = vpop.f32.mrf.mxu0
    %3329 = vmatprep.mubr.f32.mxu0 0.0
    %3330 = vmatmul.mubr.f32.gmra.mxu0 %v3252
    %v3331 = vpop.f32.mrf.mxu0
    %v3332 = vadd.f32 0.0, %v3331
    %v3333 = vpop.f32.mrf.mxu0
    %3334 = vmatprep.mubr.f32.mxu0 0.0
    %3335 = vmatmul.mubr.f32.gmra.mxu0 %v3255
    %v3336 = vpop.f32.mrf.mxu0
    %v3337 = vadd.f32 0.0, %v3336
    %v3338 = vpop.f32.mrf.mxu0
    %3339 = vmatprep.mubr.f32.mxu0 0.0
    %3340 = vmatmul.mubr.f32.gmra.mxu0 %v3258
    %v3341 = vpop.f32.mrf.mxu0
    %v3342 = vadd.f32 0.0, %v3341
    %v3343 = vpop.f32.mrf.mxu0
    %3344 = vdwg.mxu0
    %v3345 = vadd.f32 %v3230, %v3327
    %v3346 = vadd.f32 %v3235, %v3332
    %v3347 = vadd.f32 %v3240, %v3337
    %v3348 = vadd.f32 %v3245, %v3342
    %v3350 = vsel %vm994, %v3036, 0
    %v3353 = vsel %vm994, %v3041, 0
    %v3356 = vsel %vm994, %v3046, 0
    %v3359 = vsel %vm994, %v3051, 0
    %3361 = vmatprep.subr.mxu0 0.0
    %3362 = vmatpush1.msra.mxu0 0.0
    %3363 = vmatprep.subr.mxu0 0.0
    %3364 = vmatpush1.msra.mxu0 0.0
    %3365 = vmatprep.subr.mxu0 0.0
    %3366 = vmatpush1.msra.mxu0 0.0
    %3367 = vmatprep.subr.mxu0 0.0
    %3368 = vmatpush1.msra.mxu0 0.0
    %3369 = vmatprep.subr.mxu0 0.0
    %3370 = vmatpush1.msra.mxu0 0.0
    %3371 = vmatprep.subr.mxu0 0.0
    %3372 = vmatpush1.msra.mxu0 0.0
    %3373 = vmatprep.subr.mxu0 0.0
    %3374 = vmatpush1.msra.mxu0 0.0
    %3375 = vmatprep.subr.mxu0 0.0
    %3376 = vmatpush1.msra.mxu0 0.0
    %3377 = vmatprep.subr.mxu0 0.0
    %3378 = vmatpush1.msra.mxu0 0.0
    %3379 = vmatprep.subr.mxu0 0.0
    %3380 = vmatpush1.msra.mxu0 0.0
    %3381 = vmatprep.subr.mxu0 0.0
    %3382 = vmatpush1.msra.mxu0 0.0
    %3383 = vmatprep.subr.mxu0 0.0
    %3384 = vmatpush1.msra.mxu0 0.0
    %3385 = vmatprep.subr.mxu0 0.0
    %3386 = vmatpush1.msra.mxu0 %v634
    %3387 = vmatprep.subr.mxu0 0.0
    %3388 = vmatpush1.msra.mxu0 %v633
    %3389 = vmatprep.subr.mxu0 0.0
    %3390 = vmatpush1.msra.mxu0 %v632
    %3391 = vmatprep.subr.mxu0 0.0
    %3392 = vmatpush1.msra.mxu0 %v631
    %3393 = vmatprep.subr.mxu0 0.0
    %3394 = vmatpush2.msra.mxu0 0.0
    %3395 = vmatprep.subr.mxu0 0.0
    %3396 = vmatpush2.msra.mxu0 0.0
    %3397 = vmatprep.subr.mxu0 0.0
    %3398 = vmatpush2.msra.mxu0 0.0
    %3399 = vmatprep.subr.mxu0 0.0
    %3400 = vmatpush2.msra.mxu0 0.0
    %3401 = vmatprep.subr.mxu0 0.0
    %3402 = vmatpush2.msra.mxu0 0.0
    %3403 = vmatprep.subr.mxu0 0.0
    %3404 = vmatpush2.msra.mxu0 0.0
    %3405 = vmatprep.subr.mxu0 0.0
    %3406 = vmatpush2.msra.mxu0 0.0
    %3407 = vmatprep.subr.mxu0 0.0
    %3408 = vmatpush2.msra.mxu0 0.0
    %3409 = vmatprep.subr.mxu0 0.0
    %3410 = vmatpush2.msra.mxu0 0.0
    %3411 = vmatprep.subr.mxu0 0.0
    %3412 = vmatpush2.msra.mxu0 0.0
    %3413 = vmatprep.subr.mxu0 0.0
    %3414 = vmatpush2.msra.mxu0 0.0
    %3415 = vmatprep.subr.mxu0 0.0
    %3416 = vmatpush2.msra.mxu0 0.0
    %3417 = vmatprep.subr.mxu0 0.0
    %3418 = vmatpush2.msra.mxu0 0.0
    %3419 = vmatprep.subr.mxu0 0.0
    %3420 = vmatpush2.msra.mxu0 0.0
    %3421 = vmatprep.subr.mxu0 0.0
    %3422 = vmatpush2.msra.mxu0 0.0
    %3423 = vmatprep.subr.mxu0 0.0
    %3424 = vmatpush2.msra.mxu0 0.0
    %3425 = vmatprep.mubr.f32.mxu0 0.0
    %3426 = vmatmul.mubr.f32.gmra.mxu0 %v3350
    %v3427 = vpop.f32.mrf.mxu0
    %v3428 = vadd.f32 0.0, %v3427
    %v3429 = vpop.f32.mrf.mxu0
    %3430 = vmatprep.mubr.f32.mxu0 0.0
    %3431 = vmatmul.mubr.f32.gmra.mxu0 %v3353
    %v3432 = vpop.f32.mrf.mxu0
    %v3433 = vadd.f32 0.0, %v3432
    %v3434 = vpop.f32.mrf.mxu0
    %3435 = vmatprep.mubr.f32.mxu0 0.0
    %3436 = vmatmul.mubr.f32.gmra.mxu0 %v3356
    %v3437 = vpop.f32.mrf.mxu0
    %v3438 = vadd.f32 0.0, %v3437
    %v3439 = vpop.f32.mrf.mxu0
    %3440 = vmatprep.mubr.f32.mxu0 0.0
    %3441 = vmatmul.mubr.f32.gmra.mxu0 %v3359
    %v3442 = vpop.f32.mrf.mxu0
    %v3443 = vadd.f32 0.0, %v3442
    %v3444 = vpop.f32.mrf.mxu0
    %3445 = vdwg.mxu0
    %v3446 = vadd.f32 %v3345, %v3428
    %v3447 = vadd.f32 %v3346, %v3433
    %v3448 = vadd.f32 %v3347, %v3438
    %v3449 = vadd.f32 %v3348, %v3443
    %v3451 = vlaneseq
    %v3452 = vshrl.u32 %v3451, 7
    %v3453 = vsub.s32 0, %v3452
    %v3454 = vrot.slane %v635, %v3453
    %v3456 = vadd.f32 %v3446, %v3454
    %v3457 = vadd.f32 %v3447, %v3454
    %v3458 = vadd.f32 %v3448, %v3454
    %v3459 = vadd.f32 %v3449, %v3454
    %v3460 = vmax.f32 %v3456, 0.0
    %v3461 = vmax.f32 %v3457, 0.0
    %v3462 = vmax.f32 %v3458, 0.0
    %v3463 = vmax.f32 %v3459, 0.0
    %v3465 = vlaneseq
    %v3466 = vshrl.u32 %v3465, 7
    %v3467 = vsub.s32 0, %v3466
    %v3468 = vrot.slane %v644, %v3467
    %v3471 = vsel %vm1725, %v3460, 0
    %v3474 = vsel %vm1725, %v3461, 0
    %v3477 = vsel %vm1725, %v3462, 0
    %v3480 = vsel %vm1725, %v3463, 0
    %3482 = vmatprep.subr.mxu0 0.0
    %3483 = vmatpush1.msra.mxu0 0.0
    %3484 = vmatprep.subr.mxu0 0.0
    %3485 = vmatpush1.msra.mxu0 0.0
    %3486 = vmatprep.subr.mxu0 0.0
    %3487 = vmatpush1.msra.mxu0 0.0
    %3488 = vmatprep.subr.mxu0 0.0
    %3489 = vmatpush1.msra.mxu0 0.0
    %3490 = vmatprep.subr.mxu0 0.0
    %3491 = vmatpush1.msra.mxu0 0.0
    %3492 = vmatprep.subr.mxu0 0.0
    %3493 = vmatpush1.msra.mxu0 0.0
    %3494 = vmatprep.subr.mxu0 0.0
    %3495 = vmatpush1.msra.mxu0 0.0
    %3496 = vmatprep.subr.mxu0 0.0
    %3497 = vmatpush1.msra.mxu0 0.0
    %3498 = vmatprep.subr.mxu0 0.0
    %3499 = vmatpush1.msra.mxu0 %v643
    %3500 = vmatprep.subr.mxu0 0.0
    %3501 = vmatpush1.msra.mxu0 %v642
    %3502 = vmatprep.subr.mxu0 0.0
    %3503 = vmatpush1.msra.mxu0 %v641
    %3504 = vmatprep.subr.mxu0 0.0
    %3505 = vmatpush1.msra.mxu0 %v640
    %3506 = vmatprep.subr.mxu0 0.0
    %3507 = vmatpush1.msra.mxu0 %v639
    %3508 = vmatprep.subr.mxu0 0.0
    %3509 = vmatpush1.msra.mxu0 %v638
    %3510 = vmatprep.subr.mxu0 0.0
    %3511 = vmatpush1.msra.mxu0 %v637
    %3512 = vmatprep.subr.mxu0 0.0
    %3513 = vmatpush1.msra.mxu0 %v636
    %3514 = vmatprep.subr.mxu0 0.0
    %3515 = vmatpush2.msra.mxu0 0.0
    %3516 = vmatprep.subr.mxu0 0.0
    %3517 = vmatpush2.msra.mxu0 0.0
    %3518 = vmatprep.subr.mxu0 0.0
    %3519 = vmatpush2.msra.mxu0 0.0
    %3520 = vmatprep.subr.mxu0 0.0
    %3521 = vmatpush2.msra.mxu0 0.0
    %3522 = vmatprep.subr.mxu0 0.0
    %3523 = vmatpush2.msra.mxu0 0.0
    %3524 = vmatprep.subr.mxu0 0.0
    %3525 = vmatpush2.msra.mxu0 0.0
    %3526 = vmatprep.subr.mxu0 0.0
    %3527 = vmatpush2.msra.mxu0 0.0
    %3528 = vmatprep.subr.mxu0 0.0
    %3529 = vmatpush2.msra.mxu0 0.0
    %3530 = vmatprep.subr.mxu0 0.0
    %3531 = vmatpush2.msra.mxu0 0.0
    %3532 = vmatprep.subr.mxu0 0.0
    %3533 = vmatpush2.msra.mxu0 0.0
    %3534 = vmatprep.subr.mxu0 0.0
    %3535 = vmatpush2.msra.mxu0 0.0
    %3536 = vmatprep.subr.mxu0 0.0
    %3537 = vmatpush2.msra.mxu0 0.0
    %3538 = vmatprep.subr.mxu0 0.0
    %3539 = vmatpush2.msra.mxu0 0.0
    %3540 = vmatprep.subr.mxu0 0.0
    %3541 = vmatpush2.msra.mxu0 0.0
    %3542 = vmatprep.subr.mxu0 0.0
    %3543 = vmatpush2.msra.mxu0 0.0
    %3544 = vmatprep.subr.mxu0 0.0
    %3545 = vmatpush2.msra.mxu0 0.0
    %3546 = vmatprep.mubr.f32.mxu0 0.0
    %3547 = vmatmul.mubr.f32.gmra.mxu0 %v3471
    %v3548 = vpop.f32.mrf.mxu0
    %v3549 = vadd.f32 %v3468, %v3548
    %v3550 = vpop.f32.mrf.mxu0
    %3551 = vmatprep.mubr.f32.mxu0 0.0
    %3552 = vmatmul.mubr.f32.gmra.mxu0 %v3474
    %v3553 = vpop.f32.mrf.mxu0
    %v3554 = vadd.f32 %v3468, %v3553
    %v3555 = vpop.f32.mrf.mxu0
    %3556 = vmatprep.mubr.f32.mxu0 0.0
    %3557 = vmatmul.mubr.f32.gmra.mxu0 %v3477
    %v3558 = vpop.f32.mrf.mxu0
    %v3559 = vadd.f32 %v3468, %v3558
    %v3560 = vpop.f32.mrf.mxu0
    %3561 = vmatprep.mubr.f32.mxu0 0.0
    %3562 = vmatmul.mubr.f32.gmra.mxu0 %v3480
    %v3563 = vpop.f32.mrf.mxu0
    %v3564 = vadd.f32 %v3468, %v3563
    %v3565 = vpop.f32.mrf.mxu0
    %3566 = vdwg.mxu0
    %v3567 = vmax.f32 %v3549, 0.0
    %v3568 = vmax.f32 %v3554, 0.0
    %v3569 = vmax.f32 %v3559, 0.0
    %v3570 = vmax.f32 %v3564, 0.0
    %3571 = vmatprep.subr.mxu0 0.0
    %3572 = vmatpush1.msra.mxu0 0.0
    %3573 = vmatprep.subr.mxu0 0.0
    %3574 = vmatpush1.msra.mxu0 0.0
    %3575 = vmatprep.subr.mxu0 0.0
    %3576 = vmatpush1.msra.mxu0 0.0
    %3577 = vmatprep.subr.mxu0 0.0
    %3578 = vmatpush1.msra.mxu0 0.0
    %3579 = vmatprep.subr.mxu0 0.0
    %3580 = vmatpush1.msra.mxu0 0.0
    %3581 = vmatprep.subr.mxu0 0.0
    %3582 = vmatpush1.msra.mxu0 0.0
    %3583 = vmatprep.subr.mxu0 0.0
    %3584 = vmatpush1.msra.mxu0 0.0
    %3585 = vmatprep.subr.mxu0 0.0
    %3586 = vmatpush1.msra.mxu0 0.0
    %3587 = vmatprep.subr.mxu0 0.0
    %3588 = vmatpush1.msra.mxu0 0.0
    %3589 = vmatprep.subr.mxu0 0.0
    %3590 = vmatpush1.msra.mxu0 0.0
    %3591 = vmatprep.subr.mxu0 0.0
    %3592 = vmatpush1.msra.mxu0 0.0
    %3593 = vmatprep.subr.mxu0 0.0
    %3594 = vmatpush1.msra.mxu0 0.0
    %3595 = vmatprep.subr.mxu0 0.0
    %3596 = vmatpush1.msra.mxu0 %v3570
    %3597 = vmatprep.subr.mxu0 0.0
    %3598 = vmatpush1.msra.mxu0 %v3569
    %3599 = vmatprep.subr.mxu0 0.0
    %3600 = vmatpush1.msra.mxu0 %v3568
    %3601 = vmatprep.subr.mxu0 0.0
    %3602 = vmatpush1.msra.mxu0 %v3567
    %3603 = vmatprep.subr.mxu0 0.0
    %3604 = vmatpush2.msra.mxu0 0.0
    %3605 = vmatprep.subr.mxu0 0.0
    %3606 = vmatpush2.msra.mxu0 0.0
    %3607 = vmatprep.subr.mxu0 0.0
    %3608 = vmatpush2.msra.mxu0 0.0
    %3609 = vmatprep.subr.mxu0 0.0
    %3610 = vmatpush2.msra.mxu0 0.0
    %3611 = vmatprep.subr.mxu0 0.0
    %3612 = vmatpush2.msra.mxu0 0.0
    %3613 = vmatprep.subr.mxu0 0.0
    %3614 = vmatpush2.msra.mxu0 0.0
    %3615 = vmatprep.subr.mxu0 0.0
    %3616 = vmatpush2.msra.mxu0 0.0
    %3617 = vmatprep.subr.mxu0 0.0
    %3618 = vmatpush2.msra.mxu0 0.0
    %3619 = vmatprep.subr.mxu0 0.0
    %3620 = vmatpush2.msra.mxu0 0.0
    %3621 = vmatprep.subr.mxu0 0.0
    %3622 = vmatpush2.msra.mxu0 0.0
    %3623 = vmatprep.subr.mxu0 0.0
    %3624 = vmatpush2.msra.mxu0 0.0
    %3625 = vmatprep.subr.mxu0 0.0
    %3626 = vmatpush2.msra.mxu0 0.0
    %3627 = vmatprep.subr.mxu0 0.0
    %3628 = vmatpush2.msra.mxu0 0.0
    %3629 = vmatprep.subr.mxu0 0.0
    %3630 = vmatpush2.msra.mxu0 0.0
    %3631 = vmatprep.subr.mxu0 0.0
    %3632 = vmatpush2.msra.mxu0 0.0
    %3633 = vmatprep.subr.mxu0 0.0
    %3634 = vmatpush2.msra.mxu0 0.0
    %3635 = vmatprep.mubr.f32.mxu0 0.0
    %3636 = vmatmul.mubr.f32.gmra.mxu0 %v1828
    %v3637 = vpop.f32.mrf.mxu0
    %v3638 = vadd.f32 0.0, %v3637
    %v3639 = vpop.f32.mrf.mxu0
    %3640 = vmatprep.mubr.f32.mxu0 0.0
    %3641 = vmatmul.mubr.f32.gmra.mxu0 %v1831
    %v3642 = vpop.f32.mrf.mxu0
    %v3643 = vadd.f32 0.0, %v3642
    %v3644 = vpop.f32.mrf.mxu0
    %3645 = vdwg.mxu0
    %v3646 = vmul.f32 %v3638, %v1004
    %v3647 = vmul.f32 %v3643, %v1006
    %3648 = vmatprep.subr.mxu0 0.0
    %3649 = vmatpush1.msra.mxu0 0.0
    %3650 = vmatprep.subr.mxu0 0.0
    %3651 = vmatpush1.msra.mxu0 0.0
    %3652 = vmatprep.subr.mxu0 0.0
    %3653 = vmatpush1.msra.mxu0 0.0
    %3654 = vmatprep.subr.mxu0 0.0
    %3655 = vmatpush1.msra.mxu0 0.0
    %3656 = vmatprep.subr.mxu0 0.0
    %3657 = vmatpush1.msra.mxu0 0.0
    %3658 = vmatprep.subr.mxu0 0.0
    %3659 = vmatpush1.msra.mxu0 0.0
    %3660 = vmatprep.subr.mxu0 0.0
    %3661 = vmatpush1.msra.mxu0 0.0
    %3662 = vmatprep.subr.mxu0 0.0
    %3663 = vmatpush1.msra.mxu0 0.0
    %3664 = vmatprep.subr.mxu0 0.0
    %3665 = vmatpush1.msra.mxu0 0.0
    %3666 = vmatprep.subr.mxu0 0.0
    %3667 = vmatpush1.msra.mxu0 0.0
    %3668 = vmatprep.subr.mxu0 0.0
    %3669 = vmatpush1.msra.mxu0 0.0
    %3670 = vmatprep.subr.mxu0 0.0
    %3671 = vmatpush1.msra.mxu0 0.0
    %3672 = vmatprep.subr.mxu0 0.0
    %3673 = vmatpush1.msra.mxu0 0.0
    %3674 = vmatprep.subr.mxu0 0.0
    %3675 = vmatpush1.msra.mxu0 0.0
    %3676 = vmatprep.subr.mxu0 0.0
    %3677 = vmatpush1.msra.mxu0 0.0
    %3678 = vmatprep.subr.mxu0 0.0
    %3679 = vmatpush1.msra.mxu0 %v2967
    %3680 = vmatprep.subr.mxu0 0.0
    %3681 = vmatpush2.msra.mxu0 0.0
    %3682 = vmatprep.subr.mxu0 0.0
    %3683 = vmatpush2.msra.mxu0 0.0
    %3684 = vmatprep.subr.mxu0 0.0
    %3685 = vmatpush2.msra.mxu0 0.0
    %3686 = vmatprep.subr.mxu0 0.0
    %3687 = vmatpush2.msra.mxu0 0.0
    %3688 = vmatprep.subr.mxu0 0.0
    %3689 = vmatpush2.msra.mxu0 0.0
    %3690 = vmatprep.subr.mxu0 0.0
    %3691 = vmatpush2.msra.mxu0 0.0
    %3692 = vmatprep.subr.mxu0 0.0
    %3693 = vmatpush2.msra.mxu0 0.0
    %3694 = vmatprep.subr.mxu0 0.0
    %3695 = vmatpush2.msra.mxu0 0.0
    %3696 = vmatprep.subr.mxu0 0.0
    %3697 = vmatpush2.msra.mxu0 0.0
    %3698 = vmatprep.subr.mxu0 0.0
    %3699 = vmatpush2.msra.mxu0 0.0
    %3700 = vmatprep.subr.mxu0 0.0
    %3701 = vmatpush2.msra.mxu0 0.0
    %3702 = vmatprep.subr.mxu0 0.0
    %3703 = vmatpush2.msra.mxu0 0.0
    %3704 = vmatprep.subr.mxu0 0.0
    %3705 = vmatpush2.msra.mxu0 0.0
    %3706 = vmatprep.subr.mxu0 0.0
    %3707 = vmatpush2.msra.mxu0 0.0
    %3708 = vmatprep.subr.mxu0 0.0
    %3709 = vmatpush2.msra.mxu0 0.0
    %3710 = vmatprep.subr.mxu0 0.0
    %3711 = vmatpush2.msra.mxu0 0.0
    %3712 = vmatprep.mubr.f32.mxu0 0.0
    %3713 = vmatmul.mubr.f32.gmra.mxu0 %v1911
    %v3714 = vpop.f32.mrf.mxu0
    %v3715 = vadd.f32 0.0, %v3714
    %v3716 = vpop.f32.mrf.mxu0
    %3717 = vmatprep.mubr.f32.mxu0 0.0
    %3718 = vmatmul.mubr.f32.gmra.mxu0 %v1914
    %v3719 = vpop.f32.mrf.mxu0
    %v3720 = vadd.f32 0.0, %v3719
    %v3721 = vpop.f32.mrf.mxu0
    %3722 = vdwg.mxu0
    %v3724 = vsel %vm994, %v3646, 0
    %v3727 = vsel %vm994, %v3647, 0
    %3729 = vmatprep.subr.mxu0 0.0
    %3730 = vmatpush1.msra.mxu0 0.0
    %3731 = vmatprep.subr.mxu0 0.0
    %3732 = vmatpush1.msra.mxu0 0.0
    %3733 = vmatprep.subr.mxu0 0.0
    %3734 = vmatpush1.msra.mxu0 0.0
    %3735 = vmatprep.subr.mxu0 0.0
    %3736 = vmatpush1.msra.mxu0 0.0
    %3737 = vmatprep.subr.mxu0 0.0
    %3738 = vmatpush1.msra.mxu0 0.0
    %3739 = vmatprep.subr.mxu0 0.0
    %3740 = vmatpush1.msra.mxu0 0.0
    %3741 = vmatprep.subr.mxu0 0.0
    %3742 = vmatpush1.msra.mxu0 0.0
    %3743 = vmatprep.subr.mxu0 0.0
    %3744 = vmatpush1.msra.mxu0 0.0
    %3745 = vmatprep.subr.mxu0 0.0
    %3746 = vmatpush1.msra.mxu0 0.0
    %3747 = vmatprep.subr.mxu0 0.0
    %3748 = vmatpush1.msra.mxu0 0.0
    %3749 = vmatprep.subr.mxu0 0.0
    %3750 = vmatpush1.msra.mxu0 0.0
    %3751 = vmatprep.subr.mxu0 0.0
    %3752 = vmatpush1.msra.mxu0 0.0
    %3753 = vmatprep.subr.mxu0 0.0
    %3754 = vmatpush1.msra.mxu0 %v652
    %3755 = vmatprep.subr.mxu0 0.0
    %3756 = vmatpush1.msra.mxu0 %v651
    %3757 = vmatprep.subr.mxu0 0.0
    %3758 = vmatpush1.msra.mxu0 %v650
    %3759 = vmatprep.subr.mxu0 0.0
    %3760 = vmatpush1.msra.mxu0 %v649
    %3761 = vmatprep.subr.mxu0 0.0
    %3762 = vmatpush2.msra.mxu0 0.0
    %3763 = vmatprep.subr.mxu0 0.0
    %3764 = vmatpush2.msra.mxu0 0.0
    %3765 = vmatprep.subr.mxu0 0.0
    %3766 = vmatpush2.msra.mxu0 0.0
    %3767 = vmatprep.subr.mxu0 0.0
    %3768 = vmatpush2.msra.mxu0 0.0
    %3769 = vmatprep.subr.mxu0 0.0
    %3770 = vmatpush2.msra.mxu0 0.0
    %3771 = vmatprep.subr.mxu0 0.0
    %3772 = vmatpush2.msra.mxu0 0.0
    %3773 = vmatprep.subr.mxu0 0.0
    %3774 = vmatpush2.msra.mxu0 0.0
    %3775 = vmatprep.subr.mxu0 0.0
    %3776 = vmatpush2.msra.mxu0 0.0
    %3777 = vmatprep.subr.mxu0 0.0
    %3778 = vmatpush2.msra.mxu0 0.0
    %3779 = vmatprep.subr.mxu0 0.0
    %3780 = vmatpush2.msra.mxu0 0.0
    %3781 = vmatprep.subr.mxu0 0.0
    %3782 = vmatpush2.msra.mxu0 0.0
    %3783 = vmatprep.subr.mxu0 0.0
    %3784 = vmatpush2.msra.mxu0 0.0
    %3785 = vmatprep.subr.mxu0 0.0
    %3786 = vmatpush2.msra.mxu0 0.0
    %3787 = vmatprep.subr.mxu0 0.0
    %3788 = vmatpush2.msra.mxu0 0.0
    %3789 = vmatprep.subr.mxu0 0.0
    %3790 = vmatpush2.msra.mxu0 0.0
    %3791 = vmatprep.subr.mxu0 0.0
    %3792 = vmatpush2.msra.mxu0 0.0
    %3793 = vmatprep.mubr.f32.mxu0 0.0
    %3794 = vmatmul.mubr.f32.gmra.mxu0 %v3724
    %v3795 = vpop.f32.mrf.mxu0
    %v3796 = vadd.f32 0.0, %v3795
    %v3797 = vpop.f32.mrf.mxu0
    %3798 = vmatprep.mubr.f32.mxu0 0.0
    %3799 = vmatmul.mubr.f32.gmra.mxu0 %v3727
    %v3800 = vpop.f32.mrf.mxu0
    %v3801 = vadd.f32 0.0, %v3800
    %v3802 = vpop.f32.mrf.mxu0
    %3803 = vdwg.mxu0
    %v3805 = vsel %vm994, %v2336, 0
    %v3808 = vsel %vm994, %v2337, 0
    %3810 = vmatprep.subr.mxu0 0.0
    %3811 = vmatpush1.msra.mxu0 0.0
    %3812 = vmatprep.subr.mxu0 0.0
    %3813 = vmatpush1.msra.mxu0 0.0
    %3814 = vmatprep.subr.mxu0 0.0
    %3815 = vmatpush1.msra.mxu0 0.0
    %3816 = vmatprep.subr.mxu0 0.0
    %3817 = vmatpush1.msra.mxu0 0.0
    %3818 = vmatprep.subr.mxu0 0.0
    %3819 = vmatpush1.msra.mxu0 0.0
    %3820 = vmatprep.subr.mxu0 0.0
    %3821 = vmatpush1.msra.mxu0 0.0
    %3822 = vmatprep.subr.mxu0 0.0
    %3823 = vmatpush1.msra.mxu0 0.0
    %3824 = vmatprep.subr.mxu0 0.0
    %3825 = vmatpush1.msra.mxu0 0.0
    %3826 = vmatprep.subr.mxu0 0.0
    %3827 = vmatpush1.msra.mxu0 0.0
    %3828 = vmatprep.subr.mxu0 0.0
    %3829 = vmatpush1.msra.mxu0 0.0
    %3830 = vmatprep.subr.mxu0 0.0
    %3831 = vmatpush1.msra.mxu0 0.0
    %3832 = vmatprep.subr.mxu0 0.0
    %3833 = vmatpush1.msra.mxu0 0.0
    %3834 = vmatprep.subr.mxu0 0.0
    %3835 = vmatpush1.msra.mxu0 %v648
    %3836 = vmatprep.subr.mxu0 0.0
    %3837 = vmatpush1.msra.mxu0 %v647
    %3838 = vmatprep.subr.mxu0 0.0
    %3839 = vmatpush1.msra.mxu0 %v646
    %3840 = vmatprep.subr.mxu0 0.0
    %3841 = vmatpush1.msra.mxu0 %v645
    %3842 = vmatprep.subr.mxu0 0.0
    %3843 = vmatpush2.msra.mxu0 0.0
    %3844 = vmatprep.subr.mxu0 0.0
    %3845 = vmatpush2.msra.mxu0 0.0
    %3846 = vmatprep.subr.mxu0 0.0
    %3847 = vmatpush2.msra.mxu0 0.0
    %3848 = vmatprep.subr.mxu0 0.0
    %3849 = vmatpush2.msra.mxu0 0.0
    %3850 = vmatprep.subr.mxu0 0.0
    %3851 = vmatpush2.msra.mxu0 0.0
    %3852 = vmatprep.subr.mxu0 0.0
    %3853 = vmatpush2.msra.mxu0 0.0
    %3854 = vmatprep.subr.mxu0 0.0
    %3855 = vmatpush2.msra.mxu0 0.0
    %3856 = vmatprep.subr.mxu0 0.0
    %3857 = vmatpush2.msra.mxu0 0.0
    %3858 = vmatprep.subr.mxu0 0.0
    %3859 = vmatpush2.msra.mxu0 0.0
    %3860 = vmatprep.subr.mxu0 0.0
    %3861 = vmatpush2.msra.mxu0 0.0
    %3862 = vmatprep.subr.mxu0 0.0
    %3863 = vmatpush2.msra.mxu0 0.0
    %3864 = vmatprep.subr.mxu0 0.0
    %3865 = vmatpush2.msra.mxu0 0.0
    %3866 = vmatprep.subr.mxu0 0.0
    %3867 = vmatpush2.msra.mxu0 0.0
    %3868 = vmatprep.subr.mxu0 0.0
    %3869 = vmatpush2.msra.mxu0 0.0
    %3870 = vmatprep.subr.mxu0 0.0
    %3871 = vmatpush2.msra.mxu0 0.0
    %3872 = vmatprep.subr.mxu0 0.0
    %3873 = vmatpush2.msra.mxu0 0.0
    %3874 = vmatprep.mubr.f32.mxu0 0.0
    %3875 = vmatmul.mubr.f32.gmra.mxu0 %v3805
    %v3876 = vpop.f32.mrf.mxu0
    %v3877 = vadd.f32 %v3796, %v3876
    %v3878 = vpop.f32.mrf.mxu0
    %3879 = vmatprep.mubr.f32.mxu0 0.0
    %3880 = vmatmul.mubr.f32.gmra.mxu0 %v3808
    %v3881 = vpop.f32.mrf.mxu0
    %v3882 = vadd.f32 %v3801, %v3881
    %v3883 = vpop.f32.mrf.mxu0
    %3884 = vdwg.mxu0
    %v3886 = vsel %vm994, %v3715, 0
    %v3889 = vsel %vm994, %v3720, 0
    %3891 = vmatprep.subr.mxu0 0.0
    %3892 = vmatpush1.msra.mxu0 0.0
    %3893 = vmatprep.subr.mxu0 0.0
    %3894 = vmatpush1.msra.mxu0 0.0
    %3895 = vmatprep.subr.mxu0 0.0
    %3896 = vmatpush1.msra.mxu0 0.0
    %3897 = vmatprep.subr.mxu0 0.0
    %3898 = vmatpush1.msra.mxu0 0.0
    %3899 = vmatprep.subr.mxu0 0.0
    %3900 = vmatpush1.msra.mxu0 0.0
    %3901 = vmatprep.subr.mxu0 0.0
    %3902 = vmatpush1.msra.mxu0 0.0
    %3903 = vmatprep.subr.mxu0 0.0
    %3904 = vmatpush1.msra.mxu0 0.0
    %3905 = vmatprep.subr.mxu0 0.0
    %3906 = vmatpush1.msra.mxu0 0.0
    %3907 = vmatprep.subr.mxu0 0.0
    %3908 = vmatpush1.msra.mxu0 0.0
    %3909 = vmatprep.subr.mxu0 0.0
    %3910 = vmatpush1.msra.mxu0 0.0
    %3911 = vmatprep.subr.mxu0 0.0
    %3912 = vmatpush1.msra.mxu0 0.0
    %3913 = vmatprep.subr.mxu0 0.0
    %3914 = vmatpush1.msra.mxu0 0.0
    %3915 = vmatprep.subr.mxu0 0.0
    %3916 = vmatpush1.msra.mxu0 %v656
    %3917 = vmatprep.subr.mxu0 0.0
    %3918 = vmatpush1.msra.mxu0 %v655
    %3919 = vmatprep.subr.mxu0 0.0
    %3920 = vmatpush1.msra.mxu0 %v654
    %3921 = vmatprep.subr.mxu0 0.0
    %3922 = vmatpush1.msra.mxu0 %v653
    %3923 = vmatprep.subr.mxu0 0.0
    %3924 = vmatpush2.msra.mxu0 0.0
    %3925 = vmatprep.subr.mxu0 0.0
    %3926 = vmatpush2.msra.mxu0 0.0
    %3927 = vmatprep.subr.mxu0 0.0
    %3928 = vmatpush2.msra.mxu0 0.0
    %3929 = vmatprep.subr.mxu0 0.0
    %3930 = vmatpush2.msra.mxu0 0.0
    %3931 = vmatprep.subr.mxu0 0.0
    %3932 = vmatpush2.msra.mxu0 0.0
    %3933 = vmatprep.subr.mxu0 0.0
    %3934 = vmatpush2.msra.mxu0 0.0
    %3935 = vmatprep.subr.mxu0 0.0
    %3936 = vmatpush2.msra.mxu0 0.0
    %3937 = vmatprep.subr.mxu0 0.0
    %3938 = vmatpush2.msra.mxu0 0.0
    %3939 = vmatprep.subr.mxu0 0.0
    %3940 = vmatpush2.msra.mxu0 0.0
    %3941 = vmatprep.subr.mxu0 0.0
    %3942 = vmatpush2.msra.mxu0 0.0
    %3943 = vmatprep.subr.mxu0 0.0
    %3944 = vmatpush2.msra.mxu0 0.0
    %3945 = vmatprep.subr.mxu0 0.0
    %3946 = vmatpush2.msra.mxu0 0.0
    %3947 = vmatprep.subr.mxu0 0.0
    %3948 = vmatpush2.msra.mxu0 0.0
    %3949 = vmatprep.subr.mxu0 0.0
    %3950 = vmatpush2.msra.mxu0 0.0
    %3951 = vmatprep.subr.mxu0 0.0
    %3952 = vmatpush2.msra.mxu0 0.0
    %3953 = vmatprep.subr.mxu0 0.0
    %3954 = vmatpush2.msra.mxu0 0.0
    %3955 = vmatprep.mubr.f32.mxu0 0.0
    %3956 = vmatmul.mubr.f32.gmra.mxu0 %v3886
    %v3957 = vpop.f32.mrf.mxu0
    %v3958 = vadd.f32 0.0, %v3957
    %v3959 = vpop.f32.mrf.mxu0
    %3960 = vmatprep.mubr.f32.mxu0 0.0
    %3961 = vmatmul.mubr.f32.gmra.mxu0 %v3889
    %v3962 = vpop.f32.mrf.mxu0
    %v3963 = vadd.f32 0.0, %v3962
    %v3964 = vpop.f32.mrf.mxu0
    %3965 = vdwg.mxu0
    %v3966 = vadd.f32 %v3877, %v3958
    %v3967 = vadd.f32 %v3882, %v3963
    %v3969 = vlaneseq
    %v3970 = vshrl.u32 %v3969, 7
    %v3971 = vsub.s32 0, %v3970
    %v3972 = vrot.slane %v657, %v3971
    %v3974 = vadd.f32 %v3966, %v3972
    %v3975 = vadd.f32 %v3967, %v3972
    %v3976 = vmax.f32 %v3974, 0.0
    %v3977 = vmax.f32 %v3975, 0.0
    %v3979 = vlaneseq
    %v3980 = vshrl.u32 %v3979, 7
    %v3981 = vsub.s32 0, %v3980
    %v3982 = vrot.slane %v666, %v3981
    %v3985 = vsel %vm1725, %v3976, 0
    %v3988 = vsel %vm1725, %v3977, 0
    %3990 = vmatprep.subr.mxu0 0.0
    %3991 = vmatpush1.msra.mxu0 0.0
    %3992 = vmatprep.subr.mxu0 0.0
    %3993 = vmatpush1.msra.mxu0 0.0
    %3994 = vmatprep.subr.mxu0 0.0
    %3995 = vmatpush1.msra.mxu0 0.0
    %3996 = vmatprep.subr.mxu0 0.0
    %3997 = vmatpush1.msra.mxu0 0.0
    %3998 = vmatprep.subr.mxu0 0.0
    %3999 = vmatpush1.msra.mxu0 0.0
    %4000 = vmatprep.subr.mxu0 0.0
    %4001 = vmatpush1.msra.mxu0 0.0
    %4002 = vmatprep.subr.mxu0 0.0
    %4003 = vmatpush1.msra.mxu0 0.0
    %4004 = vmatprep.subr.mxu0 0.0
    %4005 = vmatpush1.msra.mxu0 0.0
    %4006 = vmatprep.subr.mxu0 0.0
    %4007 = vmatpush1.msra.mxu0 %v665
    %4008 = vmatprep.subr.mxu0 0.0
    %4009 = vmatpush1.msra.mxu0 %v664
    %4010 = vmatprep.subr.mxu0 0.0
    %4011 = vmatpush1.msra.mxu0 %v663
    %4012 = vmatprep.subr.mxu0 0.0
    %4013 = vmatpush1.msra.mxu0 %v662
    %4014 = vmatprep.subr.mxu0 0.0
    %4015 = vmatpush1.msra.mxu0 %v661
    %4016 = vmatprep.subr.mxu0 0.0
    %4017 = vmatpush1.msra.mxu0 %v660
    %4018 = vmatprep.subr.mxu0 0.0
    %4019 = vmatpush1.msra.mxu0 %v659
    %4020 = vmatprep.subr.mxu0 0.0
    %4021 = vmatpush1.msra.mxu0 %v658
    %4022 = vmatprep.subr.mxu0 0.0
    %4023 = vmatpush2.msra.mxu0 0.0
    %4024 = vmatprep.subr.mxu0 0.0
    %4025 = vmatpush2.msra.mxu0 0.0
    %4026 = vmatprep.subr.mxu0 0.0
    %4027 = vmatpush2.msra.mxu0 0.0
    %4028 = vmatprep.subr.mxu0 0.0
    %4029 = vmatpush2.msra.mxu0 0.0
    %4030 = vmatprep.subr.mxu0 0.0
    %4031 = vmatpush2.msra.mxu0 0.0
    %4032 = vmatprep.subr.mxu0 0.0
    %4033 = vmatpush2.msra.mxu0 0.0
    %4034 = vmatprep.subr.mxu0 0.0
    %4035 = vmatpush2.msra.mxu0 0.0
    %4036 = vmatprep.subr.mxu0 0.0
    %4037 = vmatpush2.msra.mxu0 0.0
    %4038 = vmatprep.subr.mxu0 0.0
    %4039 = vmatpush2.msra.mxu0 0.0
    %4040 = vmatprep.subr.mxu0 0.0
    %4041 = vmatpush2.msra.mxu0 0.0
    %4042 = vmatprep.subr.mxu0 0.0
    %4043 = vmatpush2.msra.mxu0 0.0
    %4044 = vmatprep.subr.mxu0 0.0
    %4045 = vmatpush2.msra.mxu0 0.0
    %4046 = vmatprep.subr.mxu0 0.0
    %4047 = vmatpush2.msra.mxu0 0.0
    %4048 = vmatprep.subr.mxu0 0.0
    %4049 = vmatpush2.msra.mxu0 0.0
    %4050 = vmatprep.subr.mxu0 0.0
    %4051 = vmatpush2.msra.mxu0 0.0
    %4052 = vmatprep.subr.mxu0 0.0
    %4053 = vmatpush2.msra.mxu0 0.0
    %4054 = vmatprep.mubr.f32.mxu0 0.0
    %4055 = vmatmul.mubr.f32.gmra.mxu0 %v3985
    %v4056 = vpop.f32.mrf.mxu0
    %v4057 = vadd.f32 %v3982, %v4056
    %v4058 = vpop.f32.mrf.mxu0
    %4059 = vmatprep.mubr.f32.mxu0 0.0
    %4060 = vmatmul.mubr.f32.gmra.mxu0 %v3988
    %v4061 = vpop.f32.mrf.mxu0
    %v4062 = vadd.f32 %v3982, %v4061
    %v4063 = vpop.f32.mrf.mxu0
    %4064 = vdwg.mxu0
    %v4065 = vmax.f32 %v4057, 0.0
    %v4066 = vmax.f32 %v4062, 0.0
    %4067 = vmatprep.subr.mxu0 0.0
    %4068 = vmatpush1.msra.mxu0 0.0
    %4069 = vmatprep.subr.mxu0 0.0
    %4070 = vmatpush1.msra.mxu0 0.0
    %4071 = vmatprep.subr.mxu0 0.0
    %4072 = vmatpush1.msra.mxu0 0.0
    %4073 = vmatprep.subr.mxu0 0.0
    %4074 = vmatpush1.msra.mxu0 0.0
    %4075 = vmatprep.subr.mxu0 0.0
    %4076 = vmatpush1.msra.mxu0 0.0
    %4077 = vmatprep.subr.mxu0 0.0
    %4078 = vmatpush1.msra.mxu0 0.0
    %4079 = vmatprep.subr.mxu0 0.0
    %4080 = vmatpush1.msra.mxu0 0.0
    %4081 = vmatprep.subr.mxu0 0.0
    %4082 = vmatpush1.msra.mxu0 0.0
    %4083 = vmatprep.subr.mxu0 0.0
    %4084 = vmatpush1.msra.mxu0 0.0
    %4085 = vmatprep.subr.mxu0 0.0
    %4086 = vmatpush1.msra.mxu0 0.0
    %4087 = vmatprep.subr.mxu0 0.0
    %4088 = vmatpush1.msra.mxu0 0.0
    %4089 = vmatprep.subr.mxu0 0.0
    %4090 = vmatpush1.msra.mxu0 0.0
    %4091 = vmatprep.subr.mxu0 0.0
    %4092 = vmatpush1.msra.mxu0 0.0
    %4093 = vmatprep.subr.mxu0 0.0
    %4094 = vmatpush1.msra.mxu0 0.0
    %4095 = vmatprep.subr.mxu0 0.0
    %4096 = vmatpush1.msra.mxu0 %v4066
    %4097 = vmatprep.subr.mxu0 0.0
    %4098 = vmatpush1.msra.mxu0 %v4065
    %4099 = vmatprep.subr.mxu0 0.0
    %4100 = vmatpush2.msra.mxu0 0.0
    %4101 = vmatprep.subr.mxu0 0.0
    %4102 = vmatpush2.msra.mxu0 0.0
    %4103 = vmatprep.subr.mxu0 0.0
    %4104 = vmatpush2.msra.mxu0 0.0
    %4105 = vmatprep.subr.mxu0 0.0
    %4106 = vmatpush2.msra.mxu0 0.0
    %4107 = vmatprep.subr.mxu0 0.0
    %4108 = vmatpush2.msra.mxu0 0.0
    %4109 = vmatprep.subr.mxu0 0.0
    %4110 = vmatpush2.msra.mxu0 0.0
    %4111 = vmatprep.subr.mxu0 0.0
    %4112 = vmatpush2.msra.mxu0 0.0
    %4113 = vmatprep.subr.mxu0 0.0
    %4114 = vmatpush2.msra.mxu0 0.0
    %4115 = vmatprep.subr.mxu0 0.0
    %4116 = vmatpush2.msra.mxu0 0.0
    %4117 = vmatprep.subr.mxu0 0.0
    %4118 = vmatpush2.msra.mxu0 0.0
    %4119 = vmatprep.subr.mxu0 0.0
    %4120 = vmatpush2.msra.mxu0 0.0
    %4121 = vmatprep.subr.mxu0 0.0
    %4122 = vmatpush2.msra.mxu0 0.0
    %4123 = vmatprep.subr.mxu0 0.0
    %4124 = vmatpush2.msra.mxu0 0.0
    %4125 = vmatprep.subr.mxu0 0.0
    %4126 = vmatpush2.msra.mxu0 0.0
    %4127 = vmatprep.subr.mxu0 0.0
    %4128 = vmatpush2.msra.mxu0 0.0
    %4129 = vmatprep.subr.mxu0 0.0
    %4130 = vmatpush2.msra.mxu0 0.0
    %4131 = vmatprep.mubr.f32.mxu0 0.0
    %4132 = vmatmul.mubr.f32.gmra.mxu0 %v2339
    %v4133 = vpop.f32.mrf.mxu0
    %v4134 = vadd.f32 0.0, %v4133
    %v4135 = vpop.f32.mrf.mxu0
    %4136 = vdwg.mxu0
    %v4137 = vmul.f32 %v4134, %v1013
    %4138 = vmatprep.subr.mxu0 0.0
    %4139 = vmatpush1.msra.mxu0 0.0
    %4140 = vmatprep.subr.mxu0 0.0
    %4141 = vmatpush1.msra.mxu0 0.0
    %4142 = vmatprep.subr.mxu0 0.0
    %4143 = vmatpush1.msra.mxu0 0.0
    %4144 = vmatprep.subr.mxu0 0.0
    %4145 = vmatpush1.msra.mxu0 0.0
    %4146 = vmatprep.subr.mxu0 0.0
    %4147 = vmatpush1.msra.mxu0 0.0
    %4148 = vmatprep.subr.mxu0 0.0
    %4149 = vmatpush1.msra.mxu0 0.0
    %4150 = vmatprep.subr.mxu0 0.0
    %4151 = vmatpush1.msra.mxu0 0.0
    %4152 = vmatprep.subr.mxu0 0.0
    %4153 = vmatpush1.msra.mxu0 0.0
    %4154 = vmatprep.subr.mxu0 0.0
    %4155 = vmatpush1.msra.mxu0 0.0
    %4156 = vmatprep.subr.mxu0 0.0
    %4157 = vmatpush1.msra.mxu0 0.0
    %4158 = vmatprep.subr.mxu0 0.0
    %4159 = vmatpush1.msra.mxu0 0.0
    %4160 = vmatprep.subr.mxu0 0.0
    %4161 = vmatpush1.msra.mxu0 0.0
    %4162 = vmatprep.subr.mxu0 0.0
    %4163 = vmatpush1.msra.mxu0 %v3570
    %4164 = vmatprep.subr.mxu0 0.0
    %4165 = vmatpush1.msra.mxu0 %v3569
    %4166 = vmatprep.subr.mxu0 0.0
    %4167 = vmatpush1.msra.mxu0 %v3568
    %4168 = vmatprep.subr.mxu0 0.0
    %4169 = vmatpush1.msra.mxu0 %v3567
    %4170 = vmatprep.subr.mxu0 0.0
    %4171 = vmatpush2.msra.mxu0 0.0
    %4172 = vmatprep.subr.mxu0 0.0
    %4173 = vmatpush2.msra.mxu0 0.0
    %4174 = vmatprep.subr.mxu0 0.0
    %4175 = vmatpush2.msra.mxu0 0.0
    %4176 = vmatprep.subr.mxu0 0.0
    %4177 = vmatpush2.msra.mxu0 0.0
    %4178 = vmatprep.subr.mxu0 0.0
    %4179 = vmatpush2.msra.mxu0 0.0
    %4180 = vmatprep.subr.mxu0 0.0
    %4181 = vmatpush2.msra.mxu0 0.0
    %4182 = vmatprep.subr.mxu0 0.0
    %4183 = vmatpush2.msra.mxu0 0.0
    %4184 = vmatprep.subr.mxu0 0.0
    %4185 = vmatpush2.msra.mxu0 0.0
    %4186 = vmatprep.subr.mxu0 0.0
    %4187 = vmatpush2.msra.mxu0 0.0
    %4188 = vmatprep.subr.mxu0 0.0
    %4189 = vmatpush2.msra.mxu0 0.0
    %4190 = vmatprep.subr.mxu0 0.0
    %4191 = vmatpush2.msra.mxu0 0.0
    %4192 = vmatprep.subr.mxu0 0.0
    %4193 = vmatpush2.msra.mxu0 0.0
    %4194 = vmatprep.subr.mxu0 0.0
    %4195 = vmatpush2.msra.mxu0 0.0
    %4196 = vmatprep.subr.mxu0 0.0
    %4197 = vmatpush2.msra.mxu0 0.0
    %4198 = vmatprep.subr.mxu0 0.0
    %4199 = vmatpush2.msra.mxu0 0.0
    %4200 = vmatprep.subr.mxu0 0.0
    %4201 = vmatpush2.msra.mxu0 0.0
    %4202 = vmatprep.mubr.f32.mxu0 0.0
    %4203 = vmatmul.mubr.f32.gmra.mxu0 %v2413
    %v4204 = vpop.f32.mrf.mxu0
    %v4205 = vadd.f32 0.0, %v4204
    %v4206 = vpop.f32.mrf.mxu0
    %4207 = vdwg.mxu0
    %v4208 = vmul.f32 %v4205, %v1020
    %v4210 = vsel %vm994, %v4208, 0
    %4212 = vmatprep.subr.mxu0 0.0
    %4213 = vmatpush1.msra.mxu0 0.0
    %4214 = vmatprep.subr.mxu0 0.0
    %4215 = vmatpush1.msra.mxu0 0.0
    %4216 = vmatprep.subr.mxu0 0.0
    %4217 = vmatpush1.msra.mxu0 0.0
    %4218 = vmatprep.subr.mxu0 0.0
    %4219 = vmatpush1.msra.mxu0 0.0
    %4220 = vmatprep.subr.mxu0 0.0
    %4221 = vmatpush1.msra.mxu0 0.0
    %4222 = vmatprep.subr.mxu0 0.0
    %4223 = vmatpush1.msra.mxu0 0.0
    %4224 = vmatprep.subr.mxu0 0.0
    %4225 = vmatpush1.msra.mxu0 0.0
    %4226 = vmatprep.subr.mxu0 0.0
    %4227 = vmatpush1.msra.mxu0 0.0
    %4228 = vmatprep.subr.mxu0 0.0
    %4229 = vmatpush1.msra.mxu0 0.0
    %4230 = vmatprep.subr.mxu0 0.0
    %4231 = vmatpush1.msra.mxu0 0.0
    %4232 = vmatprep.subr.mxu0 0.0
    %4233 = vmatpush1.msra.mxu0 0.0
    %4234 = vmatprep.subr.mxu0 0.0
    %4235 = vmatpush1.msra.mxu0 0.0
    %4236 = vmatprep.subr.mxu0 0.0
    %4237 = vmatpush1.msra.mxu0 %v674
    %4238 = vmatprep.subr.mxu0 0.0
    %4239 = vmatpush1.msra.mxu0 %v673
    %4240 = vmatprep.subr.mxu0 0.0
    %4241 = vmatpush1.msra.mxu0 %v672
    %4242 = vmatprep.subr.mxu0 0.0
    %4243 = vmatpush1.msra.mxu0 %v671
    %4244 = vmatprep.subr.mxu0 0.0
    %4245 = vmatpush2.msra.mxu0 0.0
    %4246 = vmatprep.subr.mxu0 0.0
    %4247 = vmatpush2.msra.mxu0 0.0
    %4248 = vmatprep.subr.mxu0 0.0
    %4249 = vmatpush2.msra.mxu0 0.0
    %4250 = vmatprep.subr.mxu0 0.0
    %4251 = vmatpush2.msra.mxu0 0.0
    %4252 = vmatprep.subr.mxu0 0.0
    %4253 = vmatpush2.msra.mxu0 0.0
    %4254 = vmatprep.subr.mxu0 0.0
    %4255 = vmatpush2.msra.mxu0 0.0
    %4256 = vmatprep.subr.mxu0 0.0
    %4257 = vmatpush2.msra.mxu0 0.0
    %4258 = vmatprep.subr.mxu0 0.0
    %4259 = vmatpush2.msra.mxu0 0.0
    %4260 = vmatprep.subr.mxu0 0.0
    %4261 = vmatpush2.msra.mxu0 0.0
    %4262 = vmatprep.subr.mxu0 0.0
    %4263 = vmatpush2.msra.mxu0 0.0
    %4264 = vmatprep.subr.mxu0 0.0
    %4265 = vmatpush2.msra.mxu0 0.0
    %4266 = vmatprep.subr.mxu0 0.0
    %4267 = vmatpush2.msra.mxu0 0.0
    %4268 = vmatprep.subr.mxu0 0.0
    %4269 = vmatpush2.msra.mxu0 0.0
    %4270 = vmatprep.subr.mxu0 0.0
    %4271 = vmatpush2.msra.mxu0 0.0
    %4272 = vmatprep.subr.mxu0 0.0
    %4273 = vmatpush2.msra.mxu0 0.0
    %4274 = vmatprep.subr.mxu0 0.0
    %4275 = vmatpush2.msra.mxu0 0.0
    %4276 = vmatprep.mubr.f32.mxu0 0.0
    %4277 = vmatmul.mubr.f32.gmra.mxu0 %v4210
    %v4278 = vpop.f32.mrf.mxu0
    %v4279 = vadd.f32 0.0, %v4278
    %v4280 = vpop.f32.mrf.mxu0
    %4281 = vdwg.mxu0
    %v4283 = vsel %vm994, %v4137, 0
    %4285 = vmatprep.subr.mxu0 0.0
    %4286 = vmatpush1.msra.mxu0 0.0
    %4287 = vmatprep.subr.mxu0 0.0
    %4288 = vmatpush1.msra.mxu0 0.0
    %4289 = vmatprep.subr.mxu0 0.0
    %4290 = vmatpush1.msra.mxu0 0.0
    %4291 = vmatprep.subr.mxu0 0.0
    %4292 = vmatpush1.msra.mxu0 0.0
    %4293 = vmatprep.subr.mxu0 0.0
    %4294 = vmatpush1.msra.mxu0 0.0
    %4295 = vmatprep.subr.mxu0 0.0
    %4296 = vmatpush1.msra.mxu0 0.0
    %4297 = vmatprep.subr.mxu0 0.0
    %4298 = vmatpush1.msra.mxu0 0.0
    %4299 = vmatprep.subr.mxu0 0.0
    %4300 = vmatpush1.msra.mxu0 0.0
    %4301 = vmatprep.subr.mxu0 0.0
    %4302 = vmatpush1.msra.mxu0 0.0
    %4303 = vmatprep.subr.mxu0 0.0
    %4304 = vmatpush1.msra.mxu0 0.0
    %4305 = vmatprep.subr.mxu0 0.0
    %4306 = vmatpush1.msra.mxu0 0.0
    %4307 = vmatprep.subr.mxu0 0.0
    %4308 = vmatpush1.msra.mxu0 0.0
    %4309 = vmatprep.subr.mxu0 0.0
    %4310 = vmatpush1.msra.mxu0 %v670
    %4311 = vmatprep.subr.mxu0 0.0
    %4312 = vmatpush1.msra.mxu0 %v669
    %4313 = vmatprep.subr.mxu0 0.0
    %4314 = vmatpush1.msra.mxu0 %v668
    %4315 = vmatprep.subr.mxu0 0.0
    %4316 = vmatpush1.msra.mxu0 %v667
    %4317 = vmatprep.subr.mxu0 0.0
    %4318 = vmatpush2.msra.mxu0 0.0
    %4319 = vmatprep.subr.mxu0 0.0
    %4320 = vmatpush2.msra.mxu0 0.0
    %4321 = vmatprep.subr.mxu0 0.0
    %4322 = vmatpush2.msra.mxu0 0.0
    %4323 = vmatprep.subr.mxu0 0.0
    %4324 = vmatpush2.msra.mxu0 0.0
    %4325 = vmatprep.subr.mxu0 0.0
    %4326 = vmatpush2.msra.mxu0 0.0
    %4327 = vmatprep.subr.mxu0 0.0
    %4328 = vmatpush2.msra.mxu0 0.0
    %4329 = vmatprep.subr.mxu0 0.0
    %4330 = vmatpush2.msra.mxu0 0.0
    %4331 = vmatprep.subr.mxu0 0.0
    %4332 = vmatpush2.msra.mxu0 0.0
    %4333 = vmatprep.subr.mxu0 0.0
    %4334 = vmatpush2.msra.mxu0 0.0
    %4335 = vmatprep.subr.mxu0 0.0
    %4336 = vmatpush2.msra.mxu0 0.0
    %4337 = vmatprep.subr.mxu0 0.0
    %4338 = vmatpush2.msra.mxu0 0.0
    %4339 = vmatprep.subr.mxu0 0.0
    %4340 = vmatpush2.msra.mxu0 0.0
    %4341 = vmatprep.subr.mxu0 0.0
    %4342 = vmatpush2.msra.mxu0 0.0
    %4343 = vmatprep.subr.mxu0 0.0
    %4344 = vmatpush2.msra.mxu0 0.0
    %4345 = vmatprep.subr.mxu0 0.0
    %4346 = vmatpush2.msra.mxu0 0.0
    %4347 = vmatprep.subr.mxu0 0.0
    %4348 = vmatpush2.msra.mxu0 0.0
    %4349 = vmatprep.mubr.f32.mxu0 0.0
    %4350 = vmatmul.mubr.f32.gmra.mxu0 %v4283
    %v4351 = vpop.f32.mrf.mxu0
    %v4352 = vadd.f32 %v4279, %v4351
    %v4353 = vpop.f32.mrf.mxu0
    %4354 = vdwg.mxu0
    %v4355 = vsel %vm994, %v2795, 0
    %4357 = vmatprep.subr.mxu0 0.0
    %4358 = vmatpush1.msra.mxu0 0.0
    %4359 = vmatprep.subr.mxu0 0.0
    %4360 = vmatpush1.msra.mxu0 0.0
    %4361 = vmatprep.subr.mxu0 0.0
    %4362 = vmatpush1.msra.mxu0 0.0
    %4363 = vmatprep.subr.mxu0 0.0
    %4364 = vmatpush1.msra.mxu0 0.0
    %4365 = vmatprep.subr.mxu0 0.0
    %4366 = vmatpush1.msra.mxu0 0.0
    %4367 = vmatprep.subr.mxu0 0.0
    %4368 = vmatpush1.msra.mxu0 0.0
    %4369 = vmatprep.subr.mxu0 0.0
    %4370 = vmatpush1.msra.mxu0 0.0
    %4371 = vmatprep.subr.mxu0 0.0
    %4372 = vmatpush1.msra.mxu0 0.0
    %4373 = vmatprep.subr.mxu0 0.0
    %4374 = vmatpush1.msra.mxu0 0.0
    %4375 = vmatprep.subr.mxu0 0.0
    %4376 = vmatpush1.msra.mxu0 0.0
    %4377 = vmatprep.subr.mxu0 0.0
    %4378 = vmatpush1.msra.mxu0 0.0
    %4379 = vmatprep.subr.mxu0 0.0
    %4380 = vmatpush1.msra.mxu0 0.0
    %4381 = vmatprep.subr.mxu0 0.0
    %4382 = vmatpush1.msra.mxu0 %v678
    %4383 = vmatprep.subr.mxu0 0.0
    %4384 = vmatpush1.msra.mxu0 %v677
    %4385 = vmatprep.subr.mxu0 0.0
    %4386 = vmatpush1.msra.mxu0 %v676
    %4387 = vmatprep.subr.mxu0 0.0
    %4388 = vmatpush1.msra.mxu0 %v675
    %4389 = vmatprep.subr.mxu0 0.0
    %4390 = vmatpush2.msra.mxu0 0.0
    %4391 = vmatprep.subr.mxu0 0.0
    %4392 = vmatpush2.msra.mxu0 0.0
    %4393 = vmatprep.subr.mxu0 0.0
    %4394 = vmatpush2.msra.mxu0 0.0
    %4395 = vmatprep.subr.mxu0 0.0
    %4396 = vmatpush2.msra.mxu0 0.0
    %4397 = vmatprep.subr.mxu0 0.0
    %4398 = vmatpush2.msra.mxu0 0.0
    %4399 = vmatprep.subr.mxu0 0.0
    %4400 = vmatpush2.msra.mxu0 0.0
    %4401 = vmatprep.subr.mxu0 0.0
    %4402 = vmatpush2.msra.mxu0 0.0
    %4403 = vmatprep.subr.mxu0 0.0
    %4404 = vmatpush2.msra.mxu0 0.0
    %4405 = vmatprep.subr.mxu0 0.0
    %4406 = vmatpush2.msra.mxu0 0.0
    %4407 = vmatprep.subr.mxu0 0.0
    %4408 = vmatpush2.msra.mxu0 0.0
    %4409 = vmatprep.subr.mxu0 0.0
    %4410 = vmatpush2.msra.mxu0 0.0
    %4411 = vmatprep.subr.mxu0 0.0
    %4412 = vmatpush2.msra.mxu0 0.0
    %4413 = vmatprep.subr.mxu0 0.0
    %4414 = vmatpush2.msra.mxu0 0.0
    %4415 = vmatprep.subr.mxu0 0.0
    %4416 = vmatpush2.msra.mxu0 0.0
    %4417 = vmatprep.subr.mxu0 0.0
    %4418 = vmatpush2.msra.mxu0 0.0
    %4419 = vmatprep.subr.mxu0 0.0
    %4420 = vmatpush2.msra.mxu0 0.0
    %4421 = vmatprep.mubr.f32.mxu0 0.0
    %4422 = vmatmul.mubr.f32.gmra.mxu0 %v4355
    %v4423 = vpop.f32.mrf.mxu0
    %v4424 = vadd.f32 0.0, %v4423
    %v4425 = vpop.f32.mrf.mxu0
    %4426 = vdwg.mxu0
    %v4427 = vadd.f32 %v4352, %v4424
    %v4429 = vlaneseq
    %v4430 = vshrl.u32 %v4429, 7
    %v4431 = vsub.s32 0, %v4430
    %v4432 = vrot.slane %v679, %v4431
    %v4434 = vadd.f32 %v4427, %v4432
    %v4435 = vmax.f32 %v4434, 0.0
    %v4437 = vlaneseq
    %v4438 = vshrl.u32 %v4437, 7
    %v4439 = vsub.s32 0, %v4438
    %v4440 = vrot.slane %v688, %v4439
    %v4443 = vsel %vm1725, %v4435, 0
    %4445 = vmatprep.subr.mxu0 0.0
    %4446 = vmatpush1.msra.mxu0 0.0
    %4447 = vmatprep.subr.mxu0 0.0
    %4448 = vmatpush1.msra.mxu0 0.0
    %4449 = vmatprep.subr.mxu0 0.0
    %4450 = vmatpush1.msra.mxu0 0.0
    %4451 = vmatprep.subr.mxu0 0.0
    %4452 = vmatpush1.msra.mxu0 0.0
    %4453 = vmatprep.subr.mxu0 0.0
    %4454 = vmatpush1.msra.mxu0 0.0
    %4455 = vmatprep.subr.mxu0 0.0
    %4456 = vmatpush1.msra.mxu0 0.0
    %4457 = vmatprep.subr.mxu0 0.0
    %4458 = vmatpush1.msra.mxu0 0.0
    %4459 = vmatprep.subr.mxu0 0.0
    %4460 = vmatpush1.msra.mxu0 0.0
    %4461 = vmatprep.subr.mxu0 0.0
    %4462 = vmatpush1.msra.mxu0 %v687
    %4463 = vmatprep.subr.mxu0 0.0
    %4464 = vmatpush1.msra.mxu0 %v686
    %4465 = vmatprep.subr.mxu0 0.0
    %4466 = vmatpush1.msra.mxu0 %v685
    %4467 = vmatprep.subr.mxu0 0.0
    %4468 = vmatpush1.msra.mxu0 %v684
    %4469 = vmatprep.subr.mxu0 0.0
    %4470 = vmatpush1.msra.mxu0 %v683
    %4471 = vmatprep.subr.mxu0 0.0
    %4472 = vmatpush1.msra.mxu0 %v682
    %4473 = vmatprep.subr.mxu0 0.0
    %4474 = vmatpush1.msra.mxu0 %v681
    %4475 = vmatprep.subr.mxu0 0.0
    %4476 = vmatpush1.msra.mxu0 %v680
    %4477 = vmatprep.subr.mxu0 0.0
    %4478 = vmatpush2.msra.mxu0 0.0
    %4479 = vmatprep.subr.mxu0 0.0
    %4480 = vmatpush2.msra.mxu0 0.0
    %4481 = vmatprep.subr.mxu0 0.0
    %4482 = vmatpush2.msra.mxu0 0.0
    %4483 = vmatprep.subr.mxu0 0.0
    %4484 = vmatpush2.msra.mxu0 0.0
    %4485 = vmatprep.subr.mxu0 0.0
    %4486 = vmatpush2.msra.mxu0 0.0
    %4487 = vmatprep.subr.mxu0 0.0
    %4488 = vmatpush2.msra.mxu0 0.0
    %4489 = vmatprep.subr.mxu0 0.0
    %4490 = vmatpush2.msra.mxu0 0.0
    %4491 = vmatprep.subr.mxu0 0.0
    %4492 = vmatpush2.msra.mxu0 0.0
    %4493 = vmatprep.subr.mxu0 0.0
    %4494 = vmatpush2.msra.mxu0 0.0
    %4495 = vmatprep.subr.mxu0 0.0
    %4496 = vmatpush2.msra.mxu0 0.0
    %4497 = vmatprep.subr.mxu0 0.0
    %4498 = vmatpush2.msra.mxu0 0.0
    %4499 = vmatprep.subr.mxu0 0.0
    %4500 = vmatpush2.msra.mxu0 0.0
    %4501 = vmatprep.subr.mxu0 0.0
    %4502 = vmatpush2.msra.mxu0 0.0
    %4503 = vmatprep.subr.mxu0 0.0
    %4504 = vmatpush2.msra.mxu0 0.0
    %4505 = vmatprep.subr.mxu0 0.0
    %4506 = vmatpush2.msra.mxu0 0.0
    %4507 = vmatprep.subr.mxu0 0.0
    %4508 = vmatpush2.msra.mxu0 0.0
    %4509 = vmatprep.mubr.f32.mxu0 0.0
    %4510 = vmatmul.mubr.f32.gmra.mxu0 %v4443
    %v4511 = vpop.f32.mrf.mxu0
    %v4512 = vadd.f32 %v4440, %v4511
    %v4513 = vpop.f32.mrf.mxu0
    %4514 = vdwg.mxu0
    %v4515 = vmax.f32 %v4512, 0.0
    %v4517 = vsel %vm994, 0.0, 0
    %4519 = vmatprep.subr.mxu0 0.0
    %4520 = vmatpush1.msra.mxu0 0.0
    %4521 = vmatprep.subr.mxu0 0.0
    %4522 = vmatpush1.msra.mxu0 0.0
    %4523 = vmatprep.subr.mxu0 0.0
    %4524 = vmatpush1.msra.mxu0 0.0
    %4525 = vmatprep.subr.mxu0 0.0
    %4526 = vmatpush1.msra.mxu0 0.0
    %4527 = vmatprep.subr.mxu0 0.0
    %4528 = vmatpush1.msra.mxu0 0.0
    %4529 = vmatprep.subr.mxu0 0.0
    %4530 = vmatpush1.msra.mxu0 0.0
    %4531 = vmatprep.subr.mxu0 0.0
    %4532 = vmatpush1.msra.mxu0 0.0
    %4533 = vmatprep.subr.mxu0 0.0
    %4534 = vmatpush1.msra.mxu0 0.0
    %4535 = vmatprep.subr.mxu0 0.0
    %4536 = vmatpush1.msra.mxu0 0.0
    %4537 = vmatprep.subr.mxu0 0.0
    %4538 = vmatpush1.msra.mxu0 0.0
    %4539 = vmatprep.subr.mxu0 0.0
    %4540 = vmatpush1.msra.mxu0 0.0
    %4541 = vmatprep.subr.mxu0 0.0
    %4542 = vmatpush1.msra.mxu0 0.0
    %4543 = vmatprep.subr.mxu0 0.0
    %4544 = vmatpush1.msra.mxu0 %v696
    %4545 = vmatprep.subr.mxu0 0.0
    %4546 = vmatpush1.msra.mxu0 %v695
    %4547 = vmatprep.subr.mxu0 0.0
    %4548 = vmatpush1.msra.mxu0 %v694
    %4549 = vmatprep.subr.mxu0 0.0
    %4550 = vmatpush1.msra.mxu0 %v693
    %4551 = vmatprep.subr.mxu0 0.0
    %4552 = vmatpush2.msra.mxu0 0.0
    %4553 = vmatprep.subr.mxu0 0.0
    %4554 = vmatpush2.msra.mxu0 0.0
    %4555 = vmatprep.subr.mxu0 0.0
    %4556 = vmatpush2.msra.mxu0 0.0
    %4557 = vmatprep.subr.mxu0 0.0
    %4558 = vmatpush2.msra.mxu0 0.0
    %4559 = vmatprep.subr.mxu0 0.0
    %4560 = vmatpush2.msra.mxu0 0.0
    %4561 = vmatprep.subr.mxu0 0.0
    %4562 = vmatpush2.msra.mxu0 0.0
    %4563 = vmatprep.subr.mxu0 0.0
    %4564 = vmatpush2.msra.mxu0 0.0
    %4565 = vmatprep.subr.mxu0 0.0
    %4566 = vmatpush2.msra.mxu0 0.0
    %4567 = vmatprep.subr.mxu0 0.0
    %4568 = vmatpush2.msra.mxu0 0.0
    %4569 = vmatprep.subr.mxu0 0.0
    %4570 = vmatpush2.msra.mxu0 0.0
    %4571 = vmatprep.subr.mxu0 0.0
    %4572 = vmatpush2.msra.mxu0 0.0
    %4573 = vmatprep.subr.mxu0 0.0
    %4574 = vmatpush2.msra.mxu0 0.0
    %4575 = vmatprep.subr.mxu0 0.0
    %4576 = vmatpush2.msra.mxu0 0.0
    %4577 = vmatprep.subr.mxu0 0.0
    %4578 = vmatpush2.msra.mxu0 0.0
    %4579 = vmatprep.subr.mxu0 0.0
    %4580 = vmatpush2.msra.mxu0 0.0
    %4581 = vmatprep.subr.mxu0 0.0
    %4582 = vmatpush2.msra.mxu0 0.0
    %4583 = vmatprep.mubr.f32.mxu0 0.0
    %4584 = vmatmul.mubr.f32.gmra.mxu0 %v4517
    %v4585 = vpop.f32.mrf.mxu0
    %v4586 = vadd.f32 0.0, %v4585
    %v4587 = vpop.f32.mrf.mxu0
    %4588 = vdwg.mxu0
    %4589 = vmatprep.subr.mxu0 0.0
    %4590 = vmatpush1.msra.mxu0 0.0
    %4591 = vmatprep.subr.mxu0 0.0
    %4592 = vmatpush1.msra.mxu0 0.0
    %4593 = vmatprep.subr.mxu0 0.0
    %4594 = vmatpush1.msra.mxu0 0.0
    %4595 = vmatprep.subr.mxu0 0.0
    %4596 = vmatpush1.msra.mxu0 0.0
    %4597 = vmatprep.subr.mxu0 0.0
    %4598 = vmatpush1.msra.mxu0 0.0
    %4599 = vmatprep.subr.mxu0 0.0
    %4600 = vmatpush1.msra.mxu0 0.0
    %4601 = vmatprep.subr.mxu0 0.0
    %4602 = vmatpush1.msra.mxu0 0.0
    %4603 = vmatprep.subr.mxu0 0.0
    %4604 = vmatpush1.msra.mxu0 0.0
    %4605 = vmatprep.subr.mxu0 0.0
    %4606 = vmatpush1.msra.mxu0 0.0
    %4607 = vmatprep.subr.mxu0 0.0
    %4608 = vmatpush1.msra.mxu0 0.0
    %4609 = vmatprep.subr.mxu0 0.0
    %4610 = vmatpush1.msra.mxu0 0.0
    %4611 = vmatprep.subr.mxu0 0.0
    %4612 = vmatpush1.msra.mxu0 0.0
    %4613 = vmatprep.subr.mxu0 0.0
    %4614 = vmatpush1.msra.mxu0 %v692
    %4615 = vmatprep.subr.mxu0 0.0
    %4616 = vmatpush1.msra.mxu0 %v691
    %4617 = vmatprep.subr.mxu0 0.0
    %4618 = vmatpush1.msra.mxu0 %v690
    %4619 = vmatprep.subr.mxu0 0.0
    %4620 = vmatpush1.msra.mxu0 %v689
    %4621 = vmatprep.subr.mxu0 0.0
    %4622 = vmatpush2.msra.mxu0 0.0
    %4623 = vmatprep.subr.mxu0 0.0
    %4624 = vmatpush2.msra.mxu0 0.0
    %4625 = vmatprep.subr.mxu0 0.0
    %4626 = vmatpush2.msra.mxu0 0.0
    %4627 = vmatprep.subr.mxu0 0.0
    %4628 = vmatpush2.msra.mxu0 0.0
    %4629 = vmatprep.subr.mxu0 0.0
    %4630 = vmatpush2.msra.mxu0 0.0
    %4631 = vmatprep.subr.mxu0 0.0
    %4632 = vmatpush2.msra.mxu0 0.0
    %4633 = vmatprep.subr.mxu0 0.0
    %4634 = vmatpush2.msra.mxu0 0.0
    %4635 = vmatprep.subr.mxu0 0.0
    %4636 = vmatpush2.msra.mxu0 0.0
    %4637 = vmatprep.subr.mxu0 0.0
    %4638 = vmatpush2.msra.mxu0 0.0
    %4639 = vmatprep.subr.mxu0 0.0
    %4640 = vmatpush2.msra.mxu0 0.0
    %4641 = vmatprep.subr.mxu0 0.0
    %4642 = vmatpush2.msra.mxu0 0.0
    %4643 = vmatprep.subr.mxu0 0.0
    %4644 = vmatpush2.msra.mxu0 0.0
    %4645 = vmatprep.subr.mxu0 0.0
    %4646 = vmatpush2.msra.mxu0 0.0
    %4647 = vmatprep.subr.mxu0 0.0
    %4648 = vmatpush2.msra.mxu0 0.0
    %4649 = vmatprep.subr.mxu0 0.0
    %4650 = vmatpush2.msra.mxu0 0.0
    %4651 = vmatprep.subr.mxu0 0.0
    %4652 = vmatpush2.msra.mxu0 0.0
    %4653 = vmatprep.mubr.f32.mxu0 0.0
    %4654 = vmatmul.mubr.f32.gmra.mxu0 %v4517
    %v4655 = vpop.f32.mrf.mxu0
    %v4656 = vadd.f32 %v4586, %v4655
    %v4657 = vpop.f32.mrf.mxu0
    %4658 = vdwg.mxu0
    %4659 = vmatprep.subr.mxu0 0.0
    %4660 = vmatpush1.msra.mxu0 0.0
    %4661 = vmatprep.subr.mxu0 0.0
    %4662 = vmatpush1.msra.mxu0 0.0
    %4663 = vmatprep.subr.mxu0 0.0
    %4664 = vmatpush1.msra.mxu0 0.0
    %4665 = vmatprep.subr.mxu0 0.0
    %4666 = vmatpush1.msra.mxu0 0.0
    %4667 = vmatprep.subr.mxu0 0.0
    %4668 = vmatpush1.msra.mxu0 0.0
    %4669 = vmatprep.subr.mxu0 0.0
    %4670 = vmatpush1.msra.mxu0 0.0
    %4671 = vmatprep.subr.mxu0 0.0
    %4672 = vmatpush1.msra.mxu0 0.0
    %4673 = vmatprep.subr.mxu0 0.0
    %4674 = vmatpush1.msra.mxu0 0.0
    %4675 = vmatprep.subr.mxu0 0.0
    %4676 = vmatpush1.msra.mxu0 0.0
    %4677 = vmatprep.subr.mxu0 0.0
    %4678 = vmatpush1.msra.mxu0 0.0
    %4679 = vmatprep.subr.mxu0 0.0
    %4680 = vmatpush1.msra.mxu0 0.0
    %4681 = vmatprep.subr.mxu0 0.0
    %4682 = vmatpush1.msra.mxu0 0.0
    %4683 = vmatprep.subr.mxu0 0.0
    %4684 = vmatpush1.msra.mxu0 %v700
    %4685 = vmatprep.subr.mxu0 0.0
    %4686 = vmatpush1.msra.mxu0 %v699
    %4687 = vmatprep.subr.mxu0 0.0
    %4688 = vmatpush1.msra.mxu0 %v698
    %4689 = vmatprep.subr.mxu0 0.0
    %4690 = vmatpush1.msra.mxu0 %v697
    %4691 = vmatprep.subr.mxu0 0.0
    %4692 = vmatpush2.msra.mxu0 0.0
    %4693 = vmatprep.subr.mxu0 0.0
    %4694 = vmatpush2.msra.mxu0 0.0
    %4695 = vmatprep.subr.mxu0 0.0
    %4696 = vmatpush2.msra.mxu0 0.0
    %4697 = vmatprep.subr.mxu0 0.0
    %4698 = vmatpush2.msra.mxu0 0.0
    %4699 = vmatprep.subr.mxu0 0.0
    %4700 = vmatpush2.msra.mxu0 0.0
    %4701 = vmatprep.subr.mxu0 0.0
    %4702 = vmatpush2.msra.mxu0 0.0
    %4703 = vmatprep.subr.mxu0 0.0
    %4704 = vmatpush2.msra.mxu0 0.0
    %4705 = vmatprep.subr.mxu0 0.0
    %4706 = vmatpush2.msra.mxu0 0.0
    %4707 = vmatprep.subr.mxu0 0.0
    %4708 = vmatpush2.msra.mxu0 0.0
    %4709 = vmatprep.subr.mxu0 0.0
    %4710 = vmatpush2.msra.mxu0 0.0
    %4711 = vmatprep.subr.mxu0 0.0
    %4712 = vmatpush2.msra.mxu0 0.0
    %4713 = vmatprep.subr.mxu0 0.0
    %4714 = vmatpush2.msra.mxu0 0.0
    %4715 = vmatprep.subr.mxu0 0.0
    %4716 = vmatpush2.msra.mxu0 0.0
    %4717 = vmatprep.subr.mxu0 0.0
    %4718 = vmatpush2.msra.mxu0 0.0
    %4719 = vmatprep.subr.mxu0 0.0
    %4720 = vmatpush2.msra.mxu0 0.0
    %4721 = vmatprep.subr.mxu0 0.0
    %4722 = vmatpush2.msra.mxu0 0.0
    %4723 = vmatprep.mubr.f32.mxu0 0.0
    %4724 = vmatmul.mubr.f32.gmra.mxu0 %v4517
    %v4725 = vpop.f32.mrf.mxu0
    %v4726 = vadd.f32 0.0, %v4725
    %v4727 = vpop.f32.mrf.mxu0
    %4728 = vdwg.mxu0
    %v4729 = vadd.f32 %v4656, %v4726
    %v4731 = vlaneseq
    %v4732 = vshrl.u32 %v4731, 7
    %v4733 = vsub.s32 0, %v4732
    %v4734 = vrot.slane %v701, %v4733
    %v4736 = vadd.f32 %v4729, %v4734
    %v4737 = vxor.u32 %v4736, 2147483648
    %v4738 = vmul.f32 %v4737, 1.442695
    %v4739 = vpow.pop %v4738
    %v4740 = vadd.f32 %v4739, 1.0
    %v4741 = vrcp.pop %v4740
    %v4742 = vmul.f32 1.0, %v4741
    %v4743 = vtanh.pop %v4736
    %v4744 = vmul.f32 %v4742, 0.0
    %4746 = vrot.lane.b32.xlu0 %v4743, 64
    %v4747 = vpop.permute.xlu0 %4746
    %v4749 = vmul.f32 %v4742, %v4747
    %4751 = vrot.lane.b32.xlu0 %v4749, 32
    %v4752 = vpop.permute.xlu0 %4751
    %v4754 = vadd.f32 %v4744, %v4752
    %v4755 = vtanh.pop %v4754
    %4757 = vrot.lane.b32.xlu0 %v4755, 64
    %v4758 = vpop.permute.xlu0 %4757
    %v4760 = vmul.f32 %v4742, %v4758
    %4762 = vrot.lane.b32.xlu0 %v4760, 32
    %v4763 = vpop.permute.xlu0 %4762
    %v4764 = vsel %vm1229, %v4763, 0
    %4766 = vmatprep.subr.mxu0 0.0
    %4767 = vmatpush1.msra.mxu0 0.0
    %4768 = vmatprep.subr.mxu0 0.0
    %4769 = vmatpush1.msra.mxu0 0.0
    %4770 = vmatprep.subr.mxu0 0.0
    %4771 = vmatpush1.msra.mxu0 0.0
    %4772 = vmatprep.subr.mxu0 0.0
    %4773 = vmatpush1.msra.mxu0 0.0
    %4774 = vmatprep.subr.mxu0 0.0
    %4775 = vmatpush1.msra.mxu0 0.0
    %4776 = vmatprep.subr.mxu0 0.0
    %4777 = vmatpush1.msra.mxu0 0.0
    %4778 = vmatprep.subr.mxu0 0.0
    %4779 = vmatpush1.msra.mxu0 0.0
    %4780 = vmatprep.subr.mxu0 0.0
    %4781 = vmatpush1.msra.mxu0 0.0
    %4782 = vmatprep.subr.mxu0 0.0
    %4783 = vmatpush1.msra.mxu0 0.0
    %4784 = vmatprep.subr.mxu0 0.0
    %4785 = vmatpush1.msra.mxu0 0.0
    %4786 = vmatprep.subr.mxu0 0.0
    %4787 = vmatpush1.msra.mxu0 0.0
    %4788 = vmatprep.subr.mxu0 0.0
    %4789 = vmatpush1.msra.mxu0 0.0
    %4790 = vmatprep.subr.mxu0 0.0
    %4791 = vmatpush1.msra.mxu0 0.0
    %4792 = vmatprep.subr.mxu0 0.0
    %4793 = vmatpush1.msra.mxu0 0.0
    %4794 = vmatprep.subr.mxu0 0.0
    %4795 = vmatpush1.msra.mxu0 0.0
    %4796 = vmatprep.subr.mxu0 0.0
    %4797 = vmatpush1.msra.mxu0 %v4764
    %4798 = vmatprep.subr.mxu0 0.0
    %4799 = vmatpush2.msra.mxu0 0.0
    %4800 = vmatprep.subr.mxu0 0.0
    %4801 = vmatpush2.msra.mxu0 0.0
    %4802 = vmatprep.subr.mxu0 0.0
    %4803 = vmatpush2.msra.mxu0 0.0
    %4804 = vmatprep.subr.mxu0 0.0
    %4805 = vmatpush2.msra.mxu0 0.0
    %4806 = vmatprep.subr.mxu0 0.0
    %4807 = vmatpush2.msra.mxu0 0.0
    %4808 = vmatprep.subr.mxu0 0.0
    %4809 = vmatpush2.msra.mxu0 0.0
    %4810 = vmatprep.subr.mxu0 0.0
    %4811 = vmatpush2.msra.mxu0 0.0
    %4812 = vmatprep.subr.mxu0 0.0
    %4813 = vmatpush2.msra.mxu0 0.0
    %4814 = vmatprep.subr.mxu0 0.0
    %4815 = vmatpush2.msra.mxu0 0.0
    %4816 = vmatprep.subr.mxu0 0.0
    %4817 = vmatpush2.msra.mxu0 0.0
    %4818 = vmatprep.subr.mxu0 0.0
    %4819 = vmatpush2.msra.mxu0 0.0
    %4820 = vmatprep.subr.mxu0 0.0
    %4821 = vmatpush2.msra.mxu0 0.0
    %4822 = vmatprep.subr.mxu0 0.0
    %4823 = vmatpush2.msra.mxu0 0.0
    %4824 = vmatprep.subr.mxu0 0.0
    %4825 = vmatpush2.msra.mxu0 0.0
    %4826 = vmatprep.subr.mxu0 0.0
    %4827 = vmatpush2.msra.mxu0 0.0
    %4828 = vmatprep.subr.mxu0 0.0
    %4829 = vmatpush2.msra.mxu0 0.0
    %4830 = vmatprep.mubr.f32.mxu0 0.0
    %4831 = vmatmul.mubr.f32.gmra.mxu0 %v1911
    %v4832 = vpop.f32.mrf.mxu0
    %v4833 = vadd.f32 0.0, %v4832
    %v4834 = vpop.f32.mrf.mxu0
    %4835 = vmatprep.mubr.f32.mxu0 0.0
    %4836 = vmatmul.mubr.f32.gmra.mxu0 %v1914
    %v4837 = vpop.f32.mrf.mxu0
    %v4838 = vadd.f32 0.0, %v4837
    %v4839 = vpop.f32.mrf.mxu0
    %4840 = vdwg.mxu0
    %v4841 = vmul.f32 %v4065, %v4833
    %v4842 = vmul.f32 %v4066, %v4838
    %v4843 = vsel %vm994, %v4841, 0.0
    %4844 = vadd.xlane.f32.xlu0 %v4843
    %v4845 = vpop.xlane.xlu0 %4844
    %v4846 = vsel %vm994, %v4842, 0.0
    %4847 = vadd.xlane.f32.xlu0 %v4846
    %v4848 = vpop.xlane.xlu0 %4847
    %vm4849 = vcmp.gt.f32.partialorder %v941, 0.5
    %vm4850 = vcmp.gt.f32.partialorder %v942, 0.5
    %v4851 = vsel %vm4849, %v4845, -1e+30
    %v4852 = vsel %vm4850, %v4848, -1e+30
    %v4853 = vsel %vm1216, %v4851, -inf
    %v4854 = vsel %vm1216, %v4852, -inf
    %v4855 = vmax.f32 %v4853, %v4854
    %v4856 = vrot.slane %v4855, 4
    %v4857 = vmax.f32 %v4855, %v4856
    %v4858 = vrot.slane %v4857, 2
    %v4859 = vmax.f32 %v4857, %v4858
    %v4860 = vrot.slane %v4859, 1
    %v4861 = vmax.f32 %v4859, %v4860
    %v4862 = vmul.f32 %v941, %v4861
    %v4863 = vmul.f32 %v942, %v4861
    %v4864 = vsel %vm1216, %v4862, 0.0
    %4865 = vadd.xlane.f32.xlu0 %v4864
    %v4866 = vpop.xlane.xlu0 %4865
    %v4867 = vsel %vm1216, %v4863, 0.0
    %4868 = vadd.xlane.f32.xlu0 %v4867
    %v4869 = vpop.xlane.xlu0 %4868
    %v4870 = vsub.f32 %v4845, %v4866
    %v4871 = vsub.f32 %v4848, %v4869
    %v4872 = vmul.f32 %v4870, 1.442695
    %v4873 = vpow.pop %v4872
    %v4874 = vmul.f32 %v4871, 1.442695
    %v4875 = vpow.pop %v4874
    %v4876 = vmul.f32 %v941, %v4873
    %v4877 = vmul.f32 %v942, %v4875
    %v4878 = vsel %vm1216, %v4876, 0.0
    %v4879 = vsel %vm1216, %v4877, 0.0
    %v4880 = vadd.f32 %v4878, %v4879
    %v4881 = vrot.slane %v4880, 4
    %v4882 = vadd.f32 %v4880, %v4881
    %v4883 = vrot.slane %v4882, 2
    %v4884 = vadd.f32 %v4882, %v4883
    %v4885 = vrot.slane %v4884, 1
    %v4886 = vadd.f32 %v4884, %v4885
    %v4887 = vmul.f32 %v941, %v4886
    %v4888 = vmul.f32 %v942, %v4886
    %v4889 = vsel %vm1216, %v4887, 0.0
    %4890 = vadd.xlane.f32.xlu0 %v4889
    %v4891 = vpop.xlane.xlu0 %4890
    %v4892 = vsel %vm1216, %v4888, 0.0
    %4893 = vadd.xlane.f32.xlu0 %v4892
    %v4894 = vpop.xlane.xlu0 %4893
    %v4895 = vrcp.pop %v4891
    %v4896 = vmul.f32 %v4873, %v4895
    %v4897 = vrcp.pop %v4894
    %v4898 = vmul.f32 %v4875, %v4897
    %v4899 = vmul.f32 %v4896, %v4065
    %v4900 = vmul.f32 %v4898, %v4066
    %4901 = vmatprep.subr.mxu0 0.0
    %4902 = vmatpush1.msra.mxu0 0.0
    %4903 = vmatprep.subr.mxu0 0.0
    %4904 = vmatpush1.msra.mxu0 0.0
    %4905 = vmatprep.subr.mxu0 0.0
    %4906 = vmatpush1.msra.mxu0 0.0
    %4907 = vmatprep.subr.mxu0 0.0
    %4908 = vmatpush1.msra.mxu0 0.0
    %4909 = vmatprep.subr.mxu0 0.0
    %4910 = vmatpush1.msra.mxu0 0.0
    %4911 = vmatprep.subr.mxu0 0.0
    %4912 = vmatpush1.msra.mxu0 0.0
    %4913 = vmatprep.subr.mxu0 0.0
    %4914 = vmatpush1.msra.mxu0 0.0
    %4915 = vmatprep.subr.mxu0 0.0
    %4916 = vmatpush1.msra.mxu0 0.0
    %4917 = vmatprep.subr.mxu0 0.0
    %4918 = vmatpush1.msra.mxu0 0.0
    %4919 = vmatprep.subr.mxu0 0.0
    %4920 = vmatpush1.msra.mxu0 0.0
    %4921 = vmatprep.subr.mxu0 0.0
    %4922 = vmatpush1.msra.mxu0 0.0
    %4923 = vmatprep.subr.mxu0 0.0
    %4924 = vmatpush1.msra.mxu0 0.0
    %4925 = vmatprep.subr.mxu0 0.0
    %4926 = vmatpush1.msra.mxu0 0.0
    %4927 = vmatprep.subr.mxu0 0.0
    %4928 = vmatpush1.msra.mxu0 0.0
    %4929 = vmatprep.subr.mxu0 0.0
    %4930 = vmatpush1.msra.mxu0 %v4900
    %4931 = vmatprep.subr.mxu0 0.0
    %4932 = vmatpush1.msra.mxu0 %v4899
    %4933 = vmatprep.subr.mxu0 0.0
    %4934 = vmatpush2.msra.mxu0 0.0
    %4935 = vmatprep.subr.mxu0 0.0
    %4936 = vmatpush2.msra.mxu0 0.0
    %4937 = vmatprep.subr.mxu0 0.0
    %4938 = vmatpush2.msra.mxu0 0.0
    %4939 = vmatprep.subr.mxu0 0.0
    %4940 = vmatpush2.msra.mxu0 0.0
    %4941 = vmatprep.subr.mxu0 0.0
    %4942 = vmatpush2.msra.mxu0 0.0
    %4943 = vmatprep.subr.mxu0 0.0
    %4944 = vmatpush2.msra.mxu0 0.0
    %4945 = vmatprep.subr.mxu0 0.0
    %4946 = vmatpush2.msra.mxu0 0.0
    %4947 = vmatprep.subr.mxu0 0.0
    %4948 = vmatpush2.msra.mxu0 0.0
    %4949 = vmatprep.subr.mxu0 0.0
    %4950 = vmatpush2.msra.mxu0 0.0
    %4951 = vmatprep.subr.mxu0 0.0
    %4952 = vmatpush2.msra.mxu0 0.0
    %4953 = vmatprep.subr.mxu0 0.0
    %4954 = vmatpush2.msra.mxu0 0.0
    %4955 = vmatprep.subr.mxu0 0.0
    %4956 = vmatpush2.msra.mxu0 0.0
    %4957 = vmatprep.subr.mxu0 0.0
    %4958 = vmatpush2.msra.mxu0 0.0
    %4959 = vmatprep.subr.mxu0 0.0
    %4960 = vmatpush2.msra.mxu0 0.0
    %4961 = vmatprep.subr.mxu0 0.0
    %4962 = vmatpush2.msra.mxu0 0.0
    %4963 = vmatprep.subr.mxu0 0.0
    %4964 = vmatpush2.msra.mxu0 0.0
    %4965 = vmatprep.mubr.f32.mxu0 0.0
    %4966 = vmatmul.mubr.f32.gmra.mxu0 %v2339
    %v4967 = vpop.f32.mrf.mxu0
    %v4968 = vadd.f32 0.0, %v4967
    %v4969 = vpop.f32.mrf.mxu0
    %4970 = vdwg.mxu0
    %v4972 = vsel %vm994, %v4968, 0
    %4974 = vmatprep.subr.mxu0 0.0
    %4975 = vmatpush1.msra.mxu0 0.0
    %4976 = vmatprep.subr.mxu0 0.0
    %4977 = vmatpush1.msra.mxu0 0.0
    %4978 = vmatprep.subr.mxu0 0.0
    %4979 = vmatpush1.msra.mxu0 0.0
    %4980 = vmatprep.subr.mxu0 0.0
    %4981 = vmatpush1.msra.mxu0 0.0
    %4982 = vmatprep.subr.mxu0 0.0
    %4983 = vmatpush1.msra.mxu0 0.0
    %4984 = vmatprep.subr.mxu0 0.0
    %4985 = vmatpush1.msra.mxu0 0.0
    %4986 = vmatprep.subr.mxu0 0.0
    %4987 = vmatpush1.msra.mxu0 0.0
    %4988 = vmatprep.subr.mxu0 0.0
    %4989 = vmatpush1.msra.mxu0 0.0
    %4990 = vmatprep.subr.mxu0 0.0
    %4991 = vmatpush1.msra.mxu0 0.0
    %4992 = vmatprep.subr.mxu0 0.0
    %4993 = vmatpush1.msra.mxu0 0.0
    %4994 = vmatprep.subr.mxu0 0.0
    %4995 = vmatpush1.msra.mxu0 0.0
    %4996 = vmatprep.subr.mxu0 0.0
    %4997 = vmatpush1.msra.mxu0 0.0
    %4998 = vmatprep.subr.mxu0 0.0
    %4999 = vmatpush1.msra.mxu0 %v696
    %5000 = vmatprep.subr.mxu0 0.0
    %5001 = vmatpush1.msra.mxu0 %v695
    %5002 = vmatprep.subr.mxu0 0.0
    %5003 = vmatpush1.msra.mxu0 %v694
    %5004 = vmatprep.subr.mxu0 0.0
    %5005 = vmatpush1.msra.mxu0 %v693
    %5006 = vmatprep.subr.mxu0 0.0
    %5007 = vmatpush2.msra.mxu0 0.0
    %5008 = vmatprep.subr.mxu0 0.0
    %5009 = vmatpush2.msra.mxu0 0.0
    %5010 = vmatprep.subr.mxu0 0.0
    %5011 = vmatpush2.msra.mxu0 0.0
    %5012 = vmatprep.subr.mxu0 0.0
    %5013 = vmatpush2.msra.mxu0 0.0
    %5014 = vmatprep.subr.mxu0 0.0
    %5015 = vmatpush2.msra.mxu0 0.0
    %5016 = vmatprep.subr.mxu0 0.0
    %5017 = vmatpush2.msra.mxu0 0.0
    %5018 = vmatprep.subr.mxu0 0.0
    %5019 = vmatpush2.msra.mxu0 0.0
    %5020 = vmatprep.subr.mxu0 0.0
    %5021 = vmatpush2.msra.mxu0 0.0
    %5022 = vmatprep.subr.mxu0 0.0
    %5023 = vmatpush2.msra.mxu0 0.0
    %5024 = vmatprep.subr.mxu0 0.0
    %5025 = vmatpush2.msra.mxu0 0.0
    %5026 = vmatprep.subr.mxu0 0.0
    %5027 = vmatpush2.msra.mxu0 0.0
    %5028 = vmatprep.subr.mxu0 0.0
    %5029 = vmatpush2.msra.mxu0 0.0
    %5030 = vmatprep.subr.mxu0 0.0
    %5031 = vmatpush2.msra.mxu0 0.0
    %5032 = vmatprep.subr.mxu0 0.0
    %5033 = vmatpush2.msra.mxu0 0.0
    %5034 = vmatprep.subr.mxu0 0.0
    %5035 = vmatpush2.msra.mxu0 0.0
    %5036 = vmatprep.subr.mxu0 0.0
    %5037 = vmatpush2.msra.mxu0 0.0
    %5038 = vmatprep.mubr.f32.mxu0 0.0
    %5039 = vmatmul.mubr.f32.gmra.mxu0 %v4972
    %v5040 = vpop.f32.mrf.mxu0
    %v5041 = vadd.f32 0.0, %v5040
    %v5042 = vpop.f32.mrf.mxu0
    %5043 = vdwg.mxu0
    %v5044 = vsel %vm994, %v4763, 0
    %5046 = vmatprep.subr.mxu0 0.0
    %5047 = vmatpush1.msra.mxu0 0.0
    %5048 = vmatprep.subr.mxu0 0.0
    %5049 = vmatpush1.msra.mxu0 0.0
    %5050 = vmatprep.subr.mxu0 0.0
    %5051 = vmatpush1.msra.mxu0 0.0
    %5052 = vmatprep.subr.mxu0 0.0
    %5053 = vmatpush1.msra.mxu0 0.0
    %5054 = vmatprep.subr.mxu0 0.0
    %5055 = vmatpush1.msra.mxu0 0.0
    %5056 = vmatprep.subr.mxu0 0.0
    %5057 = vmatpush1.msra.mxu0 0.0
    %5058 = vmatprep.subr.mxu0 0.0
    %5059 = vmatpush1.msra.mxu0 0.0
    %5060 = vmatprep.subr.mxu0 0.0
    %5061 = vmatpush1.msra.mxu0 0.0
    %5062 = vmatprep.subr.mxu0 0.0
    %5063 = vmatpush1.msra.mxu0 0.0
    %5064 = vmatprep.subr.mxu0 0.0
    %5065 = vmatpush1.msra.mxu0 0.0
    %5066 = vmatprep.subr.mxu0 0.0
    %5067 = vmatpush1.msra.mxu0 0.0
    %5068 = vmatprep.subr.mxu0 0.0
    %5069 = vmatpush1.msra.mxu0 0.0
    %5070 = vmatprep.subr.mxu0 0.0
    %5071 = vmatpush1.msra.mxu0 %v692
    %5072 = vmatprep.subr.mxu0 0.0
    %5073 = vmatpush1.msra.mxu0 %v691
    %5074 = vmatprep.subr.mxu0 0.0
    %5075 = vmatpush1.msra.mxu0 %v690
    %5076 = vmatprep.subr.mxu0 0.0
    %5077 = vmatpush1.msra.mxu0 %v689
    %5078 = vmatprep.subr.mxu0 0.0
    %5079 = vmatpush2.msra.mxu0 0.0
    %5080 = vmatprep.subr.mxu0 0.0
    %5081 = vmatpush2.msra.mxu0 0.0
    %5082 = vmatprep.subr.mxu0 0.0
    %5083 = vmatpush2.msra.mxu0 0.0
    %5084 = vmatprep.subr.mxu0 0.0
    %5085 = vmatpush2.msra.mxu0 0.0
    %5086 = vmatprep.subr.mxu0 0.0
    %5087 = vmatpush2.msra.mxu0 0.0
    %5088 = vmatprep.subr.mxu0 0.0
    %5089 = vmatpush2.msra.mxu0 0.0
    %5090 = vmatprep.subr.mxu0 0.0
    %5091 = vmatpush2.msra.mxu0 0.0
    %5092 = vmatprep.subr.mxu0 0.0
    %5093 = vmatpush2.msra.mxu0 0.0
    %5094 = vmatprep.subr.mxu0 0.0
    %5095 = vmatpush2.msra.mxu0 0.0
    %5096 = vmatprep.subr.mxu0 0.0
    %5097 = vmatpush2.msra.mxu0 0.0
    %5098 = vmatprep.subr.mxu0 0.0
    %5099 = vmatpush2.msra.mxu0 0.0
    %5100 = vmatprep.subr.mxu0 0.0
    %5101 = vmatpush2.msra.mxu0 0.0
    %5102 = vmatprep.subr.mxu0 0.0
    %5103 = vmatpush2.msra.mxu0 0.0
    %5104 = vmatprep.subr.mxu0 0.0
    %5105 = vmatpush2.msra.mxu0 0.0
    %5106 = vmatprep.subr.mxu0 0.0
    %5107 = vmatpush2.msra.mxu0 0.0
    %5108 = vmatprep.subr.mxu0 0.0
    %5109 = vmatpush2.msra.mxu0 0.0
    %5110 = vmatprep.mubr.f32.mxu0 0.0
    %5111 = vmatmul.mubr.f32.gmra.mxu0 %v5044
    %v5112 = vpop.f32.mrf.mxu0
    %v5113 = vadd.f32 %v5041, %v5112
    %v5114 = vpop.f32.mrf.mxu0
    %5115 = vdwg.mxu0
    %5116 = vmatprep.subr.mxu0 0.0
    %5117 = vmatpush1.msra.mxu0 0.0
    %5118 = vmatprep.subr.mxu0 0.0
    %5119 = vmatpush1.msra.mxu0 0.0
    %5120 = vmatprep.subr.mxu0 0.0
    %5121 = vmatpush1.msra.mxu0 0.0
    %5122 = vmatprep.subr.mxu0 0.0
    %5123 = vmatpush1.msra.mxu0 0.0
    %5124 = vmatprep.subr.mxu0 0.0
    %5125 = vmatpush1.msra.mxu0 0.0
    %5126 = vmatprep.subr.mxu0 0.0
    %5127 = vmatpush1.msra.mxu0 0.0
    %5128 = vmatprep.subr.mxu0 0.0
    %5129 = vmatpush1.msra.mxu0 0.0
    %5130 = vmatprep.subr.mxu0 0.0
    %5131 = vmatpush1.msra.mxu0 0.0
    %5132 = vmatprep.subr.mxu0 0.0
    %5133 = vmatpush1.msra.mxu0 0.0
    %5134 = vmatprep.subr.mxu0 0.0
    %5135 = vmatpush1.msra.mxu0 0.0
    %5136 = vmatprep.subr.mxu0 0.0
    %5137 = vmatpush1.msra.mxu0 0.0
    %5138 = vmatprep.subr.mxu0 0.0
    %5139 = vmatpush1.msra.mxu0 0.0
    %5140 = vmatprep.subr.mxu0 0.0
    %5141 = vmatpush1.msra.mxu0 %v700
    %5142 = vmatprep.subr.mxu0 0.0
    %5143 = vmatpush1.msra.mxu0 %v699
    %5144 = vmatprep.subr.mxu0 0.0
    %5145 = vmatpush1.msra.mxu0 %v698
    %5146 = vmatprep.subr.mxu0 0.0
    %5147 = vmatpush1.msra.mxu0 %v697
    %5148 = vmatprep.subr.mxu0 0.0
    %5149 = vmatpush2.msra.mxu0 0.0
    %5150 = vmatprep.subr.mxu0 0.0
    %5151 = vmatpush2.msra.mxu0 0.0
    %5152 = vmatprep.subr.mxu0 0.0
    %5153 = vmatpush2.msra.mxu0 0.0
    %5154 = vmatprep.subr.mxu0 0.0
    %5155 = vmatpush2.msra.mxu0 0.0
    %5156 = vmatprep.subr.mxu0 0.0
    %5157 = vmatpush2.msra.mxu0 0.0
    %5158 = vmatprep.subr.mxu0 0.0
    %5159 = vmatpush2.msra.mxu0 0.0
    %5160 = vmatprep.subr.mxu0 0.0
    %5161 = vmatpush2.msra.mxu0 0.0
    %5162 = vmatprep.subr.mxu0 0.0
    %5163 = vmatpush2.msra.mxu0 0.0
    %5164 = vmatprep.subr.mxu0 0.0
    %5165 = vmatpush2.msra.mxu0 0.0
    %5166 = vmatprep.subr.mxu0 0.0
    %5167 = vmatpush2.msra.mxu0 0.0
    %5168 = vmatprep.subr.mxu0 0.0
    %5169 = vmatpush2.msra.mxu0 0.0
    %5170 = vmatprep.subr.mxu0 0.0
    %5171 = vmatpush2.msra.mxu0 0.0
    %5172 = vmatprep.subr.mxu0 0.0
    %5173 = vmatpush2.msra.mxu0 0.0
    %5174 = vmatprep.subr.mxu0 0.0
    %5175 = vmatpush2.msra.mxu0 0.0
    %5176 = vmatprep.subr.mxu0 0.0
    %5177 = vmatpush2.msra.mxu0 0.0
    %5178 = vmatprep.subr.mxu0 0.0
    %5179 = vmatpush2.msra.mxu0 0.0
    %5180 = vmatprep.mubr.f32.mxu0 0.0
    %5181 = vmatmul.mubr.f32.gmra.mxu0 %v5044
    %v5182 = vpop.f32.mrf.mxu0
    %v5183 = vadd.f32 0.0, %v5182
    %v5184 = vpop.f32.mrf.mxu0
    %5185 = vdwg.mxu0
    %v5186 = vadd.f32 %v5113, %v5183
    %v5187 = vadd.f32 %v5186, %v4734
    %v5188 = vxor.u32 %v5187, 2147483648
    %v5189 = vmul.f32 %v5188, 1.442695
    %v5190 = vpow.pop %v5189
    %v5191 = vadd.f32 %v5190, 1.0
    %v5192 = vrcp.pop %v5191
    %v5193 = vmul.f32 1.0, %v5192
    %v5194 = vtanh.pop %v5187
    %v5195 = vmul.f32 %v5193, %v4754
    %5197 = vrot.lane.b32.xlu0 %v5194, 64
    %v5198 = vpop.permute.xlu0 %5197
    %v5200 = vmul.f32 %v5193, %v5198
    %5202 = vrot.lane.b32.xlu0 %v5200, 32
    %v5203 = vpop.permute.xlu0 %5202
    %v5205 = vadd.f32 %v5195, %v5203
    %v5206 = vtanh.pop %v5205
    %5208 = vrot.lane.b32.xlu0 %v5206, 64
    %v5209 = vpop.permute.xlu0 %5208
    %v5211 = vmul.f32 %v5193, %v5209
    %5213 = vrot.lane.b32.xlu0 %v5211, 32
    %v5214 = vpop.permute.xlu0 %5213
    %v5215 = vsel %vm1229, %v5214, 0
    %5217 = vmatprep.subr.mxu0 0.0
    %5218 = vmatpush1.msra.mxu0 0.0
    %5219 = vmatprep.subr.mxu0 0.0
    %5220 = vmatpush1.msra.mxu0 0.0
    %5221 = vmatprep.subr.mxu0 0.0
    %5222 = vmatpush1.msra.mxu0 0.0
    %5223 = vmatprep.subr.mxu0 0.0
    %5224 = vmatpush1.msra.mxu0 0.0
    %5225 = vmatprep.subr.mxu0 0.0
    %5226 = vmatpush1.msra.mxu0 0.0
    %5227 = vmatprep.subr.mxu0 0.0
    %5228 = vmatpush1.msra.mxu0 0.0
    %5229 = vmatprep.subr.mxu0 0.0
    %5230 = vmatpush1.msra.mxu0 0.0
    %5231 = vmatprep.subr.mxu0 0.0
    %5232 = vmatpush1.msra.mxu0 0.0
    %5233 = vmatprep.subr.mxu0 0.0
    %5234 = vmatpush1.msra.mxu0 0.0
    %5235 = vmatprep.subr.mxu0 0.0
    %5236 = vmatpush1.msra.mxu0 0.0
    %5237 = vmatprep.subr.mxu0 0.0
    %5238 = vmatpush1.msra.mxu0 0.0
    %5239 = vmatprep.subr.mxu0 0.0
    %5240 = vmatpush1.msra.mxu0 0.0
    %5241 = vmatprep.subr.mxu0 0.0
    %5242 = vmatpush1.msra.mxu0 0.0
    %5243 = vmatprep.subr.mxu0 0.0
    %5244 = vmatpush1.msra.mxu0 0.0
    %5245 = vmatprep.subr.mxu0 0.0
    %5246 = vmatpush1.msra.mxu0 0.0
    %5247 = vmatprep.subr.mxu0 0.0
    %5248 = vmatpush1.msra.mxu0 %v5215
    %5249 = vmatprep.subr.mxu0 0.0
    %5250 = vmatpush2.msra.mxu0 0.0
    %5251 = vmatprep.subr.mxu0 0.0
    %5252 = vmatpush2.msra.mxu0 0.0
    %5253 = vmatprep.subr.mxu0 0.0
    %5254 = vmatpush2.msra.mxu0 0.0
    %5255 = vmatprep.subr.mxu0 0.0
    %5256 = vmatpush2.msra.mxu0 0.0
    %5257 = vmatprep.subr.mxu0 0.0
    %5258 = vmatpush2.msra.mxu0 0.0
    %5259 = vmatprep.subr.mxu0 0.0
    %5260 = vmatpush2.msra.mxu0 0.0
    %5261 = vmatprep.subr.mxu0 0.0
    %5262 = vmatpush2.msra.mxu0 0.0
    %5263 = vmatprep.subr.mxu0 0.0
    %5264 = vmatpush2.msra.mxu0 0.0
    %5265 = vmatprep.subr.mxu0 0.0
    %5266 = vmatpush2.msra.mxu0 0.0
    %5267 = vmatprep.subr.mxu0 0.0
    %5268 = vmatpush2.msra.mxu0 0.0
    %5269 = vmatprep.subr.mxu0 0.0
    %5270 = vmatpush2.msra.mxu0 0.0
    %5271 = vmatprep.subr.mxu0 0.0
    %5272 = vmatpush2.msra.mxu0 0.0
    %5273 = vmatprep.subr.mxu0 0.0
    %5274 = vmatpush2.msra.mxu0 0.0
    %5275 = vmatprep.subr.mxu0 0.0
    %5276 = vmatpush2.msra.mxu0 0.0
    %5277 = vmatprep.subr.mxu0 0.0
    %5278 = vmatpush2.msra.mxu0 0.0
    %5279 = vmatprep.subr.mxu0 0.0
    %5280 = vmatpush2.msra.mxu0 0.0
    %5281 = vmatprep.mubr.f32.mxu0 0.0
    %5282 = vmatmul.mubr.f32.gmra.mxu0 %v1911
    %v5283 = vpop.f32.mrf.mxu0
    %v5284 = vadd.f32 0.0, %v5283
    %v5285 = vpop.f32.mrf.mxu0
    %5286 = vmatprep.mubr.f32.mxu0 0.0
    %5287 = vmatmul.mubr.f32.gmra.mxu0 %v1914
    %v5288 = vpop.f32.mrf.mxu0
    %v5289 = vadd.f32 0.0, %v5288
    %v5290 = vpop.f32.mrf.mxu0
    %5291 = vdwg.mxu0
    %v5292 = vmul.f32 %v4065, %v5284
    %v5293 = vmul.f32 %v4066, %v5289
    %v5294 = vsel %vm994, %v5292, 0.0
    %5295 = vadd.xlane.f32.xlu0 %v5294
    %v5296 = vpop.xlane.xlu0 %5295
    %v5297 = vsel %vm994, %v5293, 0.0
    %5298 = vadd.xlane.f32.xlu0 %v5297
    %v5299 = vpop.xlane.xlu0 %5298
    %v5300 = vsel %vm4849, %v5296, -1e+30
    %v5301 = vsel %vm4850, %v5299, -1e+30
    %v5302 = vsel %vm1216, %v5300, -inf
    %v5303 = vsel %vm1216, %v5301, -inf
    %v5304 = vmax.f32 %v5302, %v5303
    %v5305 = vrot.slane %v5304, 4
    %v5306 = vmax.f32 %v5304, %v5305
    %v5307 = vrot.slane %v5306, 2
    %v5308 = vmax.f32 %v5306, %v5307
    %v5309 = vrot.slane %v5308, 1
    %v5310 = vmax.f32 %v5308, %v5309
    %v5311 = vmul.f32 %v941, %v5310
    %v5312 = vmul.f32 %v942, %v5310
    %v5313 = vsel %vm1216, %v5311, 0.0
    %5314 = vadd.xlane.f32.xlu0 %v5313
    %v5315 = vpop.xlane.xlu0 %5314
    %v5316 = vsel %vm1216, %v5312, 0.0
    %5317 = vadd.xlane.f32.xlu0 %v5316
    %v5318 = vpop.xlane.xlu0 %5317
    %v5319 = vsub.f32 %v5296, %v5315
    %v5320 = vsub.f32 %v5299, %v5318
    %v5321 = vmul.f32 %v5319, 1.442695
    %v5322 = vpow.pop %v5321
    %v5323 = vmul.f32 %v5320, 1.442695
    %v5324 = vpow.pop %v5323
    %v5325 = vmul.f32 %v941, %v5322
    %v5326 = vmul.f32 %v942, %v5324
    %v5327 = vsel %vm1216, %v5325, 0.0
    %v5328 = vsel %vm1216, %v5326, 0.0
    %v5329 = vadd.f32 %v5327, %v5328
    %v5330 = vrot.slane %v5329, 4
    %v5331 = vadd.f32 %v5329, %v5330
    %v5332 = vrot.slane %v5331, 2
    %v5333 = vadd.f32 %v5331, %v5332
    %v5334 = vrot.slane %v5333, 1
    %v5335 = vadd.f32 %v5333, %v5334
    %v5336 = vmul.f32 %v941, %v5335
    %v5337 = vmul.f32 %v942, %v5335
    %v5338 = vsel %vm1216, %v5336, 0.0
    %5339 = vadd.xlane.f32.xlu0 %v5338
    %v5340 = vpop.xlane.xlu0 %5339
    %v5341 = vsel %vm1216, %v5337, 0.0
    %5342 = vadd.xlane.f32.xlu0 %v5341
    %v5343 = vpop.xlane.xlu0 %5342
    %v5344 = vrcp.pop %v5340
    %v5345 = vmul.f32 %v5322, %v5344
    %v5346 = vrcp.pop %v5343
    %v5347 = vmul.f32 %v5324, %v5346
    %v5348 = vmul.f32 %v5345, %v4065
    %v5349 = vmul.f32 %v5347, %v4066
    %5350 = vmatprep.subr.mxu0 0.0
    %5351 = vmatpush1.msra.mxu0 0.0
    %5352 = vmatprep.subr.mxu0 0.0
    %5353 = vmatpush1.msra.mxu0 0.0
    %5354 = vmatprep.subr.mxu0 0.0
    %5355 = vmatpush1.msra.mxu0 0.0
    %5356 = vmatprep.subr.mxu0 0.0
    %5357 = vmatpush1.msra.mxu0 0.0
    %5358 = vmatprep.subr.mxu0 0.0
    %5359 = vmatpush1.msra.mxu0 0.0
    %5360 = vmatprep.subr.mxu0 0.0
    %5361 = vmatpush1.msra.mxu0 0.0
    %5362 = vmatprep.subr.mxu0 0.0
    %5363 = vmatpush1.msra.mxu0 0.0
    %5364 = vmatprep.subr.mxu0 0.0
    %5365 = vmatpush1.msra.mxu0 0.0
    %5366 = vmatprep.subr.mxu0 0.0
    %5367 = vmatpush1.msra.mxu0 0.0
    %5368 = vmatprep.subr.mxu0 0.0
    %5369 = vmatpush1.msra.mxu0 0.0
    %5370 = vmatprep.subr.mxu0 0.0
    %5371 = vmatpush1.msra.mxu0 0.0
    %5372 = vmatprep.subr.mxu0 0.0
    %5373 = vmatpush1.msra.mxu0 0.0
    %5374 = vmatprep.subr.mxu0 0.0
    %5375 = vmatpush1.msra.mxu0 0.0
    %5376 = vmatprep.subr.mxu0 0.0
    %5377 = vmatpush1.msra.mxu0 0.0
    %5378 = vmatprep.subr.mxu0 0.0
    %5379 = vmatpush1.msra.mxu0 %v5349
    %5380 = vmatprep.subr.mxu0 0.0
    %5381 = vmatpush1.msra.mxu0 %v5348
    %5382 = vmatprep.subr.mxu0 0.0
    %5383 = vmatpush2.msra.mxu0 0.0
    %5384 = vmatprep.subr.mxu0 0.0
    %5385 = vmatpush2.msra.mxu0 0.0
    %5386 = vmatprep.subr.mxu0 0.0
    %5387 = vmatpush2.msra.mxu0 0.0
    %5388 = vmatprep.subr.mxu0 0.0
    %5389 = vmatpush2.msra.mxu0 0.0
    %5390 = vmatprep.subr.mxu0 0.0
    %5391 = vmatpush2.msra.mxu0 0.0
    %5392 = vmatprep.subr.mxu0 0.0
    %5393 = vmatpush2.msra.mxu0 0.0
    %5394 = vmatprep.subr.mxu0 0.0
    %5395 = vmatpush2.msra.mxu0 0.0
    %5396 = vmatprep.subr.mxu0 0.0
    %5397 = vmatpush2.msra.mxu0 0.0
    %5398 = vmatprep.subr.mxu0 0.0
    %5399 = vmatpush2.msra.mxu0 0.0
    %5400 = vmatprep.subr.mxu0 0.0
    %5401 = vmatpush2.msra.mxu0 0.0
    %5402 = vmatprep.subr.mxu0 0.0
    %5403 = vmatpush2.msra.mxu0 0.0
    %5404 = vmatprep.subr.mxu0 0.0
    %5405 = vmatpush2.msra.mxu0 0.0
    %5406 = vmatprep.subr.mxu0 0.0
    %5407 = vmatpush2.msra.mxu0 0.0
    %5408 = vmatprep.subr.mxu0 0.0
    %5409 = vmatpush2.msra.mxu0 0.0
    %5410 = vmatprep.subr.mxu0 0.0
    %5411 = vmatpush2.msra.mxu0 0.0
    %5412 = vmatprep.subr.mxu0 0.0
    %5413 = vmatpush2.msra.mxu0 0.0
    %5414 = vmatprep.mubr.f32.mxu0 0.0
    %5415 = vmatmul.mubr.f32.gmra.mxu0 %v2339
    %v5416 = vpop.f32.mrf.mxu0
    %v5417 = vadd.f32 0.0, %v5416
    %v5418 = vpop.f32.mrf.mxu0
    %5419 = vdwg.mxu0
    %v5421 = vsel %vm994, %v5417, 0
    %5423 = vmatprep.subr.mxu0 0.0
    %5424 = vmatpush1.msra.mxu0 0.0
    %5425 = vmatprep.subr.mxu0 0.0
    %5426 = vmatpush1.msra.mxu0 0.0
    %5427 = vmatprep.subr.mxu0 0.0
    %5428 = vmatpush1.msra.mxu0 0.0
    %5429 = vmatprep.subr.mxu0 0.0
    %5430 = vmatpush1.msra.mxu0 0.0
    %5431 = vmatprep.subr.mxu0 0.0
    %5432 = vmatpush1.msra.mxu0 0.0
    %5433 = vmatprep.subr.mxu0 0.0
    %5434 = vmatpush1.msra.mxu0 0.0
    %5435 = vmatprep.subr.mxu0 0.0
    %5436 = vmatpush1.msra.mxu0 0.0
    %5437 = vmatprep.subr.mxu0 0.0
    %5438 = vmatpush1.msra.mxu0 0.0
    %5439 = vmatprep.subr.mxu0 0.0
    %5440 = vmatpush1.msra.mxu0 0.0
    %5441 = vmatprep.subr.mxu0 0.0
    %5442 = vmatpush1.msra.mxu0 0.0
    %5443 = vmatprep.subr.mxu0 0.0
    %5444 = vmatpush1.msra.mxu0 0.0
    %5445 = vmatprep.subr.mxu0 0.0
    %5446 = vmatpush1.msra.mxu0 0.0
    %5447 = vmatprep.subr.mxu0 0.0
    %5448 = vmatpush1.msra.mxu0 %v696
    %5449 = vmatprep.subr.mxu0 0.0
    %5450 = vmatpush1.msra.mxu0 %v695
    %5451 = vmatprep.subr.mxu0 0.0
    %5452 = vmatpush1.msra.mxu0 %v694
    %5453 = vmatprep.subr.mxu0 0.0
    %5454 = vmatpush1.msra.mxu0 %v693
    %5455 = vmatprep.subr.mxu0 0.0
    %5456 = vmatpush2.msra.mxu0 0.0
    %5457 = vmatprep.subr.mxu0 0.0
    %5458 = vmatpush2.msra.mxu0 0.0
    %5459 = vmatprep.subr.mxu0 0.0
    %5460 = vmatpush2.msra.mxu0 0.0
    %5461 = vmatprep.subr.mxu0 0.0
    %5462 = vmatpush2.msra.mxu0 0.0
    %5463 = vmatprep.subr.mxu0 0.0
    %5464 = vmatpush2.msra.mxu0 0.0
    %5465 = vmatprep.subr.mxu0 0.0
    %5466 = vmatpush2.msra.mxu0 0.0
    %5467 = vmatprep.subr.mxu0 0.0
    %5468 = vmatpush2.msra.mxu0 0.0
    %5469 = vmatprep.subr.mxu0 0.0
    %5470 = vmatpush2.msra.mxu0 0.0
    %5471 = vmatprep.subr.mxu0 0.0
    %5472 = vmatpush2.msra.mxu0 0.0
    %5473 = vmatprep.subr.mxu0 0.0
    %5474 = vmatpush2.msra.mxu0 0.0
    %5475 = vmatprep.subr.mxu0 0.0
    %5476 = vmatpush2.msra.mxu0 0.0
    %5477 = vmatprep.subr.mxu0 0.0
    %5478 = vmatpush2.msra.mxu0 0.0
    %5479 = vmatprep.subr.mxu0 0.0
    %5480 = vmatpush2.msra.mxu0 0.0
    %5481 = vmatprep.subr.mxu0 0.0
    %5482 = vmatpush2.msra.mxu0 0.0
    %5483 = vmatprep.subr.mxu0 0.0
    %5484 = vmatpush2.msra.mxu0 0.0
    %5485 = vmatprep.subr.mxu0 0.0
    %5486 = vmatpush2.msra.mxu0 0.0
    %5487 = vmatprep.mubr.f32.mxu0 0.0
    %5488 = vmatmul.mubr.f32.gmra.mxu0 %v5421
    %v5489 = vpop.f32.mrf.mxu0
    %v5490 = vadd.f32 0.0, %v5489
    %v5491 = vpop.f32.mrf.mxu0
    %5492 = vdwg.mxu0
    %v5493 = vsel %vm994, %v5214, 0
    %5495 = vmatprep.subr.mxu0 0.0
    %5496 = vmatpush1.msra.mxu0 0.0
    %5497 = vmatprep.subr.mxu0 0.0
    %5498 = vmatpush1.msra.mxu0 0.0
    %5499 = vmatprep.subr.mxu0 0.0
    %5500 = vmatpush1.msra.mxu0 0.0
    %5501 = vmatprep.subr.mxu0 0.0
    %5502 = vmatpush1.msra.mxu0 0.0
    %5503 = vmatprep.subr.mxu0 0.0
    %5504 = vmatpush1.msra.mxu0 0.0
    %5505 = vmatprep.subr.mxu0 0.0
    %5506 = vmatpush1.msra.mxu0 0.0
    %5507 = vmatprep.subr.mxu0 0.0
    %5508 = vmatpush1.msra.mxu0 0.0
    %5509 = vmatprep.subr.mxu0 0.0
    %5510 = vmatpush1.msra.mxu0 0.0
    %5511 = vmatprep.subr.mxu0 0.0
    %5512 = vmatpush1.msra.mxu0 0.0
    %5513 = vmatprep.subr.mxu0 0.0
    %5514 = vmatpush1.msra.mxu0 0.0
    %5515 = vmatprep.subr.mxu0 0.0
    %5516 = vmatpush1.msra.mxu0 0.0
    %5517 = vmatprep.subr.mxu0 0.0
    %5518 = vmatpush1.msra.mxu0 0.0
    %5519 = vmatprep.subr.mxu0 0.0
    %5520 = vmatpush1.msra.mxu0 %v692
    %5521 = vmatprep.subr.mxu0 0.0
    %5522 = vmatpush1.msra.mxu0 %v691
    %5523 = vmatprep.subr.mxu0 0.0
    %5524 = vmatpush1.msra.mxu0 %v690
    %5525 = vmatprep.subr.mxu0 0.0
    %5526 = vmatpush1.msra.mxu0 %v689
    %5527 = vmatprep.subr.mxu0 0.0
    %5528 = vmatpush2.msra.mxu0 0.0
    %5529 = vmatprep.subr.mxu0 0.0
    %5530 = vmatpush2.msra.mxu0 0.0
    %5531 = vmatprep.subr.mxu0 0.0
    %5532 = vmatpush2.msra.mxu0 0.0
    %5533 = vmatprep.subr.mxu0 0.0
    %5534 = vmatpush2.msra.mxu0 0.0
    %5535 = vmatprep.subr.mxu0 0.0
    %5536 = vmatpush2.msra.mxu0 0.0
    %5537 = vmatprep.subr.mxu0 0.0
    %5538 = vmatpush2.msra.mxu0 0.0
    %5539 = vmatprep.subr.mxu0 0.0
    %5540 = vmatpush2.msra.mxu0 0.0
    %5541 = vmatprep.subr.mxu0 0.0
    %5542 = vmatpush2.msra.mxu0 0.0
    %5543 = vmatprep.subr.mxu0 0.0
    %5544 = vmatpush2.msra.mxu0 0.0
    %5545 = vmatprep.subr.mxu0 0.0
    %5546 = vmatpush2.msra.mxu0 0.0
    %5547 = vmatprep.subr.mxu0 0.0
    %5548 = vmatpush2.msra.mxu0 0.0
    %5549 = vmatprep.subr.mxu0 0.0
    %5550 = vmatpush2.msra.mxu0 0.0
    %5551 = vmatprep.subr.mxu0 0.0
    %5552 = vmatpush2.msra.mxu0 0.0
    %5553 = vmatprep.subr.mxu0 0.0
    %5554 = vmatpush2.msra.mxu0 0.0
    %5555 = vmatprep.subr.mxu0 0.0
    %5556 = vmatpush2.msra.mxu0 0.0
    %5557 = vmatprep.subr.mxu0 0.0
    %5558 = vmatpush2.msra.mxu0 0.0
    %5559 = vmatprep.mubr.f32.mxu0 0.0
    %5560 = vmatmul.mubr.f32.gmra.mxu0 %v5493
    %v5561 = vpop.f32.mrf.mxu0
    %v5562 = vadd.f32 %v5490, %v5561
    %v5563 = vpop.f32.mrf.mxu0
    %5564 = vdwg.mxu0
    %5565 = vmatprep.subr.mxu0 0.0
    %5566 = vmatpush1.msra.mxu0 0.0
    %5567 = vmatprep.subr.mxu0 0.0
    %5568 = vmatpush1.msra.mxu0 0.0
    %5569 = vmatprep.subr.mxu0 0.0
    %5570 = vmatpush1.msra.mxu0 0.0
    %5571 = vmatprep.subr.mxu0 0.0
    %5572 = vmatpush1.msra.mxu0 0.0
    %5573 = vmatprep.subr.mxu0 0.0
    %5574 = vmatpush1.msra.mxu0 0.0
    %5575 = vmatprep.subr.mxu0 0.0
    %5576 = vmatpush1.msra.mxu0 0.0
    %5577 = vmatprep.subr.mxu0 0.0
    %5578 = vmatpush1.msra.mxu0 0.0
    %5579 = vmatprep.subr.mxu0 0.0
    %5580 = vmatpush1.msra.mxu0 0.0
    %5581 = vmatprep.subr.mxu0 0.0
    %5582 = vmatpush1.msra.mxu0 0.0
    %5583 = vmatprep.subr.mxu0 0.0
    %5584 = vmatpush1.msra.mxu0 0.0
    %5585 = vmatprep.subr.mxu0 0.0
    %5586 = vmatpush1.msra.mxu0 0.0
    %5587 = vmatprep.subr.mxu0 0.0
    %5588 = vmatpush1.msra.mxu0 0.0
    %5589 = vmatprep.subr.mxu0 0.0
    %5590 = vmatpush1.msra.mxu0 %v700
    %5591 = vmatprep.subr.mxu0 0.0
    %5592 = vmatpush1.msra.mxu0 %v699
    %5593 = vmatprep.subr.mxu0 0.0
    %5594 = vmatpush1.msra.mxu0 %v698
    %5595 = vmatprep.subr.mxu0 0.0
    %5596 = vmatpush1.msra.mxu0 %v697
    %5597 = vmatprep.subr.mxu0 0.0
    %5598 = vmatpush2.msra.mxu0 0.0
    %5599 = vmatprep.subr.mxu0 0.0
    %5600 = vmatpush2.msra.mxu0 0.0
    %5601 = vmatprep.subr.mxu0 0.0
    %5602 = vmatpush2.msra.mxu0 0.0
    %5603 = vmatprep.subr.mxu0 0.0
    %5604 = vmatpush2.msra.mxu0 0.0
    %5605 = vmatprep.subr.mxu0 0.0
    %5606 = vmatpush2.msra.mxu0 0.0
    %5607 = vmatprep.subr.mxu0 0.0
    %5608 = vmatpush2.msra.mxu0 0.0
    %5609 = vmatprep.subr.mxu0 0.0
    %5610 = vmatpush2.msra.mxu0 0.0
    %5611 = vmatprep.subr.mxu0 0.0
    %5612 = vmatpush2.msra.mxu0 0.0
    %5613 = vmatprep.subr.mxu0 0.0
    %5614 = vmatpush2.msra.mxu0 0.0
    %5615 = vmatprep.subr.mxu0 0.0
    %5616 = vmatpush2.msra.mxu0 0.0
    %5617 = vmatprep.subr.mxu0 0.0
    %5618 = vmatpush2.msra.mxu0 0.0
    %5619 = vmatprep.subr.mxu0 0.0
    %5620 = vmatpush2.msra.mxu0 0.0
    %5621 = vmatprep.subr.mxu0 0.0
    %5622 = vmatpush2.msra.mxu0 0.0
    %5623 = vmatprep.subr.mxu0 0.0
    %5624 = vmatpush2.msra.mxu0 0.0
    %5625 = vmatprep.subr.mxu0 0.0
    %5626 = vmatpush2.msra.mxu0 0.0
    %5627 = vmatprep.subr.mxu0 0.0
    %5628 = vmatpush2.msra.mxu0 0.0
    %5629 = vmatprep.mubr.f32.mxu0 0.0
    %5630 = vmatmul.mubr.f32.gmra.mxu0 %v5493
    %v5631 = vpop.f32.mrf.mxu0
    %v5632 = vadd.f32 0.0, %v5631
    %v5633 = vpop.f32.mrf.mxu0
    %5634 = vdwg.mxu0
    %v5635 = vadd.f32 %v5562, %v5632
    %v5636 = vadd.f32 %v5635, %v4734
    %v5637 = vxor.u32 %v5636, 2147483648
    %v5638 = vmul.f32 %v5637, 1.442695
    %v5639 = vpow.pop %v5638
    %v5640 = vadd.f32 %v5639, 1.0
    %v5641 = vrcp.pop %v5640
    %v5642 = vmul.f32 1.0, %v5641
    %v5643 = vtanh.pop %v5636
    %v5644 = vmul.f32 %v5642, %v5205
    %5646 = vrot.lane.b32.xlu0 %v5643, 64
    %v5647 = vpop.permute.xlu0 %5646
    %v5649 = vmul.f32 %v5642, %v5647
    %5651 = vrot.lane.b32.xlu0 %v5649, 32
    %v5652 = vpop.permute.xlu0 %5651
    %v5654 = vadd.f32 %v5644, %v5652
    %v5655 = vtanh.pop %v5654
    %5657 = vrot.lane.b32.xlu0 %v5655, 64
    %v5658 = vpop.permute.xlu0 %5657
    %v5660 = vmul.f32 %v5642, %v5658
    %5662 = vrot.lane.b32.xlu0 %v5660, 32
    %v5663 = vpop.permute.xlu0 %5662
    %v5664 = vsel %vm1229, %v5663, 0
    %5666 = vmatprep.subr.mxu0 0.0
    %5667 = vmatpush1.msra.mxu0 0.0
    %5668 = vmatprep.subr.mxu0 0.0
    %5669 = vmatpush1.msra.mxu0 0.0
    %5670 = vmatprep.subr.mxu0 0.0
    %5671 = vmatpush1.msra.mxu0 0.0
    %5672 = vmatprep.subr.mxu0 0.0
    %5673 = vmatpush1.msra.mxu0 0.0
    %5674 = vmatprep.subr.mxu0 0.0
    %5675 = vmatpush1.msra.mxu0 0.0
    %5676 = vmatprep.subr.mxu0 0.0
    %5677 = vmatpush1.msra.mxu0 0.0
    %5678 = vmatprep.subr.mxu0 0.0
    %5679 = vmatpush1.msra.mxu0 0.0
    %5680 = vmatprep.subr.mxu0 0.0
    %5681 = vmatpush1.msra.mxu0 0.0
    %5682 = vmatprep.subr.mxu0 0.0
    %5683 = vmatpush1.msra.mxu0 0.0
    %5684 = vmatprep.subr.mxu0 0.0
    %5685 = vmatpush1.msra.mxu0 0.0
    %5686 = vmatprep.subr.mxu0 0.0
    %5687 = vmatpush1.msra.mxu0 0.0
    %5688 = vmatprep.subr.mxu0 0.0
    %5689 = vmatpush1.msra.mxu0 0.0
    %5690 = vmatprep.subr.mxu0 0.0
    %5691 = vmatpush1.msra.mxu0 0.0
    %5692 = vmatprep.subr.mxu0 0.0
    %5693 = vmatpush1.msra.mxu0 0.0
    %5694 = vmatprep.subr.mxu0 0.0
    %5695 = vmatpush1.msra.mxu0 0.0
    %5696 = vmatprep.subr.mxu0 0.0
    %5697 = vmatpush1.msra.mxu0 %v5664
    %5698 = vmatprep.subr.mxu0 0.0
    %5699 = vmatpush2.msra.mxu0 0.0
    %5700 = vmatprep.subr.mxu0 0.0
    %5701 = vmatpush2.msra.mxu0 0.0
    %5702 = vmatprep.subr.mxu0 0.0
    %5703 = vmatpush2.msra.mxu0 0.0
    %5704 = vmatprep.subr.mxu0 0.0
    %5705 = vmatpush2.msra.mxu0 0.0
    %5706 = vmatprep.subr.mxu0 0.0
    %5707 = vmatpush2.msra.mxu0 0.0
    %5708 = vmatprep.subr.mxu0 0.0
    %5709 = vmatpush2.msra.mxu0 0.0
    %5710 = vmatprep.subr.mxu0 0.0
    %5711 = vmatpush2.msra.mxu0 0.0
    %5712 = vmatprep.subr.mxu0 0.0
    %5713 = vmatpush2.msra.mxu0 0.0
    %5714 = vmatprep.subr.mxu0 0.0
    %5715 = vmatpush2.msra.mxu0 0.0
    %5716 = vmatprep.subr.mxu0 0.0
    %5717 = vmatpush2.msra.mxu0 0.0
    %5718 = vmatprep.subr.mxu0 0.0
    %5719 = vmatpush2.msra.mxu0 0.0
    %5720 = vmatprep.subr.mxu0 0.0
    %5721 = vmatpush2.msra.mxu0 0.0
    %5722 = vmatprep.subr.mxu0 0.0
    %5723 = vmatpush2.msra.mxu0 0.0
    %5724 = vmatprep.subr.mxu0 0.0
    %5725 = vmatpush2.msra.mxu0 0.0
    %5726 = vmatprep.subr.mxu0 0.0
    %5727 = vmatpush2.msra.mxu0 0.0
    %5728 = vmatprep.subr.mxu0 0.0
    %5729 = vmatpush2.msra.mxu0 0.0
    %5730 = vmatprep.mubr.f32.mxu0 0.0
    %5731 = vmatmul.mubr.f32.gmra.mxu0 %v1911
    %v5732 = vpop.f32.mrf.mxu0
    %v5733 = vadd.f32 0.0, %v5732
    %v5734 = vpop.f32.mrf.mxu0
    %5735 = vmatprep.mubr.f32.mxu0 0.0
    %5736 = vmatmul.mubr.f32.gmra.mxu0 %v1914
    %v5737 = vpop.f32.mrf.mxu0
    %v5738 = vadd.f32 0.0, %v5737
    %v5739 = vpop.f32.mrf.mxu0
    %5740 = vdwg.mxu0
    %v5741 = vmul.f32 %v4065, %v5733
    %v5742 = vmul.f32 %v4066, %v5738
    %v5743 = vsel %vm994, %v5741, 0.0
    %5744 = vadd.xlane.f32.xlu0 %v5743
    %v5745 = vpop.xlane.xlu0 %5744
    %v5746 = vsel %vm994, %v5742, 0.0
    %5747 = vadd.xlane.f32.xlu0 %v5746
    %v5748 = vpop.xlane.xlu0 %5747
    %v5749 = vsel %vm4849, %v5745, -1e+30
    %v5750 = vsel %vm4850, %v5748, -1e+30
    %v5751 = vsel %vm1216, %v5749, -inf
    %v5752 = vsel %vm1216, %v5750, -inf
    %v5753 = vmax.f32 %v5751, %v5752
    %v5754 = vrot.slane %v5753, 4
    %v5755 = vmax.f32 %v5753, %v5754
    %v5756 = vrot.slane %v5755, 2
    %v5757 = vmax.f32 %v5755, %v5756
    %v5758 = vrot.slane %v5757, 1
    %v5759 = vmax.f32 %v5757, %v5758
    %v5760 = vmul.f32 %v941, %v5759
    %v5761 = vmul.f32 %v942, %v5759
    %v5762 = vsel %vm1216, %v5760, 0.0
    %5763 = vadd.xlane.f32.xlu0 %v5762
    %v5764 = vpop.xlane.xlu0 %5763
    %v5765 = vsel %vm1216, %v5761, 0.0
    %5766 = vadd.xlane.f32.xlu0 %v5765
    %v5767 = vpop.xlane.xlu0 %5766
    %v5768 = vsub.f32 %v5745, %v5764
    %v5769 = vsub.f32 %v5748, %v5767
    %v5770 = vmul.f32 %v5768, 1.442695
    %v5771 = vpow.pop %v5770
    %v5772 = vmul.f32 %v5769, 1.442695
    %v5773 = vpow.pop %v5772
    %v5774 = vmul.f32 %v941, %v5771
    %v5775 = vmul.f32 %v942, %v5773
    %v5776 = vsel %vm1216, %v5774, 0.0
    %v5777 = vsel %vm1216, %v5775, 0.0
    %v5778 = vadd.f32 %v5776, %v5777
    %v5779 = vrot.slane %v5778, 4
    %v5780 = vadd.f32 %v5778, %v5779
    %v5781 = vrot.slane %v5780, 2
    %v5782 = vadd.f32 %v5780, %v5781
    %v5783 = vrot.slane %v5782, 1
    %v5784 = vadd.f32 %v5782, %v5783
    %v5785 = vmul.f32 %v941, %v5784
    %v5786 = vmul.f32 %v942, %v5784
    %v5787 = vsel %vm1216, %v5785, 0.0
    %5788 = vadd.xlane.f32.xlu0 %v5787
    %v5789 = vpop.xlane.xlu0 %5788
    %v5790 = vsel %vm1216, %v5786, 0.0
    %5791 = vadd.xlane.f32.xlu0 %v5790
    %v5792 = vpop.xlane.xlu0 %5791
    %v5793 = vrcp.pop %v5789
    %v5794 = vmul.f32 %v5771, %v5793
    %v5795 = vrcp.pop %v5792
    %v5796 = vmul.f32 %v5773, %v5795
    %v5797 = vmul.f32 %v5794, %v4065
    %v5798 = vmul.f32 %v5796, %v4066
    %5799 = vmatprep.subr.mxu0 0.0
    %5800 = vmatpush1.msra.mxu0 0.0
    %5801 = vmatprep.subr.mxu0 0.0
    %5802 = vmatpush1.msra.mxu0 0.0
    %5803 = vmatprep.subr.mxu0 0.0
    %5804 = vmatpush1.msra.mxu0 0.0
    %5805 = vmatprep.subr.mxu0 0.0
    %5806 = vmatpush1.msra.mxu0 0.0
    %5807 = vmatprep.subr.mxu0 0.0
    %5808 = vmatpush1.msra.mxu0 0.0
    %5809 = vmatprep.subr.mxu0 0.0
    %5810 = vmatpush1.msra.mxu0 0.0
    %5811 = vmatprep.subr.mxu0 0.0
    %5812 = vmatpush1.msra.mxu0 0.0
    %5813 = vmatprep.subr.mxu0 0.0
    %5814 = vmatpush1.msra.mxu0 0.0
    %5815 = vmatprep.subr.mxu0 0.0
    %5816 = vmatpush1.msra.mxu0 0.0
    %5817 = vmatprep.subr.mxu0 0.0
    %5818 = vmatpush1.msra.mxu0 0.0
    %5819 = vmatprep.subr.mxu0 0.0
    %5820 = vmatpush1.msra.mxu0 0.0
    %5821 = vmatprep.subr.mxu0 0.0
    %5822 = vmatpush1.msra.mxu0 0.0
    %5823 = vmatprep.subr.mxu0 0.0
    %5824 = vmatpush1.msra.mxu0 0.0
    %5825 = vmatprep.subr.mxu0 0.0
    %5826 = vmatpush1.msra.mxu0 0.0
    %5827 = vmatprep.subr.mxu0 0.0
    %5828 = vmatpush1.msra.mxu0 %v5798
    %5829 = vmatprep.subr.mxu0 0.0
    %5830 = vmatpush1.msra.mxu0 %v5797
    %5831 = vmatprep.subr.mxu0 0.0
    %5832 = vmatpush2.msra.mxu0 0.0
    %5833 = vmatprep.subr.mxu0 0.0
    %5834 = vmatpush2.msra.mxu0 0.0
    %5835 = vmatprep.subr.mxu0 0.0
    %5836 = vmatpush2.msra.mxu0 0.0
    %5837 = vmatprep.subr.mxu0 0.0
    %5838 = vmatpush2.msra.mxu0 0.0
    %5839 = vmatprep.subr.mxu0 0.0
    %5840 = vmatpush2.msra.mxu0 0.0
    %5841 = vmatprep.subr.mxu0 0.0
    %5842 = vmatpush2.msra.mxu0 0.0
    %5843 = vmatprep.subr.mxu0 0.0
    %5844 = vmatpush2.msra.mxu0 0.0
    %5845 = vmatprep.subr.mxu0 0.0
    %5846 = vmatpush2.msra.mxu0 0.0
    %5847 = vmatprep.subr.mxu0 0.0
    %5848 = vmatpush2.msra.mxu0 0.0
    %5849 = vmatprep.subr.mxu0 0.0
    %5850 = vmatpush2.msra.mxu0 0.0
    %5851 = vmatprep.subr.mxu0 0.0
    %5852 = vmatpush2.msra.mxu0 0.0
    %5853 = vmatprep.subr.mxu0 0.0
    %5854 = vmatpush2.msra.mxu0 0.0
    %5855 = vmatprep.subr.mxu0 0.0
    %5856 = vmatpush2.msra.mxu0 0.0
    %5857 = vmatprep.subr.mxu0 0.0
    %5858 = vmatpush2.msra.mxu0 0.0
    %5859 = vmatprep.subr.mxu0 0.0
    %5860 = vmatpush2.msra.mxu0 0.0
    %5861 = vmatprep.subr.mxu0 0.0
    %5862 = vmatpush2.msra.mxu0 0.0
    %5863 = vmatprep.mubr.f32.mxu0 0.0
    %5864 = vmatmul.mubr.f32.gmra.mxu0 %v2339
    %v5865 = vpop.f32.mrf.mxu0
    %v5866 = vadd.f32 0.0, %v5865
    %v5867 = vpop.f32.mrf.mxu0
    %5868 = vdwg.mxu0
    %5869 = vmatprep.subr.mxu0 0.0
    %5870 = vmatpush1.msra.mxu0 0.0
    %5871 = vmatprep.subr.mxu0 0.0
    %5872 = vmatpush1.msra.mxu0 0.0
    %5873 = vmatprep.subr.mxu0 0.0
    %5874 = vmatpush1.msra.mxu0 0.0
    %5875 = vmatprep.subr.mxu0 0.0
    %5876 = vmatpush1.msra.mxu0 0.0
    %5877 = vmatprep.subr.mxu0 0.0
    %5878 = vmatpush1.msra.mxu0 0.0
    %5879 = vmatprep.subr.mxu0 0.0
    %5880 = vmatpush1.msra.mxu0 0.0
    %5881 = vmatprep.subr.mxu0 0.0
    %5882 = vmatpush1.msra.mxu0 0.0
    %5883 = vmatprep.subr.mxu0 0.0
    %5884 = vmatpush1.msra.mxu0 0.0
    %5885 = vmatprep.subr.mxu0 0.0
    %5886 = vmatpush1.msra.mxu0 0.0
    %5887 = vmatprep.subr.mxu0 0.0
    %5888 = vmatpush1.msra.mxu0 0.0
    %5889 = vmatprep.subr.mxu0 0.0
    %5890 = vmatpush1.msra.mxu0 0.0
    %5891 = vmatprep.subr.mxu0 0.0
    %5892 = vmatpush1.msra.mxu0 0.0
    %5893 = vmatprep.subr.mxu0 0.0
    %5894 = vmatpush1.msra.mxu0 %v709
    %5895 = vmatprep.subr.mxu0 0.0
    %5896 = vmatpush1.msra.mxu0 %v708
    %5897 = vmatprep.subr.mxu0 0.0
    %5898 = vmatpush1.msra.mxu0 %v707
    %5899 = vmatprep.subr.mxu0 0.0
    %5900 = vmatpush1.msra.mxu0 %v706
    %5901 = vmatprep.subr.mxu0 0.0
    %5902 = vmatpush2.msra.mxu0 0.0
    %5903 = vmatprep.subr.mxu0 0.0
    %5904 = vmatpush2.msra.mxu0 0.0
    %5905 = vmatprep.subr.mxu0 0.0
    %5906 = vmatpush2.msra.mxu0 0.0
    %5907 = vmatprep.subr.mxu0 0.0
    %5908 = vmatpush2.msra.mxu0 0.0
    %5909 = vmatprep.subr.mxu0 0.0
    %5910 = vmatpush2.msra.mxu0 0.0
    %5911 = vmatprep.subr.mxu0 0.0
    %5912 = vmatpush2.msra.mxu0 0.0
    %5913 = vmatprep.subr.mxu0 0.0
    %5914 = vmatpush2.msra.mxu0 0.0
    %5915 = vmatprep.subr.mxu0 0.0
    %5916 = vmatpush2.msra.mxu0 0.0
    %5917 = vmatprep.subr.mxu0 0.0
    %5918 = vmatpush2.msra.mxu0 0.0
    %5919 = vmatprep.subr.mxu0 0.0
    %5920 = vmatpush2.msra.mxu0 0.0
    %5921 = vmatprep.subr.mxu0 0.0
    %5922 = vmatpush2.msra.mxu0 0.0
    %5923 = vmatprep.subr.mxu0 0.0
    %5924 = vmatpush2.msra.mxu0 0.0
    %5925 = vmatprep.subr.mxu0 0.0
    %5926 = vmatpush2.msra.mxu0 0.0
    %5927 = vmatprep.subr.mxu0 0.0
    %5928 = vmatpush2.msra.mxu0 0.0
    %5929 = vmatprep.subr.mxu0 0.0
    %5930 = vmatpush2.msra.mxu0 0.0
    %5931 = vmatprep.subr.mxu0 0.0
    %5932 = vmatpush2.msra.mxu0 0.0
    %5933 = vmatprep.mubr.f32.mxu0 0.0
    %5934 = vmatmul.mubr.f32.gmra.mxu0 %v4517
    %v5935 = vpop.f32.mrf.mxu0
    %v5936 = vadd.f32 0.0, %v5935
    %v5937 = vpop.f32.mrf.mxu0
    %5938 = vdwg.mxu0
    %5939 = vmatprep.subr.mxu0 0.0
    %5940 = vmatpush1.msra.mxu0 0.0
    %5941 = vmatprep.subr.mxu0 0.0
    %5942 = vmatpush1.msra.mxu0 0.0
    %5943 = vmatprep.subr.mxu0 0.0
    %5944 = vmatpush1.msra.mxu0 0.0
    %5945 = vmatprep.subr.mxu0 0.0
    %5946 = vmatpush1.msra.mxu0 0.0
    %5947 = vmatprep.subr.mxu0 0.0
    %5948 = vmatpush1.msra.mxu0 0.0
    %5949 = vmatprep.subr.mxu0 0.0
    %5950 = vmatpush1.msra.mxu0 0.0
    %5951 = vmatprep.subr.mxu0 0.0
    %5952 = vmatpush1.msra.mxu0 0.0
    %5953 = vmatprep.subr.mxu0 0.0
    %5954 = vmatpush1.msra.mxu0 0.0
    %5955 = vmatprep.subr.mxu0 0.0
    %5956 = vmatpush1.msra.mxu0 0.0
    %5957 = vmatprep.subr.mxu0 0.0
    %5958 = vmatpush1.msra.mxu0 0.0
    %5959 = vmatprep.subr.mxu0 0.0
    %5960 = vmatpush1.msra.mxu0 0.0
    %5961 = vmatprep.subr.mxu0 0.0
    %5962 = vmatpush1.msra.mxu0 0.0
    %5963 = vmatprep.subr.mxu0 0.0
    %5964 = vmatpush1.msra.mxu0 %v705
    %5965 = vmatprep.subr.mxu0 0.0
    %5966 = vmatpush1.msra.mxu0 %v704
    %5967 = vmatprep.subr.mxu0 0.0
    %5968 = vmatpush1.msra.mxu0 %v703
    %5969 = vmatprep.subr.mxu0 0.0
    %5970 = vmatpush1.msra.mxu0 %v702
    %5971 = vmatprep.subr.mxu0 0.0
    %5972 = vmatpush2.msra.mxu0 0.0
    %5973 = vmatprep.subr.mxu0 0.0
    %5974 = vmatpush2.msra.mxu0 0.0
    %5975 = vmatprep.subr.mxu0 0.0
    %5976 = vmatpush2.msra.mxu0 0.0
    %5977 = vmatprep.subr.mxu0 0.0
    %5978 = vmatpush2.msra.mxu0 0.0
    %5979 = vmatprep.subr.mxu0 0.0
    %5980 = vmatpush2.msra.mxu0 0.0
    %5981 = vmatprep.subr.mxu0 0.0
    %5982 = vmatpush2.msra.mxu0 0.0
    %5983 = vmatprep.subr.mxu0 0.0
    %5984 = vmatpush2.msra.mxu0 0.0
    %5985 = vmatprep.subr.mxu0 0.0
    %5986 = vmatpush2.msra.mxu0 0.0
    %5987 = vmatprep.subr.mxu0 0.0
    %5988 = vmatpush2.msra.mxu0 0.0
    %5989 = vmatprep.subr.mxu0 0.0
    %5990 = vmatpush2.msra.mxu0 0.0
    %5991 = vmatprep.subr.mxu0 0.0
    %5992 = vmatpush2.msra.mxu0 0.0
    %5993 = vmatprep.subr.mxu0 0.0
    %5994 = vmatpush2.msra.mxu0 0.0
    %5995 = vmatprep.subr.mxu0 0.0
    %5996 = vmatpush2.msra.mxu0 0.0
    %5997 = vmatprep.subr.mxu0 0.0
    %5998 = vmatpush2.msra.mxu0 0.0
    %5999 = vmatprep.subr.mxu0 0.0
    %6000 = vmatpush2.msra.mxu0 0.0
    %6001 = vmatprep.subr.mxu0 0.0
    %6002 = vmatpush2.msra.mxu0 0.0
    %6003 = vmatprep.mubr.f32.mxu0 0.0
    %6004 = vmatmul.mubr.f32.gmra.mxu0 %v4517
    %v6005 = vpop.f32.mrf.mxu0
    %v6006 = vadd.f32 %v5936, %v6005
    %v6007 = vpop.f32.mrf.mxu0
    %6008 = vdwg.mxu0
    %6009 = vmatprep.subr.mxu0 0.0
    %6010 = vmatpush1.msra.mxu0 0.0
    %6011 = vmatprep.subr.mxu0 0.0
    %6012 = vmatpush1.msra.mxu0 0.0
    %6013 = vmatprep.subr.mxu0 0.0
    %6014 = vmatpush1.msra.mxu0 0.0
    %6015 = vmatprep.subr.mxu0 0.0
    %6016 = vmatpush1.msra.mxu0 0.0
    %6017 = vmatprep.subr.mxu0 0.0
    %6018 = vmatpush1.msra.mxu0 0.0
    %6019 = vmatprep.subr.mxu0 0.0
    %6020 = vmatpush1.msra.mxu0 0.0
    %6021 = vmatprep.subr.mxu0 0.0
    %6022 = vmatpush1.msra.mxu0 0.0
    %6023 = vmatprep.subr.mxu0 0.0
    %6024 = vmatpush1.msra.mxu0 0.0
    %6025 = vmatprep.subr.mxu0 0.0
    %6026 = vmatpush1.msra.mxu0 0.0
    %6027 = vmatprep.subr.mxu0 0.0
    %6028 = vmatpush1.msra.mxu0 0.0
    %6029 = vmatprep.subr.mxu0 0.0
    %6030 = vmatpush1.msra.mxu0 0.0
    %6031 = vmatprep.subr.mxu0 0.0
    %6032 = vmatpush1.msra.mxu0 0.0
    %6033 = vmatprep.subr.mxu0 0.0
    %6034 = vmatpush1.msra.mxu0 %v713
    %6035 = vmatprep.subr.mxu0 0.0
    %6036 = vmatpush1.msra.mxu0 %v712
    %6037 = vmatprep.subr.mxu0 0.0
    %6038 = vmatpush1.msra.mxu0 %v711
    %6039 = vmatprep.subr.mxu0 0.0
    %6040 = vmatpush1.msra.mxu0 %v710
    %6041 = vmatprep.subr.mxu0 0.0
    %6042 = vmatpush2.msra.mxu0 0.0
    %6043 = vmatprep.subr.mxu0 0.0
    %6044 = vmatpush2.msra.mxu0 0.0
    %6045 = vmatprep.subr.mxu0 0.0
    %6046 = vmatpush2.msra.mxu0 0.0
    %6047 = vmatprep.subr.mxu0 0.0
    %6048 = vmatpush2.msra.mxu0 0.0
    %6049 = vmatprep.subr.mxu0 0.0
    %6050 = vmatpush2.msra.mxu0 0.0
    %6051 = vmatprep.subr.mxu0 0.0
    %6052 = vmatpush2.msra.mxu0 0.0
    %6053 = vmatprep.subr.mxu0 0.0
    %6054 = vmatpush2.msra.mxu0 0.0
    %6055 = vmatprep.subr.mxu0 0.0
    %6056 = vmatpush2.msra.mxu0 0.0
    %6057 = vmatprep.subr.mxu0 0.0
    %6058 = vmatpush2.msra.mxu0 0.0
    %6059 = vmatprep.subr.mxu0 0.0
    %6060 = vmatpush2.msra.mxu0 0.0
    %6061 = vmatprep.subr.mxu0 0.0
    %6062 = vmatpush2.msra.mxu0 0.0
    %6063 = vmatprep.subr.mxu0 0.0
    %6064 = vmatpush2.msra.mxu0 0.0
    %6065 = vmatprep.subr.mxu0 0.0
    %6066 = vmatpush2.msra.mxu0 0.0
    %6067 = vmatprep.subr.mxu0 0.0
    %6068 = vmatpush2.msra.mxu0 0.0
    %6069 = vmatprep.subr.mxu0 0.0
    %6070 = vmatpush2.msra.mxu0 0.0
    %6071 = vmatprep.subr.mxu0 0.0
    %6072 = vmatpush2.msra.mxu0 0.0
    %6073 = vmatprep.mubr.f32.mxu0 0.0
    %6074 = vmatmul.mubr.f32.gmra.mxu0 %v4517
    %v6075 = vpop.f32.mrf.mxu0
    %v6076 = vadd.f32 0.0, %v6075
    %v6077 = vpop.f32.mrf.mxu0
    %6078 = vdwg.mxu0
    %v6079 = vadd.f32 %v6006, %v6076
    %v6081 = vlaneseq
    %v6082 = vshrl.u32 %v6081, 7
    %v6083 = vsub.s32 0, %v6082
    %v6084 = vrot.slane %v714, %v6083
    %v6086 = vadd.f32 %v6079, %v6084
    %v6087 = vxor.u32 %v6086, 2147483648
    %v6088 = vmul.f32 %v6087, 1.442695
    %v6089 = vpow.pop %v6088
    %v6090 = vadd.f32 %v6089, 1.0
    %v6091 = vrcp.pop %v6090
    %v6092 = vmul.f32 1.0, %v6091
    %v6093 = vtanh.pop %v6086
    %v6094 = vmul.f32 %v6092, 0.0
    %6096 = vrot.lane.b32.xlu0 %v6093, 64
    %v6097 = vpop.permute.xlu0 %6096
    %v6099 = vmul.f32 %v6092, %v6097
    %6101 = vrot.lane.b32.xlu0 %v6099, 32
    %v6102 = vpop.permute.xlu0 %6101
    %v6104 = vadd.f32 %v6094, %v6102
    %v6105 = vtanh.pop %v6104
    %6107 = vrot.lane.b32.xlu0 %v6105, 64
    %v6108 = vpop.permute.xlu0 %6107
    %v6110 = vmul.f32 %v6092, %v6108
    %6112 = vrot.lane.b32.xlu0 %v6110, 32
    %v6113 = vpop.permute.xlu0 %6112
    %v6114 = vsel %vm1229, %v6113, 0
    %6116 = vmatprep.subr.mxu0 0.0
    %6117 = vmatpush1.msra.mxu0 0.0
    %6118 = vmatprep.subr.mxu0 0.0
    %6119 = vmatpush1.msra.mxu0 0.0
    %6120 = vmatprep.subr.mxu0 0.0
    %6121 = vmatpush1.msra.mxu0 0.0
    %6122 = vmatprep.subr.mxu0 0.0
    %6123 = vmatpush1.msra.mxu0 0.0
    %6124 = vmatprep.subr.mxu0 0.0
    %6125 = vmatpush1.msra.mxu0 0.0
    %6126 = vmatprep.subr.mxu0 0.0
    %6127 = vmatpush1.msra.mxu0 0.0
    %6128 = vmatprep.subr.mxu0 0.0
    %6129 = vmatpush1.msra.mxu0 0.0
    %6130 = vmatprep.subr.mxu0 0.0
    %6131 = vmatpush1.msra.mxu0 0.0
    %6132 = vmatprep.subr.mxu0 0.0
    %6133 = vmatpush1.msra.mxu0 0.0
    %6134 = vmatprep.subr.mxu0 0.0
    %6135 = vmatpush1.msra.mxu0 0.0
    %6136 = vmatprep.subr.mxu0 0.0
    %6137 = vmatpush1.msra.mxu0 0.0
    %6138 = vmatprep.subr.mxu0 0.0
    %6139 = vmatpush1.msra.mxu0 0.0
    %6140 = vmatprep.subr.mxu0 0.0
    %6141 = vmatpush1.msra.mxu0 0.0
    %6142 = vmatprep.subr.mxu0 0.0
    %6143 = vmatpush1.msra.mxu0 0.0
    %6144 = vmatprep.subr.mxu0 0.0
    %6145 = vmatpush1.msra.mxu0 0.0
    %6146 = vmatprep.subr.mxu0 0.0
    %6147 = vmatpush1.msra.mxu0 %v6114
    %6148 = vmatprep.subr.mxu0 0.0
    %6149 = vmatpush2.msra.mxu0 0.0
    %6150 = vmatprep.subr.mxu0 0.0
    %6151 = vmatpush2.msra.mxu0 0.0
    %6152 = vmatprep.subr.mxu0 0.0
    %6153 = vmatpush2.msra.mxu0 0.0
    %6154 = vmatprep.subr.mxu0 0.0
    %6155 = vmatpush2.msra.mxu0 0.0
    %6156 = vmatprep.subr.mxu0 0.0
    %6157 = vmatpush2.msra.mxu0 0.0
    %6158 = vmatprep.subr.mxu0 0.0
    %6159 = vmatpush2.msra.mxu0 0.0
    %6160 = vmatprep.subr.mxu0 0.0
    %6161 = vmatpush2.msra.mxu0 0.0
    %6162 = vmatprep.subr.mxu0 0.0
    %6163 = vmatpush2.msra.mxu0 0.0
    %6164 = vmatprep.subr.mxu0 0.0
    %6165 = vmatpush2.msra.mxu0 0.0
    %6166 = vmatprep.subr.mxu0 0.0
    %6167 = vmatpush2.msra.mxu0 0.0
    %6168 = vmatprep.subr.mxu0 0.0
    %6169 = vmatpush2.msra.mxu0 0.0
    %6170 = vmatprep.subr.mxu0 0.0
    %6171 = vmatpush2.msra.mxu0 0.0
    %6172 = vmatprep.subr.mxu0 0.0
    %6173 = vmatpush2.msra.mxu0 0.0
    %6174 = vmatprep.subr.mxu0 0.0
    %6175 = vmatpush2.msra.mxu0 0.0
    %6176 = vmatprep.subr.mxu0 0.0
    %6177 = vmatpush2.msra.mxu0 0.0
    %6178 = vmatprep.subr.mxu0 0.0
    %6179 = vmatpush2.msra.mxu0 0.0
    %6180 = vmatprep.mubr.f32.mxu0 0.0
    %6181 = vmatmul.mubr.f32.gmra.mxu0 %v1218
    %v6182 = vpop.f32.mrf.mxu0
    %v6183 = vadd.f32 0.0, %v6182
    %v6184 = vpop.f32.mrf.mxu0
    %6185 = vmatprep.mubr.f32.mxu0 0.0
    %6186 = vmatmul.mubr.f32.gmra.mxu0 %v1221
    %v6187 = vpop.f32.mrf.mxu0
    %v6188 = vadd.f32 0.0, %v6187
    %v6189 = vpop.f32.mrf.mxu0
    %6190 = vmatprep.mubr.f32.mxu0 0.0
    %6191 = vmatmul.mubr.f32.gmra.mxu0 %v1224
    %v6192 = vpop.f32.mrf.mxu0
    %v6193 = vadd.f32 0.0, %v6192
    %v6194 = vpop.f32.mrf.mxu0
    %6195 = vmatprep.mubr.f32.mxu0 0.0
    %6196 = vmatmul.mubr.f32.gmra.mxu0 %v1227
    %v6197 = vpop.f32.mrf.mxu0
    %v6198 = vadd.f32 0.0, %v6197
    %v6199 = vpop.f32.mrf.mxu0
    %6200 = vdwg.mxu0
    %v6201 = vmul.f32 %v3567, %v6183
    %v6202 = vmul.f32 %v3568, %v6188
    %v6203 = vmul.f32 %v3569, %v6193
    %v6204 = vmul.f32 %v3570, %v6198
    %v6205 = vsel %vm994, %v6201, 0.0
    %6206 = vadd.xlane.f32.xlu0 %v6205
    %v6207 = vpop.xlane.xlu0 %6206
    %v6208 = vsel %vm994, %v6202, 0.0
    %6209 = vadd.xlane.f32.xlu0 %v6208
    %v6210 = vpop.xlane.xlu0 %6209
    %v6211 = vsel %vm994, %v6203, 0.0
    %6212 = vadd.xlane.f32.xlu0 %v6211
    %v6213 = vpop.xlane.xlu0 %6212
    %v6214 = vsel %vm994, %v6204, 0.0
    %6215 = vadd.xlane.f32.xlu0 %v6214
    %v6216 = vpop.xlane.xlu0 %6215
    %vm6217 = vcmp.gt.f32.partialorder %v963, 0.5
    %vm6218 = vcmp.gt.f32.partialorder %v964, 0.5
    %vm6219 = vcmp.gt.f32.partialorder %v965, 0.5
    %vm6220 = vcmp.gt.f32.partialorder %v966, 0.5
    %v6221 = vsel %vm6217, %v6207, -1e+30
    %v6222 = vsel %vm6218, %v6210, -1e+30
    %v6223 = vsel %vm6219, %v6213, -1e+30
    %v6224 = vsel %vm6220, %v6216, -1e+30
    %v6225 = vsel %vm1216, %v6221, -inf
    %v6226 = vsel %vm1216, %v6222, -inf
    %v6227 = vsel %vm1216, %v6223, -inf
    %v6228 = vsel %vm1216, %v6224, -inf
    %v6229 = vmax.f32 %v6225, %v6226
    %v6230 = vmax.f32 %v6227, %v6228
    %v6231 = vmax.f32 %v6229, %v6230
    %v6232 = vrot.slane %v6231, 4
    %v6233 = vmax.f32 %v6231, %v6232
    %v6234 = vrot.slane %v6233, 2
    %v6235 = vmax.f32 %v6233, %v6234
    %v6236 = vrot.slane %v6235, 1
    %v6237 = vmax.f32 %v6235, %v6236
    %v6238 = vmul.f32 %v963, %v6237
    %v6239 = vmul.f32 %v964, %v6237
    %v6240 = vmul.f32 %v965, %v6237
    %v6241 = vmul.f32 %v966, %v6237
    %v6242 = vsel %vm1216, %v6238, 0.0
    %6243 = vadd.xlane.f32.xlu0 %v6242
    %v6244 = vpop.xlane.xlu0 %6243
    %v6245 = vsel %vm1216, %v6239, 0.0
    %6246 = vadd.xlane.f32.xlu0 %v6245
    %v6247 = vpop.xlane.xlu0 %6246
    %v6248 = vsel %vm1216, %v6240, 0.0
    %6249 = vadd.xlane.f32.xlu0 %v6248
    %v6250 = vpop.xlane.xlu0 %6249
    %v6251 = vsel %vm1216, %v6241, 0.0
    %6252 = vadd.xlane.f32.xlu0 %v6251
    %v6253 = vpop.xlane.xlu0 %6252
    %v6254 = vsub.f32 %v6207, %v6244
    %v6255 = vsub.f32 %v6210, %v6247
    %v6256 = vsub.f32 %v6213, %v6250
    %v6257 = vsub.f32 %v6216, %v6253
    %v6258 = vmul.f32 %v6254, 1.442695
    %v6259 = vpow.pop %v6258
    %v6260 = vmul.f32 %v6255, 1.442695
    %v6261 = vpow.pop %v6260
    %v6262 = vmul.f32 %v6256, 1.442695
    %v6263 = vpow.pop %v6262
    %v6264 = vmul.f32 %v6257, 1.442695
    %v6265 = vpow.pop %v6264
    %v6266 = vmul.f32 %v963, %v6259
    %v6267 = vmul.f32 %v964, %v6261
    %v6268 = vmul.f32 %v965, %v6263
    %v6269 = vmul.f32 %v966, %v6265
    %v6270 = vsel %vm1216, %v6266, 0.0
    %v6271 = vsel %vm1216, %v6267, 0.0
    %v6272 = vadd.f32 %v6270, %v6271
    %v6273 = vsel %vm1216, %v6268, 0.0
    %v6274 = vadd.f32 %v6272, %v6273
    %v6275 = vsel %vm1216, %v6269, 0.0
    %v6276 = vadd.f32 %v6274, %v6275
    %v6277 = vrot.slane %v6276, 4
    %v6278 = vadd.f32 %v6276, %v6277
    %v6279 = vrot.slane %v6278, 2
    %v6280 = vadd.f32 %v6278, %v6279
    %v6281 = vrot.slane %v6280, 1
    %v6282 = vadd.f32 %v6280, %v6281
    %v6283 = vmul.f32 %v963, %v6282
    %v6284 = vmul.f32 %v964, %v6282
    %v6285 = vmul.f32 %v965, %v6282
    %v6286 = vmul.f32 %v966, %v6282
    %v6287 = vsel %vm1216, %v6283, 0.0
    %6288 = vadd.xlane.f32.xlu0 %v6287
    %v6289 = vpop.xlane.xlu0 %6288
    %v6290 = vsel %vm1216, %v6284, 0.0
    %6291 = vadd.xlane.f32.xlu0 %v6290
    %v6292 = vpop.xlane.xlu0 %6291
    %v6293 = vsel %vm1216, %v6285, 0.0
    %6294 = vadd.xlane.f32.xlu0 %v6293
    %v6295 = vpop.xlane.xlu0 %6294
    %v6296 = vsel %vm1216, %v6286, 0.0
    %6297 = vadd.xlane.f32.xlu0 %v6296
    %v6298 = vpop.xlane.xlu0 %6297
    %v6299 = vrcp.pop %v6289
    %v6300 = vmul.f32 %v6259, %v6299
    %v6301 = vrcp.pop %v6292
    %v6302 = vmul.f32 %v6261, %v6301
    %v6303 = vrcp.pop %v6295
    %v6304 = vmul.f32 %v6263, %v6303
    %v6305 = vrcp.pop %v6298
    %v6306 = vmul.f32 %v6265, %v6305
    %v6307 = vmul.f32 %v6300, %v3567
    %v6308 = vmul.f32 %v6302, %v3568
    %v6309 = vmul.f32 %v6304, %v3569
    %v6310 = vmul.f32 %v6306, %v3570
    %6311 = vmatprep.subr.mxu0 0.0
    %6312 = vmatpush1.msra.mxu0 0.0
    %6313 = vmatprep.subr.mxu0 0.0
    %6314 = vmatpush1.msra.mxu0 0.0
    %6315 = vmatprep.subr.mxu0 0.0
    %6316 = vmatpush1.msra.mxu0 0.0
    %6317 = vmatprep.subr.mxu0 0.0
    %6318 = vmatpush1.msra.mxu0 0.0
    %6319 = vmatprep.subr.mxu0 0.0
    %6320 = vmatpush1.msra.mxu0 0.0
    %6321 = vmatprep.subr.mxu0 0.0
    %6322 = vmatpush1.msra.mxu0 0.0
    %6323 = vmatprep.subr.mxu0 0.0
    %6324 = vmatpush1.msra.mxu0 0.0
    %6325 = vmatprep.subr.mxu0 0.0
    %6326 = vmatpush1.msra.mxu0 0.0
    %6327 = vmatprep.subr.mxu0 0.0
    %6328 = vmatpush1.msra.mxu0 0.0
    %6329 = vmatprep.subr.mxu0 0.0
    %6330 = vmatpush1.msra.mxu0 0.0
    %6331 = vmatprep.subr.mxu0 0.0
    %6332 = vmatpush1.msra.mxu0 0.0
    %6333 = vmatprep.subr.mxu0 0.0
    %6334 = vmatpush1.msra.mxu0 0.0
    %6335 = vmatprep.subr.mxu0 0.0
    %6336 = vmatpush1.msra.mxu0 %v6310
    %6337 = vmatprep.subr.mxu0 0.0
    %6338 = vmatpush1.msra.mxu0 %v6309
    %6339 = vmatprep.subr.mxu0 0.0
    %6340 = vmatpush1.msra.mxu0 %v6308
    %6341 = vmatprep.subr.mxu0 0.0
    %6342 = vmatpush1.msra.mxu0 %v6307
    %6343 = vmatprep.subr.mxu0 0.0
    %6344 = vmatpush2.msra.mxu0 0.0
    %6345 = vmatprep.subr.mxu0 0.0
    %6346 = vmatpush2.msra.mxu0 0.0
    %6347 = vmatprep.subr.mxu0 0.0
    %6348 = vmatpush2.msra.mxu0 0.0
    %6349 = vmatprep.subr.mxu0 0.0
    %6350 = vmatpush2.msra.mxu0 0.0
    %6351 = vmatprep.subr.mxu0 0.0
    %6352 = vmatpush2.msra.mxu0 0.0
    %6353 = vmatprep.subr.mxu0 0.0
    %6354 = vmatpush2.msra.mxu0 0.0
    %6355 = vmatprep.subr.mxu0 0.0
    %6356 = vmatpush2.msra.mxu0 0.0
    %6357 = vmatprep.subr.mxu0 0.0
    %6358 = vmatpush2.msra.mxu0 0.0
    %6359 = vmatprep.subr.mxu0 0.0
    %6360 = vmatpush2.msra.mxu0 0.0
    %6361 = vmatprep.subr.mxu0 0.0
    %6362 = vmatpush2.msra.mxu0 0.0
    %6363 = vmatprep.subr.mxu0 0.0
    %6364 = vmatpush2.msra.mxu0 0.0
    %6365 = vmatprep.subr.mxu0 0.0
    %6366 = vmatpush2.msra.mxu0 0.0
    %6367 = vmatprep.subr.mxu0 0.0
    %6368 = vmatpush2.msra.mxu0 0.0
    %6369 = vmatprep.subr.mxu0 0.0
    %6370 = vmatpush2.msra.mxu0 0.0
    %6371 = vmatprep.subr.mxu0 0.0
    %6372 = vmatpush2.msra.mxu0 0.0
    %6373 = vmatprep.subr.mxu0 0.0
    %6374 = vmatpush2.msra.mxu0 0.0
    %6375 = vmatprep.mubr.f32.mxu0 0.0
    %6376 = vmatmul.mubr.f32.gmra.mxu0 %v2413
    %v6377 = vpop.f32.mrf.mxu0
    %v6378 = vadd.f32 0.0, %v6377
    %v6379 = vpop.f32.mrf.mxu0
    %6380 = vdwg.mxu0
    %v6382 = vsel %vm994, %v6378, 0
    %6384 = vmatprep.subr.mxu0 0.0
    %6385 = vmatpush1.msra.mxu0 0.0
    %6386 = vmatprep.subr.mxu0 0.0
    %6387 = vmatpush1.msra.mxu0 0.0
    %6388 = vmatprep.subr.mxu0 0.0
    %6389 = vmatpush1.msra.mxu0 0.0
    %6390 = vmatprep.subr.mxu0 0.0
    %6391 = vmatpush1.msra.mxu0 0.0
    %6392 = vmatprep.subr.mxu0 0.0
    %6393 = vmatpush1.msra.mxu0 0.0
    %6394 = vmatprep.subr.mxu0 0.0
    %6395 = vmatpush1.msra.mxu0 0.0
    %6396 = vmatprep.subr.mxu0 0.0
    %6397 = vmatpush1.msra.mxu0 0.0
    %6398 = vmatprep.subr.mxu0 0.0
    %6399 = vmatpush1.msra.mxu0 0.0
    %6400 = vmatprep.subr.mxu0 0.0
    %6401 = vmatpush1.msra.mxu0 0.0
    %6402 = vmatprep.subr.mxu0 0.0
    %6403 = vmatpush1.msra.mxu0 0.0
    %6404 = vmatprep.subr.mxu0 0.0
    %6405 = vmatpush1.msra.mxu0 0.0
    %6406 = vmatprep.subr.mxu0 0.0
    %6407 = vmatpush1.msra.mxu0 0.0
    %6408 = vmatprep.subr.mxu0 0.0
    %6409 = vmatpush1.msra.mxu0 %v709
    %6410 = vmatprep.subr.mxu0 0.0
    %6411 = vmatpush1.msra.mxu0 %v708
    %6412 = vmatprep.subr.mxu0 0.0
    %6413 = vmatpush1.msra.mxu0 %v707
    %6414 = vmatprep.subr.mxu0 0.0
    %6415 = vmatpush1.msra.mxu0 %v706
    %6416 = vmatprep.subr.mxu0 0.0
    %6417 = vmatpush2.msra.mxu0 0.0
    %6418 = vmatprep.subr.mxu0 0.0
    %6419 = vmatpush2.msra.mxu0 0.0
    %6420 = vmatprep.subr.mxu0 0.0
    %6421 = vmatpush2.msra.mxu0 0.0
    %6422 = vmatprep.subr.mxu0 0.0
    %6423 = vmatpush2.msra.mxu0 0.0
    %6424 = vmatprep.subr.mxu0 0.0
    %6425 = vmatpush2.msra.mxu0 0.0
    %6426 = vmatprep.subr.mxu0 0.0
    %6427 = vmatpush2.msra.mxu0 0.0
    %6428 = vmatprep.subr.mxu0 0.0
    %6429 = vmatpush2.msra.mxu0 0.0
    %6430 = vmatprep.subr.mxu0 0.0
    %6431 = vmatpush2.msra.mxu0 0.0
    %6432 = vmatprep.subr.mxu0 0.0
    %6433 = vmatpush2.msra.mxu0 0.0
    %6434 = vmatprep.subr.mxu0 0.0
    %6435 = vmatpush2.msra.mxu0 0.0
    %6436 = vmatprep.subr.mxu0 0.0
    %6437 = vmatpush2.msra.mxu0 0.0
    %6438 = vmatprep.subr.mxu0 0.0
    %6439 = vmatpush2.msra.mxu0 0.0
    %6440 = vmatprep.subr.mxu0 0.0
    %6441 = vmatpush2.msra.mxu0 0.0
    %6442 = vmatprep.subr.mxu0 0.0
    %6443 = vmatpush2.msra.mxu0 0.0
    %6444 = vmatprep.subr.mxu0 0.0
    %6445 = vmatpush2.msra.mxu0 0.0
    %6446 = vmatprep.subr.mxu0 0.0
    %6447 = vmatpush2.msra.mxu0 0.0
    %6448 = vmatprep.mubr.f32.mxu0 0.0
    %6449 = vmatmul.mubr.f32.gmra.mxu0 %v6382
    %v6450 = vpop.f32.mrf.mxu0
    %v6451 = vadd.f32 0.0, %v6450
    %v6452 = vpop.f32.mrf.mxu0
    %6453 = vdwg.mxu0
    %v6454 = vsel %vm994, %v6113, 0
    %6456 = vmatprep.subr.mxu0 0.0
    %6457 = vmatpush1.msra.mxu0 0.0
    %6458 = vmatprep.subr.mxu0 0.0
    %6459 = vmatpush1.msra.mxu0 0.0
    %6460 = vmatprep.subr.mxu0 0.0
    %6461 = vmatpush1.msra.mxu0 0.0
    %6462 = vmatprep.subr.mxu0 0.0
    %6463 = vmatpush1.msra.mxu0 0.0
    %6464 = vmatprep.subr.mxu0 0.0
    %6465 = vmatpush1.msra.mxu0 0.0
    %6466 = vmatprep.subr.mxu0 0.0
    %6467 = vmatpush1.msra.mxu0 0.0
    %6468 = vmatprep.subr.mxu0 0.0
    %6469 = vmatpush1.msra.mxu0 0.0
    %6470 = vmatprep.subr.mxu0 0.0
    %6471 = vmatpush1.msra.mxu0 0.0
    %6472 = vmatprep.subr.mxu0 0.0
    %6473 = vmatpush1.msra.mxu0 0.0
    %6474 = vmatprep.subr.mxu0 0.0
    %6475 = vmatpush1.msra.mxu0 0.0
    %6476 = vmatprep.subr.mxu0 0.0
    %6477 = vmatpush1.msra.mxu0 0.0
    %6478 = vmatprep.subr.mxu0 0.0
    %6479 = vmatpush1.msra.mxu0 0.0
    %6480 = vmatprep.subr.mxu0 0.0
    %6481 = vmatpush1.msra.mxu0 %v705
    %6482 = vmatprep.subr.mxu0 0.0
    %6483 = vmatpush1.msra.mxu0 %v704
    %6484 = vmatprep.subr.mxu0 0.0
    %6485 = vmatpush1.msra.mxu0 %v703
    %6486 = vmatprep.subr.mxu0 0.0
    %6487 = vmatpush1.msra.mxu0 %v702
    %6488 = vmatprep.subr.mxu0 0.0
    %6489 = vmatpush2.msra.mxu0 0.0
    %6490 = vmatprep.subr.mxu0 0.0
    %6491 = vmatpush2.msra.mxu0 0.0
    %6492 = vmatprep.subr.mxu0 0.0
    %6493 = vmatpush2.msra.mxu0 0.0
    %6494 = vmatprep.subr.mxu0 0.0
    %6495 = vmatpush2.msra.mxu0 0.0
    %6496 = vmatprep.subr.mxu0 0.0
    %6497 = vmatpush2.msra.mxu0 0.0
    %6498 = vmatprep.subr.mxu0 0.0
    %6499 = vmatpush2.msra.mxu0 0.0
    %6500 = vmatprep.subr.mxu0 0.0
    %6501 = vmatpush2.msra.mxu0 0.0
    %6502 = vmatprep.subr.mxu0 0.0
    %6503 = vmatpush2.msra.mxu0 0.0
    %6504 = vmatprep.subr.mxu0 0.0
    %6505 = vmatpush2.msra.mxu0 0.0
    %6506 = vmatprep.subr.mxu0 0.0
    %6507 = vmatpush2.msra.mxu0 0.0
    %6508 = vmatprep.subr.mxu0 0.0
    %6509 = vmatpush2.msra.mxu0 0.0
    %6510 = vmatprep.subr.mxu0 0.0
    %6511 = vmatpush2.msra.mxu0 0.0
    %6512 = vmatprep.subr.mxu0 0.0
    %6513 = vmatpush2.msra.mxu0 0.0
    %6514 = vmatprep.subr.mxu0 0.0
    %6515 = vmatpush2.msra.mxu0 0.0
    %6516 = vmatprep.subr.mxu0 0.0
    %6517 = vmatpush2.msra.mxu0 0.0
    %6518 = vmatprep.subr.mxu0 0.0
    %6519 = vmatpush2.msra.mxu0 0.0
    %6520 = vmatprep.mubr.f32.mxu0 0.0
    %6521 = vmatmul.mubr.f32.gmra.mxu0 %v6454
    %v6522 = vpop.f32.mrf.mxu0
    %v6523 = vadd.f32 %v6451, %v6522
    %v6524 = vpop.f32.mrf.mxu0
    %6525 = vdwg.mxu0
    %6526 = vmatprep.subr.mxu0 0.0
    %6527 = vmatpush1.msra.mxu0 0.0
    %6528 = vmatprep.subr.mxu0 0.0
    %6529 = vmatpush1.msra.mxu0 0.0
    %6530 = vmatprep.subr.mxu0 0.0
    %6531 = vmatpush1.msra.mxu0 0.0
    %6532 = vmatprep.subr.mxu0 0.0
    %6533 = vmatpush1.msra.mxu0 0.0
    %6534 = vmatprep.subr.mxu0 0.0
    %6535 = vmatpush1.msra.mxu0 0.0
    %6536 = vmatprep.subr.mxu0 0.0
    %6537 = vmatpush1.msra.mxu0 0.0
    %6538 = vmatprep.subr.mxu0 0.0
    %6539 = vmatpush1.msra.mxu0 0.0
    %6540 = vmatprep.subr.mxu0 0.0
    %6541 = vmatpush1.msra.mxu0 0.0
    %6542 = vmatprep.subr.mxu0 0.0
    %6543 = vmatpush1.msra.mxu0 0.0
    %6544 = vmatprep.subr.mxu0 0.0
    %6545 = vmatpush1.msra.mxu0 0.0
    %6546 = vmatprep.subr.mxu0 0.0
    %6547 = vmatpush1.msra.mxu0 0.0
    %6548 = vmatprep.subr.mxu0 0.0
    %6549 = vmatpush1.msra.mxu0 0.0
    %6550 = vmatprep.subr.mxu0 0.0
    %6551 = vmatpush1.msra.mxu0 %v713
    %6552 = vmatprep.subr.mxu0 0.0
    %6553 = vmatpush1.msra.mxu0 %v712
    %6554 = vmatprep.subr.mxu0 0.0
    %6555 = vmatpush1.msra.mxu0 %v711
    %6556 = vmatprep.subr.mxu0 0.0
    %6557 = vmatpush1.msra.mxu0 %v710
    %6558 = vmatprep.subr.mxu0 0.0
    %6559 = vmatpush2.msra.mxu0 0.0
    %6560 = vmatprep.subr.mxu0 0.0
    %6561 = vmatpush2.msra.mxu0 0.0
    %6562 = vmatprep.subr.mxu0 0.0
    %6563 = vmatpush2.msra.mxu0 0.0
    %6564 = vmatprep.subr.mxu0 0.0
    %6565 = vmatpush2.msra.mxu0 0.0
    %6566 = vmatprep.subr.mxu0 0.0
    %6567 = vmatpush2.msra.mxu0 0.0
    %6568 = vmatprep.subr.mxu0 0.0
    %6569 = vmatpush2.msra.mxu0 0.0
    %6570 = vmatprep.subr.mxu0 0.0
    %6571 = vmatpush2.msra.mxu0 0.0
    %6572 = vmatprep.subr.mxu0 0.0
    %6573 = vmatpush2.msra.mxu0 0.0
    %6574 = vmatprep.subr.mxu0 0.0
    %6575 = vmatpush2.msra.mxu0 0.0
    %6576 = vmatprep.subr.mxu0 0.0
    %6577 = vmatpush2.msra.mxu0 0.0
    %6578 = vmatprep.subr.mxu0 0.0
    %6579 = vmatpush2.msra.mxu0 0.0
    %6580 = vmatprep.subr.mxu0 0.0
    %6581 = vmatpush2.msra.mxu0 0.0
    %6582 = vmatprep.subr.mxu0 0.0
    %6583 = vmatpush2.msra.mxu0 0.0
    %6584 = vmatprep.subr.mxu0 0.0
    %6585 = vmatpush2.msra.mxu0 0.0
    %6586 = vmatprep.subr.mxu0 0.0
    %6587 = vmatpush2.msra.mxu0 0.0
    %6588 = vmatprep.subr.mxu0 0.0
    %6589 = vmatpush2.msra.mxu0 0.0
    %6590 = vmatprep.mubr.f32.mxu0 0.0
    %6591 = vmatmul.mubr.f32.gmra.mxu0 %v6454
    %v6592 = vpop.f32.mrf.mxu0
    %v6593 = vadd.f32 0.0, %v6592
    %v6594 = vpop.f32.mrf.mxu0
    %6595 = vdwg.mxu0
    %v6596 = vadd.f32 %v6523, %v6593
    %v6597 = vadd.f32 %v6596, %v6084
    %v6598 = vxor.u32 %v6597, 2147483648
    %v6599 = vmul.f32 %v6598, 1.442695
    %v6600 = vpow.pop %v6599
    %v6601 = vadd.f32 %v6600, 1.0
    %v6602 = vrcp.pop %v6601
    %v6603 = vmul.f32 1.0, %v6602
    %v6604 = vtanh.pop %v6597
    %v6605 = vmul.f32 %v6603, %v6104
    %6607 = vrot.lane.b32.xlu0 %v6604, 64
    %v6608 = vpop.permute.xlu0 %6607
    %v6610 = vmul.f32 %v6603, %v6608
    %6612 = vrot.lane.b32.xlu0 %v6610, 32
    %v6613 = vpop.permute.xlu0 %6612
    %v6615 = vadd.f32 %v6605, %v6613
    %v6616 = vtanh.pop %v6615
    %6618 = vrot.lane.b32.xlu0 %v6616, 64
    %v6619 = vpop.permute.xlu0 %6618
    %v6621 = vmul.f32 %v6603, %v6619
    %6623 = vrot.lane.b32.xlu0 %v6621, 32
    %v6624 = vpop.permute.xlu0 %6623
    %v6625 = vsel %vm1229, %v6624, 0
    %6627 = vmatprep.subr.mxu0 0.0
    %6628 = vmatpush1.msra.mxu0 0.0
    %6629 = vmatprep.subr.mxu0 0.0
    %6630 = vmatpush1.msra.mxu0 0.0
    %6631 = vmatprep.subr.mxu0 0.0
    %6632 = vmatpush1.msra.mxu0 0.0
    %6633 = vmatprep.subr.mxu0 0.0
    %6634 = vmatpush1.msra.mxu0 0.0
    %6635 = vmatprep.subr.mxu0 0.0
    %6636 = vmatpush1.msra.mxu0 0.0
    %6637 = vmatprep.subr.mxu0 0.0
    %6638 = vmatpush1.msra.mxu0 0.0
    %6639 = vmatprep.subr.mxu0 0.0
    %6640 = vmatpush1.msra.mxu0 0.0
    %6641 = vmatprep.subr.mxu0 0.0
    %6642 = vmatpush1.msra.mxu0 0.0
    %6643 = vmatprep.subr.mxu0 0.0
    %6644 = vmatpush1.msra.mxu0 0.0
    %6645 = vmatprep.subr.mxu0 0.0
    %6646 = vmatpush1.msra.mxu0 0.0
    %6647 = vmatprep.subr.mxu0 0.0
    %6648 = vmatpush1.msra.mxu0 0.0
    %6649 = vmatprep.subr.mxu0 0.0
    %6650 = vmatpush1.msra.mxu0 0.0
    %6651 = vmatprep.subr.mxu0 0.0
    %6652 = vmatpush1.msra.mxu0 0.0
    %6653 = vmatprep.subr.mxu0 0.0
    %6654 = vmatpush1.msra.mxu0 0.0
    %6655 = vmatprep.subr.mxu0 0.0
    %6656 = vmatpush1.msra.mxu0 0.0
    %6657 = vmatprep.subr.mxu0 0.0
    %6658 = vmatpush1.msra.mxu0 %v6625
    %6659 = vmatprep.subr.mxu0 0.0
    %6660 = vmatpush2.msra.mxu0 0.0
    %6661 = vmatprep.subr.mxu0 0.0
    %6662 = vmatpush2.msra.mxu0 0.0
    %6663 = vmatprep.subr.mxu0 0.0
    %6664 = vmatpush2.msra.mxu0 0.0
    %6665 = vmatprep.subr.mxu0 0.0
    %6666 = vmatpush2.msra.mxu0 0.0
    %6667 = vmatprep.subr.mxu0 0.0
    %6668 = vmatpush2.msra.mxu0 0.0
    %6669 = vmatprep.subr.mxu0 0.0
    %6670 = vmatpush2.msra.mxu0 0.0
    %6671 = vmatprep.subr.mxu0 0.0
    %6672 = vmatpush2.msra.mxu0 0.0
    %6673 = vmatprep.subr.mxu0 0.0
    %6674 = vmatpush2.msra.mxu0 0.0
    %6675 = vmatprep.subr.mxu0 0.0
    %6676 = vmatpush2.msra.mxu0 0.0
    %6677 = vmatprep.subr.mxu0 0.0
    %6678 = vmatpush2.msra.mxu0 0.0
    %6679 = vmatprep.subr.mxu0 0.0
    %6680 = vmatpush2.msra.mxu0 0.0
    %6681 = vmatprep.subr.mxu0 0.0
    %6682 = vmatpush2.msra.mxu0 0.0
    %6683 = vmatprep.subr.mxu0 0.0
    %6684 = vmatpush2.msra.mxu0 0.0
    %6685 = vmatprep.subr.mxu0 0.0
    %6686 = vmatpush2.msra.mxu0 0.0
    %6687 = vmatprep.subr.mxu0 0.0
    %6688 = vmatpush2.msra.mxu0 0.0
    %6689 = vmatprep.subr.mxu0 0.0
    %6690 = vmatpush2.msra.mxu0 0.0
    %6691 = vmatprep.mubr.f32.mxu0 0.0
    %6692 = vmatmul.mubr.f32.gmra.mxu0 %v1218
    %v6693 = vpop.f32.mrf.mxu0
    %v6694 = vadd.f32 0.0, %v6693
    %v6695 = vpop.f32.mrf.mxu0
    %6696 = vmatprep.mubr.f32.mxu0 0.0
    %6697 = vmatmul.mubr.f32.gmra.mxu0 %v1221
    %v6698 = vpop.f32.mrf.mxu0
    %v6699 = vadd.f32 0.0, %v6698
    %v6700 = vpop.f32.mrf.mxu0
    %6701 = vmatprep.mubr.f32.mxu0 0.0
    %6702 = vmatmul.mubr.f32.gmra.mxu0 %v1224
    %v6703 = vpop.f32.mrf.mxu0
    %v6704 = vadd.f32 0.0, %v6703
    %v6705 = vpop.f32.mrf.mxu0
    %6706 = vmatprep.mubr.f32.mxu0 0.0
    %6707 = vmatmul.mubr.f32.gmra.mxu0 %v1227
    %v6708 = vpop.f32.mrf.mxu0
    %v6709 = vadd.f32 0.0, %v6708
    %v6710 = vpop.f32.mrf.mxu0
    %6711 = vdwg.mxu0
    %v6712 = vmul.f32 %v3567, %v6694
    %v6713 = vmul.f32 %v3568, %v6699
    %v6714 = vmul.f32 %v3569, %v6704
    %v6715 = vmul.f32 %v3570, %v6709
    %v6716 = vsel %vm994, %v6712, 0.0
    %6717 = vadd.xlane.f32.xlu0 %v6716
    %v6718 = vpop.xlane.xlu0 %6717
    %v6719 = vsel %vm994, %v6713, 0.0
    %6720 = vadd.xlane.f32.xlu0 %v6719
    %v6721 = vpop.xlane.xlu0 %6720
    %v6722 = vsel %vm994, %v6714, 0.0
    %6723 = vadd.xlane.f32.xlu0 %v6722
    %v6724 = vpop.xlane.xlu0 %6723
    %v6725 = vsel %vm994, %v6715, 0.0
    %6726 = vadd.xlane.f32.xlu0 %v6725
    %v6727 = vpop.xlane.xlu0 %6726
    %v6728 = vsel %vm6217, %v6718, -1e+30
    %v6729 = vsel %vm6218, %v6721, -1e+30
    %v6730 = vsel %vm6219, %v6724, -1e+30
    %v6731 = vsel %vm6220, %v6727, -1e+30
    %v6732 = vsel %vm1216, %v6728, -inf
    %v6733 = vsel %vm1216, %v6729, -inf
    %v6734 = vsel %vm1216, %v6730, -inf
    %v6735 = vsel %vm1216, %v6731, -inf
    %v6736 = vmax.f32 %v6732, %v6733
    %v6737 = vmax.f32 %v6734, %v6735
    %v6738 = vmax.f32 %v6736, %v6737
    %v6739 = vrot.slane %v6738, 4
    %v6740 = vmax.f32 %v6738, %v6739
    %v6741 = vrot.slane %v6740, 2
    %v6742 = vmax.f32 %v6740, %v6741
    %v6743 = vrot.slane %v6742, 1
    %v6744 = vmax.f32 %v6742, %v6743
    %v6745 = vmul.f32 %v963, %v6744
    %v6746 = vmul.f32 %v964, %v6744
    %v6747 = vmul.f32 %v965, %v6744
    %v6748 = vmul.f32 %v966, %v6744
    %v6749 = vsel %vm1216, %v6745, 0.0
    %6750 = vadd.xlane.f32.xlu0 %v6749
    %v6751 = vpop.xlane.xlu0 %6750
    %v6752 = vsel %vm1216, %v6746, 0.0
    %6753 = vadd.xlane.f32.xlu0 %v6752
    %v6754 = vpop.xlane.xlu0 %6753
    %v6755 = vsel %vm1216, %v6747, 0.0
    %6756 = vadd.xlane.f32.xlu0 %v6755
    %v6757 = vpop.xlane.xlu0 %6756
    %v6758 = vsel %vm1216, %v6748, 0.0
    %6759 = vadd.xlane.f32.xlu0 %v6758
    %v6760 = vpop.xlane.xlu0 %6759
    %v6761 = vsub.f32 %v6718, %v6751
    %v6762 = vsub.f32 %v6721, %v6754
    %v6763 = vsub.f32 %v6724, %v6757
    %v6764 = vsub.f32 %v6727, %v6760
    %v6765 = vmul.f32 %v6761, 1.442695
    %v6766 = vpow.pop %v6765
    %v6767 = vmul.f32 %v6762, 1.442695
    %v6768 = vpow.pop %v6767
    %v6769 = vmul.f32 %v6763, 1.442695
    %v6770 = vpow.pop %v6769
    %v6771 = vmul.f32 %v6764, 1.442695
    %v6772 = vpow.pop %v6771
    %v6773 = vmul.f32 %v963, %v6766
    %v6774 = vmul.f32 %v964, %v6768
    %v6775 = vmul.f32 %v965, %v6770
    %v6776 = vmul.f32 %v966, %v6772
    %v6777 = vsel %vm1216, %v6773, 0.0
    %v6778 = vsel %vm1216, %v6774, 0.0
    %v6779 = vadd.f32 %v6777, %v6778
    %v6780 = vsel %vm1216, %v6775, 0.0
    %v6781 = vadd.f32 %v6779, %v6780
    %v6782 = vsel %vm1216, %v6776, 0.0
    %v6783 = vadd.f32 %v6781, %v6782
    %v6784 = vrot.slane %v6783, 4
    %v6785 = vadd.f32 %v6783, %v6784
    %v6786 = vrot.slane %v6785, 2
    %v6787 = vadd.f32 %v6785, %v6786
    %v6788 = vrot.slane %v6787, 1
    %v6789 = vadd.f32 %v6787, %v6788
    %v6790 = vmul.f32 %v963, %v6789
    %v6791 = vmul.f32 %v964, %v6789
    %v6792 = vmul.f32 %v965, %v6789
    %v6793 = vmul.f32 %v966, %v6789
    %v6794 = vsel %vm1216, %v6790, 0.0
    %6795 = vadd.xlane.f32.xlu0 %v6794
    %v6796 = vpop.xlane.xlu0 %6795
    %v6797 = vsel %vm1216, %v6791, 0.0
    %6798 = vadd.xlane.f32.xlu0 %v6797
    %v6799 = vpop.xlane.xlu0 %6798
    %v6800 = vsel %vm1216, %v6792, 0.0
    %6801 = vadd.xlane.f32.xlu0 %v6800
    %v6802 = vpop.xlane.xlu0 %6801
    %v6803 = vsel %vm1216, %v6793, 0.0
    %6804 = vadd.xlane.f32.xlu0 %v6803
    %v6805 = vpop.xlane.xlu0 %6804
    %v6806 = vrcp.pop %v6796
    %v6807 = vmul.f32 %v6766, %v6806
    %v6808 = vrcp.pop %v6799
    %v6809 = vmul.f32 %v6768, %v6808
    %v6810 = vrcp.pop %v6802
    %v6811 = vmul.f32 %v6770, %v6810
    %v6812 = vrcp.pop %v6805
    %v6813 = vmul.f32 %v6772, %v6812
    %v6814 = vmul.f32 %v6807, %v3567
    %v6815 = vmul.f32 %v6809, %v3568
    %v6816 = vmul.f32 %v6811, %v3569
    %v6817 = vmul.f32 %v6813, %v3570
    %6818 = vmatprep.subr.mxu0 0.0
    %6819 = vmatpush1.msra.mxu0 0.0
    %6820 = vmatprep.subr.mxu0 0.0
    %6821 = vmatpush1.msra.mxu0 0.0
    %6822 = vmatprep.subr.mxu0 0.0
    %6823 = vmatpush1.msra.mxu0 0.0
    %6824 = vmatprep.subr.mxu0 0.0
    %6825 = vmatpush1.msra.mxu0 0.0
    %6826 = vmatprep.subr.mxu0 0.0
    %6827 = vmatpush1.msra.mxu0 0.0
    %6828 = vmatprep.subr.mxu0 0.0
    %6829 = vmatpush1.msra.mxu0 0.0
    %6830 = vmatprep.subr.mxu0 0.0
    %6831 = vmatpush1.msra.mxu0 0.0
    %6832 = vmatprep.subr.mxu0 0.0
    %6833 = vmatpush1.msra.mxu0 0.0
    %6834 = vmatprep.subr.mxu0 0.0
    %6835 = vmatpush1.msra.mxu0 0.0
    %6836 = vmatprep.subr.mxu0 0.0
    %6837 = vmatpush1.msra.mxu0 0.0
    %6838 = vmatprep.subr.mxu0 0.0
    %6839 = vmatpush1.msra.mxu0 0.0
    %6840 = vmatprep.subr.mxu0 0.0
    %6841 = vmatpush1.msra.mxu0 0.0
    %6842 = vmatprep.subr.mxu0 0.0
    %6843 = vmatpush1.msra.mxu0 %v6817
    %6844 = vmatprep.subr.mxu0 0.0
    %6845 = vmatpush1.msra.mxu0 %v6816
    %6846 = vmatprep.subr.mxu0 0.0
    %6847 = vmatpush1.msra.mxu0 %v6815
    %6848 = vmatprep.subr.mxu0 0.0
    %6849 = vmatpush1.msra.mxu0 %v6814
    %6850 = vmatprep.subr.mxu0 0.0
    %6851 = vmatpush2.msra.mxu0 0.0
    %6852 = vmatprep.subr.mxu0 0.0
    %6853 = vmatpush2.msra.mxu0 0.0
    %6854 = vmatprep.subr.mxu0 0.0
    %6855 = vmatpush2.msra.mxu0 0.0
    %6856 = vmatprep.subr.mxu0 0.0
    %6857 = vmatpush2.msra.mxu0 0.0
    %6858 = vmatprep.subr.mxu0 0.0
    %6859 = vmatpush2.msra.mxu0 0.0
    %6860 = vmatprep.subr.mxu0 0.0
    %6861 = vmatpush2.msra.mxu0 0.0
    %6862 = vmatprep.subr.mxu0 0.0
    %6863 = vmatpush2.msra.mxu0 0.0
    %6864 = vmatprep.subr.mxu0 0.0
    %6865 = vmatpush2.msra.mxu0 0.0
    %6866 = vmatprep.subr.mxu0 0.0
    %6867 = vmatpush2.msra.mxu0 0.0
    %6868 = vmatprep.subr.mxu0 0.0
    %6869 = vmatpush2.msra.mxu0 0.0
    %6870 = vmatprep.subr.mxu0 0.0
    %6871 = vmatpush2.msra.mxu0 0.0
    %6872 = vmatprep.subr.mxu0 0.0
    %6873 = vmatpush2.msra.mxu0 0.0
    %6874 = vmatprep.subr.mxu0 0.0
    %6875 = vmatpush2.msra.mxu0 0.0
    %6876 = vmatprep.subr.mxu0 0.0
    %6877 = vmatpush2.msra.mxu0 0.0
    %6878 = vmatprep.subr.mxu0 0.0
    %6879 = vmatpush2.msra.mxu0 0.0
    %6880 = vmatprep.subr.mxu0 0.0
    %6881 = vmatpush2.msra.mxu0 0.0
    %6882 = vmatprep.mubr.f32.mxu0 0.0
    %6883 = vmatmul.mubr.f32.gmra.mxu0 %v2413
    %v6884 = vpop.f32.mrf.mxu0
    %v6885 = vadd.f32 0.0, %v6884
    %v6886 = vpop.f32.mrf.mxu0
    %6887 = vdwg.mxu0
    %v6889 = vsel %vm994, %v6885, 0
    %6891 = vmatprep.subr.mxu0 0.0
    %6892 = vmatpush1.msra.mxu0 0.0
    %6893 = vmatprep.subr.mxu0 0.0
    %6894 = vmatpush1.msra.mxu0 0.0
    %6895 = vmatprep.subr.mxu0 0.0
    %6896 = vmatpush1.msra.mxu0 0.0
    %6897 = vmatprep.subr.mxu0 0.0
    %6898 = vmatpush1.msra.mxu0 0.0
    %6899 = vmatprep.subr.mxu0 0.0
    %6900 = vmatpush1.msra.mxu0 0.0
    %6901 = vmatprep.subr.mxu0 0.0
    %6902 = vmatpush1.msra.mxu0 0.0
    %6903 = vmatprep.subr.mxu0 0.0
    %6904 = vmatpush1.msra.mxu0 0.0
    %6905 = vmatprep.subr.mxu0 0.0
    %6906 = vmatpush1.msra.mxu0 0.0
    %6907 = vmatprep.subr.mxu0 0.0
    %6908 = vmatpush1.msra.mxu0 0.0
    %6909 = vmatprep.subr.mxu0 0.0
    %6910 = vmatpush1.msra.mxu0 0.0
    %6911 = vmatprep.subr.mxu0 0.0
    %6912 = vmatpush1.msra.mxu0 0.0
    %6913 = vmatprep.subr.mxu0 0.0
    %6914 = vmatpush1.msra.mxu0 0.0
    %6915 = vmatprep.subr.mxu0 0.0
    %6916 = vmatpush1.msra.mxu0 %v709
    %6917 = vmatprep.subr.mxu0 0.0
    %6918 = vmatpush1.msra.mxu0 %v708
    %6919 = vmatprep.subr.mxu0 0.0
    %6920 = vmatpush1.msra.mxu0 %v707
    %6921 = vmatprep.subr.mxu0 0.0
    %6922 = vmatpush1.msra.mxu0 %v706
    %6923 = vmatprep.subr.mxu0 0.0
    %6924 = vmatpush2.msra.mxu0 0.0
    %6925 = vmatprep.subr.mxu0 0.0
    %6926 = vmatpush2.msra.mxu0 0.0
    %6927 = vmatprep.subr.mxu0 0.0
    %6928 = vmatpush2.msra.mxu0 0.0
    %6929 = vmatprep.subr.mxu0 0.0
    %6930 = vmatpush2.msra.mxu0 0.0
    %6931 = vmatprep.subr.mxu0 0.0
    %6932 = vmatpush2.msra.mxu0 0.0
    %6933 = vmatprep.subr.mxu0 0.0
    %6934 = vmatpush2.msra.mxu0 0.0
    %6935 = vmatprep.subr.mxu0 0.0
    %6936 = vmatpush2.msra.mxu0 0.0
    %6937 = vmatprep.subr.mxu0 0.0
    %6938 = vmatpush2.msra.mxu0 0.0
    %6939 = vmatprep.subr.mxu0 0.0
    %6940 = vmatpush2.msra.mxu0 0.0
    %6941 = vmatprep.subr.mxu0 0.0
    %6942 = vmatpush2.msra.mxu0 0.0
    %6943 = vmatprep.subr.mxu0 0.0
    %6944 = vmatpush2.msra.mxu0 0.0
    %6945 = vmatprep.subr.mxu0 0.0
    %6946 = vmatpush2.msra.mxu0 0.0
    %6947 = vmatprep.subr.mxu0 0.0
    %6948 = vmatpush2.msra.mxu0 0.0
    %6949 = vmatprep.subr.mxu0 0.0
    %6950 = vmatpush2.msra.mxu0 0.0
    %6951 = vmatprep.subr.mxu0 0.0
    %6952 = vmatpush2.msra.mxu0 0.0
    %6953 = vmatprep.subr.mxu0 0.0
    %6954 = vmatpush2.msra.mxu0 0.0
    %6955 = vmatprep.mubr.f32.mxu0 0.0
    %6956 = vmatmul.mubr.f32.gmra.mxu0 %v6889
    %v6957 = vpop.f32.mrf.mxu0
    %v6958 = vadd.f32 0.0, %v6957
    %v6959 = vpop.f32.mrf.mxu0
    %6960 = vdwg.mxu0
    %v6961 = vsel %vm994, %v6624, 0
    %6963 = vmatprep.subr.mxu0 0.0
    %6964 = vmatpush1.msra.mxu0 0.0
    %6965 = vmatprep.subr.mxu0 0.0
    %6966 = vmatpush1.msra.mxu0 0.0
    %6967 = vmatprep.subr.mxu0 0.0
    %6968 = vmatpush1.msra.mxu0 0.0
    %6969 = vmatprep.subr.mxu0 0.0
    %6970 = vmatpush1.msra.mxu0 0.0
    %6971 = vmatprep.subr.mxu0 0.0
    %6972 = vmatpush1.msra.mxu0 0.0
    %6973 = vmatprep.subr.mxu0 0.0
    %6974 = vmatpush1.msra.mxu0 0.0
    %6975 = vmatprep.subr.mxu0 0.0
    %6976 = vmatpush1.msra.mxu0 0.0
    %6977 = vmatprep.subr.mxu0 0.0
    %6978 = vmatpush1.msra.mxu0 0.0
    %6979 = vmatprep.subr.mxu0 0.0
    %6980 = vmatpush1.msra.mxu0 0.0
    %6981 = vmatprep.subr.mxu0 0.0
    %6982 = vmatpush1.msra.mxu0 0.0
    %6983 = vmatprep.subr.mxu0 0.0
    %6984 = vmatpush1.msra.mxu0 0.0
    %6985 = vmatprep.subr.mxu0 0.0
    %6986 = vmatpush1.msra.mxu0 0.0
    %6987 = vmatprep.subr.mxu0 0.0
    %6988 = vmatpush1.msra.mxu0 %v705
    %6989 = vmatprep.subr.mxu0 0.0
    %6990 = vmatpush1.msra.mxu0 %v704
    %6991 = vmatprep.subr.mxu0 0.0
    %6992 = vmatpush1.msra.mxu0 %v703
    %6993 = vmatprep.subr.mxu0 0.0
    %6994 = vmatpush1.msra.mxu0 %v702
    %6995 = vmatprep.subr.mxu0 0.0
    %6996 = vmatpush2.msra.mxu0 0.0
    %6997 = vmatprep.subr.mxu0 0.0
    %6998 = vmatpush2.msra.mxu0 0.0
    %6999 = vmatprep.subr.mxu0 0.0
    %7000 = vmatpush2.msra.mxu0 0.0
    %7001 = vmatprep.subr.mxu0 0.0
    %7002 = vmatpush2.msra.mxu0 0.0
    %7003 = vmatprep.subr.mxu0 0.0
    %7004 = vmatpush2.msra.mxu0 0.0
    %7005 = vmatprep.subr.mxu0 0.0
    %7006 = vmatpush2.msra.mxu0 0.0
    %7007 = vmatprep.subr.mxu0 0.0
    %7008 = vmatpush2.msra.mxu0 0.0
    %7009 = vmatprep.subr.mxu0 0.0
    %7010 = vmatpush2.msra.mxu0 0.0
    %7011 = vmatprep.subr.mxu0 0.0
    %7012 = vmatpush2.msra.mxu0 0.0
    %7013 = vmatprep.subr.mxu0 0.0
    %7014 = vmatpush2.msra.mxu0 0.0
    %7015 = vmatprep.subr.mxu0 0.0
    %7016 = vmatpush2.msra.mxu0 0.0
    %7017 = vmatprep.subr.mxu0 0.0
    %7018 = vmatpush2.msra.mxu0 0.0
    %7019 = vmatprep.subr.mxu0 0.0
    %7020 = vmatpush2.msra.mxu0 0.0
    %7021 = vmatprep.subr.mxu0 0.0
    %7022 = vmatpush2.msra.mxu0 0.0
    %7023 = vmatprep.subr.mxu0 0.0
    %7024 = vmatpush2.msra.mxu0 0.0
    %7025 = vmatprep.subr.mxu0 0.0
    %7026 = vmatpush2.msra.mxu0 0.0
    %7027 = vmatprep.mubr.f32.mxu0 0.0
    %7028 = vmatmul.mubr.f32.gmra.mxu0 %v6961
    %v7029 = vpop.f32.mrf.mxu0
    %v7030 = vadd.f32 %v6958, %v7029
    %v7031 = vpop.f32.mrf.mxu0
    %7032 = vdwg.mxu0
    %7033 = vmatprep.subr.mxu0 0.0
    %7034 = vmatpush1.msra.mxu0 0.0
    %7035 = vmatprep.subr.mxu0 0.0
    %7036 = vmatpush1.msra.mxu0 0.0
    %7037 = vmatprep.subr.mxu0 0.0
    %7038 = vmatpush1.msra.mxu0 0.0
    %7039 = vmatprep.subr.mxu0 0.0
    %7040 = vmatpush1.msra.mxu0 0.0
    %7041 = vmatprep.subr.mxu0 0.0
    %7042 = vmatpush1.msra.mxu0 0.0
    %7043 = vmatprep.subr.mxu0 0.0
    %7044 = vmatpush1.msra.mxu0 0.0
    %7045 = vmatprep.subr.mxu0 0.0
    %7046 = vmatpush1.msra.mxu0 0.0
    %7047 = vmatprep.subr.mxu0 0.0
    %7048 = vmatpush1.msra.mxu0 0.0
    %7049 = vmatprep.subr.mxu0 0.0
    %7050 = vmatpush1.msra.mxu0 0.0
    %7051 = vmatprep.subr.mxu0 0.0
    %7052 = vmatpush1.msra.mxu0 0.0
    %7053 = vmatprep.subr.mxu0 0.0
    %7054 = vmatpush1.msra.mxu0 0.0
    %7055 = vmatprep.subr.mxu0 0.0
    %7056 = vmatpush1.msra.mxu0 0.0
    %7057 = vmatprep.subr.mxu0 0.0
    %7058 = vmatpush1.msra.mxu0 %v713
    %7059 = vmatprep.subr.mxu0 0.0
    %7060 = vmatpush1.msra.mxu0 %v712
    %7061 = vmatprep.subr.mxu0 0.0
    %7062 = vmatpush1.msra.mxu0 %v711
    %7063 = vmatprep.subr.mxu0 0.0
    %7064 = vmatpush1.msra.mxu0 %v710
    %7065 = vmatprep.subr.mxu0 0.0
    %7066 = vmatpush2.msra.mxu0 0.0
    %7067 = vmatprep.subr.mxu0 0.0
    %7068 = vmatpush2.msra.mxu0 0.0
    %7069 = vmatprep.subr.mxu0 0.0
    %7070 = vmatpush2.msra.mxu0 0.0
    %7071 = vmatprep.subr.mxu0 0.0
    %7072 = vmatpush2.msra.mxu0 0.0
    %7073 = vmatprep.subr.mxu0 0.0
    %7074 = vmatpush2.msra.mxu0 0.0
    %7075 = vmatprep.subr.mxu0 0.0
    %7076 = vmatpush2.msra.mxu0 0.0
    %7077 = vmatprep.subr.mxu0 0.0
    %7078 = vmatpush2.msra.mxu0 0.0
    %7079 = vmatprep.subr.mxu0 0.0
    %7080 = vmatpush2.msra.mxu0 0.0
    %7081 = vmatprep.subr.mxu0 0.0
    %7082 = vmatpush2.msra.mxu0 0.0
    %7083 = vmatprep.subr.mxu0 0.0
    %7084 = vmatpush2.msra.mxu0 0.0
    %7085 = vmatprep.subr.mxu0 0.0
    %7086 = vmatpush2.msra.mxu0 0.0
    %7087 = vmatprep.subr.mxu0 0.0
    %7088 = vmatpush2.msra.mxu0 0.0
    %7089 = vmatprep.subr.mxu0 0.0
    %7090 = vmatpush2.msra.mxu0 0.0
    %7091 = vmatprep.subr.mxu0 0.0
    %7092 = vmatpush2.msra.mxu0 0.0
    %7093 = vmatprep.subr.mxu0 0.0
    %7094 = vmatpush2.msra.mxu0 0.0
    %7095 = vmatprep.subr.mxu0 0.0
    %7096 = vmatpush2.msra.mxu0 0.0
    %7097 = vmatprep.mubr.f32.mxu0 0.0
    %7098 = vmatmul.mubr.f32.gmra.mxu0 %v6961
    %v7099 = vpop.f32.mrf.mxu0
    %v7100 = vadd.f32 0.0, %v7099
    %v7101 = vpop.f32.mrf.mxu0
    %7102 = vdwg.mxu0
    %v7103 = vadd.f32 %v7030, %v7100
    %v7104 = vadd.f32 %v7103, %v6084
    %v7105 = vxor.u32 %v7104, 2147483648
    %v7106 = vmul.f32 %v7105, 1.442695
    %v7107 = vpow.pop %v7106
    %v7108 = vadd.f32 %v7107, 1.0
    %v7109 = vrcp.pop %v7108
    %v7110 = vmul.f32 1.0, %v7109
    %v7111 = vtanh.pop %v7104
    %v7112 = vmul.f32 %v7110, %v6615
    %7114 = vrot.lane.b32.xlu0 %v7111, 64
    %v7115 = vpop.permute.xlu0 %7114
    %v7117 = vmul.f32 %v7110, %v7115
    %7119 = vrot.lane.b32.xlu0 %v7117, 32
    %v7120 = vpop.permute.xlu0 %7119
    %v7122 = vadd.f32 %v7112, %v7120
    %v7123 = vtanh.pop %v7122
    %7125 = vrot.lane.b32.xlu0 %v7123, 64
    %v7126 = vpop.permute.xlu0 %7125
    %v7128 = vmul.f32 %v7110, %v7126
    %7130 = vrot.lane.b32.xlu0 %v7128, 32
    %v7131 = vpop.permute.xlu0 %7130
    %v7132 = vsel %vm1229, %v7131, 0
    %7134 = vmatprep.subr.mxu0 0.0
    %7135 = vmatpush1.msra.mxu0 0.0
    %7136 = vmatprep.subr.mxu0 0.0
    %7137 = vmatpush1.msra.mxu0 0.0
    %7138 = vmatprep.subr.mxu0 0.0
    %7139 = vmatpush1.msra.mxu0 0.0
    %7140 = vmatprep.subr.mxu0 0.0
    %7141 = vmatpush1.msra.mxu0 0.0
    %7142 = vmatprep.subr.mxu0 0.0
    %7143 = vmatpush1.msra.mxu0 0.0
    %7144 = vmatprep.subr.mxu0 0.0
    %7145 = vmatpush1.msra.mxu0 0.0
    %7146 = vmatprep.subr.mxu0 0.0
    %7147 = vmatpush1.msra.mxu0 0.0
    %7148 = vmatprep.subr.mxu0 0.0
    %7149 = vmatpush1.msra.mxu0 0.0
    %7150 = vmatprep.subr.mxu0 0.0
    %7151 = vmatpush1.msra.mxu0 0.0
    %7152 = vmatprep.subr.mxu0 0.0
    %7153 = vmatpush1.msra.mxu0 0.0
    %7154 = vmatprep.subr.mxu0 0.0
    %7155 = vmatpush1.msra.mxu0 0.0
    %7156 = vmatprep.subr.mxu0 0.0
    %7157 = vmatpush1.msra.mxu0 0.0
    %7158 = vmatprep.subr.mxu0 0.0
    %7159 = vmatpush1.msra.mxu0 0.0
    %7160 = vmatprep.subr.mxu0 0.0
    %7161 = vmatpush1.msra.mxu0 0.0
    %7162 = vmatprep.subr.mxu0 0.0
    %7163 = vmatpush1.msra.mxu0 0.0
    %7164 = vmatprep.subr.mxu0 0.0
    %7165 = vmatpush1.msra.mxu0 %v7132
    %7166 = vmatprep.subr.mxu0 0.0
    %7167 = vmatpush2.msra.mxu0 0.0
    %7168 = vmatprep.subr.mxu0 0.0
    %7169 = vmatpush2.msra.mxu0 0.0
    %7170 = vmatprep.subr.mxu0 0.0
    %7171 = vmatpush2.msra.mxu0 0.0
    %7172 = vmatprep.subr.mxu0 0.0
    %7173 = vmatpush2.msra.mxu0 0.0
    %7174 = vmatprep.subr.mxu0 0.0
    %7175 = vmatpush2.msra.mxu0 0.0
    %7176 = vmatprep.subr.mxu0 0.0
    %7177 = vmatpush2.msra.mxu0 0.0
    %7178 = vmatprep.subr.mxu0 0.0
    %7179 = vmatpush2.msra.mxu0 0.0
    %7180 = vmatprep.subr.mxu0 0.0
    %7181 = vmatpush2.msra.mxu0 0.0
    %7182 = vmatprep.subr.mxu0 0.0
    %7183 = vmatpush2.msra.mxu0 0.0
    %7184 = vmatprep.subr.mxu0 0.0
    %7185 = vmatpush2.msra.mxu0 0.0
    %7186 = vmatprep.subr.mxu0 0.0
    %7187 = vmatpush2.msra.mxu0 0.0
    %7188 = vmatprep.subr.mxu0 0.0
    %7189 = vmatpush2.msra.mxu0 0.0
    %7190 = vmatprep.subr.mxu0 0.0
    %7191 = vmatpush2.msra.mxu0 0.0
    %7192 = vmatprep.subr.mxu0 0.0
    %7193 = vmatpush2.msra.mxu0 0.0
    %7194 = vmatprep.subr.mxu0 0.0
    %7195 = vmatpush2.msra.mxu0 0.0
    %7196 = vmatprep.subr.mxu0 0.0
    %7197 = vmatpush2.msra.mxu0 0.0
    %7198 = vmatprep.mubr.f32.mxu0 0.0
    %7199 = vmatmul.mubr.f32.gmra.mxu0 %v1218
    %v7200 = vpop.f32.mrf.mxu0
    %v7201 = vadd.f32 0.0, %v7200
    %v7202 = vpop.f32.mrf.mxu0
    %7203 = vmatprep.mubr.f32.mxu0 0.0
    %7204 = vmatmul.mubr.f32.gmra.mxu0 %v1221
    %v7205 = vpop.f32.mrf.mxu0
    %v7206 = vadd.f32 0.0, %v7205
    %v7207 = vpop.f32.mrf.mxu0
    %7208 = vmatprep.mubr.f32.mxu0 0.0
    %7209 = vmatmul.mubr.f32.gmra.mxu0 %v1224
    %v7210 = vpop.f32.mrf.mxu0
    %v7211 = vadd.f32 0.0, %v7210
    %v7212 = vpop.f32.mrf.mxu0
    %7213 = vmatprep.mubr.f32.mxu0 0.0
    %7214 = vmatmul.mubr.f32.gmra.mxu0 %v1227
    %v7215 = vpop.f32.mrf.mxu0
    %v7216 = vadd.f32 0.0, %v7215
    %v7217 = vpop.f32.mrf.mxu0
    %7218 = vdwg.mxu0
    %v7219 = vmul.f32 %v3567, %v7201
    %v7220 = vmul.f32 %v3568, %v7206
    %v7221 = vmul.f32 %v3569, %v7211
    %v7222 = vmul.f32 %v3570, %v7216
    %v7223 = vsel %vm994, %v7219, 0.0
    %7224 = vadd.xlane.f32.xlu0 %v7223
    %v7225 = vpop.xlane.xlu0 %7224
    %v7226 = vsel %vm994, %v7220, 0.0
    %7227 = vadd.xlane.f32.xlu0 %v7226
    %v7228 = vpop.xlane.xlu0 %7227
    %v7229 = vsel %vm994, %v7221, 0.0
    %7230 = vadd.xlane.f32.xlu0 %v7229
    %v7231 = vpop.xlane.xlu0 %7230
    %v7232 = vsel %vm994, %v7222, 0.0
    %7233 = vadd.xlane.f32.xlu0 %v7232
    %v7234 = vpop.xlane.xlu0 %7233
    %v7235 = vsel %vm6217, %v7225, -1e+30
    %v7236 = vsel %vm6218, %v7228, -1e+30
    %v7237 = vsel %vm6219, %v7231, -1e+30
    %v7238 = vsel %vm6220, %v7234, -1e+30
    %v7239 = vsel %vm1216, %v7235, -inf
    %v7240 = vsel %vm1216, %v7236, -inf
    %v7241 = vsel %vm1216, %v7237, -inf
    %v7242 = vsel %vm1216, %v7238, -inf
    %v7243 = vmax.f32 %v7239, %v7240
    %v7244 = vmax.f32 %v7241, %v7242
    %v7245 = vmax.f32 %v7243, %v7244
    %v7246 = vrot.slane %v7245, 4
    %v7247 = vmax.f32 %v7245, %v7246
    %v7248 = vrot.slane %v7247, 2
    %v7249 = vmax.f32 %v7247, %v7248
    %v7250 = vrot.slane %v7249, 1
    %v7251 = vmax.f32 %v7249, %v7250
    %v7252 = vmul.f32 %v963, %v7251
    %v7253 = vmul.f32 %v964, %v7251
    %v7254 = vmul.f32 %v965, %v7251
    %v7255 = vmul.f32 %v966, %v7251
    %v7256 = vsel %vm1216, %v7252, 0.0
    %7257 = vadd.xlane.f32.xlu0 %v7256
    %v7258 = vpop.xlane.xlu0 %7257
    %v7259 = vsel %vm1216, %v7253, 0.0
    %7260 = vadd.xlane.f32.xlu0 %v7259
    %v7261 = vpop.xlane.xlu0 %7260
    %v7262 = vsel %vm1216, %v7254, 0.0
    %7263 = vadd.xlane.f32.xlu0 %v7262
    %v7264 = vpop.xlane.xlu0 %7263
    %v7265 = vsel %vm1216, %v7255, 0.0
    %7266 = vadd.xlane.f32.xlu0 %v7265
    %v7267 = vpop.xlane.xlu0 %7266
    %v7268 = vsub.f32 %v7225, %v7258
    %v7269 = vsub.f32 %v7228, %v7261
    %v7270 = vsub.f32 %v7231, %v7264
    %v7271 = vsub.f32 %v7234, %v7267
    %v7272 = vmul.f32 %v7268, 1.442695
    %v7273 = vpow.pop %v7272
    %v7274 = vmul.f32 %v7269, 1.442695
    %v7275 = vpow.pop %v7274
    %v7276 = vmul.f32 %v7270, 1.442695
    %v7277 = vpow.pop %v7276
    %v7278 = vmul.f32 %v7271, 1.442695
    %v7279 = vpow.pop %v7278
    %v7280 = vmul.f32 %v963, %v7273
    %v7281 = vmul.f32 %v964, %v7275
    %v7282 = vmul.f32 %v965, %v7277
    %v7283 = vmul.f32 %v966, %v7279
    %v7284 = vsel %vm1216, %v7280, 0.0
    %v7285 = vsel %vm1216, %v7281, 0.0
    %v7286 = vadd.f32 %v7284, %v7285
    %v7287 = vsel %vm1216, %v7282, 0.0
    %v7288 = vadd.f32 %v7286, %v7287
    %v7289 = vsel %vm1216, %v7283, 0.0
    %v7290 = vadd.f32 %v7288, %v7289
    %v7291 = vrot.slane %v7290, 4
    %v7292 = vadd.f32 %v7290, %v7291
    %v7293 = vrot.slane %v7292, 2
    %v7294 = vadd.f32 %v7292, %v7293
    %v7295 = vrot.slane %v7294, 1
    %v7296 = vadd.f32 %v7294, %v7295
    %v7297 = vmul.f32 %v963, %v7296
    %v7298 = vmul.f32 %v964, %v7296
    %v7299 = vmul.f32 %v965, %v7296
    %v7300 = vmul.f32 %v966, %v7296
    %v7301 = vsel %vm1216, %v7297, 0.0
    %7302 = vadd.xlane.f32.xlu0 %v7301
    %v7303 = vpop.xlane.xlu0 %7302
    %v7304 = vsel %vm1216, %v7298, 0.0
    %7305 = vadd.xlane.f32.xlu0 %v7304
    %v7306 = vpop.xlane.xlu0 %7305
    %v7307 = vsel %vm1216, %v7299, 0.0
    %7308 = vadd.xlane.f32.xlu0 %v7307
    %v7309 = vpop.xlane.xlu0 %7308
    %v7310 = vsel %vm1216, %v7300, 0.0
    %7311 = vadd.xlane.f32.xlu0 %v7310
    %v7312 = vpop.xlane.xlu0 %7311
    %v7313 = vrcp.pop %v7303
    %v7314 = vmul.f32 %v7273, %v7313
    %v7315 = vrcp.pop %v7306
    %v7316 = vmul.f32 %v7275, %v7315
    %v7317 = vrcp.pop %v7309
    %v7318 = vmul.f32 %v7277, %v7317
    %v7319 = vrcp.pop %v7312
    %v7320 = vmul.f32 %v7279, %v7319
    %v7321 = vmul.f32 %v7314, %v3567
    %v7322 = vmul.f32 %v7316, %v3568
    %v7323 = vmul.f32 %v7318, %v3569
    %v7324 = vmul.f32 %v7320, %v3570
    %7325 = vmatprep.subr.mxu0 0.0
    %7326 = vmatpush1.msra.mxu0 0.0
    %7327 = vmatprep.subr.mxu0 0.0
    %7328 = vmatpush1.msra.mxu0 0.0
    %7329 = vmatprep.subr.mxu0 0.0
    %7330 = vmatpush1.msra.mxu0 0.0
    %7331 = vmatprep.subr.mxu0 0.0
    %7332 = vmatpush1.msra.mxu0 0.0
    %7333 = vmatprep.subr.mxu0 0.0
    %7334 = vmatpush1.msra.mxu0 0.0
    %7335 = vmatprep.subr.mxu0 0.0
    %7336 = vmatpush1.msra.mxu0 0.0
    %7337 = vmatprep.subr.mxu0 0.0
    %7338 = vmatpush1.msra.mxu0 0.0
    %7339 = vmatprep.subr.mxu0 0.0
    %7340 = vmatpush1.msra.mxu0 0.0
    %7341 = vmatprep.subr.mxu0 0.0
    %7342 = vmatpush1.msra.mxu0 0.0
    %7343 = vmatprep.subr.mxu0 0.0
    %7344 = vmatpush1.msra.mxu0 0.0
    %7345 = vmatprep.subr.mxu0 0.0
    %7346 = vmatpush1.msra.mxu0 0.0
    %7347 = vmatprep.subr.mxu0 0.0
    %7348 = vmatpush1.msra.mxu0 0.0
    %7349 = vmatprep.subr.mxu0 0.0
    %7350 = vmatpush1.msra.mxu0 %v7324
    %7351 = vmatprep.subr.mxu0 0.0
    %7352 = vmatpush1.msra.mxu0 %v7323
    %7353 = vmatprep.subr.mxu0 0.0
    %7354 = vmatpush1.msra.mxu0 %v7322
    %7355 = vmatprep.subr.mxu0 0.0
    %7356 = vmatpush1.msra.mxu0 %v7321
    %7357 = vmatprep.subr.mxu0 0.0
    %7358 = vmatpush2.msra.mxu0 0.0
    %7359 = vmatprep.subr.mxu0 0.0
    %7360 = vmatpush2.msra.mxu0 0.0
    %7361 = vmatprep.subr.mxu0 0.0
    %7362 = vmatpush2.msra.mxu0 0.0
    %7363 = vmatprep.subr.mxu0 0.0
    %7364 = vmatpush2.msra.mxu0 0.0
    %7365 = vmatprep.subr.mxu0 0.0
    %7366 = vmatpush2.msra.mxu0 0.0
    %7367 = vmatprep.subr.mxu0 0.0
    %7368 = vmatpush2.msra.mxu0 0.0
    %7369 = vmatprep.subr.mxu0 0.0
    %7370 = vmatpush2.msra.mxu0 0.0
    %7371 = vmatprep.subr.mxu0 0.0
    %7372 = vmatpush2.msra.mxu0 0.0
    %7373 = vmatprep.subr.mxu0 0.0
    %7374 = vmatpush2.msra.mxu0 0.0
    %7375 = vmatprep.subr.mxu0 0.0
    %7376 = vmatpush2.msra.mxu0 0.0
    %7377 = vmatprep.subr.mxu0 0.0
    %7378 = vmatpush2.msra.mxu0 0.0
    %7379 = vmatprep.subr.mxu0 0.0
    %7380 = vmatpush2.msra.mxu0 0.0
    %7381 = vmatprep.subr.mxu0 0.0
    %7382 = vmatpush2.msra.mxu0 0.0
    %7383 = vmatprep.subr.mxu0 0.0
    %7384 = vmatpush2.msra.mxu0 0.0
    %7385 = vmatprep.subr.mxu0 0.0
    %7386 = vmatpush2.msra.mxu0 0.0
    %7387 = vmatprep.subr.mxu0 0.0
    %7388 = vmatpush2.msra.mxu0 0.0
    %7389 = vmatprep.mubr.f32.mxu0 0.0
    %7390 = vmatmul.mubr.f32.gmra.mxu0 %v2413
    %v7391 = vpop.f32.mrf.mxu0
    %v7392 = vadd.f32 0.0, %v7391
    %v7393 = vpop.f32.mrf.mxu0
    %7394 = vdwg.mxu0
    %v7396 = vsel %vm994, %v5866, 0
    %7398 = vmatprep.subr.mxu0 0.0
    %7399 = vmatpush1.msra.mxu0 0.0
    %7400 = vmatprep.subr.mxu0 0.0
    %7401 = vmatpush1.msra.mxu0 0.0
    %7402 = vmatprep.subr.mxu0 0.0
    %7403 = vmatpush1.msra.mxu0 0.0
    %7404 = vmatprep.subr.mxu0 0.0
    %7405 = vmatpush1.msra.mxu0 0.0
    %7406 = vmatprep.subr.mxu0 0.0
    %7407 = vmatpush1.msra.mxu0 0.0
    %7408 = vmatprep.subr.mxu0 0.0
    %7409 = vmatpush1.msra.mxu0 0.0
    %7410 = vmatprep.subr.mxu0 0.0
    %7411 = vmatpush1.msra.mxu0 0.0
    %7412 = vmatprep.subr.mxu0 0.0
    %7413 = vmatpush1.msra.mxu0 0.0
    %7414 = vmatprep.subr.mxu0 0.0
    %7415 = vmatpush1.msra.mxu0 0.0
    %7416 = vmatprep.subr.mxu0 0.0
    %7417 = vmatpush1.msra.mxu0 0.0
    %7418 = vmatprep.subr.mxu0 0.0
    %7419 = vmatpush1.msra.mxu0 0.0
    %7420 = vmatprep.subr.mxu0 0.0
    %7421 = vmatpush1.msra.mxu0 0.0
    %7422 = vmatprep.subr.mxu0 0.0
    %7423 = vmatpush1.msra.mxu0 %v722
    %7424 = vmatprep.subr.mxu0 0.0
    %7425 = vmatpush1.msra.mxu0 %v721
    %7426 = vmatprep.subr.mxu0 0.0
    %7427 = vmatpush1.msra.mxu0 %v720
    %7428 = vmatprep.subr.mxu0 0.0
    %7429 = vmatpush1.msra.mxu0 %v719
    %7430 = vmatprep.subr.mxu0 0.0
    %7431 = vmatpush2.msra.mxu0 0.0
    %7432 = vmatprep.subr.mxu0 0.0
    %7433 = vmatpush2.msra.mxu0 0.0
    %7434 = vmatprep.subr.mxu0 0.0
    %7435 = vmatpush2.msra.mxu0 0.0
    %7436 = vmatprep.subr.mxu0 0.0
    %7437 = vmatpush2.msra.mxu0 0.0
    %7438 = vmatprep.subr.mxu0 0.0
    %7439 = vmatpush2.msra.mxu0 0.0
    %7440 = vmatprep.subr.mxu0 0.0
    %7441 = vmatpush2.msra.mxu0 0.0
    %7442 = vmatprep.subr.mxu0 0.0
    %7443 = vmatpush2.msra.mxu0 0.0
    %7444 = vmatprep.subr.mxu0 0.0
    %7445 = vmatpush2.msra.mxu0 0.0
    %7446 = vmatprep.subr.mxu0 0.0
    %7447 = vmatpush2.msra.mxu0 0.0
    %7448 = vmatprep.subr.mxu0 0.0
    %7449 = vmatpush2.msra.mxu0 0.0
    %7450 = vmatprep.subr.mxu0 0.0
    %7451 = vmatpush2.msra.mxu0 0.0
    %7452 = vmatprep.subr.mxu0 0.0
    %7453 = vmatpush2.msra.mxu0 0.0
    %7454 = vmatprep.subr.mxu0 0.0
    %7455 = vmatpush2.msra.mxu0 0.0
    %7456 = vmatprep.subr.mxu0 0.0
    %7457 = vmatpush2.msra.mxu0 0.0
    %7458 = vmatprep.subr.mxu0 0.0
    %7459 = vmatpush2.msra.mxu0 0.0
    %7460 = vmatprep.subr.mxu0 0.0
    %7461 = vmatpush2.msra.mxu0 0.0
    %7462 = vmatprep.mubr.f32.mxu0 0.0
    %7463 = vmatmul.mubr.f32.gmra.mxu0 %v7396
    %v7464 = vpop.f32.mrf.mxu0
    %v7465 = vadd.f32 0.0, %v7464
    %v7466 = vpop.f32.mrf.mxu0
    %7467 = vdwg.mxu0
    %v7468 = vsel %vm994, %v5663, 0
    %7470 = vmatprep.subr.mxu0 0.0
    %7471 = vmatpush1.msra.mxu0 0.0
    %7472 = vmatprep.subr.mxu0 0.0
    %7473 = vmatpush1.msra.mxu0 0.0
    %7474 = vmatprep.subr.mxu0 0.0
    %7475 = vmatpush1.msra.mxu0 0.0
    %7476 = vmatprep.subr.mxu0 0.0
    %7477 = vmatpush1.msra.mxu0 0.0
    %7478 = vmatprep.subr.mxu0 0.0
    %7479 = vmatpush1.msra.mxu0 0.0
    %7480 = vmatprep.subr.mxu0 0.0
    %7481 = vmatpush1.msra.mxu0 0.0
    %7482 = vmatprep.subr.mxu0 0.0
    %7483 = vmatpush1.msra.mxu0 0.0
    %7484 = vmatprep.subr.mxu0 0.0
    %7485 = vmatpush1.msra.mxu0 0.0
    %7486 = vmatprep.subr.mxu0 0.0
    %7487 = vmatpush1.msra.mxu0 0.0
    %7488 = vmatprep.subr.mxu0 0.0
    %7489 = vmatpush1.msra.mxu0 0.0
    %7490 = vmatprep.subr.mxu0 0.0
    %7491 = vmatpush1.msra.mxu0 0.0
    %7492 = vmatprep.subr.mxu0 0.0
    %7493 = vmatpush1.msra.mxu0 0.0
    %7494 = vmatprep.subr.mxu0 0.0
    %7495 = vmatpush1.msra.mxu0 %v718
    %7496 = vmatprep.subr.mxu0 0.0
    %7497 = vmatpush1.msra.mxu0 %v717
    %7498 = vmatprep.subr.mxu0 0.0
    %7499 = vmatpush1.msra.mxu0 %v716
    %7500 = vmatprep.subr.mxu0 0.0
    %7501 = vmatpush1.msra.mxu0 %v715
    %7502 = vmatprep.subr.mxu0 0.0
    %7503 = vmatpush2.msra.mxu0 0.0
    %7504 = vmatprep.subr.mxu0 0.0
    %7505 = vmatpush2.msra.mxu0 0.0
    %7506 = vmatprep.subr.mxu0 0.0
    %7507 = vmatpush2.msra.mxu0 0.0
    %7508 = vmatprep.subr.mxu0 0.0
    %7509 = vmatpush2.msra.mxu0 0.0
    %7510 = vmatprep.subr.mxu0 0.0
    %7511 = vmatpush2.msra.mxu0 0.0
    %7512 = vmatprep.subr.mxu0 0.0
    %7513 = vmatpush2.msra.mxu0 0.0
    %7514 = vmatprep.subr.mxu0 0.0
    %7515 = vmatpush2.msra.mxu0 0.0
    %7516 = vmatprep.subr.mxu0 0.0
    %7517 = vmatpush2.msra.mxu0 0.0
    %7518 = vmatprep.subr.mxu0 0.0
    %7519 = vmatpush2.msra.mxu0 0.0
    %7520 = vmatprep.subr.mxu0 0.0
    %7521 = vmatpush2.msra.mxu0 0.0
    %7522 = vmatprep.subr.mxu0 0.0
    %7523 = vmatpush2.msra.mxu0 0.0
    %7524 = vmatprep.subr.mxu0 0.0
    %7525 = vmatpush2.msra.mxu0 0.0
    %7526 = vmatprep.subr.mxu0 0.0
    %7527 = vmatpush2.msra.mxu0 0.0
    %7528 = vmatprep.subr.mxu0 0.0
    %7529 = vmatpush2.msra.mxu0 0.0
    %7530 = vmatprep.subr.mxu0 0.0
    %7531 = vmatpush2.msra.mxu0 0.0
    %7532 = vmatprep.subr.mxu0 0.0
    %7533 = vmatpush2.msra.mxu0 0.0
    %7534 = vmatprep.mubr.f32.mxu0 0.0
    %7535 = vmatmul.mubr.f32.gmra.mxu0 %v7468
    %v7536 = vpop.f32.mrf.mxu0
    %v7537 = vadd.f32 %v7465, %v7536
    %v7538 = vpop.f32.mrf.mxu0
    %7539 = vdwg.mxu0
    %v7540 = vsel %vm994, %v7131, 0
    %7542 = vmatprep.subr.mxu0 0.0
    %7543 = vmatpush1.msra.mxu0 0.0
    %7544 = vmatprep.subr.mxu0 0.0
    %7545 = vmatpush1.msra.mxu0 0.0
    %7546 = vmatprep.subr.mxu0 0.0
    %7547 = vmatpush1.msra.mxu0 0.0
    %7548 = vmatprep.subr.mxu0 0.0
    %7549 = vmatpush1.msra.mxu0 0.0
    %7550 = vmatprep.subr.mxu0 0.0
    %7551 = vmatpush1.msra.mxu0 0.0
    %7552 = vmatprep.subr.mxu0 0.0
    %7553 = vmatpush1.msra.mxu0 0.0
    %7554 = vmatprep.subr.mxu0 0.0
    %7555 = vmatpush1.msra.mxu0 0.0
    %7556 = vmatprep.subr.mxu0 0.0
    %7557 = vmatpush1.msra.mxu0 0.0
    %7558 = vmatprep.subr.mxu0 0.0
    %7559 = vmatpush1.msra.mxu0 0.0
    %7560 = vmatprep.subr.mxu0 0.0
    %7561 = vmatpush1.msra.mxu0 0.0
    %7562 = vmatprep.subr.mxu0 0.0
    %7563 = vmatpush1.msra.mxu0 0.0
    %7564 = vmatprep.subr.mxu0 0.0
    %7565 = vmatpush1.msra.mxu0 0.0
    %7566 = vmatprep.subr.mxu0 0.0
    %7567 = vmatpush1.msra.mxu0 %v726
    %7568 = vmatprep.subr.mxu0 0.0
    %7569 = vmatpush1.msra.mxu0 %v725
    %7570 = vmatprep.subr.mxu0 0.0
    %7571 = vmatpush1.msra.mxu0 %v724
    %7572 = vmatprep.subr.mxu0 0.0
    %7573 = vmatpush1.msra.mxu0 %v723
    %7574 = vmatprep.subr.mxu0 0.0
    %7575 = vmatpush2.msra.mxu0 0.0
    %7576 = vmatprep.subr.mxu0 0.0
    %7577 = vmatpush2.msra.mxu0 0.0
    %7578 = vmatprep.subr.mxu0 0.0
    %7579 = vmatpush2.msra.mxu0 0.0
    %7580 = vmatprep.subr.mxu0 0.0
    %7581 = vmatpush2.msra.mxu0 0.0
    %7582 = vmatprep.subr.mxu0 0.0
    %7583 = vmatpush2.msra.mxu0 0.0
    %7584 = vmatprep.subr.mxu0 0.0
    %7585 = vmatpush2.msra.mxu0 0.0
    %7586 = vmatprep.subr.mxu0 0.0
    %7587 = vmatpush2.msra.mxu0 0.0
    %7588 = vmatprep.subr.mxu0 0.0
    %7589 = vmatpush2.msra.mxu0 0.0
    %7590 = vmatprep.subr.mxu0 0.0
    %7591 = vmatpush2.msra.mxu0 0.0
    %7592 = vmatprep.subr.mxu0 0.0
    %7593 = vmatpush2.msra.mxu0 0.0
    %7594 = vmatprep.subr.mxu0 0.0
    %7595 = vmatpush2.msra.mxu0 0.0
    %7596 = vmatprep.subr.mxu0 0.0
    %7597 = vmatpush2.msra.mxu0 0.0
    %7598 = vmatprep.subr.mxu0 0.0
    %7599 = vmatpush2.msra.mxu0 0.0
    %7600 = vmatprep.subr.mxu0 0.0
    %7601 = vmatpush2.msra.mxu0 0.0
    %7602 = vmatprep.subr.mxu0 0.0
    %7603 = vmatpush2.msra.mxu0 0.0
    %7604 = vmatprep.subr.mxu0 0.0
    %7605 = vmatpush2.msra.mxu0 0.0
    %7606 = vmatprep.mubr.f32.mxu0 0.0
    %7607 = vmatmul.mubr.f32.gmra.mxu0 %v7540
    %v7608 = vpop.f32.mrf.mxu0
    %v7609 = vadd.f32 0.0, %v7608
    %v7610 = vpop.f32.mrf.mxu0
    %7611 = vdwg.mxu0
    %v7612 = vadd.f32 %v7537, %v7609
    %v7614 = vsel %vm994, %v7392, 0
    %7616 = vmatprep.subr.mxu0 0.0
    %7617 = vmatpush1.msra.mxu0 0.0
    %7618 = vmatprep.subr.mxu0 0.0
    %7619 = vmatpush1.msra.mxu0 0.0
    %7620 = vmatprep.subr.mxu0 0.0
    %7621 = vmatpush1.msra.mxu0 0.0
    %7622 = vmatprep.subr.mxu0 0.0
    %7623 = vmatpush1.msra.mxu0 0.0
    %7624 = vmatprep.subr.mxu0 0.0
    %7625 = vmatpush1.msra.mxu0 0.0
    %7626 = vmatprep.subr.mxu0 0.0
    %7627 = vmatpush1.msra.mxu0 0.0
    %7628 = vmatprep.subr.mxu0 0.0
    %7629 = vmatpush1.msra.mxu0 0.0
    %7630 = vmatprep.subr.mxu0 0.0
    %7631 = vmatpush1.msra.mxu0 0.0
    %7632 = vmatprep.subr.mxu0 0.0
    %7633 = vmatpush1.msra.mxu0 0.0
    %7634 = vmatprep.subr.mxu0 0.0
    %7635 = vmatpush1.msra.mxu0 0.0
    %7636 = vmatprep.subr.mxu0 0.0
    %7637 = vmatpush1.msra.mxu0 0.0
    %7638 = vmatprep.subr.mxu0 0.0
    %7639 = vmatpush1.msra.mxu0 0.0
    %7640 = vmatprep.subr.mxu0 0.0
    %7641 = vmatpush1.msra.mxu0 %v730
    %7642 = vmatprep.subr.mxu0 0.0
    %7643 = vmatpush1.msra.mxu0 %v729
    %7644 = vmatprep.subr.mxu0 0.0
    %7645 = vmatpush1.msra.mxu0 %v728
    %7646 = vmatprep.subr.mxu0 0.0
    %7647 = vmatpush1.msra.mxu0 %v727
    %7648 = vmatprep.subr.mxu0 0.0
    %7649 = vmatpush2.msra.mxu0 0.0
    %7650 = vmatprep.subr.mxu0 0.0
    %7651 = vmatpush2.msra.mxu0 0.0
    %7652 = vmatprep.subr.mxu0 0.0
    %7653 = vmatpush2.msra.mxu0 0.0
    %7654 = vmatprep.subr.mxu0 0.0
    %7655 = vmatpush2.msra.mxu0 0.0
    %7656 = vmatprep.subr.mxu0 0.0
    %7657 = vmatpush2.msra.mxu0 0.0
    %7658 = vmatprep.subr.mxu0 0.0
    %7659 = vmatpush2.msra.mxu0 0.0
    %7660 = vmatprep.subr.mxu0 0.0
    %7661 = vmatpush2.msra.mxu0 0.0
    %7662 = vmatprep.subr.mxu0 0.0
    %7663 = vmatpush2.msra.mxu0 0.0
    %7664 = vmatprep.subr.mxu0 0.0
    %7665 = vmatpush2.msra.mxu0 0.0
    %7666 = vmatprep.subr.mxu0 0.0
    %7667 = vmatpush2.msra.mxu0 0.0
    %7668 = vmatprep.subr.mxu0 0.0
    %7669 = vmatpush2.msra.mxu0 0.0
    %7670 = vmatprep.subr.mxu0 0.0
    %7671 = vmatpush2.msra.mxu0 0.0
    %7672 = vmatprep.subr.mxu0 0.0
    %7673 = vmatpush2.msra.mxu0 0.0
    %7674 = vmatprep.subr.mxu0 0.0
    %7675 = vmatpush2.msra.mxu0 0.0
    %7676 = vmatprep.subr.mxu0 0.0
    %7677 = vmatpush2.msra.mxu0 0.0
    %7678 = vmatprep.subr.mxu0 0.0
    %7679 = vmatpush2.msra.mxu0 0.0
    %7680 = vmatprep.mubr.f32.mxu0 0.0
    %7681 = vmatmul.mubr.f32.gmra.mxu0 %v7614
    %v7682 = vpop.f32.mrf.mxu0
    %v7683 = vadd.f32 0.0, %v7682
    %v7684 = vpop.f32.mrf.mxu0
    %7685 = vdwg.mxu0
    %v7686 = vadd.f32 %v7612, %v7683
    %v7688 = vsel %vm994, %v4515, 0
    %7690 = vmatprep.subr.mxu0 0.0
    %7691 = vmatpush1.msra.mxu0 0.0
    %7692 = vmatprep.subr.mxu0 0.0
    %7693 = vmatpush1.msra.mxu0 0.0
    %7694 = vmatprep.subr.mxu0 0.0
    %7695 = vmatpush1.msra.mxu0 0.0
    %7696 = vmatprep.subr.mxu0 0.0
    %7697 = vmatpush1.msra.mxu0 0.0
    %7698 = vmatprep.subr.mxu0 0.0
    %7699 = vmatpush1.msra.mxu0 0.0
    %7700 = vmatprep.subr.mxu0 0.0
    %7701 = vmatpush1.msra.mxu0 0.0
    %7702 = vmatprep.subr.mxu0 0.0
    %7703 = vmatpush1.msra.mxu0 0.0
    %7704 = vmatprep.subr.mxu0 0.0
    %7705 = vmatpush1.msra.mxu0 0.0
    %7706 = vmatprep.subr.mxu0 0.0
    %7707 = vmatpush1.msra.mxu0 0.0
    %7708 = vmatprep.subr.mxu0 0.0
    %7709 = vmatpush1.msra.mxu0 0.0
    %7710 = vmatprep.subr.mxu0 0.0
    %7711 = vmatpush1.msra.mxu0 0.0
    %7712 = vmatprep.subr.mxu0 0.0
    %7713 = vmatpush1.msra.mxu0 0.0
    %7714 = vmatprep.subr.mxu0 0.0
    %7715 = vmatpush1.msra.mxu0 %v734
    %7716 = vmatprep.subr.mxu0 0.0
    %7717 = vmatpush1.msra.mxu0 %v733
    %7718 = vmatprep.subr.mxu0 0.0
    %7719 = vmatpush1.msra.mxu0 %v732
    %7720 = vmatprep.subr.mxu0 0.0
    %7721 = vmatpush1.msra.mxu0 %v731
    %7722 = vmatprep.subr.mxu0 0.0
    %7723 = vmatpush2.msra.mxu0 0.0
    %7724 = vmatprep.subr.mxu0 0.0
    %7725 = vmatpush2.msra.mxu0 0.0
    %7726 = vmatprep.subr.mxu0 0.0
    %7727 = vmatpush2.msra.mxu0 0.0
    %7728 = vmatprep.subr.mxu0 0.0
    %7729 = vmatpush2.msra.mxu0 0.0
    %7730 = vmatprep.subr.mxu0 0.0
    %7731 = vmatpush2.msra.mxu0 0.0
    %7732 = vmatprep.subr.mxu0 0.0
    %7733 = vmatpush2.msra.mxu0 0.0
    %7734 = vmatprep.subr.mxu0 0.0
    %7735 = vmatpush2.msra.mxu0 0.0
    %7736 = vmatprep.subr.mxu0 0.0
    %7737 = vmatpush2.msra.mxu0 0.0
    %7738 = vmatprep.subr.mxu0 0.0
    %7739 = vmatpush2.msra.mxu0 0.0
    %7740 = vmatprep.subr.mxu0 0.0
    %7741 = vmatpush2.msra.mxu0 0.0
    %7742 = vmatprep.subr.mxu0 0.0
    %7743 = vmatpush2.msra.mxu0 0.0
    %7744 = vmatprep.subr.mxu0 0.0
    %7745 = vmatpush2.msra.mxu0 0.0
    %7746 = vmatprep.subr.mxu0 0.0
    %7747 = vmatpush2.msra.mxu0 0.0
    %7748 = vmatprep.subr.mxu0 0.0
    %7749 = vmatpush2.msra.mxu0 0.0
    %7750 = vmatprep.subr.mxu0 0.0
    %7751 = vmatpush2.msra.mxu0 0.0
    %7752 = vmatprep.subr.mxu0 0.0
    %7753 = vmatpush2.msra.mxu0 0.0
    %7754 = vmatprep.mubr.f32.mxu0 0.0
    %7755 = vmatmul.mubr.f32.gmra.mxu0 %v7688
    %v7756 = vpop.f32.mrf.mxu0
    %v7757 = vadd.f32 0.0, %v7756
    %v7758 = vpop.f32.mrf.mxu0
    %7759 = vdwg.mxu0
    %v7760 = vadd.f32 %v7686, %v7757
    %v7762 = vlaneseq
    %v7763 = vshrl.u32 %v7762, 7
    %v7764 = vsub.s32 0, %v7763
    %v7765 = vrot.slane %v735, %v7764
    %v7767 = vadd.f32 %v7760, %v7765
    %v7768 = vmax.f32 %v7767, 0.0
    %v7770 = vlaneseq
    %v7771 = vshrl.u32 %v7770, 7
    %v7772 = vsub.s32 0, %v7771
    %v7773 = vrot.slane %v740, %v7772
    %v7776 = vsel %vm994, %v7768, 0
    %7778 = vmatprep.subr.mxu0 0.0
    %7779 = vmatpush1.msra.mxu0 0.0
    %7780 = vmatprep.subr.mxu0 0.0
    %7781 = vmatpush1.msra.mxu0 0.0
    %7782 = vmatprep.subr.mxu0 0.0
    %7783 = vmatpush1.msra.mxu0 0.0
    %7784 = vmatprep.subr.mxu0 0.0
    %7785 = vmatpush1.msra.mxu0 0.0
    %7786 = vmatprep.subr.mxu0 0.0
    %7787 = vmatpush1.msra.mxu0 0.0
    %7788 = vmatprep.subr.mxu0 0.0
    %7789 = vmatpush1.msra.mxu0 0.0
    %7790 = vmatprep.subr.mxu0 0.0
    %7791 = vmatpush1.msra.mxu0 0.0
    %7792 = vmatprep.subr.mxu0 0.0
    %7793 = vmatpush1.msra.mxu0 0.0
    %7794 = vmatprep.subr.mxu0 0.0
    %7795 = vmatpush1.msra.mxu0 0.0
    %7796 = vmatprep.subr.mxu0 0.0
    %7797 = vmatpush1.msra.mxu0 0.0
    %7798 = vmatprep.subr.mxu0 0.0
    %7799 = vmatpush1.msra.mxu0 0.0
    %7800 = vmatprep.subr.mxu0 0.0
    %7801 = vmatpush1.msra.mxu0 0.0
    %7802 = vmatprep.subr.mxu0 0.0
    %7803 = vmatpush1.msra.mxu0 %v739
    %7804 = vmatprep.subr.mxu0 0.0
    %7805 = vmatpush1.msra.mxu0 %v738
    %7806 = vmatprep.subr.mxu0 0.0
    %7807 = vmatpush1.msra.mxu0 %v737
    %7808 = vmatprep.subr.mxu0 0.0
    %7809 = vmatpush1.msra.mxu0 %v736
    %7810 = vmatprep.subr.mxu0 0.0
    %7811 = vmatpush2.msra.mxu0 0.0
    %7812 = vmatprep.subr.mxu0 0.0
    %7813 = vmatpush2.msra.mxu0 0.0
    %7814 = vmatprep.subr.mxu0 0.0
    %7815 = vmatpush2.msra.mxu0 0.0
    %7816 = vmatprep.subr.mxu0 0.0
    %7817 = vmatpush2.msra.mxu0 0.0
    %7818 = vmatprep.subr.mxu0 0.0
    %7819 = vmatpush2.msra.mxu0 0.0
    %7820 = vmatprep.subr.mxu0 0.0
    %7821 = vmatpush2.msra.mxu0 0.0
    %7822 = vmatprep.subr.mxu0 0.0
    %7823 = vmatpush2.msra.mxu0 0.0
    %7824 = vmatprep.subr.mxu0 0.0
    %7825 = vmatpush2.msra.mxu0 0.0
    %7826 = vmatprep.subr.mxu0 0.0
    %7827 = vmatpush2.msra.mxu0 0.0
    %7828 = vmatprep.subr.mxu0 0.0
    %7829 = vmatpush2.msra.mxu0 0.0
    %7830 = vmatprep.subr.mxu0 0.0
    %7831 = vmatpush2.msra.mxu0 0.0
    %7832 = vmatprep.subr.mxu0 0.0
    %7833 = vmatpush2.msra.mxu0 0.0
    %7834 = vmatprep.subr.mxu0 0.0
    %7835 = vmatpush2.msra.mxu0 0.0
    %7836 = vmatprep.subr.mxu0 0.0
    %7837 = vmatpush2.msra.mxu0 0.0
    %7838 = vmatprep.subr.mxu0 0.0
    %7839 = vmatpush2.msra.mxu0 0.0
    %7840 = vmatprep.subr.mxu0 0.0
    %7841 = vmatpush2.msra.mxu0 0.0
    %7842 = vmatprep.mubr.f32.mxu0 0.0
    %7843 = vmatmul.mubr.f32.gmra.mxu0 %v7776
    %v7844 = vpop.f32.mrf.mxu0
    %v7845 = vadd.f32 %v7773, %v7844
    %v7846 = vpop.f32.mrf.mxu0
    %7847 = vdwg.mxu0
    %v7848 = vmax.f32 %v7845, 0.0
    %v7850 = vlaneseq
    %v7851 = vshrl.u32 %v7850, 7
    %v7852 = vsub.s32 0, %v7851
    %v7853 = vrot.slane %v743, %v7852
    %v7856 = vsel %vm1021, %v7848, 0
    %7858 = vmatprep.subr.mxu0 0.0
    %7859 = vmatpush1.msra.mxu0 0.0
    %7860 = vmatprep.subr.mxu0 0.0
    %7861 = vmatpush1.msra.mxu0 0.0
    %7862 = vmatprep.subr.mxu0 0.0
    %7863 = vmatpush1.msra.mxu0 0.0
    %7864 = vmatprep.subr.mxu0 0.0
    %7865 = vmatpush1.msra.mxu0 0.0
    %7866 = vmatprep.subr.mxu0 0.0
    %7867 = vmatpush1.msra.mxu0 0.0
    %7868 = vmatprep.subr.mxu0 0.0
    %7869 = vmatpush1.msra.mxu0 0.0
    %7870 = vmatprep.subr.mxu0 0.0
    %7871 = vmatpush1.msra.mxu0 0.0
    %7872 = vmatprep.subr.mxu0 0.0
    %7873 = vmatpush1.msra.mxu0 0.0
    %7874 = vmatprep.subr.mxu0 0.0
    %7875 = vmatpush1.msra.mxu0 0.0
    %7876 = vmatprep.subr.mxu0 0.0
    %7877 = vmatpush1.msra.mxu0 0.0
    %7878 = vmatprep.subr.mxu0 0.0
    %7879 = vmatpush1.msra.mxu0 0.0
    %7880 = vmatprep.subr.mxu0 0.0
    %7881 = vmatpush1.msra.mxu0 0.0
    %7882 = vmatprep.subr.mxu0 0.0
    %7883 = vmatpush1.msra.mxu0 0.0
    %7884 = vmatprep.subr.mxu0 0.0
    %7885 = vmatpush1.msra.mxu0 0.0
    %7886 = vmatprep.subr.mxu0 0.0
    %7887 = vmatpush1.msra.mxu0 %v742
    %7888 = vmatprep.subr.mxu0 0.0
    %7889 = vmatpush1.msra.mxu0 %v741
    %7890 = vmatprep.subr.mxu0 0.0
    %7891 = vmatpush2.msra.mxu0 0.0
    %7892 = vmatprep.subr.mxu0 0.0
    %7893 = vmatpush2.msra.mxu0 0.0
    %7894 = vmatprep.subr.mxu0 0.0
    %7895 = vmatpush2.msra.mxu0 0.0
    %7896 = vmatprep.subr.mxu0 0.0
    %7897 = vmatpush2.msra.mxu0 0.0
    %7898 = vmatprep.subr.mxu0 0.0
    %7899 = vmatpush2.msra.mxu0 0.0
    %7900 = vmatprep.subr.mxu0 0.0
    %7901 = vmatpush2.msra.mxu0 0.0
    %7902 = vmatprep.subr.mxu0 0.0
    %7903 = vmatpush2.msra.mxu0 0.0
    %7904 = vmatprep.subr.mxu0 0.0
    %7905 = vmatpush2.msra.mxu0 0.0
    %7906 = vmatprep.subr.mxu0 0.0
    %7907 = vmatpush2.msra.mxu0 0.0
    %7908 = vmatprep.subr.mxu0 0.0
    %7909 = vmatpush2.msra.mxu0 0.0
    %7910 = vmatprep.subr.mxu0 0.0
    %7911 = vmatpush2.msra.mxu0 0.0
    %7912 = vmatprep.subr.mxu0 0.0
    %7913 = vmatpush2.msra.mxu0 0.0
    %7914 = vmatprep.subr.mxu0 0.0
    %7915 = vmatpush2.msra.mxu0 0.0
    %7916 = vmatprep.subr.mxu0 0.0
    %7917 = vmatpush2.msra.mxu0 0.0
    %7918 = vmatprep.subr.mxu0 0.0
    %7919 = vmatpush2.msra.mxu0 0.0
    %7920 = vmatprep.subr.mxu0 0.0
    %7921 = vmatpush2.msra.mxu0 0.0
    %7922 = vmatprep.mubr.f32.mxu0 0.0
    %7923 = vmatmul.mubr.f32.gmra.mxu0 %v7856
    %v7924 = vpop.f32.mrf.mxu0
    %v7925 = vadd.f32 %v7853, %v7924
    %v7926 = vpop.f32.mrf.mxu0
    %7927 = vdwg.mxu0
    %vm7928 = vcmask 1024
    %7929 = vst.msk [vmem:[%s137] sm:$0x3] %vm7928, %v7925
    // Predicated region
    $region354: #{megnet_forward_fn.1} parent=1 // pred_check
      _
    $region355: #{megnet_forward_fn.1} parent=1 // pred_check_branch
      %7931 = sbr.rel (0) target = $region357
    $region356: #{megnet_forward_fn.1} parent=1 // pred_region
      _
    $region357: #{megnet_forward_fn.1} parent=1 // pred_fallthru
      _
    // Predicated region
    $region358: #{megnet_forward_fn.1} parent=1 // pred_check
      _
    $region359: #{megnet_forward_fn.1} parent=1 // pred_check_branch
      %7933 = sbr.rel (0) target = $region361
    $region360: #{megnet_forward_fn.1} parent=1 // pred_region
      _
    $region361: #{megnet_forward_fn.1} parent=1 // pred_fallthru
      _
    %7934 = vsyncpa [#allocation4], 1
    %7935 = vsyncpa [#allocation6], 1
    %7936 = vsyncpa [#allocation9], 1
    %7937 = vsyncpa [#allocation12], 1
    %7938 = vsyncpa [#allocation15], 1
    %7939 = vsyncpa [#allocation18], 1
    %7940 = vsyncpa [#allocation21], 1
    %7941 = vsyncpa [#allocation24], 1
    %7942 = vsyncpa [#allocation27], 1
    %7943 = vsyncpa [#allocation30], 1
    %7944 = vsyncpa [#allocation33], 1

</llo_original>
